<compile_context>
chip_gen: v7x
topology: tpu7x:2x2x1
jax: 0.10.0
libtpu: 0.0.40
codegen_flags: <defaults>
</compile_context>

<pallas_src>
import math

import jax
import jax.numpy as jnp
from jax.experimental import pallas as pl
from jax.experimental.pallas import tpu as pltpu


def _round_up(x, m):
    return ((x + m - 1) // m) * m


def make_fcn_kernel(*, CI, CC, PC, Wp, Pf_pad, n_pix):
    """Kernel body for a fixed static configuration (all sizes Python ints)."""
    inv_p = 1.0 / float(n_pix)
    eps = 1e-5

    def kernel(img_ref, pos_ref, mask_ref, wconv_ref, wpos_ref, wout_ref,
               bng_ref, bnb_ref, cob_ref, out_ref):
        mask = mask_ref[...]                      # (1, Pf_pad), 1.0 on real pixels

        def bn_relu(x, col):
            # Training-mode BatchNorm (stats over the N*H*W real pixels, biased
            # variance) -> ReLU -> re-zero the padding ring / lane tail so the
            # result is a valid zero-padded input for the next 3x3 conv.
            # Conv biases are omitted: a bias feeding straight into BN cancels
            # exactly inside (x - mean).
            c = x.shape[0]
            g = bng_ref[0:c, col:col + 1]         # (c, 1)
            b = bnb_ref[0:c, col:col + 1]
            mean = jnp.sum(x * mask, axis=1, keepdims=True) * inv_p
            d = (x - mean) * mask
            var = jnp.sum(d * d, axis=1, keepdims=True) * inv_p
            y = (x - mean) * jax.lax.rsqrt(var + eps) * g + b
            return jnp.maximum(y, 0.0) * mask

        def conv3x3(x, w_col):
            # 3x3 / stride 1 / pad 1 conv as ONE im2col matmul.
            #   x:     (cin, Pf_pad) f32, zero on the padding ring,
            #   w_col: (CC, 9*cin)   bf16, tap-major / channel-minor.
            # A spatial tap (dy, dx) is a lane shift of (dy-1)*(W+2)+(dx-1) in
            # the flat padded layout; the circular wrap of roll only ever
            # touches padding-ring outputs, which are masked / discarded.
            taps = []
            for dy in range(3):
                for dx in range(3):
                    delta = (dy - 1) * Wp + (dx - 1)
                    if delta == 0:
                        taps.append(x)
                    else:
                        taps.append(pltpu.roll(x, (-delta) % Pf_pad, 1))
            xcol = jnp.concatenate(taps, axis=0).astype(jnp.bfloat16)
            return jnp.dot(w_col, xcol, preferred_element_type=jnp.float32)

        def mm(w, x):                             # small 1x1 "convs" (f32 MXU)
            return jnp.dot(w, x, preferred_element_type=jnp.float32)

        # ---------------- position branch (all 1x1 convs) --------------------
        pos = pos_ref[...]                        # (PC, Pf_pad)
        f = mm(wpos_ref[0], pos)                  # fourier features
        # pos_mlp1(cat(sin, cos)) folded into two weight halves (no concat).
        h = mm(wpos_ref[1], jnp.sin(f)) + mm(wpos_ref[2], jnp.cos(f))
        h = bn_relu(h, 0)
        h = bn_relu(mm(wpos_ref[3], h), 1)
        pos_feat = bn_relu(mm(wpos_ref[4], h), 2)  # (PC, Pf_pad)

        # ---------------- image branch: 4x (conv3x3 -> BN -> ReLU) -----------
        x = img_ref[...]                          # (CI, Pf_pad)
        x = bn_relu(conv3x3(x, wconv_ref[0][:, :9 * CI]), 3)
        x = bn_relu(conv3x3(x, wconv_ref[1][:, :9 * CC]), 4)
        x = bn_relu(conv3x3(x, wconv_ref[2][:, :9 * CC]), 5)
        x = bn_relu(conv3x3(x, wconv_ref[3][:, :9 * CC]), 6)

        # ---------------- conv5 on cat(image feats, position feats) ----------
        xcat = jnp.concatenate([x, pos_feat], axis=0)        # (CC+PC, Pf_pad)
        x = bn_relu(conv3x3(xcat, wconv_ref[4][:, :9 * (CC + PC)]), 7)

        # ---------------- 1x1 output conv + softmax over classes -------------
        scores = mm(wout_ref[...], x) + cob_ref[...]         # (NCLS, Pf_pad)
        m = jnp.max(scores, axis=0, keepdims=True)
        e = jnp.exp(scores - m)
        out_ref[...] = e * pl.reciprocal(jnp.sum(e, axis=0, keepdims=True),
                                         approx=True)

    return kernel


@jax.jit
def fcn_pallas(img_nchw, pos_nchw, params):
    """FCN forward pass. img_nchw: (B, C_in, H, W); pos_nchw: (B, 2, H, W).
    Returns (B, n_classes, H, W) class probabilities (softmax over channels)."""
    N, input_ch, H, W = img_nchw.shape
    conv_ch = params["conv1_w"].shape[-1]
    pos_ch = params["pos_fourier_w"].shape[-1]
    n_classes = params["conv_out_w"].shape[-1]

    CI = _round_up(input_ch, 8)           # channel counts padded to sublane tile
    CC = _round_up(conv_ch, 8)
    PC = _round_up(pos_ch, 8)
    Hp, Wp = H + 2, W + 2
    Pf = N * Hp * Wp                      # flat zero-padded spatial size
    Pf_pad = _round_up(Pf, 128)           # lane-dense padded width
    Kmax = 9 * (CC + PC)

    # ---- activations / mask in "CP" layout (channels x flat padded pixels) --
    def to_slab(x, c_pad):
        c = x.shape[1]
        xp = jnp.pad(x.astype(jnp.float32),
                     ((0, 0), (0, c_pad - c), (1, 1), (1, 1)))
        xp = jnp.transpose(xp, (1, 0, 2, 3)).reshape(c_pad, Pf)
        return jnp.pad(xp, ((0, 0), (0, Pf_pad - Pf)))

    img_slab = to_slab(img_nchw, CI)
    pos_slab = to_slab(pos_nchw, PC)

    interior = jnp.zeros((N, Hp, Wp), jnp.float32).at[:, 1:H + 1, 1:W + 1].set(1.0)
    mask = jnp.pad(interior.reshape(1, Pf), ((0, 0), (0, Pf_pad - Pf)))

    # ---- 3x3 conv weights -> im2col layout (cout, 9 * cin_padded), bf16 -----
    def conv_col(w_hwio, group_sizes, group_pads):
        pieces, start = [], 0
        for g, gp in zip(group_sizes, group_pads):
            pieces.append(jnp.pad(w_hwio[:, :, start:start + g, :],
                                  ((0, 0), (0, 0), (0, gp - g), (0, 0))))
            start += g
        wp = jnp.concatenate(pieces, axis=2)
        wp = jnp.pad(wp, ((0, 0), (0, 0), (0, 0), (0, CC - wp.shape[3])))
        wc = jnp.transpose(wp, (3, 0, 1, 2)).reshape(CC, -1)   # tap-major, ch-minor
        return jnp.pad(wc, ((0, 0), (0, Kmax - wc.shape[1])))

    w_conv = jnp.stack([
        conv_col(params["conv1_w"], (input_ch,), (CI,)),
        conv_col(params["conv2_w"], (conv_ch,), (CC,)),
        conv_col(params["conv3_w"], (conv_ch,), (CC,)),
        conv_col(params["conv4_w"], (conv_ch,), (CC,)),
        conv_col(params["conv5_w"], (conv_ch, pos_ch), (CC, PC)),
    ]).astype(jnp.bfloat16)                        # (5, CC, Kmax)

    # ---- 1x1 weights, (out, in) layout, zero-padded to (PC, PC) -------------
    def pos_w(w_io):
        w = jnp.transpose(w_io)
        return jnp.pad(w, ((0, PC - w.shape[0]), (0, PC - w.shape[1])))

    w_m1 = jnp.transpose(params["pos_mlp1_w"])     # (pos_ch, 2*pos_ch)
    w_pos = jnp.stack([
        pos_w(params["pos_fourier_w"]),
        jnp.pad(w_m1[:, :pos_ch], ((0, PC - pos_ch), (0, PC - pos_ch))),  # sin half
        jnp.pad(w_m1[:, pos_ch:], ((0, PC - pos_ch), (0, PC - pos_ch))),  # cos half
        pos_w(params["pos_mlp2_w"]),
        pos_w(params["pos_mlp3_w"]),
    ]).astype(jnp.float32)                         # (5, PC, PC)

    w_out = jnp.pad(jnp.transpose(params["conv_out_w"]),
                    ((0, 0), (0, CC - conv_ch))).astype(jnp.float32)  # (NCLS, CC)
    cob = params["conv_out_b"].reshape(n_classes, 1).astype(jnp.float32)

    # ---- BatchNorm affines packed as columns of two (CC, 8) arrays ----------
    def colvec(v, fill):
        return jnp.full((CC,), fill, jnp.float32).at[:v.shape[0]].set(v)

    g_names = ["pos_norm1_g", "pos_norm2_g", "pos_norm3_g",
               "norm1_g", "norm2_g", "norm3_g", "norm4_g", "norm5_g"]
    bn_g = jnp.stack([colvec(params[n], 1.0) for n in g_names], axis=1)
    bn_b = jnp.stack([colvec(params[n.replace("_g", "_b")], 0.0) for n in g_names],
                     axis=1)

    kernel = make_fcn_kernel(CI=CI, CC=CC, PC=PC, Wp=Wp,
                             Pf_pad=Pf_pad, n_pix=N * H * W)
    args = (img_slab, pos_slab, mask, w_conv, w_pos, w_out, bn_g, bn_b, cob)

    # TODO(synk): for large H*W the single-shot design exceeds v7x's 64 MiB VMEM;
    # tile the flat-pixel axis with a grid (halo of W+3 lanes) plus a two-pass
    # BatchNorm (per-tile sum/sum-sq, then normalize) and mark the tile axis
    # "parallel" so it shards across v7x's two TensorCores.
    out_flat = pl.pallas_call(
        kernel,
        out_shape=jax.ShapeDtypeStruct((n_classes, Pf_pad), jnp.float32),
        in_specs=[pl.BlockSpec(memory_space=pltpu.MemorySpace.VMEM)] * len(args),
        out_specs=pl.BlockSpec(memory_space=pltpu.MemorySpace.VMEM),
        compiler_params=pltpu.CompilerParams(vmem_limit_bytes=32 * 1024 * 1024),
    )(*args)

    # lane-dense kernel output -> (B, n_classes, H, W); layout plumbing in XLA.
    out = out_flat[:, :Pf].reshape(n_classes, N, Hp, Wp)[:, :, 1:H + 1, 1:W + 1]
    return jnp.transpose(out, (1, 0, 2, 3))


# ----------------------------- parameter init --------------------------------
def init_params(key, input_ch, n_classes, conv_ch=16, pos_ch=4):
    keys = iter(jax.random.split(key, 64))

    def unif(shape, bound):
        return jax.random.uniform(next(keys), shape, jnp.float32, -bound, bound)

    def conv3(cin, cout):
        b = 1.0 / math.sqrt(cin * 9)
        return unif((3, 3, cin, cout), b), unif((cout,), b)

    def conv1(cin, cout):
        b = 1.0 / math.sqrt(cin)
        return unif((cin, cout), b), unif((cout,), b)

    def bn(c):
        g = 1.0 + 0.1 * jax.random.normal(next(keys), (c,), jnp.float32)
        be = 0.1 * jax.random.normal(next(keys), (c,), jnp.float32)
        return g, be

    p = {}
    p["pos_fourier_w"], _ = conv1(2, pos_ch)           # bias=False in module
    p["pos_mlp1_w"], p["pos_mlp1_b"] = conv1(2 * pos_ch, pos_ch)
    p["pos_mlp2_w"], p["pos_mlp2_b"] = conv1(pos_ch, pos_ch)
    p["pos_mlp3_w"], p["pos_mlp3_b"] = conv1(pos_ch, pos_ch)
    p["pos_norm1_g"], p["pos_norm1_b"] = bn(pos_ch)
    p["pos_norm2_g"], p["pos_norm2_b"] = bn(pos_ch)
    p["pos_norm3_g"], p["pos_norm3_b"] = bn(pos_ch)
    p["conv1_w"], p["conv1_b"] = conv3(input_ch, conv_ch)
    p["conv2_w"], p["conv2_b"] = conv3(conv_ch, conv_ch)
    p["conv3_w"], p["conv3_b"] = conv3(conv_ch, conv_ch)
    p["conv4_w"], p["conv4_b"] = conv3(conv_ch, conv_ch)
    p["norm1_g"], p["norm1_b"] = bn(conv_ch)
    p["norm2_g"], p["norm2_b"] = bn(conv_ch)
    p["norm3_g"], p["norm3_b"] = bn(conv_ch)
    p["norm4_g"], p["norm4_b"] = bn(conv_ch)
    p["conv5_w"], p["conv5_b"] = conv3(conv_ch + pos_ch, conv_ch)
    p["norm5_g"], p["norm5_b"] = bn(conv_ch)
    p["conv_out_w"], p["conv_out_b"] = conv1(conv_ch, n_classes)
    return p


# -------------------------- pure-JAX reference (NCHW) ------------------------
def reference_forward(img, pos, p, eps=1e-5):
    hi = jax.lax.Precision.HIGHEST

    def conv2d(x, w_hwio, b, pad):
        w = jnp.transpose(w_hwio, (3, 2, 0, 1))  # OIHW
        y = jax.lax.conv_general_dilated(
            x, w, (1, 1), [(pad, pad), (pad, pad)],
            dimension_numbers=("NCHW", "OIHW", "NCHW"), precision=hi)
        if b is not None:
            y = y + b[None, :, None, None]
        return y

    def conv1x1(x, w_io, b):
        return conv2d(x, w_io[None, None], b, 0)

    def bn(x, g, b):
        m = jnp.mean(x, axis=(0, 2, 3), keepdims=True)
        v = jnp.mean((x - m) ** 2, axis=(0, 2, 3), keepdims=True)
        return (x - m) * jax.lax.rsqrt(v + eps) * g[None, :, None, None] \
            + b[None, :, None, None]

    relu = lambda t: jnp.maximum(t, 0.0)

    x = conv1x1(pos, p["pos_fourier_w"], None)
    x = jnp.concatenate([jnp.sin(x), jnp.cos(x)], axis=1)
    x = relu(bn(conv1x1(x, p["pos_mlp1_w"], p["pos_mlp1_b"]), p["pos_norm1_g"], p["pos_norm1_b"]))
    x = relu(bn(conv1x1(x, p["pos_mlp2_w"], p["pos_mlp2_b"]), p["pos_norm2_g"], p["pos_norm2_b"]))
    pos_feat = relu(bn(conv1x1(x, p["pos_mlp3_w"], p["pos_mlp3_b"]), p["pos_norm3_g"], p["pos_norm3_b"]))

    x = img
    x = relu(bn(conv2d(x, p["conv1_w"], p["conv1_b"], 1), p["norm1_g"], p["norm1_b"]))
    x = relu(bn(conv2d(x, p["conv2_w"], p["conv2_b"], 1), p["norm2_g"], p["norm2_b"]))
    x = relu(bn(conv2d(x, p["conv3_w"], p["conv3_b"], 1), p["norm3_g"], p["norm3_b"]))
    x = relu(bn(conv2d(x, p["conv4_w"], p["conv4_b"], 1), p["norm4_g"], p["norm4_b"]))
    x = jnp.concatenate([x, pos_feat], axis=1)
    x = relu(bn(conv2d(x, p["conv5_w"], p["conv5_b"], 1), p["norm5_g"], p["norm5_b"]))
    scores = conv1x1(x, p["conv_out_w"], p["conv_out_b"])
    return jax.nn.softmax(scores, axis=1)


if __name__ == "__main__":
    key = jax.random.PRNGKey(0)
    k_img, k_par = jax.random.split(key)

    B, Ci, H, W = 2, 4, 16, 16
    n_classes, conv_ch, pos_ch = 3, 16, 4

    img = jax.random.normal(k_img, (B, Ci, H, W), jnp.float32)
    gy, gx = jnp.meshgrid(jnp.linspace(0.0, 1.0, H), jnp.linspace(0.0, 1.0, W),
                          indexing="ij")
    pos_grid = jnp.broadcast_to(jnp.stack([gy, gx])[None], (B, 2, H, W)).astype(jnp.float32)

    params = init_params(k_par, Ci, n_classes, conv_ch, pos_ch)

    out = fcn_pallas(img, pos_grid, params)
    out = jax.block_until_ready(out)

    assert out.shape == (B, n_classes, H, W)
    assert bool(jnp.all(jnp.isfinite(out)))

    ref = reference_forward(img, pos_grid, params)
    err = float(jnp.max(jnp.abs(out - ref)))
    assert err < 2e-2, f"max abs err vs reference: {err}"

    print("KERNEL_OK")
</pallas_src>

<mosaic_0001>
module attributes {stable_mosaic.version = 11 : i64} {
  func.func @kernel(%arg0: memref<8x768xf32, #tpu.memory_space<vmem>>, %arg1: memref<8x768xf32, #tpu.memory_space<vmem>>, %arg2: memref<1x768xf32, #tpu.memory_space<vmem>>, %arg3: memref<5x16x216xbf16, #tpu.memory_space<vmem>>, %arg4: memref<5x8x8xf32, #tpu.memory_space<vmem>>, %arg5: memref<3x16xf32, #tpu.memory_space<vmem>>, %arg6: memref<16x8xf32, #tpu.memory_space<vmem>>, %arg7: memref<16x8xf32, #tpu.memory_space<vmem>>, %arg8: memref<3x1xf32, #tpu.memory_space<vmem>>, %arg9: memref<3x768xf32, #tpu.memory_space<vmem>>) attributes {dimension_semantics = [], scalar_prefetch = 0 : i64, scratch_operands = 0 : i64, tpu.core_type = #tpu.core_type<tc>} {
    %c0 = arith.constant 0 : index
    %c0_0 = arith.constant 0 : index
    %0 = vector.load %arg2[%c0, %c0_0] : memref<1x768xf32, #tpu.memory_space<vmem>>, vector<1x768xf32>
    %c0_1 = arith.constant 0 : index
    %c0_2 = arith.constant 0 : index
    %1 = vector.load %arg1[%c0_1, %c0_2] : memref<8x768xf32, #tpu.memory_space<vmem>>, vector<8x768xf32>
    %c0_3 = arith.constant 0 : index
    %c0_4 = arith.constant 0 : index
    %c0_5 = arith.constant 0 : index
    %2 = vector.load %arg4[%c0_3, %c0_4, %c0_5] : memref<5x8x8xf32, #tpu.memory_space<vmem>>, vector<1x8x8xf32>
    %3 = vector.shape_cast %2 : vector<1x8x8xf32> to vector<8x8xf32>
    %cst = arith.constant dense<0.000000e+00> : vector<8x768xf32>
    %4 = tpu.matmul %3, %1, %cst {dimension_numbers = #tpu.dot_dimension_numbers<[1], [0], [0], [1], [0, 0, 1, 1], [], []>} : vector<8x8xf32>, vector<8x768xf32>, vector<8x768xf32> -> vector<8x768xf32>
    %c1 = arith.constant 1 : index
    %c0_6 = arith.constant 0 : index
    %c0_7 = arith.constant 0 : index
    %5 = vector.load %arg4[%c1, %c0_6, %c0_7] : memref<5x8x8xf32, #tpu.memory_space<vmem>>, vector<1x8x8xf32>
    %6 = vector.shape_cast %5 : vector<1x8x8xf32> to vector<8x8xf32>
    %7 = math.sin %4 : vector<8x768xf32>
    %cst_8 = arith.constant dense<0.000000e+00> : vector<8x768xf32>
    %8 = tpu.matmul %6, %7, %cst_8 {dimension_numbers = #tpu.dot_dimension_numbers<[1], [0], [0], [1], [0, 0, 1, 1], [], []>} : vector<8x8xf32>, vector<8x768xf32>, vector<8x768xf32> -> vector<8x768xf32>
    %c2 = arith.constant 2 : index
    %c0_9 = arith.constant 0 : index
    %c0_10 = arith.constant 0 : index
    %9 = vector.load %arg4[%c2, %c0_9, %c0_10] : memref<5x8x8xf32, #tpu.memory_space<vmem>>, vector<1x8x8xf32>
    %10 = vector.shape_cast %9 : vector<1x8x8xf32> to vector<8x8xf32>
    %11 = math.cos %4 : vector<8x768xf32>
    %cst_11 = arith.constant dense<0.000000e+00> : vector<8x768xf32>
    %12 = tpu.matmul %10, %11, %cst_11 {dimension_numbers = #tpu.dot_dimension_numbers<[1], [0], [0], [1], [0, 0, 1, 1], [], []>} : vector<8x8xf32>, vector<8x768xf32>, vector<8x768xf32> -> vector<8x768xf32>
    %13 = arith.addf %8, %12 : vector<8x768xf32>
    %c0_12 = arith.constant 0 : index
    %c0_13 = arith.constant 0 : index
    %14 = vector.load %arg6[%c0_12, %c0_13] : memref<16x8xf32, #tpu.memory_space<vmem>>, vector<8x1xf32>
    %c0_14 = arith.constant 0 : index
    %c0_15 = arith.constant 0 : index
    %15 = vector.load %arg7[%c0_14, %c0_15] : memref<16x8xf32, #tpu.memory_space<vmem>>, vector<8x1xf32>
    %16 = vector.broadcast %0 : vector<1x768xf32> to vector<8x768xf32>
    %17 = arith.mulf %13, %16 : vector<8x768xf32>
    %cst_16 = arith.constant dense<0.000000e+00> : vector<8xf32>
    %18 = vector.multi_reduction <add>, %17, %cst_16 [1] : vector<8x768xf32> to vector<8xf32>
    %19 = vector.shape_cast %18 : vector<8xf32> to vector<8x1xf32>
    %cst_17 = arith.constant 0.001953125 : f32
    %20 = vector.broadcast %cst_17 : f32 to vector<8x1xf32>
    %21 = arith.mulf %19, %20 : vector<8x1xf32>
    %22 = vector.broadcast %21 : vector<8x1xf32> to vector<8x768xf32>
    %23 = arith.subf %13, %22 : vector<8x768xf32>
    %24 = vector.broadcast %0 : vector<1x768xf32> to vector<8x768xf32>
    %25 = arith.mulf %23, %24 : vector<8x768xf32>
    %26 = arith.mulf %25, %25 : vector<8x768xf32>
    %cst_18 = arith.constant dense<0.000000e+00> : vector<8xf32>
    %27 = vector.multi_reduction <add>, %26, %cst_18 [1] : vector<8x768xf32> to vector<8xf32>
    %28 = vector.shape_cast %27 : vector<8xf32> to vector<8x1xf32>
    %cst_19 = arith.constant 0.001953125 : f32
    %29 = vector.broadcast %cst_19 : f32 to vector<8x1xf32>
    %30 = arith.mulf %28, %29 : vector<8x1xf32>
    %31 = vector.broadcast %21 : vector<8x1xf32> to vector<8x768xf32>
    %32 = arith.subf %13, %31 : vector<8x768xf32>
    %cst_20 = arith.constant 9.99999974E-6 : f32
    %33 = vector.broadcast %cst_20 : f32 to vector<8x1xf32>
    %34 = arith.addf %30, %33 : vector<8x1xf32>
    %35 = math.rsqrt %34 : vector<8x1xf32>
    %36 = vector.broadcast %35 : vector<8x1xf32> to vector<8x768xf32>
    %37 = arith.mulf %32, %36 : vector<8x768xf32>
    %38 = vector.broadcast %14 : vector<8x1xf32> to vector<8x768xf32>
    %39 = arith.mulf %37, %38 : vector<8x768xf32>
    %40 = vector.broadcast %15 : vector<8x1xf32> to vector<8x768xf32>
    %41 = arith.addf %39, %40 : vector<8x768xf32>
    %cst_21 = arith.constant 0.000000e+00 : f32
    %42 = vector.broadcast %cst_21 : f32 to vector<8x768xf32>
    %43 = arith.maximumf %41, %42 : vector<8x768xf32>
    %44 = vector.broadcast %0 : vector<1x768xf32> to vector<8x768xf32>
    %45 = arith.mulf %43, %44 : vector<8x768xf32>
    %c3 = arith.constant 3 : index
    %c0_22 = arith.constant 0 : index
    %c0_23 = arith.constant 0 : index
    %46 = vector.load %arg4[%c3, %c0_22, %c0_23] : memref<5x8x8xf32, #tpu.memory_space<vmem>>, vector<1x8x8xf32>
    %47 = vector.shape_cast %46 : vector<1x8x8xf32> to vector<8x8xf32>
    %cst_24 = arith.constant dense<0.000000e+00> : vector<8x768xf32>
    %48 = tpu.matmul %47, %45, %cst_24 {dimension_numbers = #tpu.dot_dimension_numbers<[1], [0], [0], [1], [0, 0, 1, 1], [], []>} : vector<8x8xf32>, vector<8x768xf32>, vector<8x768xf32> -> vector<8x768xf32>
    %c0_25 = arith.constant 0 : index
    %c1_26 = arith.constant 1 : index
    %49 = vector.load %arg6[%c0_25, %c1_26] : memref<16x8xf32, #tpu.memory_space<vmem>>, vector<8x1xf32>
    %c0_27 = arith.constant 0 : index
    %c1_28 = arith.constant 1 : index
    %50 = vector.load %arg7[%c0_27, %c1_28] : memref<16x8xf32, #tpu.memory_space<vmem>>, vector<8x1xf32>
    %51 = vector.broadcast %0 : vector<1x768xf32> to vector<8x768xf32>
    %52 = arith.mulf %48, %51 : vector<8x768xf32>
    %cst_29 = arith.constant dense<0.000000e+00> : vector<8xf32>
    %53 = vector.multi_reduction <add>, %52, %cst_29 [1] : vector<8x768xf32> to vector<8xf32>
    %54 = vector.shape_cast %53 : vector<8xf32> to vector<8x1xf32>
    %cst_30 = arith.constant 0.001953125 : f32
    %55 = vector.broadcast %cst_30 : f32 to vector<8x1xf32>
    %56 = arith.mulf %54, %55 : vector<8x1xf32>
    %57 = vector.broadcast %56 : vector<8x1xf32> to vector<8x768xf32>
    %58 = arith.subf %48, %57 : vector<8x768xf32>
    %59 = vector.broadcast %0 : vector<1x768xf32> to vector<8x768xf32>
    %60 = arith.mulf %58, %59 : vector<8x768xf32>
    %61 = arith.mulf %60, %60 : vector<8x768xf32>
    %cst_31 = arith.constant dense<0.000000e+00> : vector<8xf32>
    %62 = vector.multi_reduction <add>, %61, %cst_31 [1] : vector<8x768xf32> to vector<8xf32>
    %63 = vector.shape_cast %62 : vector<8xf32> to vector<8x1xf32>
    %cst_32 = arith.constant 0.001953125 : f32
    %64 = vector.broadcast %cst_32 : f32 to vector<8x1xf32>
    %65 = arith.mulf %63, %64 : vector<8x1xf32>
    %66 = vector.broadcast %56 : vector<8x1xf32> to vector<8x768xf32>
    %67 = arith.subf %48, %66 : vector<8x768xf32>
    %cst_33 = arith.constant 9.99999974E-6 : f32
    %68 = vector.broadcast %cst_33 : f32 to vector<8x1xf32>
    %69 = arith.addf %65, %68 : vector<8x1xf32>
    %70 = math.rsqrt %69 : vector<8x1xf32>
    %71 = vector.broadcast %70 : vector<8x1xf32> to vector<8x768xf32>
    %72 = arith.mulf %67, %71 : vector<8x768xf32>
    %73 = vector.broadcast %49 : vector<8x1xf32> to vector<8x768xf32>
    %74 = arith.mulf %72, %73 : vector<8x768xf32>
    %75 = vector.broadcast %50 : vector<8x1xf32> to vector<8x768xf32>
    %76 = arith.addf %74, %75 : vector<8x768xf32>
    %cst_34 = arith.constant 0.000000e+00 : f32
    %77 = vector.broadcast %cst_34 : f32 to vector<8x768xf32>
    %78 = arith.maximumf %76, %77 : vector<8x768xf32>
    %79 = vector.broadcast %0 : vector<1x768xf32> to vector<8x768xf32>
    %80 = arith.mulf %78, %79 : vector<8x768xf32>
    %c4 = arith.constant 4 : index
    %c0_35 = arith.constant 0 : index
    %c0_36 = arith.constant 0 : index
    %81 = vector.load %arg4[%c4, %c0_35, %c0_36] : memref<5x8x8xf32, #tpu.memory_space<vmem>>, vector<1x8x8xf32>
    %82 = vector.shape_cast %81 : vector<1x8x8xf32> to vector<8x8xf32>
    %cst_37 = arith.constant dense<0.000000e+00> : vector<8x768xf32>
    %83 = tpu.matmul %82, %80, %cst_37 {dimension_numbers = #tpu.dot_dimension_numbers<[1], [0], [0], [1], [0, 0, 1, 1], [], []>} : vector<8x8xf32>, vector<8x768xf32>, vector<8x768xf32> -> vector<8x768xf32>
    %c0_38 = arith.constant 0 : index
    %c2_39 = arith.constant 2 : index
    %84 = vector.load %arg6[%c0_38, %c2_39] : memref<16x8xf32, #tpu.memory_space<vmem>>, vector<8x1xf32>
    %c0_40 = arith.constant 0 : index
    %c2_41 = arith.constant 2 : index
    %85 = vector.load %arg7[%c0_40, %c2_41] : memref<16x8xf32, #tpu.memory_space<vmem>>, vector<8x1xf32>
    %86 = vector.broadcast %0 : vector<1x768xf32> to vector<8x768xf32>
    %87 = arith.mulf %83, %86 : vector<8x768xf32>
    %cst_42 = arith.constant dense<0.000000e+00> : vector<8xf32>
    %88 = vector.multi_reduction <add>, %87, %cst_42 [1] : vector<8x768xf32> to vector<8xf32>
    %89 = vector.shape_cast %88 : vector<8xf32> to vector<8x1xf32>
    %cst_43 = arith.constant 0.001953125 : f32
    %90 = vector.broadcast %cst_43 : f32 to vector<8x1xf32>
    %91 = arith.mulf %89, %90 : vector<8x1xf32>
    %92 = vector.broadcast %91 : vector<8x1xf32> to vector<8x768xf32>
    %93 = arith.subf %83, %92 : vector<8x768xf32>
    %94 = vector.broadcast %0 : vector<1x768xf32> to vector<8x768xf32>
    %95 = arith.mulf %93, %94 : vector<8x768xf32>
    %96 = arith.mulf %95, %95 : vector<8x768xf32>
    %cst_44 = arith.constant dense<0.000000e+00> : vector<8xf32>
    %97 = vector.multi_reduction <add>, %96, %cst_44 [1] : vector<8x768xf32> to vector<8xf32>
    %98 = vector.shape_cast %97 : vector<8xf32> to vector<8x1xf32>
    %cst_45 = arith.constant 0.001953125 : f32
    %99 = vector.broadcast %cst_45 : f32 to vector<8x1xf32>
    %100 = arith.mulf %98, %99 : vector<8x1xf32>
    %101 = vector.broadcast %91 : vector<8x1xf32> to vector<8x768xf32>
    %102 = arith.subf %83, %101 : vector<8x768xf32>
    %cst_46 = arith.constant 9.99999974E-6 : f32
    %103 = vector.broadcast %cst_46 : f32 to vector<8x1xf32>
    %104 = arith.addf %100, %103 : vector<8x1xf32>
    %105 = math.rsqrt %104 : vector<8x1xf32>
    %106 = vector.broadcast %105 : vector<8x1xf32> to vector<8x768xf32>
    %107 = arith.mulf %102, %106 : vector<8x768xf32>
    %108 = vector.broadcast %84 : vector<8x1xf32> to vector<8x768xf32>
    %109 = arith.mulf %107, %108 : vector<8x768xf32>
    %110 = vector.broadcast %85 : vector<8x1xf32> to vector<8x768xf32>
    %111 = arith.addf %109, %110 : vector<8x768xf32>
    %cst_47 = arith.constant 0.000000e+00 : f32
    %112 = vector.broadcast %cst_47 : f32 to vector<8x768xf32>
    %113 = arith.maximumf %111, %112 : vector<8x768xf32>
    %114 = vector.broadcast %0 : vector<1x768xf32> to vector<8x768xf32>
    %115 = arith.mulf %113, %114 : vector<8x768xf32>
    %c0_48 = arith.constant 0 : index
    %c0_49 = arith.constant 0 : index
    %116 = vector.load %arg0[%c0_48, %c0_49] : memref<8x768xf32, #tpu.memory_space<vmem>>, vector<8x768xf32>
    %c0_50 = arith.constant 0 : index
    %c0_51 = arith.constant 0 : index
    %c0_52 = arith.constant 0 : index
    %117 = vector.load %arg3[%c0_50, %c0_51, %c0_52] : memref<5x16x216xbf16, #tpu.memory_space<vmem>>, vector<1x16x216xbf16>
    %118 = vector.shape_cast %117 : vector<1x16x216xbf16> to vector<16x216xbf16>
    %119 = vector.extract_strided_slice %118 {offsets = [0, 0], sizes = [16, 72], strides = [1, 1]} : vector<16x216xbf16> to vector<16x72xbf16>
    %c19_i32 = arith.constant 19 : i32
    %120 = tpu.dynamic_rotate %116 by %c19_i32 dim 1 : vector<8x768xf32>, i32 -> vector<8x768xf32>
    %c18_i32 = arith.constant 18 : i32
    %121 = tpu.dynamic_rotate %116 by %c18_i32 dim 1 : vector<8x768xf32>, i32 -> vector<8x768xf32>
    %c17_i32 = arith.constant 17 : i32
    %122 = tpu.dynamic_rotate %116 by %c17_i32 dim 1 : vector<8x768xf32>, i32 -> vector<8x768xf32>
    %c1_i32 = arith.constant 1 : i32
    %123 = tpu.dynamic_rotate %116 by %c1_i32 dim 1 : vector<8x768xf32>, i32 -> vector<8x768xf32>
    %c767_i32 = arith.constant 767 : i32
    %124 = tpu.dynamic_rotate %116 by %c767_i32 dim 1 : vector<8x768xf32>, i32 -> vector<8x768xf32>
    %c751_i32 = arith.constant 751 : i32
    %125 = tpu.dynamic_rotate %116 by %c751_i32 dim 1 : vector<8x768xf32>, i32 -> vector<8x768xf32>
    %c750_i32 = arith.constant 750 : i32
    %126 = tpu.dynamic_rotate %116 by %c750_i32 dim 1 : vector<8x768xf32>, i32 -> vector<8x768xf32>
    %c749_i32 = arith.constant 749 : i32
    %127 = tpu.dynamic_rotate %116 by %c749_i32 dim 1 : vector<8x768xf32>, i32 -> vector<8x768xf32>
    %128 = tpu.concatenate %120, %121, %122, %123, %116, %124, %125, %126, %127 in 0 : vector<8x768xf32>, vector<8x768xf32>, vector<8x768xf32>, vector<8x768xf32>, vector<8x768xf32>, vector<8x768xf32>, vector<8x768xf32>, vector<8x768xf32>, vector<8x768xf32> -> vector<72x768xf32>
    %129 = arith.truncf %128 : vector<72x768xf32> to vector<72x768xbf16>
    %cst_53 = arith.constant dense<0.000000e+00> : vector<16x768xf32>
    %130 = tpu.matmul %119, %129, %cst_53 {dimension_numbers = #tpu.dot_dimension_numbers<[1], [0], [0], [1], [0, 0, 1, 1], [], []>} : vector<16x72xbf16>, vector<72x768xbf16>, vector<16x768xf32> -> vector<16x768xf32>
    %c0_54 = arith.constant 0 : index
    %c3_55 = arith.constant 3 : index
    %131 = vector.load %arg6[%c0_54, %c3_55] : memref<16x8xf32, #tpu.memory_space<vmem>>, vector<16x1xf32>
    %c0_56 = arith.constant 0 : index
    %c3_57 = arith.constant 3 : index
    %132 = vector.load %arg7[%c0_56, %c3_57] : memref<16x8xf32, #tpu.memory_space<vmem>>, vector<16x1xf32>
    %133 = vector.broadcast %0 : vector<1x768xf32> to vector<16x768xf32>
    %134 = arith.mulf %130, %133 : vector<16x768xf32>
    %cst_58 = arith.constant dense<0.000000e+00> : vector<16xf32>
    %135 = vector.multi_reduction <add>, %134, %cst_58 [1] : vector<16x768xf32> to vector<16xf32>
    %136 = vector.shape_cast %135 : vector<16xf32> to vector<16x1xf32>
    %cst_59 = arith.constant 0.001953125 : f32
    %137 = vector.broadcast %cst_59 : f32 to vector<16x1xf32>
    %138 = arith.mulf %136, %137 : vector<16x1xf32>
    %139 = vector.broadcast %138 : vector<16x1xf32> to vector<16x768xf32>
    %140 = arith.subf %130, %139 : vector<16x768xf32>
    %141 = vector.broadcast %0 : vector<1x768xf32> to vector<16x768xf32>
    %142 = arith.mulf %140, %141 : vector<16x768xf32>
    %143 = arith.mulf %142, %142 : vector<16x768xf32>
    %cst_60 = arith.constant dense<0.000000e+00> : vector<16xf32>
    %144 = vector.multi_reduction <add>, %143, %cst_60 [1] : vector<16x768xf32> to vector<16xf32>
    %145 = vector.shape_cast %144 : vector<16xf32> to vector<16x1xf32>
    %cst_61 = arith.constant 0.001953125 : f32
    %146 = vector.broadcast %cst_61 : f32 to vector<16x1xf32>
    %147 = arith.mulf %145, %146 : vector<16x1xf32>
    %148 = vector.broadcast %138 : vector<16x1xf32> to vector<16x768xf32>
    %149 = arith.subf %130, %148 : vector<16x768xf32>
    %cst_62 = arith.constant 9.99999974E-6 : f32
    %150 = vector.broadcast %cst_62 : f32 to vector<16x1xf32>
    %151 = arith.addf %147, %150 : vector<16x1xf32>
    %152 = math.rsqrt %151 : vector<16x1xf32>
    %153 = vector.broadcast %152 : vector<16x1xf32> to vector<16x768xf32>
    %154 = arith.mulf %149, %153 : vector<16x768xf32>
    %155 = vector.broadcast %131 : vector<16x1xf32> to vector<16x768xf32>
    %156 = arith.mulf %154, %155 : vector<16x768xf32>
    %157 = vector.broadcast %132 : vector<16x1xf32> to vector<16x768xf32>
    %158 = arith.addf %156, %157 : vector<16x768xf32>
    %cst_63 = arith.constant 0.000000e+00 : f32
    %159 = vector.broadcast %cst_63 : f32 to vector<16x768xf32>
    %160 = arith.maximumf %158, %159 : vector<16x768xf32>
    %161 = vector.broadcast %0 : vector<1x768xf32> to vector<16x768xf32>
    %162 = arith.mulf %160, %161 : vector<16x768xf32>
    %c1_64 = arith.constant 1 : index
    %c0_65 = arith.constant 0 : index
    %c0_66 = arith.constant 0 : index
    %163 = vector.load %arg3[%c1_64, %c0_65, %c0_66] : memref<5x16x216xbf16, #tpu.memory_space<vmem>>, vector<1x16x216xbf16>
    %164 = vector.shape_cast %163 : vector<1x16x216xbf16> to vector<16x216xbf16>
    %165 = vector.extract_strided_slice %164 {offsets = [0, 0], sizes = [16, 144], strides = [1, 1]} : vector<16x216xbf16> to vector<16x144xbf16>
    %c19_i32_67 = arith.constant 19 : i32
    %166 = tpu.dynamic_rotate %162 by %c19_i32_67 dim 1 : vector<16x768xf32>, i32 -> vector<16x768xf32>
    %c18_i32_68 = arith.constant 18 : i32
    %167 = tpu.dynamic_rotate %162 by %c18_i32_68 dim 1 : vector<16x768xf32>, i32 -> vector<16x768xf32>
    %c17_i32_69 = arith.constant 17 : i32
    %168 = tpu.dynamic_rotate %162 by %c17_i32_69 dim 1 : vector<16x768xf32>, i32 -> vector<16x768xf32>
    %c1_i32_70 = arith.constant 1 : i32
    %169 = tpu.dynamic_rotate %162 by %c1_i32_70 dim 1 : vector<16x768xf32>, i32 -> vector<16x768xf32>
    %c767_i32_71 = arith.constant 767 : i32
    %170 = tpu.dynamic_rotate %162 by %c767_i32_71 dim 1 : vector<16x768xf32>, i32 -> vector<16x768xf32>
    %c751_i32_72 = arith.constant 751 : i32
    %171 = tpu.dynamic_rotate %162 by %c751_i32_72 dim 1 : vector<16x768xf32>, i32 -> vector<16x768xf32>
    %c750_i32_73 = arith.constant 750 : i32
    %172 = tpu.dynamic_rotate %162 by %c750_i32_73 dim 1 : vector<16x768xf32>, i32 -> vector<16x768xf32>
    %c749_i32_74 = arith.constant 749 : i32
    %173 = tpu.dynamic_rotate %162 by %c749_i32_74 dim 1 : vector<16x768xf32>, i32 -> vector<16x768xf32>
    %174 = tpu.concatenate %166, %167, %168, %169, %162, %170, %171, %172, %173 in 0 : vector<16x768xf32>, vector<16x768xf32>, vector<16x768xf32>, vector<16x768xf32>, vector<16x768xf32>, vector<16x768xf32>, vector<16x768xf32>, vector<16x768xf32>, vector<16x768xf32> -> vector<144x768xf32>
    %175 = arith.truncf %174 : vector<144x768xf32> to vector<144x768xbf16>
    %cst_75 = arith.constant dense<0.000000e+00> : vector<16x768xf32>
    %176 = tpu.matmul %165, %175, %cst_75 {dimension_numbers = #tpu.dot_dimension_numbers<[1], [0], [0], [1], [0, 0, 1, 1], [], []>} : vector<16x144xbf16>, vector<144x768xbf16>, vector<16x768xf32> -> vector<16x768xf32>
    %c0_76 = arith.constant 0 : index
    %c4_77 = arith.constant 4 : index
    %177 = vector.load %arg6[%c0_76, %c4_77] : memref<16x8xf32, #tpu.memory_space<vmem>>, vector<16x1xf32>
    %c0_78 = arith.constant 0 : index
    %c4_79 = arith.constant 4 : index
    %178 = vector.load %arg7[%c0_78, %c4_79] : memref<16x8xf32, #tpu.memory_space<vmem>>, vector<16x1xf32>
    %179 = vector.broadcast %0 : vector<1x768xf32> to vector<16x768xf32>
    %180 = arith.mulf %176, %179 : vector<16x768xf32>
    %cst_80 = arith.constant dense<0.000000e+00> : vector<16xf32>
    %181 = vector.multi_reduction <add>, %180, %cst_80 [1] : vector<16x768xf32> to vector<16xf32>
    %182 = vector.shape_cast %181 : vector<16xf32> to vector<16x1xf32>
    %cst_81 = arith.constant 0.001953125 : f32
    %183 = vector.broadcast %cst_81 : f32 to vector<16x1xf32>
    %184 = arith.mulf %182, %183 : vector<16x1xf32>
    %185 = vector.broadcast %184 : vector<16x1xf32> to vector<16x768xf32>
    %186 = arith.subf %176, %185 : vector<16x768xf32>
    %187 = vector.broadcast %0 : vector<1x768xf32> to vector<16x768xf32>
    %188 = arith.mulf %186, %187 : vector<16x768xf32>
    %189 = arith.mulf %188, %188 : vector<16x768xf32>
    %cst_82 = arith.constant dense<0.000000e+00> : vector<16xf32>
    %190 = vector.multi_reduction <add>, %189, %cst_82 [1] : vector<16x768xf32> to vector<16xf32>
    %191 = vector.shape_cast %190 : vector<16xf32> to vector<16x1xf32>
    %cst_83 = arith.constant 0.001953125 : f32
    %192 = vector.broadcast %cst_83 : f32 to vector<16x1xf32>
    %193 = arith.mulf %191, %192 : vector<16x1xf32>
    %194 = vector.broadcast %184 : vector<16x1xf32> to vector<16x768xf32>
    %195 = arith.subf %176, %194 : vector<16x768xf32>
    %cst_84 = arith.constant 9.99999974E-6 : f32
    %196 = vector.broadcast %cst_84 : f32 to vector<16x1xf32>
    %197 = arith.addf %193, %196 : vector<16x1xf32>
    %198 = math.rsqrt %197 : vector<16x1xf32>
    %199 = vector.broadcast %198 : vector<16x1xf32> to vector<16x768xf32>
    %200 = arith.mulf %195, %199 : vector<16x768xf32>
    %201 = vector.broadcast %177 : vector<16x1xf32> to vector<16x768xf32>
    %202 = arith.mulf %200, %201 : vector<16x768xf32>
    %203 = vector.broadcast %178 : vector<16x1xf32> to vector<16x768xf32>
    %204 = arith.addf %202, %203 : vector<16x768xf32>
    %cst_85 = arith.constant 0.000000e+00 : f32
    %205 = vector.broadcast %cst_85 : f32 to vector<16x768xf32>
    %206 = arith.maximumf %204, %205 : vector<16x768xf32>
    %207 = vector.broadcast %0 : vector<1x768xf32> to vector<16x768xf32>
    %208 = arith.mulf %206, %207 : vector<16x768xf32>
    %c2_86 = arith.constant 2 : index
    %c0_87 = arith.constant 0 : index
    %c0_88 = arith.constant 0 : index
    %209 = vector.load %arg3[%c2_86, %c0_87, %c0_88] : memref<5x16x216xbf16, #tpu.memory_space<vmem>>, vector<1x16x216xbf16>
    %210 = vector.shape_cast %209 : vector<1x16x216xbf16> to vector<16x216xbf16>
    %211 = vector.extract_strided_slice %210 {offsets = [0, 0], sizes = [16, 144], strides = [1, 1]} : vector<16x216xbf16> to vector<16x144xbf16>
    %c19_i32_89 = arith.constant 19 : i32
    %212 = tpu.dynamic_rotate %208 by %c19_i32_89 dim 1 : vector<16x768xf32>, i32 -> vector<16x768xf32>
    %c18_i32_90 = arith.constant 18 : i32
    %213 = tpu.dynamic_rotate %208 by %c18_i32_90 dim 1 : vector<16x768xf32>, i32 -> vector<16x768xf32>
    %c17_i32_91 = arith.constant 17 : i32
    %214 = tpu.dynamic_rotate %208 by %c17_i32_91 dim 1 : vector<16x768xf32>, i32 -> vector<16x768xf32>
    %c1_i32_92 = arith.constant 1 : i32
    %215 = tpu.dynamic_rotate %208 by %c1_i32_92 dim 1 : vector<16x768xf32>, i32 -> vector<16x768xf32>
    %c767_i32_93 = arith.constant 767 : i32
    %216 = tpu.dynamic_rotate %208 by %c767_i32_93 dim 1 : vector<16x768xf32>, i32 -> vector<16x768xf32>
    %c751_i32_94 = arith.constant 751 : i32
    %217 = tpu.dynamic_rotate %208 by %c751_i32_94 dim 1 : vector<16x768xf32>, i32 -> vector<16x768xf32>
    %c750_i32_95 = arith.constant 750 : i32
    %218 = tpu.dynamic_rotate %208 by %c750_i32_95 dim 1 : vector<16x768xf32>, i32 -> vector<16x768xf32>
    %c749_i32_96 = arith.constant 749 : i32
    %219 = tpu.dynamic_rotate %208 by %c749_i32_96 dim 1 : vector<16x768xf32>, i32 -> vector<16x768xf32>
    %220 = tpu.concatenate %212, %213, %214, %215, %208, %216, %217, %218, %219 in 0 : vector<16x768xf32>, vector<16x768xf32>, vector<16x768xf32>, vector<16x768xf32>, vector<16x768xf32>, vector<16x768xf32>, vector<16x768xf32>, vector<16x768xf32>, vector<16x768xf32> -> vector<144x768xf32>
    %221 = arith.truncf %220 : vector<144x768xf32> to vector<144x768xbf16>
    %cst_97 = arith.constant dense<0.000000e+00> : vector<16x768xf32>
    %222 = tpu.matmul %211, %221, %cst_97 {dimension_numbers = #tpu.dot_dimension_numbers<[1], [0], [0], [1], [0, 0, 1, 1], [], []>} : vector<16x144xbf16>, vector<144x768xbf16>, vector<16x768xf32> -> vector<16x768xf32>
    %c0_98 = arith.constant 0 : index
    %c5 = arith.constant 5 : index
    %223 = vector.load %arg6[%c0_98, %c5] : memref<16x8xf32, #tpu.memory_space<vmem>>, vector<16x1xf32>
    %c0_99 = arith.constant 0 : index
    %c5_100 = arith.constant 5 : index
    %224 = vector.load %arg7[%c0_99, %c5_100] : memref<16x8xf32, #tpu.memory_space<vmem>>, vector<16x1xf32>
    %225 = vector.broadcast %0 : vector<1x768xf32> to vector<16x768xf32>
    %226 = arith.mulf %222, %225 : vector<16x768xf32>
    %cst_101 = arith.constant dense<0.000000e+00> : vector<16xf32>
    %227 = vector.multi_reduction <add>, %226, %cst_101 [1] : vector<16x768xf32> to vector<16xf32>
    %228 = vector.shape_cast %227 : vector<16xf32> to vector<16x1xf32>
    %cst_102 = arith.constant 0.001953125 : f32
    %229 = vector.broadcast %cst_102 : f32 to vector<16x1xf32>
    %230 = arith.mulf %228, %229 : vector<16x1xf32>
    %231 = vector.broadcast %230 : vector<16x1xf32> to vector<16x768xf32>
    %232 = arith.subf %222, %231 : vector<16x768xf32>
    %233 = vector.broadcast %0 : vector<1x768xf32> to vector<16x768xf32>
    %234 = arith.mulf %232, %233 : vector<16x768xf32>
    %235 = arith.mulf %234, %234 : vector<16x768xf32>
    %cst_103 = arith.constant dense<0.000000e+00> : vector<16xf32>
    %236 = vector.multi_reduction <add>, %235, %cst_103 [1] : vector<16x768xf32> to vector<16xf32>
    %237 = vector.shape_cast %236 : vector<16xf32> to vector<16x1xf32>
    %cst_104 = arith.constant 0.001953125 : f32
    %238 = vector.broadcast %cst_104 : f32 to vector<16x1xf32>
    %239 = arith.mulf %237, %238 : vector<16x1xf32>
    %240 = vector.broadcast %230 : vector<16x1xf32> to vector<16x768xf32>
    %241 = arith.subf %222, %240 : vector<16x768xf32>
    %cst_105 = arith.constant 9.99999974E-6 : f32
    %242 = vector.broadcast %cst_105 : f32 to vector<16x1xf32>
    %243 = arith.addf %239, %242 : vector<16x1xf32>
    %244 = math.rsqrt %243 : vector<16x1xf32>
    %245 = vector.broadcast %244 : vector<16x1xf32> to vector<16x768xf32>
    %246 = arith.mulf %241, %245 : vector<16x768xf32>
    %247 = vector.broadcast %223 : vector<16x1xf32> to vector<16x768xf32>
    %248 = arith.mulf %246, %247 : vector<16x768xf32>
    %249 = vector.broadcast %224 : vector<16x1xf32> to vector<16x768xf32>
    %250 = arith.addf %248, %249 : vector<16x768xf32>
    %cst_106 = arith.constant 0.000000e+00 : f32
    %251 = vector.broadcast %cst_106 : f32 to vector<16x768xf32>
    %252 = arith.maximumf %250, %251 : vector<16x768xf32>
    %253 = vector.broadcast %0 : vector<1x768xf32> to vector<16x768xf32>
    %254 = arith.mulf %252, %253 : vector<16x768xf32>
    %c3_107 = arith.constant 3 : index
    %c0_108 = arith.constant 0 : index
    %c0_109 = arith.constant 0 : index
    %255 = vector.load %arg3[%c3_107, %c0_108, %c0_109] : memref<5x16x216xbf16, #tpu.memory_space<vmem>>, vector<1x16x216xbf16>
    %256 = vector.shape_cast %255 : vector<1x16x216xbf16> to vector<16x216xbf16>
    %257 = vector.extract_strided_slice %256 {offsets = [0, 0], sizes = [16, 144], strides = [1, 1]} : vector<16x216xbf16> to vector<16x144xbf16>
    %c19_i32_110 = arith.constant 19 : i32
    %258 = tpu.dynamic_rotate %254 by %c19_i32_110 dim 1 : vector<16x768xf32>, i32 -> vector<16x768xf32>
    %c18_i32_111 = arith.constant 18 : i32
    %259 = tpu.dynamic_rotate %254 by %c18_i32_111 dim 1 : vector<16x768xf32>, i32 -> vector<16x768xf32>
    %c17_i32_112 = arith.constant 17 : i32
    %260 = tpu.dynamic_rotate %254 by %c17_i32_112 dim 1 : vector<16x768xf32>, i32 -> vector<16x768xf32>
    %c1_i32_113 = arith.constant 1 : i32
    %261 = tpu.dynamic_rotate %254 by %c1_i32_113 dim 1 : vector<16x768xf32>, i32 -> vector<16x768xf32>
    %c767_i32_114 = arith.constant 767 : i32
    %262 = tpu.dynamic_rotate %254 by %c767_i32_114 dim 1 : vector<16x768xf32>, i32 -> vector<16x768xf32>
    %c751_i32_115 = arith.constant 751 : i32
    %263 = tpu.dynamic_rotate %254 by %c751_i32_115 dim 1 : vector<16x768xf32>, i32 -> vector<16x768xf32>
    %c750_i32_116 = arith.constant 750 : i32
    %264 = tpu.dynamic_rotate %254 by %c750_i32_116 dim 1 : vector<16x768xf32>, i32 -> vector<16x768xf32>
    %c749_i32_117 = arith.constant 749 : i32
    %265 = tpu.dynamic_rotate %254 by %c749_i32_117 dim 1 : vector<16x768xf32>, i32 -> vector<16x768xf32>
    %266 = tpu.concatenate %258, %259, %260, %261, %254, %262, %263, %264, %265 in 0 : vector<16x768xf32>, vector<16x768xf32>, vector<16x768xf32>, vector<16x768xf32>, vector<16x768xf32>, vector<16x768xf32>, vector<16x768xf32>, vector<16x768xf32>, vector<16x768xf32> -> vector<144x768xf32>
    %267 = arith.truncf %266 : vector<144x768xf32> to vector<144x768xbf16>
    %cst_118 = arith.constant dense<0.000000e+00> : vector<16x768xf32>
    %268 = tpu.matmul %257, %267, %cst_118 {dimension_numbers = #tpu.dot_dimension_numbers<[1], [0], [0], [1], [0, 0, 1, 1], [], []>} : vector<16x144xbf16>, vector<144x768xbf16>, vector<16x768xf32> -> vector<16x768xf32>
    %c0_119 = arith.constant 0 : index
    %c6 = arith.constant 6 : index
    %269 = vector.load %arg6[%c0_119, %c6] : memref<16x8xf32, #tpu.memory_space<vmem>>, vector<16x1xf32>
    %c0_120 = arith.constant 0 : index
    %c6_121 = arith.constant 6 : index
    %270 = vector.load %arg7[%c0_120, %c6_121] : memref<16x8xf32, #tpu.memory_space<vmem>>, vector<16x1xf32>
    %271 = vector.broadcast %0 : vector<1x768xf32> to vector<16x768xf32>
    %272 = arith.mulf %268, %271 : vector<16x768xf32>
    %cst_122 = arith.constant dense<0.000000e+00> : vector<16xf32>
    %273 = vector.multi_reduction <add>, %272, %cst_122 [1] : vector<16x768xf32> to vector<16xf32>
    %274 = vector.shape_cast %273 : vector<16xf32> to vector<16x1xf32>
    %cst_123 = arith.constant 0.001953125 : f32
    %275 = vector.broadcast %cst_123 : f32 to vector<16x1xf32>
    %276 = arith.mulf %274, %275 : vector<16x1xf32>
    %277 = vector.broadcast %276 : vector<16x1xf32> to vector<16x768xf32>
    %278 = arith.subf %268, %277 : vector<16x768xf32>
    %279 = vector.broadcast %0 : vector<1x768xf32> to vector<16x768xf32>
    %280 = arith.mulf %278, %279 : vector<16x768xf32>
    %281 = arith.mulf %280, %280 : vector<16x768xf32>
    %cst_124 = arith.constant dense<0.000000e+00> : vector<16xf32>
    %282 = vector.multi_reduction <add>, %281, %cst_124 [1] : vector<16x768xf32> to vector<16xf32>
    %283 = vector.shape_cast %282 : vector<16xf32> to vector<16x1xf32>
    %cst_125 = arith.constant 0.001953125 : f32
    %284 = vector.broadcast %cst_125 : f32 to vector<16x1xf32>
    %285 = arith.mulf %283, %284 : vector<16x1xf32>
    %286 = vector.broadcast %276 : vector<16x1xf32> to vector<16x768xf32>
    %287 = arith.subf %268, %286 : vector<16x768xf32>
    %cst_126 = arith.constant 9.99999974E-6 : f32
    %288 = vector.broadcast %cst_126 : f32 to vector<16x1xf32>
    %289 = arith.addf %285, %288 : vector<16x1xf32>
    %290 = math.rsqrt %289 : vector<16x1xf32>
    %291 = vector.broadcast %290 : vector<16x1xf32> to vector<16x768xf32>
    %292 = arith.mulf %287, %291 : vector<16x768xf32>
    %293 = vector.broadcast %269 : vector<16x1xf32> to vector<16x768xf32>
    %294 = arith.mulf %292, %293 : vector<16x768xf32>
    %295 = vector.broadcast %270 : vector<16x1xf32> to vector<16x768xf32>
    %296 = arith.addf %294, %295 : vector<16x768xf32>
    %cst_127 = arith.constant 0.000000e+00 : f32
    %297 = vector.broadcast %cst_127 : f32 to vector<16x768xf32>
    %298 = arith.maximumf %296, %297 : vector<16x768xf32>
    %299 = vector.broadcast %0 : vector<1x768xf32> to vector<16x768xf32>
    %300 = arith.mulf %298, %299 : vector<16x768xf32>
    %301 = tpu.concatenate %300, %115 in 0 : vector<16x768xf32>, vector<8x768xf32> -> vector<24x768xf32>
    %c4_128 = arith.constant 4 : index
    %c0_129 = arith.constant 0 : index
    %c0_130 = arith.constant 0 : index
    %302 = vector.load %arg3[%c4_128, %c0_129, %c0_130] : memref<5x16x216xbf16, #tpu.memory_space<vmem>>, vector<1x16x216xbf16>
    %303 = vector.shape_cast %302 : vector<1x16x216xbf16> to vector<16x216xbf16>
    %c19_i32_131 = arith.constant 19 : i32
    %304 = tpu.dynamic_rotate %301 by %c19_i32_131 dim 1 : vector<24x768xf32>, i32 -> vector<24x768xf32>
    %c18_i32_132 = arith.constant 18 : i32
    %305 = tpu.dynamic_rotate %301 by %c18_i32_132 dim 1 : vector<24x768xf32>, i32 -> vector<24x768xf32>
    %c17_i32_133 = arith.constant 17 : i32
    %306 = tpu.dynamic_rotate %301 by %c17_i32_133 dim 1 : vector<24x768xf32>, i32 -> vector<24x768xf32>
    %c1_i32_134 = arith.constant 1 : i32
    %307 = tpu.dynamic_rotate %301 by %c1_i32_134 dim 1 : vector<24x768xf32>, i32 -> vector<24x768xf32>
    %c767_i32_135 = arith.constant 767 : i32
    %308 = tpu.dynamic_rotate %301 by %c767_i32_135 dim 1 : vector<24x768xf32>, i32 -> vector<24x768xf32>
    %c751_i32_136 = arith.constant 751 : i32
    %309 = tpu.dynamic_rotate %301 by %c751_i32_136 dim 1 : vector<24x768xf32>, i32 -> vector<24x768xf32>
    %c750_i32_137 = arith.constant 750 : i32
    %310 = tpu.dynamic_rotate %301 by %c750_i32_137 dim 1 : vector<24x768xf32>, i32 -> vector<24x768xf32>
    %c749_i32_138 = arith.constant 749 : i32
    %311 = tpu.dynamic_rotate %301 by %c749_i32_138 dim 1 : vector<24x768xf32>, i32 -> vector<24x768xf32>
    %312 = tpu.concatenate %304, %305, %306, %307, %301, %308, %309, %310, %311 in 0 : vector<24x768xf32>, vector<24x768xf32>, vector<24x768xf32>, vector<24x768xf32>, vector<24x768xf32>, vector<24x768xf32>, vector<24x768xf32>, vector<24x768xf32>, vector<24x768xf32> -> vector<216x768xf32>
    %313 = arith.truncf %312 : vector<216x768xf32> to vector<216x768xbf16>
    %cst_139 = arith.constant dense<0.000000e+00> : vector<16x768xf32>
    %314 = tpu.matmul %303, %313, %cst_139 {dimension_numbers = #tpu.dot_dimension_numbers<[1], [0], [0], [1], [0, 0, 1, 1], [], []>} : vector<16x216xbf16>, vector<216x768xbf16>, vector<16x768xf32> -> vector<16x768xf32>
    %c0_140 = arith.constant 0 : index
    %c7 = arith.constant 7 : index
    %315 = vector.load %arg6[%c0_140, %c7] : memref<16x8xf32, #tpu.memory_space<vmem>>, vector<16x1xf32>
    %c0_141 = arith.constant 0 : index
    %c7_142 = arith.constant 7 : index
    %316 = vector.load %arg7[%c0_141, %c7_142] : memref<16x8xf32, #tpu.memory_space<vmem>>, vector<16x1xf32>
    %317 = vector.broadcast %0 : vector<1x768xf32> to vector<16x768xf32>
    %318 = arith.mulf %314, %317 : vector<16x768xf32>
    %cst_143 = arith.constant dense<0.000000e+00> : vector<16xf32>
    %319 = vector.multi_reduction <add>, %318, %cst_143 [1] : vector<16x768xf32> to vector<16xf32>
    %320 = vector.shape_cast %319 : vector<16xf32> to vector<16x1xf32>
    %cst_144 = arith.constant 0.001953125 : f32
    %321 = vector.broadcast %cst_144 : f32 to vector<16x1xf32>
    %322 = arith.mulf %320, %321 : vector<16x1xf32>
    %323 = vector.broadcast %322 : vector<16x1xf32> to vector<16x768xf32>
    %324 = arith.subf %314, %323 : vector<16x768xf32>
    %325 = vector.broadcast %0 : vector<1x768xf32> to vector<16x768xf32>
    %326 = arith.mulf %324, %325 : vector<16x768xf32>
    %327 = arith.mulf %326, %326 : vector<16x768xf32>
    %cst_145 = arith.constant dense<0.000000e+00> : vector<16xf32>
    %328 = vector.multi_reduction <add>, %327, %cst_145 [1] : vector<16x768xf32> to vector<16xf32>
    %329 = vector.shape_cast %328 : vector<16xf32> to vector<16x1xf32>
    %cst_146 = arith.constant 0.001953125 : f32
    %330 = vector.broadcast %cst_146 : f32 to vector<16x1xf32>
    %331 = arith.mulf %329, %330 : vector<16x1xf32>
    %332 = vector.broadcast %322 : vector<16x1xf32> to vector<16x768xf32>
    %333 = arith.subf %314, %332 : vector<16x768xf32>
    %cst_147 = arith.constant 9.99999974E-6 : f32
    %334 = vector.broadcast %cst_147 : f32 to vector<16x1xf32>
    %335 = arith.addf %331, %334 : vector<16x1xf32>
    %336 = math.rsqrt %335 : vector<16x1xf32>
    %337 = vector.broadcast %336 : vector<16x1xf32> to vector<16x768xf32>
    %338 = arith.mulf %333, %337 : vector<16x768xf32>
    %339 = vector.broadcast %315 : vector<16x1xf32> to vector<16x768xf32>
    %340 = arith.mulf %338, %339 : vector<16x768xf32>
    %341 = vector.broadcast %316 : vector<16x1xf32> to vector<16x768xf32>
    %342 = arith.addf %340, %341 : vector<16x768xf32>
    %cst_148 = arith.constant 0.000000e+00 : f32
    %343 = vector.broadcast %cst_148 : f32 to vector<16x768xf32>
    %344 = arith.maximumf %342, %343 : vector<16x768xf32>
    %345 = vector.broadcast %0 : vector<1x768xf32> to vector<16x768xf32>
    %346 = arith.mulf %344, %345 : vector<16x768xf32>
    %c0_149 = arith.constant 0 : index
    %c0_150 = arith.constant 0 : index
    %347 = vector.load %arg5[%c0_149, %c0_150] : memref<3x16xf32, #tpu.memory_space<vmem>>, vector<3x16xf32>
    %cst_151 = arith.constant dense<0.000000e+00> : vector<3x768xf32>
    %348 = tpu.matmul %347, %346, %cst_151 {dimension_numbers = #tpu.dot_dimension_numbers<[1], [0], [0], [1], [0, 0, 1, 1], [], []>} : vector<3x16xf32>, vector<16x768xf32>, vector<3x768xf32> -> vector<3x768xf32>
    %c0_152 = arith.constant 0 : index
    %c0_153 = arith.constant 0 : index
    %349 = vector.load %arg8[%c0_152, %c0_153] : memref<3x1xf32, #tpu.memory_space<vmem>>, vector<3x1xf32>
    %350 = vector.broadcast %349 : vector<3x1xf32> to vector<3x768xf32>
    %351 = arith.addf %348, %350 : vector<3x768xf32>
    %cst_154 = arith.constant dense<0xFF800000> : vector<768xf32>
    %352 = vector.multi_reduction <maximumf>, %351, %cst_154 [0] : vector<3x768xf32> to vector<768xf32>
    %353 = vector.shape_cast %352 : vector<768xf32> to vector<1x768xf32>
    %354 = vector.broadcast %353 : vector<1x768xf32> to vector<3x768xf32>
    %355 = arith.subf %351, %354 : vector<3x768xf32>
    %356 = math.exp %355 : vector<3x768xf32>
    %cst_155 = arith.constant dense<0.000000e+00> : vector<768xf32>
    %357 = vector.multi_reduction <add>, %356, %cst_155 [0] : vector<3x768xf32> to vector<768xf32>
    %358 = vector.shape_cast %357 : vector<768xf32> to vector<1x768xf32>
    %359 = tpu.reciprocal %358 {approx = true} : vector<1x768xf32> -> vector<1x768xf32>
    %360 = vector.broadcast %359 : vector<1x768xf32> to vector<3x768xf32>
    %361 = arith.mulf %356, %360 : vector<3x768xf32>
    %c0_156 = arith.constant 0 : index
    %c0_157 = arith.constant 0 : index
    %362 = vector.load %arg9[%c0_156, %c0_157] : memref<3x768xf32, #tpu.memory_space<vmem>>, vector<3x768xf32>
    tpu.vector_store %arg9[%c0_156, %c0_157], %361 {strides = array<i32>} : memref<3x768xf32, #tpu.memory_space<vmem>>, vector<3x768xf32>,
    return
  }
}

</mosaic_0001>

<llo_original>
// kernel: fcn_pallas.1
$region0: #{fcn_pallas.1}
  #allocation0 [shape = 'u32[]', space=smem, size = 0x4, offset = 0x4, fixed_abs, tag = 'smem constant byte address 0x4 - core index']
  #allocation1 [shape = 'u32[144,128]{1,0:T(1,128)}', space=vmem, size = 0x12000, scoped, tag = 'internal scratch']
  %s0 = inlined_call_operand.vmem [shape: f32[8,768], index: 0, kind: input, shape index: {}]
  %s1 = inlined_call_operand.vmem [shape: f32[8,768], index: 1, kind: input, shape index: {}]
  %s2 = inlined_call_operand.vmem [shape: f32[1,768], index: 2, kind: input, shape index: {}]
  %s3 = inlined_call_operand.vmem [shape: bf16[5,16,216], index: 3, kind: input, shape index: {}]
  %s4 = inlined_call_operand.vmem [shape: f32[5,8,8], index: 4, kind: input, shape index: {}]
  %s5 = inlined_call_operand.vmem [shape: f32[3,16], index: 5, kind: input, shape index: {}]
  %s6 = inlined_call_operand.vmem [shape: f32[16,8], index: 6, kind: input, shape index: {}]
  %s7 = inlined_call_operand.vmem [shape: f32[16,8], index: 7, kind: input, shape index: {}]
  %s8 = inlined_call_operand.vmem [shape: f32[3,1], index: 8, kind: input, shape index: {}]
  %s9 = inlined_call_operand.vmem [shape: f32[3,768], index: 9, kind: output, shape index: {}]
  %s10 = sld [smem:[#allocation0]]
  $region46: #{fcn_pallas.1} parent=0
    _
  %s12 = ssub.s32 1, %s10
  %s13 = scalar_select 0, %s12, %s10
  // Predicated region
  $region2: #{fcn_pallas.1} parent=0 // pred_check
    _
  $region3: #{fcn_pallas.1} parent=0 // pred_check_branch
    %15 = sbr.rel (0) target = $region5
  $region4: #{fcn_pallas.1} parent=0 // pred_region
    _
  $region5: #{fcn_pallas.1} parent=0 // pred_fallthru
    _
  // Predicated region
  $region6: #{fcn_pallas.1} parent=0 // pred_check
    _
  $region7: #{fcn_pallas.1} parent=0 // pred_check_branch
    %17 = sbr.rel (0) target = $region9
  $region8: #{fcn_pallas.1} parent=0 // pred_region
    _
  $region9: #{fcn_pallas.1} parent=0 // pred_fallthru
    _
  // Predicated region
  $region10: #{fcn_pallas.1} parent=0 // pred_check
    _
  $region11: #{fcn_pallas.1} parent=0 // pred_check_branch
    %19 = sbr.rel (0) target = $region13
  $region12: #{fcn_pallas.1} parent=0 // pred_region
    _
  $region13: #{fcn_pallas.1} parent=0 // pred_fallthru
    _
  // Predicated region
  $region14: #{fcn_pallas.1} parent=0 // pred_check
    _
  $region15: #{fcn_pallas.1} parent=0 // pred_check_branch
    %21 = sbr.rel (0) target = $region17
  $region16: #{fcn_pallas.1} parent=0 // pred_region
    _
  $region17: #{fcn_pallas.1} parent=0 // pred_fallthru
    _
  // Predicated region
  $region18: #{fcn_pallas.1} parent=0 // pred_check
    _
  $region19: #{fcn_pallas.1} parent=0 // pred_check_branch
    %23 = sbr.rel (0) target = $region21
  $region20: #{fcn_pallas.1} parent=0 // pred_region
    _
  $region21: #{fcn_pallas.1} parent=0 // pred_fallthru
    _
  // Predicated region
  $region22: #{fcn_pallas.1} parent=0 // pred_check
    _
  $region23: #{fcn_pallas.1} parent=0 // pred_check_branch
    %25 = sbr.rel (0) target = $region25
  $region24: #{fcn_pallas.1} parent=0 // pred_region
    _
  $region25: #{fcn_pallas.1} parent=0 // pred_fallthru
    _
  // Predicated region
  $region26: #{fcn_pallas.1} parent=0 // pred_check
    _
  $region27: #{fcn_pallas.1} parent=0 // pred_check_branch
    %27 = sbr.rel (0) target = $region29
  $region28: #{fcn_pallas.1} parent=0 // pred_region
    _
  $region29: #{fcn_pallas.1} parent=0 // pred_fallthru
    _
  // Predicated region
  $region30: #{fcn_pallas.1} parent=0 // pred_check
    _
  $region31: #{fcn_pallas.1} parent=0 // pred_check_branch
    %29 = sbr.rel (0) target = $region33
  $region32: #{fcn_pallas.1} parent=0 // pred_region
    _
  $region33: #{fcn_pallas.1} parent=0 // pred_fallthru
    _
  // Predicated region
  $region34: #{fcn_pallas.1} parent=0 // pred_check
    _
  $region35: #{fcn_pallas.1} parent=0 // pred_check_branch
    %31 = sbr.rel (0) target = $region37
  $region36: #{fcn_pallas.1} parent=0 // pred_region
    _
  $region37: #{fcn_pallas.1} parent=0 // pred_fallthru
    _
  %v33 = vld [vmem:[%s2] sm:$0x3f]
  %v34 = vld [vmem:[%s1] sm:$0xff]
  %v35 = vld [vmem:[%s1 + $0x8] sm:$0xff]
  %v36 = vld [vmem:[%s1 + $0x10] sm:$0xff]
  %v37 = vld [vmem:[%s1 + $0x18] sm:$0xff]
  %v38 = vld [vmem:[%s1 + $0x20] sm:$0xff]
  %v39 = vld [vmem:[%s1 + $0x28] sm:$0xff]
  %v40 = vld [vmem:[%s4] sm:$0xff]
  %vm41 = vcmask 64512
  %v43 = vsel %vm41, %v40, 0
  %45 = vmatprep.subr.mxu0 %v35
  %46 = vmatpush1.msra.mxu0 %v34
  %47 = vmatprep.subr.mxu0 0.0
  %48 = vmatpush1.msra.mxu0 0.0
  %49 = vmatprep.subr.mxu0 0.0
  %50 = vmatpush1.msra.mxu0 0.0
  %51 = vmatprep.subr.mxu0 0.0
  %52 = vmatpush1.msra.mxu0 0.0
  %53 = vmatprep.subr.mxu0 0.0
  %54 = vmatpush1.msra.mxu0 0.0
  %55 = vmatprep.subr.mxu0 0.0
  %56 = vmatpush1.msra.mxu0 0.0
  %57 = vmatprep.subr.mxu0 0.0
  %58 = vmatpush1.msra.mxu0 0.0
  %59 = vmatprep.subr.mxu0 0.0
  %60 = vmatpush1.msra.mxu0 0.0
  %61 = vmatprep.subr.mxu0 0.0
  %62 = vmatpush1.msra.mxu0 0.0
  %63 = vmatprep.subr.mxu0 0.0
  %64 = vmatpush1.msra.mxu0 0.0
  %65 = vmatprep.subr.mxu0 0.0
  %66 = vmatpush1.msra.mxu0 0.0
  %67 = vmatprep.subr.mxu0 0.0
  %68 = vmatpush1.msra.mxu0 0.0
  %69 = vmatprep.subr.mxu0 0.0
  %70 = vmatpush1.msra.mxu0 0.0
  %71 = vmatprep.subr.mxu0 0.0
  %72 = vmatpush1.msra.mxu0 0.0
  %73 = vmatprep.subr.mxu0 0.0
  %74 = vmatpush1.msra.mxu0 0.0
  %75 = vmatprep.subr.mxu0 0.0
  %76 = vmatpush1.msra.mxu0 0.0
  %77 = vmatprep.subr.mxu0 0.0
  %78 = vmatpush1.msra.mxu0 0.0
  %79 = vmatprep.subr.mxu0 0.0
  %80 = vmatpush1.msra.mxu0 0.0
  %81 = vmatprep.subr.mxu0 0.0
  %82 = vmatpush1.msra.mxu0 0.0
  %83 = vmatprep.subr.mxu0 0.0
  %84 = vmatpush1.msra.mxu0 0.0
  %85 = vmatprep.subr.mxu0 0.0
  %86 = vmatpush1.msra.mxu0 0.0
  %87 = vmatprep.subr.mxu0 0.0
  %88 = vmatpush1.msra.mxu0 0.0
  %89 = vmatprep.subr.mxu0 0.0
  %90 = vmatpush1.msra.mxu0 0.0
  %91 = vmatprep.subr.mxu0 0.0
  %92 = vmatpush1.msra.mxu0 0.0
  %93 = vmatprep.subr.mxu0 0.0
  %94 = vmatpush1.msra.mxu0 0.0
  %95 = vmatprep.subr.mxu0 0.0
  %96 = vmatpush1.msra.mxu0 0.0
  %97 = vmatprep.subr.mxu0 0.0
  %98 = vmatpush1.msra.mxu0 0.0
  %99 = vmatprep.subr.mxu0 0.0
  %100 = vmatpush1.msra.mxu0 0.0
  %101 = vmatprep.subr.mxu0 0.0
  %102 = vmatpush1.msra.mxu0 0.0
  %103 = vmatprep.subr.mxu0 0.0
  %104 = vmatpush1.msra.mxu0 0.0
  %105 = vmatprep.subr.mxu0 0.0
  %106 = vmatpush1.msra.mxu0 0.0
  %107 = vmatprep.subr.mxu0 0.0
  %108 = vmatpush1.msra.mxu0 0.0
  %109 = vmatprep.mubr.f32.mxu0 0.0
  %110 = vmatmul.mubr.f32.gmra.mrb[0].mxu0 %v43
  %v111 = vpop.f32.mrb[0].mxu0
  %v112 = vadd.f32 0.0, %v111
  %v113 = vpop.f32.mrb[0].mxu0
  %v114 = vadd.f32 0.0, %v113
  %115 = vdwg.mxu0
  %116 = vmatprep.subr.mxu0 %v37
  %117 = vmatpush1.msra.mxu0 %v36
  %118 = vmatprep.subr.mxu0 0.0
  %119 = vmatpush1.msra.mxu0 0.0
  %120 = vmatprep.subr.mxu0 0.0
  %121 = vmatpush1.msra.mxu0 0.0
  %122 = vmatprep.subr.mxu0 0.0
  %123 = vmatpush1.msra.mxu0 0.0
  %124 = vmatprep.subr.mxu0 0.0
  %125 = vmatpush1.msra.mxu0 0.0
  %126 = vmatprep.subr.mxu0 0.0
  %127 = vmatpush1.msra.mxu0 0.0
  %128 = vmatprep.subr.mxu0 0.0
  %129 = vmatpush1.msra.mxu0 0.0
  %130 = vmatprep.subr.mxu0 0.0
  %131 = vmatpush1.msra.mxu0 0.0
  %132 = vmatprep.subr.mxu0 0.0
  %133 = vmatpush1.msra.mxu0 0.0
  %134 = vmatprep.subr.mxu0 0.0
  %135 = vmatpush1.msra.mxu0 0.0
  %136 = vmatprep.subr.mxu0 0.0
  %137 = vmatpush1.msra.mxu0 0.0
  %138 = vmatprep.subr.mxu0 0.0
  %139 = vmatpush1.msra.mxu0 0.0
  %140 = vmatprep.subr.mxu0 0.0
  %141 = vmatpush1.msra.mxu0 0.0
  %142 = vmatprep.subr.mxu0 0.0
  %143 = vmatpush1.msra.mxu0 0.0
  %144 = vmatprep.subr.mxu0 0.0
  %145 = vmatpush1.msra.mxu0 0.0
  %146 = vmatprep.subr.mxu0 0.0
  %147 = vmatpush1.msra.mxu0 0.0
  %148 = vmatprep.subr.mxu0 0.0
  %149 = vmatpush1.msra.mxu0 0.0
  %150 = vmatprep.subr.mxu0 0.0
  %151 = vmatpush1.msra.mxu0 0.0
  %152 = vmatprep.subr.mxu0 0.0
  %153 = vmatpush1.msra.mxu0 0.0
  %154 = vmatprep.subr.mxu0 0.0
  %155 = vmatpush1.msra.mxu0 0.0
  %156 = vmatprep.subr.mxu0 0.0
  %157 = vmatpush1.msra.mxu0 0.0
  %158 = vmatprep.subr.mxu0 0.0
  %159 = vmatpush1.msra.mxu0 0.0
  %160 = vmatprep.subr.mxu0 0.0
  %161 = vmatpush1.msra.mxu0 0.0
  %162 = vmatprep.subr.mxu0 0.0
  %163 = vmatpush1.msra.mxu0 0.0
  %164 = vmatprep.subr.mxu0 0.0
  %165 = vmatpush1.msra.mxu0 0.0
  %166 = vmatprep.subr.mxu0 0.0
  %167 = vmatpush1.msra.mxu0 0.0
  %168 = vmatprep.subr.mxu0 0.0
  %169 = vmatpush1.msra.mxu0 0.0
  %170 = vmatprep.subr.mxu0 0.0
  %171 = vmatpush1.msra.mxu0 0.0
  %172 = vmatprep.subr.mxu0 0.0
  %173 = vmatpush1.msra.mxu0 0.0
  %174 = vmatprep.subr.mxu0 0.0
  %175 = vmatpush1.msra.mxu0 0.0
  %176 = vmatprep.subr.mxu0 0.0
  %177 = vmatpush1.msra.mxu0 0.0
  %178 = vmatprep.subr.mxu0 0.0
  %179 = vmatpush1.msra.mxu0 0.0
  %180 = vmatprep.mubr.f32.mxu0 0.0
  %181 = vmatmul.mubr.f32.gmra.mrb[0].mxu0 %v43
  %v182 = vpop.f32.mrb[0].mxu0
  %v183 = vadd.f32 0.0, %v182
  %v184 = vpop.f32.mrb[0].mxu0
  %v185 = vadd.f32 0.0, %v184
  %186 = vdwg.mxu0
  %187 = vmatprep.subr.mxu0 %v39
  %188 = vmatpush1.msra.mxu0 %v38
  %189 = vmatprep.subr.mxu0 0.0
  %190 = vmatpush1.msra.mxu0 0.0
  %191 = vmatprep.subr.mxu0 0.0
  %192 = vmatpush1.msra.mxu0 0.0
  %193 = vmatprep.subr.mxu0 0.0
  %194 = vmatpush1.msra.mxu0 0.0
  %195 = vmatprep.subr.mxu0 0.0
  %196 = vmatpush1.msra.mxu0 0.0
  %197 = vmatprep.subr.mxu0 0.0
  %198 = vmatpush1.msra.mxu0 0.0
  %199 = vmatprep.subr.mxu0 0.0
  %200 = vmatpush1.msra.mxu0 0.0
  %201 = vmatprep.subr.mxu0 0.0
  %202 = vmatpush1.msra.mxu0 0.0
  %203 = vmatprep.subr.mxu0 0.0
  %204 = vmatpush1.msra.mxu0 0.0
  %205 = vmatprep.subr.mxu0 0.0
  %206 = vmatpush1.msra.mxu0 0.0
  %207 = vmatprep.subr.mxu0 0.0
  %208 = vmatpush1.msra.mxu0 0.0
  %209 = vmatprep.subr.mxu0 0.0
  %210 = vmatpush1.msra.mxu0 0.0
  %211 = vmatprep.subr.mxu0 0.0
  %212 = vmatpush1.msra.mxu0 0.0
  %213 = vmatprep.subr.mxu0 0.0
  %214 = vmatpush1.msra.mxu0 0.0
  %215 = vmatprep.subr.mxu0 0.0
  %216 = vmatpush1.msra.mxu0 0.0
  %217 = vmatprep.subr.mxu0 0.0
  %218 = vmatpush1.msra.mxu0 0.0
  %219 = vmatprep.subr.mxu0 0.0
  %220 = vmatpush1.msra.mxu0 0.0
  %221 = vmatprep.subr.mxu0 0.0
  %222 = vmatpush1.msra.mxu0 0.0
  %223 = vmatprep.subr.mxu0 0.0
  %224 = vmatpush1.msra.mxu0 0.0
  %225 = vmatprep.subr.mxu0 0.0
  %226 = vmatpush1.msra.mxu0 0.0
  %227 = vmatprep.subr.mxu0 0.0
  %228 = vmatpush1.msra.mxu0 0.0
  %229 = vmatprep.subr.mxu0 0.0
  %230 = vmatpush1.msra.mxu0 0.0
  %231 = vmatprep.subr.mxu0 0.0
  %232 = vmatpush1.msra.mxu0 0.0
  %233 = vmatprep.subr.mxu0 0.0
  %234 = vmatpush1.msra.mxu0 0.0
  %235 = vmatprep.subr.mxu0 0.0
  %236 = vmatpush1.msra.mxu0 0.0
  %237 = vmatprep.subr.mxu0 0.0
  %238 = vmatpush1.msra.mxu0 0.0
  %239 = vmatprep.subr.mxu0 0.0
  %240 = vmatpush1.msra.mxu0 0.0
  %241 = vmatprep.subr.mxu0 0.0
  %242 = vmatpush1.msra.mxu0 0.0
  %243 = vmatprep.subr.mxu0 0.0
  %244 = vmatpush1.msra.mxu0 0.0
  %245 = vmatprep.subr.mxu0 0.0
  %246 = vmatpush1.msra.mxu0 0.0
  %247 = vmatprep.subr.mxu0 0.0
  %248 = vmatpush1.msra.mxu0 0.0
  %249 = vmatprep.subr.mxu0 0.0
  %250 = vmatpush1.msra.mxu0 0.0
  %251 = vmatprep.mubr.f32.mxu0 0.0
  %252 = vmatmul.mubr.f32.gmra.mrb[0].mxu0 %v43
  %v253 = vpop.f32.mrb[0].mxu0
  %v254 = vadd.f32 0.0, %v253
  %v255 = vpop.f32.mrb[0].mxu0
  %v256 = vadd.f32 0.0, %v255
  %257 = vdwg.mxu0
  %s258 = scalar_lea.vmem %s4, 8
  %v259 = vld [vmem:[%s258] sm:$0xff]
  %v260 = vand.u32 2147483647, %v112
  %vm261 = vcmp.le.f32.partialorder %v260, 0.7853982
  %vm262 = vcmp.lt.s32.totalorder %v112, 0
  %v263 = vand.u32 %v112, 2139095040
  %v264 = vshrl.u32 %v263, 23
  %v265 = vsub.s32 %v264, 127
  %v266 = vand.u32 2147483647, %v112
  %v267 = vand.u32 %v266, 8388607
  %v268 = vor.u32 %v267, 8388608
  %v269 = vsub.s32 0, %v268
  %v270 = vadd.s32 %v265, 1
  %vm271 = vcmp.gt.s32.totalorder %v270, 0
  %v272 = vsel %vm271, %v270, 0
  %v273 = vshrl.u32 %v272, 5
  %v274 = vand.u32 %v272, 31
  %v275 = vsub.s32 32, %v274
  %v276 = vshrl.u32 683565275, %v275
  %v277 = vshll.u32 683565275, %v274
  %v278 = vshrl.u32 2475754826, %v275
  %v279 = vor.u32 %v277, %v278
  %v280 = vshll.u32 2475754826, %v274
  %v281 = vshrl.u32 2131351028, %v275
  %v282 = vor.u32 %v280, %v281
  %v283 = vshll.u32 2131351028, %v274
  %v284 = vshrl.u32 2102212464, %v275
  %v285 = vor.u32 %v283, %v284
  %v286 = vshll.u32 2102212464, %v274
  %v287 = vshrl.u32 920167782, %v275
  %v288 = vor.u32 %v286, %v287
  %v289 = vshll.u32 920167782, %v274
  %v290 = vshrl.u32 1326507024, %v275
  %v291 = vor.u32 %v289, %v290
  %vm292 = vcmp.lt.s32.totalorder %v273, 1
  %vm293 = vcmp.lt.s32.totalorder %v273, 2
  %vm294 = vcmp.lt.s32.totalorder %v273, 3
  %vm295 = vcmp.lt.s32.totalorder %v273, 4
  %v296 = vsel %vm292, %v276, %v279
  %v297 = vsel %vm295, %v285, 2102212464
  %v298 = vsel %vm294, %v282, %v297
  %v299 = vsel %vm293, %v296, %v298
  %v300 = vsel %vm292, %v279, %v282
  %v301 = vsel %vm295, %v288, 920167782
  %v302 = vsel %vm294, %v285, %v301
  %v303 = vsel %vm293, %v300, %v302
  %v304 = vsel %vm292, %v282, %v285
  %v305 = vsel %vm295, %v291, 1326507024
  %v306 = vsel %vm294, %v288, %v305
  %v307 = vsel %vm293, %v304, %v306
  %v308 = vshll.u32 %v268, 8
  %v309 = vmul.u32.u64.compose %v308, %v307
  %v310 = vextract.low.u32 %v309
  %v311 = vextract.high.u32 %v309
  %v312 = vmul.u32.u64.compose %v308, %v303
  %v313 = vextract.low.u32 %v312
  %v314 = vextract.high.u32 %v312
  %v315 = vmul.u32 %v308, %v299
  %v316 = vadd.s32 %v311, %v313
  %vm317 = vc.u32 %v311, %v313
  %v318 = vadd.s32 %v314, 1
  %v319 = vsel %vm317, %v318, %v314
  %v320 = vadd.s32 %v315, %v319
  %v321 = vadd.s32 %v320, 536870912
  %v322 = vshrl.u32 %v321, 30
  %v323 = vshll.u32 %v322, 30
  %v324 = vsub.s32 %v320, %v323
  %vm325 = vcmp.lt.s32.totalorder %v324, 0
  %v326 = vsub.s32 0, %v324
  %v327 = vsel %vm325, %v326, %v324
  %v328 = vclz %v327
  %v329 = vsub.s32 %v328, 2
  %vm330 = vcmp.gt.s32.totalorder 0, %v329
  %v331 = vsel %vm330, 0, %v329
  %v332 = vsub.s32 32, %v331
  %v333 = vshll.u32 %v324, %v331
  %v334 = vshrl.u32 %v316, %v332
  %v335 = vor.u32 %v333, %v334
  %v336 = vsub.s32 4294967266, %v331
  %v337 = vadd.s32 %v336, 127
  %v338 = vshll.u32 %v337, 23
  %v339 = vor.u32 4788187, %v338
  %v340 = vand.u32 2147483647, %v339
  %v342 = vcvt.s32.f32 %v335
  %v343 = vmul.f32 %v342, %v340
  %v344 = vxor.u32 %v343, 2147483648
  %v345 = vsel %vm262, %v344, %v343
  %v346 = vsub.s32 4, %v322
  %v347 = vsel %vm262, %v346, %v322
  %v348 = vsel %vm261, %v112, %v345
  %v349 = vsel %vm261, 0, %v347
  %v350 = vcosq.f32.pop %v348
  %v351 = vsinq.f32.pop %v348
  %vm352 = vweird.f32 %v112
  %v353 = vadd.s32 %v349, 3
  %v354 = vand.u32 %v353, 3
  %vm355 = vcmp.lt.s32.totalorder %v354, 2
  %vm356 = vcmp.eq.s32.totalorder %v354, 0
  %v357 = vxor.u32 %v351, 2147483648
  %v358 = vsel %vm356, %v350, %v357
  %vm359 = vcmp.eq.s32.totalorder %v354, 2
  %v360 = vxor.u32 %v350, 2147483648
  %v361 = vsel %vm359, %v360, %v351
  %v362 = vsel %vm355, %v358, %v361
  %v363 = vsel %vm352, nan, %v362
  %v364 = vand.u32 2147483647, %v114
  %vm365 = vcmp.le.f32.partialorder %v364, 0.7853982
  %vm366 = vcmp.lt.s32.totalorder %v114, 0
  %v367 = vand.u32 %v114, 2139095040
  %v368 = vshrl.u32 %v367, 23
  %v369 = vsub.s32 %v368, 127
  %v370 = vand.u32 2147483647, %v114
  %v371 = vand.u32 %v370, 8388607
  %v372 = vor.u32 %v371, 8388608
  %v373 = vsub.s32 0, %v372
  %v374 = vadd.s32 %v369, 1
  %vm375 = vcmp.gt.s32.totalorder %v374, 0
  %v376 = vsel %vm375, %v374, 0
  %v377 = vshrl.u32 %v376, 5
  %v378 = vand.u32 %v376, 31
  %v379 = vsub.s32 32, %v378
  %v380 = vshrl.u32 683565275, %v379
  %v381 = vshll.u32 683565275, %v378
  %v382 = vshrl.u32 2475754826, %v379
  %v383 = vor.u32 %v381, %v382
  %v384 = vshll.u32 2475754826, %v378
  %v385 = vshrl.u32 2131351028, %v379
  %v386 = vor.u32 %v384, %v385
  %v387 = vshll.u32 2131351028, %v378
  %v388 = vshrl.u32 2102212464, %v379
  %v389 = vor.u32 %v387, %v388
  %v390 = vshll.u32 2102212464, %v378
  %v391 = vshrl.u32 920167782, %v379
  %v392 = vor.u32 %v390, %v391
  %v393 = vshll.u32 920167782, %v378
  %v394 = vshrl.u32 1326507024, %v379
  %v395 = vor.u32 %v393, %v394
  %vm396 = vcmp.lt.s32.totalorder %v377, 1
  %vm397 = vcmp.lt.s32.totalorder %v377, 2
  %vm398 = vcmp.lt.s32.totalorder %v377, 3
  %vm399 = vcmp.lt.s32.totalorder %v377, 4
  %v400 = vsel %vm396, %v380, %v383
  %v401 = vsel %vm399, %v389, 2102212464
  %v402 = vsel %vm398, %v386, %v401
  %v403 = vsel %vm397, %v400, %v402
  %v404 = vsel %vm396, %v383, %v386
  %v405 = vsel %vm399, %v392, 920167782
  %v406 = vsel %vm398, %v389, %v405
  %v407 = vsel %vm397, %v404, %v406
  %v408 = vsel %vm396, %v386, %v389
  %v409 = vsel %vm399, %v395, 1326507024
  %v410 = vsel %vm398, %v392, %v409
  %v411 = vsel %vm397, %v408, %v410
  %v412 = vshll.u32 %v372, 8
  %v413 = vmul.u32.u64.compose %v412, %v411
  %v414 = vextract.low.u32 %v413
  %v415 = vextract.high.u32 %v413
  %v416 = vmul.u32.u64.compose %v412, %v407
  %v417 = vextract.low.u32 %v416
  %v418 = vextract.high.u32 %v416
  %v419 = vmul.u32 %v412, %v403
  %v420 = vadd.s32 %v415, %v417
  %vm421 = vc.u32 %v415, %v417
  %v422 = vadd.s32 %v418, 1
  %v423 = vsel %vm421, %v422, %v418
  %v424 = vadd.s32 %v419, %v423
  %v425 = vadd.s32 %v424, 536870912
  %v426 = vshrl.u32 %v425, 30
  %v427 = vshll.u32 %v426, 30
  %v428 = vsub.s32 %v424, %v427
  %vm429 = vcmp.lt.s32.totalorder %v428, 0
  %v430 = vsub.s32 0, %v428
  %v431 = vsel %vm429, %v430, %v428
  %v432 = vclz %v431
  %v433 = vsub.s32 %v432, 2
  %vm434 = vcmp.gt.s32.totalorder 0, %v433
  %v435 = vsel %vm434, 0, %v433
  %v436 = vsub.s32 32, %v435
  %v437 = vshll.u32 %v428, %v435
  %v438 = vshrl.u32 %v420, %v436
  %v439 = vor.u32 %v437, %v438
  %v440 = vsub.s32 4294967266, %v435
  %v441 = vadd.s32 %v440, 127
  %v442 = vshll.u32 %v441, 23
  %v443 = vor.u32 4788187, %v442
  %v444 = vand.u32 2147483647, %v443
  %v446 = vcvt.s32.f32 %v439
  %v447 = vmul.f32 %v446, %v444
  %v448 = vxor.u32 %v447, 2147483648
  %v449 = vsel %vm366, %v448, %v447
  %v450 = vsub.s32 4, %v426
  %v451 = vsel %vm366, %v450, %v426
  %v452 = vsel %vm365, %v114, %v449
  %v453 = vsel %vm365, 0, %v451
  %v454 = vcosq.f32.pop %v452
  %v455 = vsinq.f32.pop %v452
  %vm456 = vweird.f32 %v114
  %v457 = vadd.s32 %v453, 3
  %v458 = vand.u32 %v457, 3
  %vm459 = vcmp.lt.s32.totalorder %v458, 2
  %vm460 = vcmp.eq.s32.totalorder %v458, 0
  %v461 = vxor.u32 %v455, 2147483648
  %v462 = vsel %vm460, %v454, %v461
  %vm463 = vcmp.eq.s32.totalorder %v458, 2
  %v464 = vxor.u32 %v454, 2147483648
  %v465 = vsel %vm463, %v464, %v455
  %v466 = vsel %vm459, %v462, %v465
  %v467 = vsel %vm456, nan, %v466
  %v468 = vand.u32 2147483647, %v183
  %vm469 = vcmp.le.f32.partialorder %v468, 0.7853982
  %vm470 = vcmp.lt.s32.totalorder %v183, 0
  %v471 = vand.u32 %v183, 2139095040
  %v472 = vshrl.u32 %v471, 23
  %v473 = vsub.s32 %v472, 127
  %v474 = vand.u32 2147483647, %v183
  %v475 = vand.u32 %v474, 8388607
  %v476 = vor.u32 %v475, 8388608
  %v477 = vsub.s32 0, %v476
  %v478 = vadd.s32 %v473, 1
  %vm479 = vcmp.gt.s32.totalorder %v478, 0
  %v480 = vsel %vm479, %v478, 0
  %v481 = vshrl.u32 %v480, 5
  %v482 = vand.u32 %v480, 31
  %v483 = vsub.s32 32, %v482
  %v484 = vshrl.u32 683565275, %v483
  %v485 = vshll.u32 683565275, %v482
  %v486 = vshrl.u32 2475754826, %v483
  %v487 = vor.u32 %v485, %v486
  %v488 = vshll.u32 2475754826, %v482
  %v489 = vshrl.u32 2131351028, %v483
  %v490 = vor.u32 %v488, %v489
  %v491 = vshll.u32 2131351028, %v482
  %v492 = vshrl.u32 2102212464, %v483
  %v493 = vor.u32 %v491, %v492
  %v494 = vshll.u32 2102212464, %v482
  %v495 = vshrl.u32 920167782, %v483
  %v496 = vor.u32 %v494, %v495
  %v497 = vshll.u32 920167782, %v482
  %v498 = vshrl.u32 1326507024, %v483
  %v499 = vor.u32 %v497, %v498
  %vm500 = vcmp.lt.s32.totalorder %v481, 1
  %vm501 = vcmp.lt.s32.totalorder %v481, 2
  %vm502 = vcmp.lt.s32.totalorder %v481, 3
  %vm503 = vcmp.lt.s32.totalorder %v481, 4
  %v504 = vsel %vm500, %v484, %v487
  %v505 = vsel %vm503, %v493, 2102212464
  %v506 = vsel %vm502, %v490, %v505
  %v507 = vsel %vm501, %v504, %v506
  %v508 = vsel %vm500, %v487, %v490
  %v509 = vsel %vm503, %v496, 920167782
  %v510 = vsel %vm502, %v493, %v509
  %v511 = vsel %vm501, %v508, %v510
  %v512 = vsel %vm500, %v490, %v493
  %v513 = vsel %vm503, %v499, 1326507024
  %v514 = vsel %vm502, %v496, %v513
  %v515 = vsel %vm501, %v512, %v514
  %v516 = vshll.u32 %v476, 8
  %v517 = vmul.u32.u64.compose %v516, %v515
  %v518 = vextract.low.u32 %v517
  %v519 = vextract.high.u32 %v517
  %v520 = vmul.u32.u64.compose %v516, %v511
  %v521 = vextract.low.u32 %v520
  %v522 = vextract.high.u32 %v520
  %v523 = vmul.u32 %v516, %v507
  %v524 = vadd.s32 %v519, %v521
  %vm525 = vc.u32 %v519, %v521
  %v526 = vadd.s32 %v522, 1
  %v527 = vsel %vm525, %v526, %v522
  %v528 = vadd.s32 %v523, %v527
  %v529 = vadd.s32 %v528, 536870912
  %v530 = vshrl.u32 %v529, 30
  %v531 = vshll.u32 %v530, 30
  %v532 = vsub.s32 %v528, %v531
  %vm533 = vcmp.lt.s32.totalorder %v532, 0
  %v534 = vsub.s32 0, %v532
  %v535 = vsel %vm533, %v534, %v532
  %v536 = vclz %v535
  %v537 = vsub.s32 %v536, 2
  %vm538 = vcmp.gt.s32.totalorder 0, %v537
  %v539 = vsel %vm538, 0, %v537
  %v540 = vsub.s32 32, %v539
  %v541 = vshll.u32 %v532, %v539
  %v542 = vshrl.u32 %v524, %v540
  %v543 = vor.u32 %v541, %v542
  %v544 = vsub.s32 4294967266, %v539
  %v545 = vadd.s32 %v544, 127
  %v546 = vshll.u32 %v545, 23
  %v547 = vor.u32 4788187, %v546
  %v548 = vand.u32 2147483647, %v547
  %v550 = vcvt.s32.f32 %v543
  %v551 = vmul.f32 %v550, %v548
  %v552 = vxor.u32 %v551, 2147483648
  %v553 = vsel %vm470, %v552, %v551
  %v554 = vsub.s32 4, %v530
  %v555 = vsel %vm470, %v554, %v530
  %v556 = vsel %vm469, %v183, %v553
  %v557 = vsel %vm469, 0, %v555
  %v558 = vcosq.f32.pop %v556
  %v559 = vsinq.f32.pop %v556
  %vm560 = vweird.f32 %v183
  %v561 = vadd.s32 %v557, 3
  %v562 = vand.u32 %v561, 3
  %vm563 = vcmp.lt.s32.totalorder %v562, 2
  %vm564 = vcmp.eq.s32.totalorder %v562, 0
  %v565 = vxor.u32 %v559, 2147483648
  %v566 = vsel %vm564, %v558, %v565
  %vm567 = vcmp.eq.s32.totalorder %v562, 2
  %v568 = vxor.u32 %v558, 2147483648
  %v569 = vsel %vm567, %v568, %v559
  %v570 = vsel %vm563, %v566, %v569
  %v571 = vsel %vm560, nan, %v570
  %v572 = vand.u32 2147483647, %v185
  %vm573 = vcmp.le.f32.partialorder %v572, 0.7853982
  %vm574 = vcmp.lt.s32.totalorder %v185, 0
  %v575 = vand.u32 %v185, 2139095040
  %v576 = vshrl.u32 %v575, 23
  %v577 = vsub.s32 %v576, 127
  %v578 = vand.u32 2147483647, %v185
  %v579 = vand.u32 %v578, 8388607
  %v580 = vor.u32 %v579, 8388608
  %v581 = vsub.s32 0, %v580
  %v582 = vadd.s32 %v577, 1
  %vm583 = vcmp.gt.s32.totalorder %v582, 0
  %v584 = vsel %vm583, %v582, 0
  %v585 = vshrl.u32 %v584, 5
  %v586 = vand.u32 %v584, 31
  %v587 = vsub.s32 32, %v586
  %v588 = vshrl.u32 683565275, %v587
  %v589 = vshll.u32 683565275, %v586
  %v590 = vshrl.u32 2475754826, %v587
  %v591 = vor.u32 %v589, %v590
  %v592 = vshll.u32 2475754826, %v586
  %v593 = vshrl.u32 2131351028, %v587
  %v594 = vor.u32 %v592, %v593
  %v595 = vshll.u32 2131351028, %v586
  %v596 = vshrl.u32 2102212464, %v587
  %v597 = vor.u32 %v595, %v596
  %v598 = vshll.u32 2102212464, %v586
  %v599 = vshrl.u32 920167782, %v587
  %v600 = vor.u32 %v598, %v599
  %v601 = vshll.u32 920167782, %v586
  %v602 = vshrl.u32 1326507024, %v587
  %v603 = vor.u32 %v601, %v602
  %vm604 = vcmp.lt.s32.totalorder %v585, 1
  %vm605 = vcmp.lt.s32.totalorder %v585, 2
  %vm606 = vcmp.lt.s32.totalorder %v585, 3
  %vm607 = vcmp.lt.s32.totalorder %v585, 4
  %v608 = vsel %vm604, %v588, %v591
  %v609 = vsel %vm607, %v597, 2102212464
  %v610 = vsel %vm606, %v594, %v609
  %v611 = vsel %vm605, %v608, %v610
  %v612 = vsel %vm604, %v591, %v594
  %v613 = vsel %vm607, %v600, 920167782
  %v614 = vsel %vm606, %v597, %v613
  %v615 = vsel %vm605, %v612, %v614
  %v616 = vsel %vm604, %v594, %v597
  %v617 = vsel %vm607, %v603, 1326507024
  %v618 = vsel %vm606, %v600, %v617
  %v619 = vsel %vm605, %v616, %v618
  %v620 = vshll.u32 %v580, 8
  %v621 = vmul.u32.u64.compose %v620, %v619
  %v622 = vextract.low.u32 %v621
  %v623 = vextract.high.u32 %v621
  %v624 = vmul.u32.u64.compose %v620, %v615
  %v625 = vextract.low.u32 %v624
  %v626 = vextract.high.u32 %v624
  %v627 = vmul.u32 %v620, %v611
  %v628 = vadd.s32 %v623, %v625
  %vm629 = vc.u32 %v623, %v625
  %v630 = vadd.s32 %v626, 1
  %v631 = vsel %vm629, %v630, %v626
  %v632 = vadd.s32 %v627, %v631
  %v633 = vadd.s32 %v632, 536870912
  %v634 = vshrl.u32 %v633, 30
  %v635 = vshll.u32 %v634, 30
  %v636 = vsub.s32 %v632, %v635
  %vm637 = vcmp.lt.s32.totalorder %v636, 0
  %v638 = vsub.s32 0, %v636
  %v639 = vsel %vm637, %v638, %v636
  %v640 = vclz %v639
  %v641 = vsub.s32 %v640, 2
  %vm642 = vcmp.gt.s32.totalorder 0, %v641
  %v643 = vsel %vm642, 0, %v641
  %v644 = vsub.s32 32, %v643
  %v645 = vshll.u32 %v636, %v643
  %v646 = vshrl.u32 %v628, %v644
  %v647 = vor.u32 %v645, %v646
  %v648 = vsub.s32 4294967266, %v643
  %v649 = vadd.s32 %v648, 127
  %v650 = vshll.u32 %v649, 23
  %v651 = vor.u32 4788187, %v650
  %v652 = vand.u32 2147483647, %v651
  %v654 = vcvt.s32.f32 %v647
  %v655 = vmul.f32 %v654, %v652
  %v656 = vxor.u32 %v655, 2147483648
  %v657 = vsel %vm574, %v656, %v655
  %v658 = vsub.s32 4, %v634
  %v659 = vsel %vm574, %v658, %v634
  %v660 = vsel %vm573, %v185, %v657
  %v661 = vsel %vm573, 0, %v659
  %v662 = vcosq.f32.pop %v660
  %v663 = vsinq.f32.pop %v660
  %vm664 = vweird.f32 %v185
  %v665 = vadd.s32 %v661, 3
  %v666 = vand.u32 %v665, 3
  %vm667 = vcmp.lt.s32.totalorder %v666, 2
  %vm668 = vcmp.eq.s32.totalorder %v666, 0
  %v669 = vxor.u32 %v663, 2147483648
  %v670 = vsel %vm668, %v662, %v669
  %vm671 = vcmp.eq.s32.totalorder %v666, 2
  %v672 = vxor.u32 %v662, 2147483648
  %v673 = vsel %vm671, %v672, %v663
  %v674 = vsel %vm667, %v670, %v673
  %v675 = vsel %vm664, nan, %v674
  %v676 = vand.u32 2147483647, %v254
  %vm677 = vcmp.le.f32.partialorder %v676, 0.7853982
  %vm678 = vcmp.lt.s32.totalorder %v254, 0
  %v679 = vand.u32 %v254, 2139095040
  %v680 = vshrl.u32 %v679, 23
  %v681 = vsub.s32 %v680, 127
  %v682 = vand.u32 2147483647, %v254
  %v683 = vand.u32 %v682, 8388607
  %v684 = vor.u32 %v683, 8388608
  %v685 = vsub.s32 0, %v684
  %v686 = vadd.s32 %v681, 1
  %vm687 = vcmp.gt.s32.totalorder %v686, 0
  %v688 = vsel %vm687, %v686, 0
  %v689 = vshrl.u32 %v688, 5
  %v690 = vand.u32 %v688, 31
  %v691 = vsub.s32 32, %v690
  %v692 = vshrl.u32 683565275, %v691
  %v693 = vshll.u32 683565275, %v690
  %v694 = vshrl.u32 2475754826, %v691
  %v695 = vor.u32 %v693, %v694
  %v696 = vshll.u32 2475754826, %v690
  %v697 = vshrl.u32 2131351028, %v691
  %v698 = vor.u32 %v696, %v697
  %v699 = vshll.u32 2131351028, %v690
  %v700 = vshrl.u32 2102212464, %v691
  %v701 = vor.u32 %v699, %v700
  %v702 = vshll.u32 2102212464, %v690
  %v703 = vshrl.u32 920167782, %v691
  %v704 = vor.u32 %v702, %v703
  %v705 = vshll.u32 920167782, %v690
  %v706 = vshrl.u32 1326507024, %v691
  %v707 = vor.u32 %v705, %v706
  %vm708 = vcmp.lt.s32.totalorder %v689, 1
  %vm709 = vcmp.lt.s32.totalorder %v689, 2
  %vm710 = vcmp.lt.s32.totalorder %v689, 3
  %vm711 = vcmp.lt.s32.totalorder %v689, 4
  %v712 = vsel %vm708, %v692, %v695
  %v713 = vsel %vm711, %v701, 2102212464
  %v714 = vsel %vm710, %v698, %v713
  %v715 = vsel %vm709, %v712, %v714
  %v716 = vsel %vm708, %v695, %v698
  %v717 = vsel %vm711, %v704, 920167782
  %v718 = vsel %vm710, %v701, %v717
  %v719 = vsel %vm709, %v716, %v718
  %v720 = vsel %vm708, %v698, %v701
  %v721 = vsel %vm711, %v707, 1326507024
  %v722 = vsel %vm710, %v704, %v721
  %v723 = vsel %vm709, %v720, %v722
  %v724 = vshll.u32 %v684, 8
  %v725 = vmul.u32.u64.compose %v724, %v723
  %v726 = vextract.low.u32 %v725
  %v727 = vextract.high.u32 %v725
  %v728 = vmul.u32.u64.compose %v724, %v719
  %v729 = vextract.low.u32 %v728
  %v730 = vextract.high.u32 %v728
  %v731 = vmul.u32 %v724, %v715
  %v732 = vadd.s32 %v727, %v729
  %vm733 = vc.u32 %v727, %v729
  %v734 = vadd.s32 %v730, 1
  %v735 = vsel %vm733, %v734, %v730
  %v736 = vadd.s32 %v731, %v735
  %v737 = vadd.s32 %v736, 536870912
  %v738 = vshrl.u32 %v737, 30
  %v739 = vshll.u32 %v738, 30
  %v740 = vsub.s32 %v736, %v739
  %vm741 = vcmp.lt.s32.totalorder %v740, 0
  %v742 = vsub.s32 0, %v740
  %v743 = vsel %vm741, %v742, %v740
  %v744 = vclz %v743
  %v745 = vsub.s32 %v744, 2
  %vm746 = vcmp.gt.s32.totalorder 0, %v745
  %v747 = vsel %vm746, 0, %v745
  %v748 = vsub.s32 32, %v747
  %v749 = vshll.u32 %v740, %v747
  %v750 = vshrl.u32 %v732, %v748
  %v751 = vor.u32 %v749, %v750
  %v752 = vsub.s32 4294967266, %v747
  %v753 = vadd.s32 %v752, 127
  %v754 = vshll.u32 %v753, 23
  %v755 = vor.u32 4788187, %v754
  %v756 = vand.u32 2147483647, %v755
  %v758 = vcvt.s32.f32 %v751
  %v759 = vmul.f32 %v758, %v756
  %v760 = vxor.u32 %v759, 2147483648
  %v761 = vsel %vm678, %v760, %v759
  %v762 = vsub.s32 4, %v738
  %v763 = vsel %vm678, %v762, %v738
  %v764 = vsel %vm677, %v254, %v761
  %v765 = vsel %vm677, 0, %v763
  %v766 = vcosq.f32.pop %v764
  %v767 = vsinq.f32.pop %v764
  %vm768 = vweird.f32 %v254
  %v769 = vadd.s32 %v765, 3
  %v770 = vand.u32 %v769, 3
  %vm771 = vcmp.lt.s32.totalorder %v770, 2
  %vm772 = vcmp.eq.s32.totalorder %v770, 0
  %v773 = vxor.u32 %v767, 2147483648
  %v774 = vsel %vm772, %v766, %v773
  %vm775 = vcmp.eq.s32.totalorder %v770, 2
  %v776 = vxor.u32 %v766, 2147483648
  %v777 = vsel %vm775, %v776, %v767
  %v778 = vsel %vm771, %v774, %v777
  %v779 = vsel %vm768, nan, %v778
  %v780 = vand.u32 2147483647, %v256
  %vm781 = vcmp.le.f32.partialorder %v780, 0.7853982
  %vm782 = vcmp.lt.s32.totalorder %v256, 0
  %v783 = vand.u32 %v256, 2139095040
  %v784 = vshrl.u32 %v783, 23
  %v785 = vsub.s32 %v784, 127
  %v786 = vand.u32 2147483647, %v256
  %v787 = vand.u32 %v786, 8388607
  %v788 = vor.u32 %v787, 8388608
  %v789 = vsub.s32 0, %v788
  %v790 = vadd.s32 %v785, 1
  %vm791 = vcmp.gt.s32.totalorder %v790, 0
  %v792 = vsel %vm791, %v790, 0
  %v793 = vshrl.u32 %v792, 5
  %v794 = vand.u32 %v792, 31
  %v795 = vsub.s32 32, %v794
  %v796 = vshrl.u32 683565275, %v795
  %v797 = vshll.u32 683565275, %v794
  %v798 = vshrl.u32 2475754826, %v795
  %v799 = vor.u32 %v797, %v798
  %v800 = vshll.u32 2475754826, %v794
  %v801 = vshrl.u32 2131351028, %v795
  %v802 = vor.u32 %v800, %v801
  %v803 = vshll.u32 2131351028, %v794
  %v804 = vshrl.u32 2102212464, %v795
  %v805 = vor.u32 %v803, %v804
  %v806 = vshll.u32 2102212464, %v794
  %v807 = vshrl.u32 920167782, %v795
  %v808 = vor.u32 %v806, %v807
  %v809 = vshll.u32 920167782, %v794
  %v810 = vshrl.u32 1326507024, %v795
  %v811 = vor.u32 %v809, %v810
  %vm812 = vcmp.lt.s32.totalorder %v793, 1
  %vm813 = vcmp.lt.s32.totalorder %v793, 2
  %vm814 = vcmp.lt.s32.totalorder %v793, 3
  %vm815 = vcmp.lt.s32.totalorder %v793, 4
  %v816 = vsel %vm812, %v796, %v799
  %v817 = vsel %vm815, %v805, 2102212464
  %v818 = vsel %vm814, %v802, %v817
  %v819 = vsel %vm813, %v816, %v818
  %v820 = vsel %vm812, %v799, %v802
  %v821 = vsel %vm815, %v808, 920167782
  %v822 = vsel %vm814, %v805, %v821
  %v823 = vsel %vm813, %v820, %v822
  %v824 = vsel %vm812, %v802, %v805
  %v825 = vsel %vm815, %v811, 1326507024
  %v826 = vsel %vm814, %v808, %v825
  %v827 = vsel %vm813, %v824, %v826
  %v828 = vshll.u32 %v788, 8
  %v829 = vmul.u32.u64.compose %v828, %v827
  %v830 = vextract.low.u32 %v829
  %v831 = vextract.high.u32 %v829
  %v832 = vmul.u32.u64.compose %v828, %v823
  %v833 = vextract.low.u32 %v832
  %v834 = vextract.high.u32 %v832
  %v835 = vmul.u32 %v828, %v819
  %v836 = vadd.s32 %v831, %v833
  %vm837 = vc.u32 %v831, %v833
  %v838 = vadd.s32 %v834, 1
  %v839 = vsel %vm837, %v838, %v834
  %v840 = vadd.s32 %v835, %v839
  %v841 = vadd.s32 %v840, 536870912
  %v842 = vshrl.u32 %v841, 30
  %v843 = vshll.u32 %v842, 30
  %v844 = vsub.s32 %v840, %v843
  %vm845 = vcmp.lt.s32.totalorder %v844, 0
  %v846 = vsub.s32 0, %v844
  %v847 = vsel %vm845, %v846, %v844
  %v848 = vclz %v847
  %v849 = vsub.s32 %v848, 2
  %vm850 = vcmp.gt.s32.totalorder 0, %v849
  %v851 = vsel %vm850, 0, %v849
  %v852 = vsub.s32 32, %v851
  %v853 = vshll.u32 %v844, %v851
  %v854 = vshrl.u32 %v836, %v852
  %v855 = vor.u32 %v853, %v854
  %v856 = vsub.s32 4294967266, %v851
  %v857 = vadd.s32 %v856, 127
  %v858 = vshll.u32 %v857, 23
  %v859 = vor.u32 4788187, %v858
  %v860 = vand.u32 2147483647, %v859
  %v862 = vcvt.s32.f32 %v855
  %v863 = vmul.f32 %v862, %v860
  %v864 = vxor.u32 %v863, 2147483648
  %v865 = vsel %vm782, %v864, %v863
  %v866 = vsub.s32 4, %v842
  %v867 = vsel %vm782, %v866, %v842
  %v868 = vsel %vm781, %v256, %v865
  %v869 = vsel %vm781, 0, %v867
  %v870 = vcosq.f32.pop %v868
  %v871 = vsinq.f32.pop %v868
  %vm872 = vweird.f32 %v256
  %v873 = vadd.s32 %v869, 3
  %v874 = vand.u32 %v873, 3
  %vm875 = vcmp.lt.s32.totalorder %v874, 2
  %vm876 = vcmp.eq.s32.totalorder %v874, 0
  %v877 = vxor.u32 %v871, 2147483648
  %v878 = vsel %vm876, %v870, %v877
  %vm879 = vcmp.eq.s32.totalorder %v874, 2
  %v880 = vxor.u32 %v870, 2147483648
  %v881 = vsel %vm879, %v880, %v871
  %v882 = vsel %vm875, %v878, %v881
  %v883 = vsel %vm872, nan, %v882
  %s884 = scalar_lea.vmem %s4, 16
  %v885 = vld [vmem:[%s884] sm:$0xff]
  %v886 = vand.u32 2147483647, %v112
  %vm887 = vcmp.le.f32.partialorder %v886, 0.7853982
  %vm888 = vcmp.lt.s32.totalorder %v112, 0
  %v889 = vand.u32 %v112, 2139095040
  %v890 = vshrl.u32 %v889, 23
  %v891 = vsub.s32 %v890, 127
  %v892 = vand.u32 2147483647, %v112
  %v893 = vand.u32 %v892, 8388607
  %v894 = vor.u32 %v893, 8388608
  %v895 = vsub.s32 0, %v894
  %v896 = vadd.s32 %v891, 1
  %vm897 = vcmp.gt.s32.totalorder %v896, 0
  %v898 = vsel %vm897, %v896, 0
  %v899 = vshrl.u32 %v898, 5
  %v900 = vand.u32 %v898, 31
  %v901 = vsub.s32 32, %v900
  %v902 = vshrl.u32 683565275, %v901
  %v903 = vshll.u32 683565275, %v900
  %v904 = vshrl.u32 2475754826, %v901
  %v905 = vor.u32 %v903, %v904
  %v906 = vshll.u32 2475754826, %v900
  %v907 = vshrl.u32 2131351028, %v901
  %v908 = vor.u32 %v906, %v907
  %v909 = vshll.u32 2131351028, %v900
  %v910 = vshrl.u32 2102212464, %v901
  %v911 = vor.u32 %v909, %v910
  %v912 = vshll.u32 2102212464, %v900
  %v913 = vshrl.u32 920167782, %v901
  %v914 = vor.u32 %v912, %v913
  %v915 = vshll.u32 920167782, %v900
  %v916 = vshrl.u32 1326507024, %v901
  %v917 = vor.u32 %v915, %v916
  %vm918 = vcmp.lt.s32.totalorder %v899, 1
  %vm919 = vcmp.lt.s32.totalorder %v899, 2
  %vm920 = vcmp.lt.s32.totalorder %v899, 3
  %vm921 = vcmp.lt.s32.totalorder %v899, 4
  %v922 = vsel %vm918, %v902, %v905
  %v923 = vsel %vm921, %v911, 2102212464
  %v924 = vsel %vm920, %v908, %v923
  %v925 = vsel %vm919, %v922, %v924
  %v926 = vsel %vm918, %v905, %v908
  %v927 = vsel %vm921, %v914, 920167782
  %v928 = vsel %vm920, %v911, %v927
  %v929 = vsel %vm919, %v926, %v928
  %v930 = vsel %vm918, %v908, %v911
  %v931 = vsel %vm921, %v917, 1326507024
  %v932 = vsel %vm920, %v914, %v931
  %v933 = vsel %vm919, %v930, %v932
  %v934 = vshll.u32 %v894, 8
  %v935 = vmul.u32.u64.compose %v934, %v933
  %v936 = vextract.low.u32 %v935
  %v937 = vextract.high.u32 %v935
  %v938 = vmul.u32.u64.compose %v934, %v929
  %v939 = vextract.low.u32 %v938
  %v940 = vextract.high.u32 %v938
  %v941 = vmul.u32 %v934, %v925
  %v942 = vadd.s32 %v937, %v939
  %vm943 = vc.u32 %v937, %v939
  %v944 = vadd.s32 %v940, 1
  %v945 = vsel %vm943, %v944, %v940
  %v946 = vadd.s32 %v941, %v945
  %v947 = vadd.s32 %v946, 536870912
  %v948 = vshrl.u32 %v947, 30
  %v949 = vshll.u32 %v948, 30
  %v950 = vsub.s32 %v946, %v949
  %vm951 = vcmp.lt.s32.totalorder %v950, 0
  %v952 = vsub.s32 0, %v950
  %v953 = vsel %vm951, %v952, %v950
  %v954 = vclz %v953
  %v955 = vsub.s32 %v954, 2
  %vm956 = vcmp.gt.s32.totalorder 0, %v955
  %v957 = vsel %vm956, 0, %v955
  %v958 = vsub.s32 32, %v957
  %v959 = vshll.u32 %v950, %v957
  %v960 = vshrl.u32 %v942, %v958
  %v961 = vor.u32 %v959, %v960
  %v962 = vsub.s32 4294967266, %v957
  %v963 = vadd.s32 %v962, 127
  %v964 = vshll.u32 %v963, 23
  %v965 = vor.u32 4788187, %v964
  %v966 = vand.u32 2147483647, %v965
  %v968 = vcvt.s32.f32 %v961
  %v969 = vmul.f32 %v968, %v966
  %v970 = vxor.u32 %v969, 2147483648
  %v971 = vsel %vm888, %v970, %v969
  %v972 = vsub.s32 4, %v948
  %v973 = vsel %vm888, %v972, %v948
  %v974 = vsel %vm887, %v112, %v971
  %v975 = vsel %vm887, 0, %v973
  %v976 = vcosq.f32.pop %v974
  %v977 = vsinq.f32.pop %v974
  %vm978 = vweird.f32 %v112
  %v979 = vand.u32 %v975, 3
  %vm980 = vcmp.lt.s32.totalorder %v979, 2
  %vm981 = vcmp.eq.s32.totalorder %v979, 0
  %v982 = vxor.u32 %v977, 2147483648
  %v983 = vsel %vm981, %v976, %v982
  %vm984 = vcmp.eq.s32.totalorder %v979, 2
  %v985 = vxor.u32 %v976, 2147483648
  %v986 = vsel %vm984, %v985, %v977
  %v987 = vsel %vm980, %v983, %v986
  %v988 = vsel %vm978, nan, %v987
  %v989 = vand.u32 2147483647, %v114
  %vm990 = vcmp.le.f32.partialorder %v989, 0.7853982
  %vm991 = vcmp.lt.s32.totalorder %v114, 0
  %v992 = vand.u32 %v114, 2139095040
  %v993 = vshrl.u32 %v992, 23
  %v994 = vsub.s32 %v993, 127
  %v995 = vand.u32 2147483647, %v114
  %v996 = vand.u32 %v995, 8388607
  %v997 = vor.u32 %v996, 8388608
  %v998 = vsub.s32 0, %v997
  %v999 = vadd.s32 %v994, 1
  %vm1000 = vcmp.gt.s32.totalorder %v999, 0
  %v1001 = vsel %vm1000, %v999, 0
  %v1002 = vshrl.u32 %v1001, 5
  %v1003 = vand.u32 %v1001, 31
  %v1004 = vsub.s32 32, %v1003
  %v1005 = vshrl.u32 683565275, %v1004
  %v1006 = vshll.u32 683565275, %v1003
  %v1007 = vshrl.u32 2475754826, %v1004
  %v1008 = vor.u32 %v1006, %v1007
  %v1009 = vshll.u32 2475754826, %v1003
  %v1010 = vshrl.u32 2131351028, %v1004
  %v1011 = vor.u32 %v1009, %v1010
  %v1012 = vshll.u32 2131351028, %v1003
  %v1013 = vshrl.u32 2102212464, %v1004
  %v1014 = vor.u32 %v1012, %v1013
  %v1015 = vshll.u32 2102212464, %v1003
  %v1016 = vshrl.u32 920167782, %v1004
  %v1017 = vor.u32 %v1015, %v1016
  %v1018 = vshll.u32 920167782, %v1003
  %v1019 = vshrl.u32 1326507024, %v1004
  %v1020 = vor.u32 %v1018, %v1019
  %vm1021 = vcmp.lt.s32.totalorder %v1002, 1
  %vm1022 = vcmp.lt.s32.totalorder %v1002, 2
  %vm1023 = vcmp.lt.s32.totalorder %v1002, 3
  %vm1024 = vcmp.lt.s32.totalorder %v1002, 4
  %v1025 = vsel %vm1021, %v1005, %v1008
  %v1026 = vsel %vm1024, %v1014, 2102212464
  %v1027 = vsel %vm1023, %v1011, %v1026
  %v1028 = vsel %vm1022, %v1025, %v1027
  %v1029 = vsel %vm1021, %v1008, %v1011
  %v1030 = vsel %vm1024, %v1017, 920167782
  %v1031 = vsel %vm1023, %v1014, %v1030
  %v1032 = vsel %vm1022, %v1029, %v1031
  %v1033 = vsel %vm1021, %v1011, %v1014
  %v1034 = vsel %vm1024, %v1020, 1326507024
  %v1035 = vsel %vm1023, %v1017, %v1034
  %v1036 = vsel %vm1022, %v1033, %v1035
  %v1037 = vshll.u32 %v997, 8
  %v1038 = vmul.u32.u64.compose %v1037, %v1036
  %v1039 = vextract.low.u32 %v1038
  %v1040 = vextract.high.u32 %v1038
  %v1041 = vmul.u32.u64.compose %v1037, %v1032
  %v1042 = vextract.low.u32 %v1041
  %v1043 = vextract.high.u32 %v1041
  %v1044 = vmul.u32 %v1037, %v1028
  %v1045 = vadd.s32 %v1040, %v1042
  %vm1046 = vc.u32 %v1040, %v1042
  %v1047 = vadd.s32 %v1043, 1
  %v1048 = vsel %vm1046, %v1047, %v1043
  %v1049 = vadd.s32 %v1044, %v1048
  %v1050 = vadd.s32 %v1049, 536870912
  %v1051 = vshrl.u32 %v1050, 30
  %v1052 = vshll.u32 %v1051, 30
  %v1053 = vsub.s32 %v1049, %v1052
  %vm1054 = vcmp.lt.s32.totalorder %v1053, 0
  %v1055 = vsub.s32 0, %v1053
  %v1056 = vsel %vm1054, %v1055, %v1053
  %v1057 = vclz %v1056
  %v1058 = vsub.s32 %v1057, 2
  %vm1059 = vcmp.gt.s32.totalorder 0, %v1058
  %v1060 = vsel %vm1059, 0, %v1058
  %v1061 = vsub.s32 32, %v1060
  %v1062 = vshll.u32 %v1053, %v1060
  %v1063 = vshrl.u32 %v1045, %v1061
  %v1064 = vor.u32 %v1062, %v1063
  %v1065 = vsub.s32 4294967266, %v1060
  %v1066 = vadd.s32 %v1065, 127
  %v1067 = vshll.u32 %v1066, 23
  %v1068 = vor.u32 4788187, %v1067
  %v1069 = vand.u32 2147483647, %v1068
  %v1071 = vcvt.s32.f32 %v1064
  %v1072 = vmul.f32 %v1071, %v1069
  %v1073 = vxor.u32 %v1072, 2147483648
  %v1074 = vsel %vm991, %v1073, %v1072
  %v1075 = vsub.s32 4, %v1051
  %v1076 = vsel %vm991, %v1075, %v1051
  %v1077 = vsel %vm990, %v114, %v1074
  %v1078 = vsel %vm990, 0, %v1076
  %v1079 = vcosq.f32.pop %v1077
  %v1080 = vsinq.f32.pop %v1077
  %vm1081 = vweird.f32 %v114
  %v1082 = vand.u32 %v1078, 3
  %vm1083 = vcmp.lt.s32.totalorder %v1082, 2
  %vm1084 = vcmp.eq.s32.totalorder %v1082, 0
  %v1085 = vxor.u32 %v1080, 2147483648
  %v1086 = vsel %vm1084, %v1079, %v1085
  %vm1087 = vcmp.eq.s32.totalorder %v1082, 2
  %v1088 = vxor.u32 %v1079, 2147483648
  %v1089 = vsel %vm1087, %v1088, %v1080
  %v1090 = vsel %vm1083, %v1086, %v1089
  %v1091 = vsel %vm1081, nan, %v1090
  %v1092 = vand.u32 2147483647, %v183
  %vm1093 = vcmp.le.f32.partialorder %v1092, 0.7853982
  %vm1094 = vcmp.lt.s32.totalorder %v183, 0
  %v1095 = vand.u32 %v183, 2139095040
  %v1096 = vshrl.u32 %v1095, 23
  %v1097 = vsub.s32 %v1096, 127
  %v1098 = vand.u32 2147483647, %v183
  %v1099 = vand.u32 %v1098, 8388607
  %v1100 = vor.u32 %v1099, 8388608
  %v1101 = vsub.s32 0, %v1100
  %v1102 = vadd.s32 %v1097, 1
  %vm1103 = vcmp.gt.s32.totalorder %v1102, 0
  %v1104 = vsel %vm1103, %v1102, 0
  %v1105 = vshrl.u32 %v1104, 5
  %v1106 = vand.u32 %v1104, 31
  %v1107 = vsub.s32 32, %v1106
  %v1108 = vshrl.u32 683565275, %v1107
  %v1109 = vshll.u32 683565275, %v1106
  %v1110 = vshrl.u32 2475754826, %v1107
  %v1111 = vor.u32 %v1109, %v1110
  %v1112 = vshll.u32 2475754826, %v1106
  %v1113 = vshrl.u32 2131351028, %v1107
  %v1114 = vor.u32 %v1112, %v1113
  %v1115 = vshll.u32 2131351028, %v1106
  %v1116 = vshrl.u32 2102212464, %v1107
  %v1117 = vor.u32 %v1115, %v1116
  %v1118 = vshll.u32 2102212464, %v1106
  %v1119 = vshrl.u32 920167782, %v1107
  %v1120 = vor.u32 %v1118, %v1119
  %v1121 = vshll.u32 920167782, %v1106
  %v1122 = vshrl.u32 1326507024, %v1107
  %v1123 = vor.u32 %v1121, %v1122
  %vm1124 = vcmp.lt.s32.totalorder %v1105, 1
  %vm1125 = vcmp.lt.s32.totalorder %v1105, 2
  %vm1126 = vcmp.lt.s32.totalorder %v1105, 3
  %vm1127 = vcmp.lt.s32.totalorder %v1105, 4
  %v1128 = vsel %vm1124, %v1108, %v1111
  %v1129 = vsel %vm1127, %v1117, 2102212464
  %v1130 = vsel %vm1126, %v1114, %v1129
  %v1131 = vsel %vm1125, %v1128, %v1130
  %v1132 = vsel %vm1124, %v1111, %v1114
  %v1133 = vsel %vm1127, %v1120, 920167782
  %v1134 = vsel %vm1126, %v1117, %v1133
  %v1135 = vsel %vm1125, %v1132, %v1134
  %v1136 = vsel %vm1124, %v1114, %v1117
  %v1137 = vsel %vm1127, %v1123, 1326507024
  %v1138 = vsel %vm1126, %v1120, %v1137
  %v1139 = vsel %vm1125, %v1136, %v1138
  %v1140 = vshll.u32 %v1100, 8
  %v1141 = vmul.u32.u64.compose %v1140, %v1139
  %v1142 = vextract.low.u32 %v1141
  %v1143 = vextract.high.u32 %v1141
  %v1144 = vmul.u32.u64.compose %v1140, %v1135
  %v1145 = vextract.low.u32 %v1144
  %v1146 = vextract.high.u32 %v1144
  %v1147 = vmul.u32 %v1140, %v1131
  %v1148 = vadd.s32 %v1143, %v1145
  %vm1149 = vc.u32 %v1143, %v1145
  %v1150 = vadd.s32 %v1146, 1
  %v1151 = vsel %vm1149, %v1150, %v1146
  %v1152 = vadd.s32 %v1147, %v1151
  %v1153 = vadd.s32 %v1152, 536870912
  %v1154 = vshrl.u32 %v1153, 30
  %v1155 = vshll.u32 %v1154, 30
  %v1156 = vsub.s32 %v1152, %v1155
  %vm1157 = vcmp.lt.s32.totalorder %v1156, 0
  %v1158 = vsub.s32 0, %v1156
  %v1159 = vsel %vm1157, %v1158, %v1156
  %v1160 = vclz %v1159
  %v1161 = vsub.s32 %v1160, 2
  %vm1162 = vcmp.gt.s32.totalorder 0, %v1161
  %v1163 = vsel %vm1162, 0, %v1161
  %v1164 = vsub.s32 32, %v1163
  %v1165 = vshll.u32 %v1156, %v1163
  %v1166 = vshrl.u32 %v1148, %v1164
  %v1167 = vor.u32 %v1165, %v1166
  %v1168 = vsub.s32 4294967266, %v1163
  %v1169 = vadd.s32 %v1168, 127
  %v1170 = vshll.u32 %v1169, 23
  %v1171 = vor.u32 4788187, %v1170
  %v1172 = vand.u32 2147483647, %v1171
  %v1174 = vcvt.s32.f32 %v1167
  %v1175 = vmul.f32 %v1174, %v1172
  %v1176 = vxor.u32 %v1175, 2147483648
  %v1177 = vsel %vm1094, %v1176, %v1175
  %v1178 = vsub.s32 4, %v1154
  %v1179 = vsel %vm1094, %v1178, %v1154
  %v1180 = vsel %vm1093, %v183, %v1177
  %v1181 = vsel %vm1093, 0, %v1179
  %v1182 = vcosq.f32.pop %v1180
  %v1183 = vsinq.f32.pop %v1180
  %vm1184 = vweird.f32 %v183
  %v1185 = vand.u32 %v1181, 3
  %vm1186 = vcmp.lt.s32.totalorder %v1185, 2
  %vm1187 = vcmp.eq.s32.totalorder %v1185, 0
  %v1188 = vxor.u32 %v1183, 2147483648
  %v1189 = vsel %vm1187, %v1182, %v1188
  %vm1190 = vcmp.eq.s32.totalorder %v1185, 2
  %v1191 = vxor.u32 %v1182, 2147483648
  %v1192 = vsel %vm1190, %v1191, %v1183
  %v1193 = vsel %vm1186, %v1189, %v1192
  %v1194 = vsel %vm1184, nan, %v1193
  %v1195 = vand.u32 2147483647, %v185
  %vm1196 = vcmp.le.f32.partialorder %v1195, 0.7853982
  %vm1197 = vcmp.lt.s32.totalorder %v185, 0
  %v1198 = vand.u32 %v185, 2139095040
  %v1199 = vshrl.u32 %v1198, 23
  %v1200 = vsub.s32 %v1199, 127
  %v1201 = vand.u32 2147483647, %v185
  %v1202 = vand.u32 %v1201, 8388607
  %v1203 = vor.u32 %v1202, 8388608
  %v1204 = vsub.s32 0, %v1203
  %v1205 = vadd.s32 %v1200, 1
  %vm1206 = vcmp.gt.s32.totalorder %v1205, 0
  %v1207 = vsel %vm1206, %v1205, 0
  %v1208 = vshrl.u32 %v1207, 5
  %v1209 = vand.u32 %v1207, 31
  %v1210 = vsub.s32 32, %v1209
  %v1211 = vshrl.u32 683565275, %v1210
  %v1212 = vshll.u32 683565275, %v1209
  %v1213 = vshrl.u32 2475754826, %v1210
  %v1214 = vor.u32 %v1212, %v1213
  %v1215 = vshll.u32 2475754826, %v1209
  %v1216 = vshrl.u32 2131351028, %v1210
  %v1217 = vor.u32 %v1215, %v1216
  %v1218 = vshll.u32 2131351028, %v1209
  %v1219 = vshrl.u32 2102212464, %v1210
  %v1220 = vor.u32 %v1218, %v1219
  %v1221 = vshll.u32 2102212464, %v1209
  %v1222 = vshrl.u32 920167782, %v1210
  %v1223 = vor.u32 %v1221, %v1222
  %v1224 = vshll.u32 920167782, %v1209
  %v1225 = vshrl.u32 1326507024, %v1210
  %v1226 = vor.u32 %v1224, %v1225
  %vm1227 = vcmp.lt.s32.totalorder %v1208, 1
  %vm1228 = vcmp.lt.s32.totalorder %v1208, 2
  %vm1229 = vcmp.lt.s32.totalorder %v1208, 3
  %vm1230 = vcmp.lt.s32.totalorder %v1208, 4
  %v1231 = vsel %vm1227, %v1211, %v1214
  %v1232 = vsel %vm1230, %v1220, 2102212464
  %v1233 = vsel %vm1229, %v1217, %v1232
  %v1234 = vsel %vm1228, %v1231, %v1233
  %v1235 = vsel %vm1227, %v1214, %v1217
  %v1236 = vsel %vm1230, %v1223, 920167782
  %v1237 = vsel %vm1229, %v1220, %v1236
  %v1238 = vsel %vm1228, %v1235, %v1237
  %v1239 = vsel %vm1227, %v1217, %v1220
  %v1240 = vsel %vm1230, %v1226, 1326507024
  %v1241 = vsel %vm1229, %v1223, %v1240
  %v1242 = vsel %vm1228, %v1239, %v1241
  %v1243 = vshll.u32 %v1203, 8
  %v1244 = vmul.u32.u64.compose %v1243, %v1242
  %v1245 = vextract.low.u32 %v1244
  %v1246 = vextract.high.u32 %v1244
  %v1247 = vmul.u32.u64.compose %v1243, %v1238
  %v1248 = vextract.low.u32 %v1247
  %v1249 = vextract.high.u32 %v1247
  %v1250 = vmul.u32 %v1243, %v1234
  %v1251 = vadd.s32 %v1246, %v1248
  %vm1252 = vc.u32 %v1246, %v1248
  %v1253 = vadd.s32 %v1249, 1
  %v1254 = vsel %vm1252, %v1253, %v1249
  %v1255 = vadd.s32 %v1250, %v1254
  %v1256 = vadd.s32 %v1255, 536870912
  %v1257 = vshrl.u32 %v1256, 30
  %v1258 = vshll.u32 %v1257, 30
  %v1259 = vsub.s32 %v1255, %v1258
  %vm1260 = vcmp.lt.s32.totalorder %v1259, 0
  %v1261 = vsub.s32 0, %v1259
  %v1262 = vsel %vm1260, %v1261, %v1259
  %v1263 = vclz %v1262
  %v1264 = vsub.s32 %v1263, 2
  %vm1265 = vcmp.gt.s32.totalorder 0, %v1264
  %v1266 = vsel %vm1265, 0, %v1264
  %v1267 = vsub.s32 32, %v1266
  %v1268 = vshll.u32 %v1259, %v1266
  %v1269 = vshrl.u32 %v1251, %v1267
  %v1270 = vor.u32 %v1268, %v1269
  %v1271 = vsub.s32 4294967266, %v1266
  %v1272 = vadd.s32 %v1271, 127
  %v1273 = vshll.u32 %v1272, 23
  %v1274 = vor.u32 4788187, %v1273
  %v1275 = vand.u32 2147483647, %v1274
  %v1277 = vcvt.s32.f32 %v1270
  %v1278 = vmul.f32 %v1277, %v1275
  %v1279 = vxor.u32 %v1278, 2147483648
  %v1280 = vsel %vm1197, %v1279, %v1278
  %v1281 = vsub.s32 4, %v1257
  %v1282 = vsel %vm1197, %v1281, %v1257
  %v1283 = vsel %vm1196, %v185, %v1280
  %v1284 = vsel %vm1196, 0, %v1282
  %v1285 = vcosq.f32.pop %v1283
  %v1286 = vsinq.f32.pop %v1283
  %vm1287 = vweird.f32 %v185
  %v1288 = vand.u32 %v1284, 3
  %vm1289 = vcmp.lt.s32.totalorder %v1288, 2
  %vm1290 = vcmp.eq.s32.totalorder %v1288, 0
  %v1291 = vxor.u32 %v1286, 2147483648
  %v1292 = vsel %vm1290, %v1285, %v1291
  %vm1293 = vcmp.eq.s32.totalorder %v1288, 2
  %v1294 = vxor.u32 %v1285, 2147483648
  %v1295 = vsel %vm1293, %v1294, %v1286
  %v1296 = vsel %vm1289, %v1292, %v1295
  %v1297 = vsel %vm1287, nan, %v1296
  %v1298 = vand.u32 2147483647, %v254
  %vm1299 = vcmp.le.f32.partialorder %v1298, 0.7853982
  %vm1300 = vcmp.lt.s32.totalorder %v254, 0
  %v1301 = vand.u32 %v254, 2139095040
  %v1302 = vshrl.u32 %v1301, 23
  %v1303 = vsub.s32 %v1302, 127
  %v1304 = vand.u32 2147483647, %v254
  %v1305 = vand.u32 %v1304, 8388607
  %v1306 = vor.u32 %v1305, 8388608
  %v1307 = vsub.s32 0, %v1306
  %v1308 = vadd.s32 %v1303, 1
  %vm1309 = vcmp.gt.s32.totalorder %v1308, 0
  %v1310 = vsel %vm1309, %v1308, 0
  %v1311 = vshrl.u32 %v1310, 5
  %v1312 = vand.u32 %v1310, 31
  %v1313 = vsub.s32 32, %v1312
  %v1314 = vshrl.u32 683565275, %v1313
  %v1315 = vshll.u32 683565275, %v1312
  %v1316 = vshrl.u32 2475754826, %v1313
  %v1317 = vor.u32 %v1315, %v1316
  %v1318 = vshll.u32 2475754826, %v1312
  %v1319 = vshrl.u32 2131351028, %v1313
  %v1320 = vor.u32 %v1318, %v1319
  %v1321 = vshll.u32 2131351028, %v1312
  %v1322 = vshrl.u32 2102212464, %v1313
  %v1323 = vor.u32 %v1321, %v1322
  %v1324 = vshll.u32 2102212464, %v1312
  %v1325 = vshrl.u32 920167782, %v1313
  %v1326 = vor.u32 %v1324, %v1325
  %v1327 = vshll.u32 920167782, %v1312
  %v1328 = vshrl.u32 1326507024, %v1313
  %v1329 = vor.u32 %v1327, %v1328
  %vm1330 = vcmp.lt.s32.totalorder %v1311, 1
  %vm1331 = vcmp.lt.s32.totalorder %v1311, 2
  %vm1332 = vcmp.lt.s32.totalorder %v1311, 3
  %vm1333 = vcmp.lt.s32.totalorder %v1311, 4
  %v1334 = vsel %vm1330, %v1314, %v1317
  %v1335 = vsel %vm1333, %v1323, 2102212464
  %v1336 = vsel %vm1332, %v1320, %v1335
  %v1337 = vsel %vm1331, %v1334, %v1336
  %v1338 = vsel %vm1330, %v1317, %v1320
  %v1339 = vsel %vm1333, %v1326, 920167782
  %v1340 = vsel %vm1332, %v1323, %v1339
  %v1341 = vsel %vm1331, %v1338, %v1340
  %v1342 = vsel %vm1330, %v1320, %v1323
  %v1343 = vsel %vm1333, %v1329, 1326507024
  %v1344 = vsel %vm1332, %v1326, %v1343
  %v1345 = vsel %vm1331, %v1342, %v1344
  %v1346 = vshll.u32 %v1306, 8
  %v1347 = vmul.u32.u64.compose %v1346, %v1345
  %v1348 = vextract.low.u32 %v1347
  %v1349 = vextract.high.u32 %v1347
  %v1350 = vmul.u32.u64.compose %v1346, %v1341
  %v1351 = vextract.low.u32 %v1350
  %v1352 = vextract.high.u32 %v1350
  %v1353 = vmul.u32 %v1346, %v1337
  %v1354 = vadd.s32 %v1349, %v1351
  %vm1355 = vc.u32 %v1349, %v1351
  %v1356 = vadd.s32 %v1352, 1
  %v1357 = vsel %vm1355, %v1356, %v1352
  %v1358 = vadd.s32 %v1353, %v1357
  %v1359 = vadd.s32 %v1358, 536870912
  %v1360 = vshrl.u32 %v1359, 30
  %v1361 = vshll.u32 %v1360, 30
  %v1362 = vsub.s32 %v1358, %v1361
  %vm1363 = vcmp.lt.s32.totalorder %v1362, 0
  %v1364 = vsub.s32 0, %v1362
  %v1365 = vsel %vm1363, %v1364, %v1362
  %v1366 = vclz %v1365
  %v1367 = vsub.s32 %v1366, 2
  %vm1368 = vcmp.gt.s32.totalorder 0, %v1367
  %v1369 = vsel %vm1368, 0, %v1367
  %v1370 = vsub.s32 32, %v1369
  %v1371 = vshll.u32 %v1362, %v1369
  %v1372 = vshrl.u32 %v1354, %v1370
  %v1373 = vor.u32 %v1371, %v1372
  %v1374 = vsub.s32 4294967266, %v1369
  %v1375 = vadd.s32 %v1374, 127
  %v1376 = vshll.u32 %v1375, 23
  %v1377 = vor.u32 4788187, %v1376
  %v1378 = vand.u32 2147483647, %v1377
  %v1380 = vcvt.s32.f32 %v1373
  %v1381 = vmul.f32 %v1380, %v1378
  %v1382 = vxor.u32 %v1381, 2147483648
  %v1383 = vsel %vm1300, %v1382, %v1381
  %v1384 = vsub.s32 4, %v1360
  %v1385 = vsel %vm1300, %v1384, %v1360
  %v1386 = vsel %vm1299, %v254, %v1383
  %v1387 = vsel %vm1299, 0, %v1385
  %v1388 = vcosq.f32.pop %v1386
  %v1389 = vsinq.f32.pop %v1386
  %vm1390 = vweird.f32 %v254
  %v1391 = vand.u32 %v1387, 3
  %vm1392 = vcmp.lt.s32.totalorder %v1391, 2
  %vm1393 = vcmp.eq.s32.totalorder %v1391, 0
  %v1394 = vxor.u32 %v1389, 2147483648
  %v1395 = vsel %vm1393, %v1388, %v1394
  %vm1396 = vcmp.eq.s32.totalorder %v1391, 2
  %v1397 = vxor.u32 %v1388, 2147483648
  %v1398 = vsel %vm1396, %v1397, %v1389
  %v1399 = vsel %vm1392, %v1395, %v1398
  %v1400 = vsel %vm1390, nan, %v1399
  %v1401 = vand.u32 2147483647, %v256
  %vm1402 = vcmp.le.f32.partialorder %v1401, 0.7853982
  %vm1403 = vcmp.lt.s32.totalorder %v256, 0
  %v1404 = vand.u32 %v256, 2139095040
  %v1405 = vshrl.u32 %v1404, 23
  %v1406 = vsub.s32 %v1405, 127
  %v1407 = vand.u32 2147483647, %v256
  %v1408 = vand.u32 %v1407, 8388607
  %v1409 = vor.u32 %v1408, 8388608
  %v1410 = vsub.s32 0, %v1409
  %v1411 = vadd.s32 %v1406, 1
  %vm1412 = vcmp.gt.s32.totalorder %v1411, 0
  %v1413 = vsel %vm1412, %v1411, 0
  %v1414 = vshrl.u32 %v1413, 5
  %v1415 = vand.u32 %v1413, 31
  %v1416 = vsub.s32 32, %v1415
  %v1417 = vshrl.u32 683565275, %v1416
  %v1418 = vshll.u32 683565275, %v1415
  %v1419 = vshrl.u32 2475754826, %v1416
  %v1420 = vor.u32 %v1418, %v1419
  %v1421 = vshll.u32 2475754826, %v1415
  %v1422 = vshrl.u32 2131351028, %v1416
  %v1423 = vor.u32 %v1421, %v1422
  %v1424 = vshll.u32 2131351028, %v1415
  %v1425 = vshrl.u32 2102212464, %v1416
  %v1426 = vor.u32 %v1424, %v1425
  %v1427 = vshll.u32 2102212464, %v1415
  %v1428 = vshrl.u32 920167782, %v1416
  %v1429 = vor.u32 %v1427, %v1428
  %v1430 = vshll.u32 920167782, %v1415
  %v1431 = vshrl.u32 1326507024, %v1416
  %v1432 = vor.u32 %v1430, %v1431
  %vm1433 = vcmp.lt.s32.totalorder %v1414, 1
  %vm1434 = vcmp.lt.s32.totalorder %v1414, 2
  %vm1435 = vcmp.lt.s32.totalorder %v1414, 3
  %vm1436 = vcmp.lt.s32.totalorder %v1414, 4
  %v1437 = vsel %vm1433, %v1417, %v1420
  %v1438 = vsel %vm1436, %v1426, 2102212464
  %v1439 = vsel %vm1435, %v1423, %v1438
  %v1440 = vsel %vm1434, %v1437, %v1439
  %v1441 = vsel %vm1433, %v1420, %v1423
  %v1442 = vsel %vm1436, %v1429, 920167782
  %v1443 = vsel %vm1435, %v1426, %v1442
  %v1444 = vsel %vm1434, %v1441, %v1443
  %v1445 = vsel %vm1433, %v1423, %v1426
  %v1446 = vsel %vm1436, %v1432, 1326507024
  %v1447 = vsel %vm1435, %v1429, %v1446
  %v1448 = vsel %vm1434, %v1445, %v1447
  %v1449 = vshll.u32 %v1409, 8
  %v1450 = vmul.u32.u64.compose %v1449, %v1448
  %v1451 = vextract.low.u32 %v1450
  %v1452 = vextract.high.u32 %v1450
  %v1453 = vmul.u32.u64.compose %v1449, %v1444
  %v1454 = vextract.low.u32 %v1453
  %v1455 = vextract.high.u32 %v1453
  %v1456 = vmul.u32 %v1449, %v1440
  %v1457 = vadd.s32 %v1452, %v1454
  %vm1458 = vc.u32 %v1452, %v1454
  %v1459 = vadd.s32 %v1455, 1
  %v1460 = vsel %vm1458, %v1459, %v1455
  %v1461 = vadd.s32 %v1456, %v1460
  %v1462 = vadd.s32 %v1461, 536870912
  %v1463 = vshrl.u32 %v1462, 30
  %v1464 = vshll.u32 %v1463, 30
  %v1465 = vsub.s32 %v1461, %v1464
  %vm1466 = vcmp.lt.s32.totalorder %v1465, 0
  %v1467 = vsub.s32 0, %v1465
  %v1468 = vsel %vm1466, %v1467, %v1465
  %v1469 = vclz %v1468
  %v1470 = vsub.s32 %v1469, 2
  %vm1471 = vcmp.gt.s32.totalorder 0, %v1470
  %v1472 = vsel %vm1471, 0, %v1470
  %v1473 = vsub.s32 32, %v1472
  %v1474 = vshll.u32 %v1465, %v1472
  %v1475 = vshrl.u32 %v1457, %v1473
  %v1476 = vor.u32 %v1474, %v1475
  %v1477 = vsub.s32 4294967266, %v1472
  %v1478 = vadd.s32 %v1477, 127
  %v1479 = vshll.u32 %v1478, 23
  %v1480 = vor.u32 4788187, %v1479
  %v1481 = vand.u32 2147483647, %v1480
  %v1483 = vcvt.s32.f32 %v1476
  %v1484 = vmul.f32 %v1483, %v1481
  %v1485 = vxor.u32 %v1484, 2147483648
  %v1486 = vsel %vm1403, %v1485, %v1484
  %v1487 = vsub.s32 4, %v1463
  %v1488 = vsel %vm1403, %v1487, %v1463
  %v1489 = vsel %vm1402, %v256, %v1486
  %v1490 = vsel %vm1402, 0, %v1488
  %v1491 = vcosq.f32.pop %v1489
  %v1492 = vsinq.f32.pop %v1489
  %vm1493 = vweird.f32 %v256
  %v1494 = vand.u32 %v1490, 3
  %vm1495 = vcmp.lt.s32.totalorder %v1494, 2
  %vm1496 = vcmp.eq.s32.totalorder %v1494, 0
  %v1497 = vxor.u32 %v1492, 2147483648
  %v1498 = vsel %vm1496, %v1491, %v1497
  %vm1499 = vcmp.eq.s32.totalorder %v1494, 2
  %v1500 = vxor.u32 %v1491, 2147483648
  %v1501 = vsel %vm1499, %v1500, %v1492
  %v1502 = vsel %vm1495, %v1498, %v1501
  %v1503 = vsel %vm1493, nan, %v1502
  %v1505 = vsel %vm41, %v885, 0
  %1507 = vmatprep.subr.mxu0 %v1091
  %1508 = vmatpush1.msra.mxu0 %v988
  %1509 = vmatprep.subr.mxu0 0.0
  %1510 = vmatpush1.msra.mxu0 0.0
  %1511 = vmatprep.subr.mxu0 0.0
  %1512 = vmatpush1.msra.mxu0 0.0
  %1513 = vmatprep.subr.mxu0 0.0
  %1514 = vmatpush1.msra.mxu0 0.0
  %1515 = vmatprep.subr.mxu0 0.0
  %1516 = vmatpush1.msra.mxu0 0.0
  %1517 = vmatprep.subr.mxu0 0.0
  %1518 = vmatpush1.msra.mxu0 0.0
  %1519 = vmatprep.subr.mxu0 0.0
  %1520 = vmatpush1.msra.mxu0 0.0
  %1521 = vmatprep.subr.mxu0 0.0
  %1522 = vmatpush1.msra.mxu0 0.0
  %1523 = vmatprep.subr.mxu0 0.0
  %1524 = vmatpush1.msra.mxu0 0.0
  %1525 = vmatprep.subr.mxu0 0.0
  %1526 = vmatpush1.msra.mxu0 0.0
  %1527 = vmatprep.subr.mxu0 0.0
  %1528 = vmatpush1.msra.mxu0 0.0
  %1529 = vmatprep.subr.mxu0 0.0
  %1530 = vmatpush1.msra.mxu0 0.0
  %1531 = vmatprep.subr.mxu0 0.0
  %1532 = vmatpush1.msra.mxu0 0.0
  %1533 = vmatprep.subr.mxu0 0.0
  %1534 = vmatpush1.msra.mxu0 0.0
  %1535 = vmatprep.subr.mxu0 0.0
  %1536 = vmatpush1.msra.mxu0 0.0
  %1537 = vmatprep.subr.mxu0 0.0
  %1538 = vmatpush1.msra.mxu0 0.0
  %1539 = vmatprep.subr.mxu0 0.0
  %1540 = vmatpush1.msra.mxu0 0.0
  %1541 = vmatprep.subr.mxu0 0.0
  %1542 = vmatpush1.msra.mxu0 0.0
  %1543 = vmatprep.subr.mxu0 0.0
  %1544 = vmatpush1.msra.mxu0 0.0
  %1545 = vmatprep.subr.mxu0 0.0
  %1546 = vmatpush1.msra.mxu0 0.0
  %1547 = vmatprep.subr.mxu0 0.0
  %1548 = vmatpush1.msra.mxu0 0.0
  %1549 = vmatprep.subr.mxu0 0.0
  %1550 = vmatpush1.msra.mxu0 0.0
  %1551 = vmatprep.subr.mxu0 0.0
  %1552 = vmatpush1.msra.mxu0 0.0
  %1553 = vmatprep.subr.mxu0 0.0
  %1554 = vmatpush1.msra.mxu0 0.0
  %1555 = vmatprep.subr.mxu0 0.0
  %1556 = vmatpush1.msra.mxu0 0.0
  %1557 = vmatprep.subr.mxu0 0.0
  %1558 = vmatpush1.msra.mxu0 0.0
  %1559 = vmatprep.subr.mxu0 0.0
  %1560 = vmatpush1.msra.mxu0 0.0
  %1561 = vmatprep.subr.mxu0 0.0
  %1562 = vmatpush1.msra.mxu0 0.0
  %1563 = vmatprep.subr.mxu0 0.0
  %1564 = vmatpush1.msra.mxu0 0.0
  %1565 = vmatprep.subr.mxu0 0.0
  %1566 = vmatpush1.msra.mxu0 0.0
  %1567 = vmatprep.subr.mxu0 0.0
  %1568 = vmatpush1.msra.mxu0 0.0
  %1569 = vmatprep.subr.mxu0 0.0
  %1570 = vmatpush1.msra.mxu0 0.0
  %1571 = vmatprep.mubr.f32.mxu0 0.0
  %1572 = vmatmul.mubr.f32.gmra.mrb[0].mxu0 %v1505
  %v1573 = vpop.f32.mrb[0].mxu0
  %v1574 = vadd.f32 0.0, %v1573
  %v1575 = vpop.f32.mrb[0].mxu0
  %v1576 = vadd.f32 0.0, %v1575
  %1577 = vdwg.mxu0
  %1578 = vmatprep.subr.mxu0 %v1297
  %1579 = vmatpush1.msra.mxu0 %v1194
  %1580 = vmatprep.subr.mxu0 0.0
  %1581 = vmatpush1.msra.mxu0 0.0
  %1582 = vmatprep.subr.mxu0 0.0
  %1583 = vmatpush1.msra.mxu0 0.0
  %1584 = vmatprep.subr.mxu0 0.0
  %1585 = vmatpush1.msra.mxu0 0.0
  %1586 = vmatprep.subr.mxu0 0.0
  %1587 = vmatpush1.msra.mxu0 0.0
  %1588 = vmatprep.subr.mxu0 0.0
  %1589 = vmatpush1.msra.mxu0 0.0
  %1590 = vmatprep.subr.mxu0 0.0
  %1591 = vmatpush1.msra.mxu0 0.0
  %1592 = vmatprep.subr.mxu0 0.0
  %1593 = vmatpush1.msra.mxu0 0.0
  %1594 = vmatprep.subr.mxu0 0.0
  %1595 = vmatpush1.msra.mxu0 0.0
  %1596 = vmatprep.subr.mxu0 0.0
  %1597 = vmatpush1.msra.mxu0 0.0
  %1598 = vmatprep.subr.mxu0 0.0
  %1599 = vmatpush1.msra.mxu0 0.0
  %1600 = vmatprep.subr.mxu0 0.0
  %1601 = vmatpush1.msra.mxu0 0.0
  %1602 = vmatprep.subr.mxu0 0.0
  %1603 = vmatpush1.msra.mxu0 0.0
  %1604 = vmatprep.subr.mxu0 0.0
  %1605 = vmatpush1.msra.mxu0 0.0
  %1606 = vmatprep.subr.mxu0 0.0
  %1607 = vmatpush1.msra.mxu0 0.0
  %1608 = vmatprep.subr.mxu0 0.0
  %1609 = vmatpush1.msra.mxu0 0.0
  %1610 = vmatprep.subr.mxu0 0.0
  %1611 = vmatpush1.msra.mxu0 0.0
  %1612 = vmatprep.subr.mxu0 0.0
  %1613 = vmatpush1.msra.mxu0 0.0
  %1614 = vmatprep.subr.mxu0 0.0
  %1615 = vmatpush1.msra.mxu0 0.0
  %1616 = vmatprep.subr.mxu0 0.0
  %1617 = vmatpush1.msra.mxu0 0.0
  %1618 = vmatprep.subr.mxu0 0.0
  %1619 = vmatpush1.msra.mxu0 0.0
  %1620 = vmatprep.subr.mxu0 0.0
  %1621 = vmatpush1.msra.mxu0 0.0
  %1622 = vmatprep.subr.mxu0 0.0
  %1623 = vmatpush1.msra.mxu0 0.0
  %1624 = vmatprep.subr.mxu0 0.0
  %1625 = vmatpush1.msra.mxu0 0.0
  %1626 = vmatprep.subr.mxu0 0.0
  %1627 = vmatpush1.msra.mxu0 0.0
  %1628 = vmatprep.subr.mxu0 0.0
  %1629 = vmatpush1.msra.mxu0 0.0
  %1630 = vmatprep.subr.mxu0 0.0
  %1631 = vmatpush1.msra.mxu0 0.0
  %1632 = vmatprep.subr.mxu0 0.0
  %1633 = vmatpush1.msra.mxu0 0.0
  %1634 = vmatprep.subr.mxu0 0.0
  %1635 = vmatpush1.msra.mxu0 0.0
  %1636 = vmatprep.subr.mxu0 0.0
  %1637 = vmatpush1.msra.mxu0 0.0
  %1638 = vmatprep.subr.mxu0 0.0
  %1639 = vmatpush1.msra.mxu0 0.0
  %1640 = vmatprep.subr.mxu0 0.0
  %1641 = vmatpush1.msra.mxu0 0.0
  %1642 = vmatprep.mubr.f32.mxu0 0.0
  %1643 = vmatmul.mubr.f32.gmra.mrb[0].mxu0 %v1505
  %v1644 = vpop.f32.mrb[0].mxu0
  %v1645 = vadd.f32 0.0, %v1644
  %v1646 = vpop.f32.mrb[0].mxu0
  %v1647 = vadd.f32 0.0, %v1646
  %1648 = vdwg.mxu0
  %1649 = vmatprep.subr.mxu0 %v1503
  %1650 = vmatpush1.msra.mxu0 %v1400
  %1651 = vmatprep.subr.mxu0 0.0
  %1652 = vmatpush1.msra.mxu0 0.0
  %1653 = vmatprep.subr.mxu0 0.0
  %1654 = vmatpush1.msra.mxu0 0.0
  %1655 = vmatprep.subr.mxu0 0.0
  %1656 = vmatpush1.msra.mxu0 0.0
  %1657 = vmatprep.subr.mxu0 0.0
  %1658 = vmatpush1.msra.mxu0 0.0
  %1659 = vmatprep.subr.mxu0 0.0
  %1660 = vmatpush1.msra.mxu0 0.0
  %1661 = vmatprep.subr.mxu0 0.0
  %1662 = vmatpush1.msra.mxu0 0.0
  %1663 = vmatprep.subr.mxu0 0.0
  %1664 = vmatpush1.msra.mxu0 0.0
  %1665 = vmatprep.subr.mxu0 0.0
  %1666 = vmatpush1.msra.mxu0 0.0
  %1667 = vmatprep.subr.mxu0 0.0
  %1668 = vmatpush1.msra.mxu0 0.0
  %1669 = vmatprep.subr.mxu0 0.0
  %1670 = vmatpush1.msra.mxu0 0.0
  %1671 = vmatprep.subr.mxu0 0.0
  %1672 = vmatpush1.msra.mxu0 0.0
  %1673 = vmatprep.subr.mxu0 0.0
  %1674 = vmatpush1.msra.mxu0 0.0
  %1675 = vmatprep.subr.mxu0 0.0
  %1676 = vmatpush1.msra.mxu0 0.0
  %1677 = vmatprep.subr.mxu0 0.0
  %1678 = vmatpush1.msra.mxu0 0.0
  %1679 = vmatprep.subr.mxu0 0.0
  %1680 = vmatpush1.msra.mxu0 0.0
  %1681 = vmatprep.subr.mxu0 0.0
  %1682 = vmatpush1.msra.mxu0 0.0
  %1683 = vmatprep.subr.mxu0 0.0
  %1684 = vmatpush1.msra.mxu0 0.0
  %1685 = vmatprep.subr.mxu0 0.0
  %1686 = vmatpush1.msra.mxu0 0.0
  %1687 = vmatprep.subr.mxu0 0.0
  %1688 = vmatpush1.msra.mxu0 0.0
  %1689 = vmatprep.subr.mxu0 0.0
  %1690 = vmatpush1.msra.mxu0 0.0
  %1691 = vmatprep.subr.mxu0 0.0
  %1692 = vmatpush1.msra.mxu0 0.0
  %1693 = vmatprep.subr.mxu0 0.0
  %1694 = vmatpush1.msra.mxu0 0.0
  %1695 = vmatprep.subr.mxu0 0.0
  %1696 = vmatpush1.msra.mxu0 0.0
  %1697 = vmatprep.subr.mxu0 0.0
  %1698 = vmatpush1.msra.mxu0 0.0
  %1699 = vmatprep.subr.mxu0 0.0
  %1700 = vmatpush1.msra.mxu0 0.0
  %1701 = vmatprep.subr.mxu0 0.0
  %1702 = vmatpush1.msra.mxu0 0.0
  %1703 = vmatprep.subr.mxu0 0.0
  %1704 = vmatpush1.msra.mxu0 0.0
  %1705 = vmatprep.subr.mxu0 0.0
  %1706 = vmatpush1.msra.mxu0 0.0
  %1707 = vmatprep.subr.mxu0 0.0
  %1708 = vmatpush1.msra.mxu0 0.0
  %1709 = vmatprep.subr.mxu0 0.0
  %1710 = vmatpush1.msra.mxu0 0.0
  %1711 = vmatprep.subr.mxu0 0.0
  %1712 = vmatpush1.msra.mxu0 0.0
  %1713 = vmatprep.mubr.f32.mxu0 0.0
  %1714 = vmatmul.mubr.f32.gmra.mrb[0].mxu0 %v1505
  %v1715 = vpop.f32.mrb[0].mxu0
  %v1716 = vadd.f32 0.0, %v1715
  %v1717 = vpop.f32.mrb[0].mxu0
  %v1718 = vadd.f32 0.0, %v1717
  %1719 = vdwg.mxu0
  %v1721 = vsel %vm41, %v259, 0
  %1723 = vmatprep.subr.mxu0 %v467
  %1724 = vmatpush1.msra.mxu0 %v363
  %1725 = vmatprep.subr.mxu0 0.0
  %1726 = vmatpush1.msra.mxu0 0.0
  %1727 = vmatprep.subr.mxu0 0.0
  %1728 = vmatpush1.msra.mxu0 0.0
  %1729 = vmatprep.subr.mxu0 0.0
  %1730 = vmatpush1.msra.mxu0 0.0
  %1731 = vmatprep.subr.mxu0 0.0
  %1732 = vmatpush1.msra.mxu0 0.0
  %1733 = vmatprep.subr.mxu0 0.0
  %1734 = vmatpush1.msra.mxu0 0.0
  %1735 = vmatprep.subr.mxu0 0.0
  %1736 = vmatpush1.msra.mxu0 0.0
  %1737 = vmatprep.subr.mxu0 0.0
  %1738 = vmatpush1.msra.mxu0 0.0
  %1739 = vmatprep.subr.mxu0 0.0
  %1740 = vmatpush1.msra.mxu0 0.0
  %1741 = vmatprep.subr.mxu0 0.0
  %1742 = vmatpush1.msra.mxu0 0.0
  %1743 = vmatprep.subr.mxu0 0.0
  %1744 = vmatpush1.msra.mxu0 0.0
  %1745 = vmatprep.subr.mxu0 0.0
  %1746 = vmatpush1.msra.mxu0 0.0
  %1747 = vmatprep.subr.mxu0 0.0
  %1748 = vmatpush1.msra.mxu0 0.0
  %1749 = vmatprep.subr.mxu0 0.0
  %1750 = vmatpush1.msra.mxu0 0.0
  %1751 = vmatprep.subr.mxu0 0.0
  %1752 = vmatpush1.msra.mxu0 0.0
  %1753 = vmatprep.subr.mxu0 0.0
  %1754 = vmatpush1.msra.mxu0 0.0
  %1755 = vmatprep.subr.mxu0 0.0
  %1756 = vmatpush1.msra.mxu0 0.0
  %1757 = vmatprep.subr.mxu0 0.0
  %1758 = vmatpush1.msra.mxu0 0.0
  %1759 = vmatprep.subr.mxu0 0.0
  %1760 = vmatpush1.msra.mxu0 0.0
  %1761 = vmatprep.subr.mxu0 0.0
  %1762 = vmatpush1.msra.mxu0 0.0
  %1763 = vmatprep.subr.mxu0 0.0
  %1764 = vmatpush1.msra.mxu0 0.0
  %1765 = vmatprep.subr.mxu0 0.0
  %1766 = vmatpush1.msra.mxu0 0.0
  %1767 = vmatprep.subr.mxu0 0.0
  %1768 = vmatpush1.msra.mxu0 0.0
  %1769 = vmatprep.subr.mxu0 0.0
  %1770 = vmatpush1.msra.mxu0 0.0
  %1771 = vmatprep.subr.mxu0 0.0
  %1772 = vmatpush1.msra.mxu0 0.0
  %1773 = vmatprep.subr.mxu0 0.0
  %1774 = vmatpush1.msra.mxu0 0.0
  %1775 = vmatprep.subr.mxu0 0.0
  %1776 = vmatpush1.msra.mxu0 0.0
  %1777 = vmatprep.subr.mxu0 0.0
  %1778 = vmatpush1.msra.mxu0 0.0
  %1779 = vmatprep.subr.mxu0 0.0
  %1780 = vmatpush1.msra.mxu0 0.0
  %1781 = vmatprep.subr.mxu0 0.0
  %1782 = vmatpush1.msra.mxu0 0.0
  %1783 = vmatprep.subr.mxu0 0.0
  %1784 = vmatpush1.msra.mxu0 0.0
  %1785 = vmatprep.subr.mxu0 0.0
  %1786 = vmatpush1.msra.mxu0 0.0
  %1787 = vmatprep.mubr.f32.mxu0 0.0
  %1788 = vmatmul.mubr.f32.gmra.mrb[0].mxu0 %v1721
  %v1789 = vpop.f32.mrb[0].mxu0
  %v1790 = vadd.f32 %v1574, %v1789
  %v1791 = vpop.f32.mrb[0].mxu0
  %v1792 = vadd.f32 %v1576, %v1791
  %1793 = vdwg.mxu0
  %1794 = vmatprep.subr.mxu0 %v675
  %1795 = vmatpush1.msra.mxu0 %v571
  %1796 = vmatprep.subr.mxu0 0.0
  %1797 = vmatpush1.msra.mxu0 0.0
  %1798 = vmatprep.subr.mxu0 0.0
  %1799 = vmatpush1.msra.mxu0 0.0
  %1800 = vmatprep.subr.mxu0 0.0
  %1801 = vmatpush1.msra.mxu0 0.0
  %1802 = vmatprep.subr.mxu0 0.0
  %1803 = vmatpush1.msra.mxu0 0.0
  %1804 = vmatprep.subr.mxu0 0.0
  %1805 = vmatpush1.msra.mxu0 0.0
  %1806 = vmatprep.subr.mxu0 0.0
  %1807 = vmatpush1.msra.mxu0 0.0
  %1808 = vmatprep.subr.mxu0 0.0
  %1809 = vmatpush1.msra.mxu0 0.0
  %1810 = vmatprep.subr.mxu0 0.0
  %1811 = vmatpush1.msra.mxu0 0.0
  %1812 = vmatprep.subr.mxu0 0.0
  %1813 = vmatpush1.msra.mxu0 0.0
  %1814 = vmatprep.subr.mxu0 0.0
  %1815 = vmatpush1.msra.mxu0 0.0
  %1816 = vmatprep.subr.mxu0 0.0
  %1817 = vmatpush1.msra.mxu0 0.0
  %1818 = vmatprep.subr.mxu0 0.0
  %1819 = vmatpush1.msra.mxu0 0.0
  %1820 = vmatprep.subr.mxu0 0.0
  %1821 = vmatpush1.msra.mxu0 0.0
  %1822 = vmatprep.subr.mxu0 0.0
  %1823 = vmatpush1.msra.mxu0 0.0
  %1824 = vmatprep.subr.mxu0 0.0
  %1825 = vmatpush1.msra.mxu0 0.0
  %1826 = vmatprep.subr.mxu0 0.0
  %1827 = vmatpush1.msra.mxu0 0.0
  %1828 = vmatprep.subr.mxu0 0.0
  %1829 = vmatpush1.msra.mxu0 0.0
  %1830 = vmatprep.subr.mxu0 0.0
  %1831 = vmatpush1.msra.mxu0 0.0
  %1832 = vmatprep.subr.mxu0 0.0
  %1833 = vmatpush1.msra.mxu0 0.0
  %1834 = vmatprep.subr.mxu0 0.0
  %1835 = vmatpush1.msra.mxu0 0.0
  %1836 = vmatprep.subr.mxu0 0.0
  %1837 = vmatpush1.msra.mxu0 0.0
  %1838 = vmatprep.subr.mxu0 0.0
  %1839 = vmatpush1.msra.mxu0 0.0
  %1840 = vmatprep.subr.mxu0 0.0
  %1841 = vmatpush1.msra.mxu0 0.0
  %1842 = vmatprep.subr.mxu0 0.0
  %1843 = vmatpush1.msra.mxu0 0.0
  %1844 = vmatprep.subr.mxu0 0.0
  %1845 = vmatpush1.msra.mxu0 0.0
  %1846 = vmatprep.subr.mxu0 0.0
  %1847 = vmatpush1.msra.mxu0 0.0
  %1848 = vmatprep.subr.mxu0 0.0
  %1849 = vmatpush1.msra.mxu0 0.0
  %1850 = vmatprep.subr.mxu0 0.0
  %1851 = vmatpush1.msra.mxu0 0.0
  %1852 = vmatprep.subr.mxu0 0.0
  %1853 = vmatpush1.msra.mxu0 0.0
  %1854 = vmatprep.subr.mxu0 0.0
  %1855 = vmatpush1.msra.mxu0 0.0
  %1856 = vmatprep.subr.mxu0 0.0
  %1857 = vmatpush1.msra.mxu0 0.0
  %1858 = vmatprep.mubr.f32.mxu0 0.0
  %1859 = vmatmul.mubr.f32.gmra.mrb[0].mxu0 %v1721
  %v1860 = vpop.f32.mrb[0].mxu0
  %v1861 = vadd.f32 %v1645, %v1860
  %v1862 = vpop.f32.mrb[0].mxu0
  %v1863 = vadd.f32 %v1647, %v1862
  %1864 = vdwg.mxu0
  %1865 = vmatprep.subr.mxu0 %v883
  %1866 = vmatpush1.msra.mxu0 %v779
  %1867 = vmatprep.subr.mxu0 0.0
  %1868 = vmatpush1.msra.mxu0 0.0
  %1869 = vmatprep.subr.mxu0 0.0
  %1870 = vmatpush1.msra.mxu0 0.0
  %1871 = vmatprep.subr.mxu0 0.0
  %1872 = vmatpush1.msra.mxu0 0.0
  %1873 = vmatprep.subr.mxu0 0.0
  %1874 = vmatpush1.msra.mxu0 0.0
  %1875 = vmatprep.subr.mxu0 0.0
  %1876 = vmatpush1.msra.mxu0 0.0
  %1877 = vmatprep.subr.mxu0 0.0
  %1878 = vmatpush1.msra.mxu0 0.0
  %1879 = vmatprep.subr.mxu0 0.0
  %1880 = vmatpush1.msra.mxu0 0.0
  %1881 = vmatprep.subr.mxu0 0.0
  %1882 = vmatpush1.msra.mxu0 0.0
  %1883 = vmatprep.subr.mxu0 0.0
  %1884 = vmatpush1.msra.mxu0 0.0
  %1885 = vmatprep.subr.mxu0 0.0
  %1886 = vmatpush1.msra.mxu0 0.0
  %1887 = vmatprep.subr.mxu0 0.0
  %1888 = vmatpush1.msra.mxu0 0.0
  %1889 = vmatprep.subr.mxu0 0.0
  %1890 = vmatpush1.msra.mxu0 0.0
  %1891 = vmatprep.subr.mxu0 0.0
  %1892 = vmatpush1.msra.mxu0 0.0
  %1893 = vmatprep.subr.mxu0 0.0
  %1894 = vmatpush1.msra.mxu0 0.0
  %1895 = vmatprep.subr.mxu0 0.0
  %1896 = vmatpush1.msra.mxu0 0.0
  %1897 = vmatprep.subr.mxu0 0.0
  %1898 = vmatpush1.msra.mxu0 0.0
  %1899 = vmatprep.subr.mxu0 0.0
  %1900 = vmatpush1.msra.mxu0 0.0
  %1901 = vmatprep.subr.mxu0 0.0
  %1902 = vmatpush1.msra.mxu0 0.0
  %1903 = vmatprep.subr.mxu0 0.0
  %1904 = vmatpush1.msra.mxu0 0.0
  %1905 = vmatprep.subr.mxu0 0.0
  %1906 = vmatpush1.msra.mxu0 0.0
  %1907 = vmatprep.subr.mxu0 0.0
  %1908 = vmatpush1.msra.mxu0 0.0
  %1909 = vmatprep.subr.mxu0 0.0
  %1910 = vmatpush1.msra.mxu0 0.0
  %1911 = vmatprep.subr.mxu0 0.0
  %1912 = vmatpush1.msra.mxu0 0.0
  %1913 = vmatprep.subr.mxu0 0.0
  %1914 = vmatpush1.msra.mxu0 0.0
  %1915 = vmatprep.subr.mxu0 0.0
  %1916 = vmatpush1.msra.mxu0 0.0
  %1917 = vmatprep.subr.mxu0 0.0
  %1918 = vmatpush1.msra.mxu0 0.0
  %1919 = vmatprep.subr.mxu0 0.0
  %1920 = vmatpush1.msra.mxu0 0.0
  %1921 = vmatprep.subr.mxu0 0.0
  %1922 = vmatpush1.msra.mxu0 0.0
  %1923 = vmatprep.subr.mxu0 0.0
  %1924 = vmatpush1.msra.mxu0 0.0
  %1925 = vmatprep.subr.mxu0 0.0
  %1926 = vmatpush1.msra.mxu0 0.0
  %1927 = vmatprep.subr.mxu0 0.0
  %1928 = vmatpush1.msra.mxu0 0.0
  %1929 = vmatprep.mubr.f32.mxu0 0.0
  %1930 = vmatmul.mubr.f32.gmra.mrb[0].mxu0 %v1721
  %v1931 = vpop.f32.mrb[0].mxu0
  %v1932 = vadd.f32 %v1716, %v1931
  %v1933 = vpop.f32.mrb[0].mxu0
  %v1934 = vadd.f32 %v1718, %v1933
  %1935 = vdwg.mxu0
  %v1936 = vld [vmem:[%s6] sm:$0xff]
  %v1937 = vld [vmem:[%s7] sm:$0xff]
  %v1939 = vlaneseq
  %v1940 = vshrl.u32 %v1939, 7
  %v1941 = vsub.s32 0, %v1940
  %v1942 = vrot.slane %v33, %v1941
  %v1943 = vlaneseq
  %v1944 = vshrl.u32 %v1943, 7
  %v1945 = vsub.s32 1, %v1944
  %v1946 = vrot.slane %v33, %v1945
  %v1947 = vlaneseq
  %v1948 = vshrl.u32 %v1947, 7
  %v1949 = vsub.s32 2, %v1948
  %v1950 = vrot.slane %v33, %v1949
  %v1951 = vlaneseq
  %v1952 = vshrl.u32 %v1951, 7
  %v1953 = vsub.s32 3, %v1952
  %v1954 = vrot.slane %v33, %v1953
  %v1955 = vlaneseq
  %v1956 = vshrl.u32 %v1955, 7
  %v1957 = vsub.s32 4, %v1956
  %v1958 = vrot.slane %v33, %v1957
  %v1959 = vlaneseq
  %v1960 = vshrl.u32 %v1959, 7
  %v1961 = vsub.s32 5, %v1960
  %v1962 = vrot.slane %v33, %v1961
  %v1969 = vmul.f32 %v1790, %v1942
  %v1970 = vmul.f32 %v1792, %v1946
  %v1971 = vmul.f32 %v1861, %v1950
  %v1972 = vmul.f32 %v1863, %v1954
  %v1973 = vmul.f32 %v1932, %v1958
  %v1974 = vmul.f32 %v1934, %v1962
  %v1975 = vadd.f32 %v1969, %v1970
  %v1976 = vadd.f32 %v1975, %v1971
  %v1977 = vadd.f32 %v1976, %v1972
  %v1978 = vadd.f32 %v1977, %v1973
  %v1979 = vadd.f32 %v1978, %v1974
  %1980 = vadd.xlane.f32.xlu0 %v1979
  %v1981 = vpop.xlane.xlu0 %1980
  %v1982 = vmul.f32 %v1981, 0.001953125
  %v1983 = vsub.f32 %v1790, %v1982
  %v1984 = vsub.f32 %v1792, %v1982
  %v1985 = vsub.f32 %v1861, %v1982
  %v1986 = vsub.f32 %v1863, %v1982
  %v1987 = vsub.f32 %v1932, %v1982
  %v1988 = vsub.f32 %v1934, %v1982
  %v1989 = vmul.f32 %v1983, %v1942
  %v1990 = vmul.f32 %v1984, %v1946
  %v1991 = vmul.f32 %v1985, %v1950
  %v1992 = vmul.f32 %v1986, %v1954
  %v1993 = vmul.f32 %v1987, %v1958
  %v1994 = vmul.f32 %v1988, %v1962
  %v1995 = vmul.f32 %v1989, %v1989
  %v1996 = vmul.f32 %v1990, %v1990
  %v1997 = vmul.f32 %v1991, %v1991
  %v1998 = vmul.f32 %v1992, %v1992
  %v1999 = vmul.f32 %v1993, %v1993
  %v2000 = vmul.f32 %v1994, %v1994
  %v2001 = vadd.f32 %v1995, %v1996
  %v2002 = vadd.f32 %v2001, %v1997
  %v2003 = vadd.f32 %v2002, %v1998
  %v2004 = vadd.f32 %v2003, %v1999
  %v2005 = vadd.f32 %v2004, %v2000
  %2006 = vadd.xlane.f32.xlu0 %v2005
  %v2007 = vpop.xlane.xlu0 %2006
  %v2008 = vmul.f32 %v2007, 0.001953125
  %v2009 = vadd.f32 %v2008, 1e-05
  %v2010 = vrsqrt.pop %v2009
  %v2011 = vmul.f32 %v1983, %v2010
  %v2012 = vmul.f32 %v1984, %v2010
  %v2013 = vmul.f32 %v1985, %v2010
  %v2014 = vmul.f32 %v1986, %v2010
  %v2015 = vmul.f32 %v1987, %v2010
  %v2016 = vmul.f32 %v1988, %v2010
  %2018 = vset.pattern.permute.xlu0 0
  %2019 = vperm.xlu0 %2018, %v1936
  %v2020 = vpop.permute.xlu0 %2019
  %v2022 = vmul.f32 %v2011, %v2020
  %v2023 = vmul.f32 %v2012, %v2020
  %v2024 = vmul.f32 %v2013, %v2020
  %v2025 = vmul.f32 %v2014, %v2020
  %v2026 = vmul.f32 %v2015, %v2020
  %v2027 = vmul.f32 %v2016, %v2020
  %2029 = vset.pattern.permute.xlu0 0
  %2030 = vperm.xlu0 %2029, %v1937
  %v2031 = vpop.permute.xlu0 %2030
  %v2033 = vadd.f32 %v2022, %v2031
  %v2034 = vadd.f32 %v2023, %v2031
  %v2035 = vadd.f32 %v2024, %v2031
  %v2036 = vadd.f32 %v2025, %v2031
  %v2037 = vadd.f32 %v2026, %v2031
  %v2038 = vadd.f32 %v2027, %v2031
  %v2039 = vmax.f32 %v2033, 0.0
  %v2040 = vmax.f32 %v2034, 0.0
  %v2041 = vmax.f32 %v2035, 0.0
  %v2042 = vmax.f32 %v2036, 0.0
  %v2043 = vmax.f32 %v2037, 0.0
  %v2044 = vmax.f32 %v2038, 0.0
  %v2045 = vmul.f32 %v2039, %v1942
  %v2046 = vmul.f32 %v2040, %v1946
  %v2047 = vmul.f32 %v2041, %v1950
  %v2048 = vmul.f32 %v2042, %v1954
  %v2049 = vmul.f32 %v2043, %v1958
  %v2050 = vmul.f32 %v2044, %v1962
  %s2051 = scalar_lea.vmem %s4, 24
  %v2052 = vld [vmem:[%s2051] sm:$0xff]
  %v2054 = vsel %vm41, %v2052, 0
  %2056 = vmatprep.subr.mxu0 %v2046
  %2057 = vmatpush1.msra.mxu0 %v2045
  %2058 = vmatprep.subr.mxu0 0.0
  %2059 = vmatpush1.msra.mxu0 0.0
  %2060 = vmatprep.subr.mxu0 0.0
  %2061 = vmatpush1.msra.mxu0 0.0
  %2062 = vmatprep.subr.mxu0 0.0
  %2063 = vmatpush1.msra.mxu0 0.0
  %2064 = vmatprep.subr.mxu0 0.0
  %2065 = vmatpush1.msra.mxu0 0.0
  %2066 = vmatprep.subr.mxu0 0.0
  %2067 = vmatpush1.msra.mxu0 0.0
  %2068 = vmatprep.subr.mxu0 0.0
  %2069 = vmatpush1.msra.mxu0 0.0
  %2070 = vmatprep.subr.mxu0 0.0
  %2071 = vmatpush1.msra.mxu0 0.0
  %2072 = vmatprep.subr.mxu0 0.0
  %2073 = vmatpush1.msra.mxu0 0.0
  %2074 = vmatprep.subr.mxu0 0.0
  %2075 = vmatpush1.msra.mxu0 0.0
  %2076 = vmatprep.subr.mxu0 0.0
  %2077 = vmatpush1.msra.mxu0 0.0
  %2078 = vmatprep.subr.mxu0 0.0
  %2079 = vmatpush1.msra.mxu0 0.0
  %2080 = vmatprep.subr.mxu0 0.0
  %2081 = vmatpush1.msra.mxu0 0.0
  %2082 = vmatprep.subr.mxu0 0.0
  %2083 = vmatpush1.msra.mxu0 0.0
  %2084 = vmatprep.subr.mxu0 0.0
  %2085 = vmatpush1.msra.mxu0 0.0
  %2086 = vmatprep.subr.mxu0 0.0
  %2087 = vmatpush1.msra.mxu0 0.0
  %2088 = vmatprep.subr.mxu0 0.0
  %2089 = vmatpush1.msra.mxu0 0.0
  %2090 = vmatprep.subr.mxu0 0.0
  %2091 = vmatpush1.msra.mxu0 0.0
  %2092 = vmatprep.subr.mxu0 0.0
  %2093 = vmatpush1.msra.mxu0 0.0
  %2094 = vmatprep.subr.mxu0 0.0
  %2095 = vmatpush1.msra.mxu0 0.0
  %2096 = vmatprep.subr.mxu0 0.0
  %2097 = vmatpush1.msra.mxu0 0.0
  %2098 = vmatprep.subr.mxu0 0.0
  %2099 = vmatpush1.msra.mxu0 0.0
  %2100 = vmatprep.subr.mxu0 0.0
  %2101 = vmatpush1.msra.mxu0 0.0
  %2102 = vmatprep.subr.mxu0 0.0
  %2103 = vmatpush1.msra.mxu0 0.0
  %2104 = vmatprep.subr.mxu0 0.0
  %2105 = vmatpush1.msra.mxu0 0.0
  %2106 = vmatprep.subr.mxu0 0.0
  %2107 = vmatpush1.msra.mxu0 0.0
  %2108 = vmatprep.subr.mxu0 0.0
  %2109 = vmatpush1.msra.mxu0 0.0
  %2110 = vmatprep.subr.mxu0 0.0
  %2111 = vmatpush1.msra.mxu0 0.0
  %2112 = vmatprep.subr.mxu0 0.0
  %2113 = vmatpush1.msra.mxu0 0.0
  %2114 = vmatprep.subr.mxu0 0.0
  %2115 = vmatpush1.msra.mxu0 0.0
  %2116 = vmatprep.subr.mxu0 0.0
  %2117 = vmatpush1.msra.mxu0 0.0
  %2118 = vmatprep.subr.mxu0 0.0
  %2119 = vmatpush1.msra.mxu0 0.0
  %2120 = vmatprep.mubr.f32.mxu0 0.0
  %2121 = vmatmul.mubr.f32.gmra.mrb[0].mxu0 %v2054
  %v2122 = vpop.f32.mrb[0].mxu0
  %v2123 = vadd.f32 0.0, %v2122
  %v2124 = vpop.f32.mrb[0].mxu0
  %v2125 = vadd.f32 0.0, %v2124
  %2126 = vdwg.mxu0
  %2127 = vmatprep.subr.mxu0 %v2048
  %2128 = vmatpush1.msra.mxu0 %v2047
  %2129 = vmatprep.subr.mxu0 0.0
  %2130 = vmatpush1.msra.mxu0 0.0
  %2131 = vmatprep.subr.mxu0 0.0
  %2132 = vmatpush1.msra.mxu0 0.0
  %2133 = vmatprep.subr.mxu0 0.0
  %2134 = vmatpush1.msra.mxu0 0.0
  %2135 = vmatprep.subr.mxu0 0.0
  %2136 = vmatpush1.msra.mxu0 0.0
  %2137 = vmatprep.subr.mxu0 0.0
  %2138 = vmatpush1.msra.mxu0 0.0
  %2139 = vmatprep.subr.mxu0 0.0
  %2140 = vmatpush1.msra.mxu0 0.0
  %2141 = vmatprep.subr.mxu0 0.0
  %2142 = vmatpush1.msra.mxu0 0.0
  %2143 = vmatprep.subr.mxu0 0.0
  %2144 = vmatpush1.msra.mxu0 0.0
  %2145 = vmatprep.subr.mxu0 0.0
  %2146 = vmatpush1.msra.mxu0 0.0
  %2147 = vmatprep.subr.mxu0 0.0
  %2148 = vmatpush1.msra.mxu0 0.0
  %2149 = vmatprep.subr.mxu0 0.0
  %2150 = vmatpush1.msra.mxu0 0.0
  %2151 = vmatprep.subr.mxu0 0.0
  %2152 = vmatpush1.msra.mxu0 0.0
  %2153 = vmatprep.subr.mxu0 0.0
  %2154 = vmatpush1.msra.mxu0 0.0
  %2155 = vmatprep.subr.mxu0 0.0
  %2156 = vmatpush1.msra.mxu0 0.0
  %2157 = vmatprep.subr.mxu0 0.0
  %2158 = vmatpush1.msra.mxu0 0.0
  %2159 = vmatprep.subr.mxu0 0.0
  %2160 = vmatpush1.msra.mxu0 0.0
  %2161 = vmatprep.subr.mxu0 0.0
  %2162 = vmatpush1.msra.mxu0 0.0
  %2163 = vmatprep.subr.mxu0 0.0
  %2164 = vmatpush1.msra.mxu0 0.0
  %2165 = vmatprep.subr.mxu0 0.0
  %2166 = vmatpush1.msra.mxu0 0.0
  %2167 = vmatprep.subr.mxu0 0.0
  %2168 = vmatpush1.msra.mxu0 0.0
  %2169 = vmatprep.subr.mxu0 0.0
  %2170 = vmatpush1.msra.mxu0 0.0
  %2171 = vmatprep.subr.mxu0 0.0
  %2172 = vmatpush1.msra.mxu0 0.0
  %2173 = vmatprep.subr.mxu0 0.0
  %2174 = vmatpush1.msra.mxu0 0.0
  %2175 = vmatprep.subr.mxu0 0.0
  %2176 = vmatpush1.msra.mxu0 0.0
  %2177 = vmatprep.subr.mxu0 0.0
  %2178 = vmatpush1.msra.mxu0 0.0
  %2179 = vmatprep.subr.mxu0 0.0
  %2180 = vmatpush1.msra.mxu0 0.0
  %2181 = vmatprep.subr.mxu0 0.0
  %2182 = vmatpush1.msra.mxu0 0.0
  %2183 = vmatprep.subr.mxu0 0.0
  %2184 = vmatpush1.msra.mxu0 0.0
  %2185 = vmatprep.subr.mxu0 0.0
  %2186 = vmatpush1.msra.mxu0 0.0
  %2187 = vmatprep.subr.mxu0 0.0
  %2188 = vmatpush1.msra.mxu0 0.0
  %2189 = vmatprep.subr.mxu0 0.0
  %2190 = vmatpush1.msra.mxu0 0.0
  %2191 = vmatprep.mubr.f32.mxu0 0.0
  %2192 = vmatmul.mubr.f32.gmra.mrb[0].mxu0 %v2054
  %v2193 = vpop.f32.mrb[0].mxu0
  %v2194 = vadd.f32 0.0, %v2193
  %v2195 = vpop.f32.mrb[0].mxu0
  %v2196 = vadd.f32 0.0, %v2195
  %2197 = vdwg.mxu0
  %2198 = vmatprep.subr.mxu0 %v2050
  %2199 = vmatpush1.msra.mxu0 %v2049
  %2200 = vmatprep.subr.mxu0 0.0
  %2201 = vmatpush1.msra.mxu0 0.0
  %2202 = vmatprep.subr.mxu0 0.0
  %2203 = vmatpush1.msra.mxu0 0.0
  %2204 = vmatprep.subr.mxu0 0.0
  %2205 = vmatpush1.msra.mxu0 0.0
  %2206 = vmatprep.subr.mxu0 0.0
  %2207 = vmatpush1.msra.mxu0 0.0
  %2208 = vmatprep.subr.mxu0 0.0
  %2209 = vmatpush1.msra.mxu0 0.0
  %2210 = vmatprep.subr.mxu0 0.0
  %2211 = vmatpush1.msra.mxu0 0.0
  %2212 = vmatprep.subr.mxu0 0.0
  %2213 = vmatpush1.msra.mxu0 0.0
  %2214 = vmatprep.subr.mxu0 0.0
  %2215 = vmatpush1.msra.mxu0 0.0
  %2216 = vmatprep.subr.mxu0 0.0
  %2217 = vmatpush1.msra.mxu0 0.0
  %2218 = vmatprep.subr.mxu0 0.0
  %2219 = vmatpush1.msra.mxu0 0.0
  %2220 = vmatprep.subr.mxu0 0.0
  %2221 = vmatpush1.msra.mxu0 0.0
  %2222 = vmatprep.subr.mxu0 0.0
  %2223 = vmatpush1.msra.mxu0 0.0
  %2224 = vmatprep.subr.mxu0 0.0
  %2225 = vmatpush1.msra.mxu0 0.0
  %2226 = vmatprep.subr.mxu0 0.0
  %2227 = vmatpush1.msra.mxu0 0.0
  %2228 = vmatprep.subr.mxu0 0.0
  %2229 = vmatpush1.msra.mxu0 0.0
  %2230 = vmatprep.subr.mxu0 0.0
  %2231 = vmatpush1.msra.mxu0 0.0
  %2232 = vmatprep.subr.mxu0 0.0
  %2233 = vmatpush1.msra.mxu0 0.0
  %2234 = vmatprep.subr.mxu0 0.0
  %2235 = vmatpush1.msra.mxu0 0.0
  %2236 = vmatprep.subr.mxu0 0.0
  %2237 = vmatpush1.msra.mxu0 0.0
  %2238 = vmatprep.subr.mxu0 0.0
  %2239 = vmatpush1.msra.mxu0 0.0
  %2240 = vmatprep.subr.mxu0 0.0
  %2241 = vmatpush1.msra.mxu0 0.0
  %2242 = vmatprep.subr.mxu0 0.0
  %2243 = vmatpush1.msra.mxu0 0.0
  %2244 = vmatprep.subr.mxu0 0.0
  %2245 = vmatpush1.msra.mxu0 0.0
  %2246 = vmatprep.subr.mxu0 0.0
  %2247 = vmatpush1.msra.mxu0 0.0
  %2248 = vmatprep.subr.mxu0 0.0
  %2249 = vmatpush1.msra.mxu0 0.0
  %2250 = vmatprep.subr.mxu0 0.0
  %2251 = vmatpush1.msra.mxu0 0.0
  %2252 = vmatprep.subr.mxu0 0.0
  %2253 = vmatpush1.msra.mxu0 0.0
  %2254 = vmatprep.subr.mxu0 0.0
  %2255 = vmatpush1.msra.mxu0 0.0
  %2256 = vmatprep.subr.mxu0 0.0
  %2257 = vmatpush1.msra.mxu0 0.0
  %2258 = vmatprep.subr.mxu0 0.0
  %2259 = vmatpush1.msra.mxu0 0.0
  %2260 = vmatprep.subr.mxu0 0.0
  %2261 = vmatpush1.msra.mxu0 0.0
  %2262 = vmatprep.mubr.f32.mxu0 0.0
  %2263 = vmatmul.mubr.f32.gmra.mrb[0].mxu0 %v2054
  %v2264 = vpop.f32.mrb[0].mxu0
  %v2265 = vadd.f32 0.0, %v2264
  %v2266 = vpop.f32.mrb[0].mxu0
  %v2267 = vadd.f32 0.0, %v2266
  %2268 = vdwg.mxu0
  %v2269 = vmul.f32 %v2123, %v1942
  %v2270 = vmul.f32 %v2125, %v1946
  %v2271 = vmul.f32 %v2194, %v1950
  %v2272 = vmul.f32 %v2196, %v1954
  %v2273 = vmul.f32 %v2265, %v1958
  %v2274 = vmul.f32 %v2267, %v1962
  %v2275 = vadd.f32 %v2269, %v2270
  %v2276 = vadd.f32 %v2275, %v2271
  %v2277 = vadd.f32 %v2276, %v2272
  %v2278 = vadd.f32 %v2277, %v2273
  %v2279 = vadd.f32 %v2278, %v2274
  %2280 = vadd.xlane.f32.xlu0 %v2279
  %v2281 = vpop.xlane.xlu0 %2280
  %v2282 = vmul.f32 %v2281, 0.001953125
  %v2283 = vsub.f32 %v2123, %v2282
  %v2284 = vsub.f32 %v2125, %v2282
  %v2285 = vsub.f32 %v2194, %v2282
  %v2286 = vsub.f32 %v2196, %v2282
  %v2287 = vsub.f32 %v2265, %v2282
  %v2288 = vsub.f32 %v2267, %v2282
  %v2289 = vmul.f32 %v2283, %v1942
  %v2290 = vmul.f32 %v2284, %v1946
  %v2291 = vmul.f32 %v2285, %v1950
  %v2292 = vmul.f32 %v2286, %v1954
  %v2293 = vmul.f32 %v2287, %v1958
  %v2294 = vmul.f32 %v2288, %v1962
  %v2295 = vmul.f32 %v2289, %v2289
  %v2296 = vmul.f32 %v2290, %v2290
  %v2297 = vmul.f32 %v2291, %v2291
  %v2298 = vmul.f32 %v2292, %v2292
  %v2299 = vmul.f32 %v2293, %v2293
  %v2300 = vmul.f32 %v2294, %v2294
  %v2301 = vadd.f32 %v2295, %v2296
  %v2302 = vadd.f32 %v2301, %v2297
  %v2303 = vadd.f32 %v2302, %v2298
  %v2304 = vadd.f32 %v2303, %v2299
  %v2305 = vadd.f32 %v2304, %v2300
  %2306 = vadd.xlane.f32.xlu0 %v2305
  %v2307 = vpop.xlane.xlu0 %2306
  %v2308 = vmul.f32 %v2307, 0.001953125
  %v2309 = vadd.f32 %v2308, 1e-05
  %v2310 = vrsqrt.pop %v2309
  %v2311 = vmul.f32 %v2283, %v2310
  %v2312 = vmul.f32 %v2284, %v2310
  %v2313 = vmul.f32 %v2285, %v2310
  %v2314 = vmul.f32 %v2286, %v2310
  %v2315 = vmul.f32 %v2287, %v2310
  %v2316 = vmul.f32 %v2288, %v2310
  %2317 = vset.pattern.permute.xlu0 1
  %2318 = vperm.xlu0 %2317, %v1936
  %v2319 = vpop.permute.xlu0 %2318
  %v2321 = vmul.f32 %v2311, %v2319
  %v2322 = vmul.f32 %v2312, %v2319
  %v2323 = vmul.f32 %v2313, %v2319
  %v2324 = vmul.f32 %v2314, %v2319
  %v2325 = vmul.f32 %v2315, %v2319
  %v2326 = vmul.f32 %v2316, %v2319
  %2327 = vset.pattern.permute.xlu0 1
  %2328 = vperm.xlu0 %2327, %v1937
  %v2329 = vpop.permute.xlu0 %2328
  %v2331 = vadd.f32 %v2321, %v2329
  %v2332 = vadd.f32 %v2322, %v2329
  %v2333 = vadd.f32 %v2323, %v2329
  %v2334 = vadd.f32 %v2324, %v2329
  %v2335 = vadd.f32 %v2325, %v2329
  %v2336 = vadd.f32 %v2326, %v2329
  %v2337 = vmax.f32 %v2331, 0.0
  %v2338 = vmax.f32 %v2332, 0.0
  %v2339 = vmax.f32 %v2333, 0.0
  %v2340 = vmax.f32 %v2334, 0.0
  %v2341 = vmax.f32 %v2335, 0.0
  %v2342 = vmax.f32 %v2336, 0.0
  %v2343 = vmul.f32 %v2337, %v1942
  %v2344 = vmul.f32 %v2338, %v1946
  %v2345 = vmul.f32 %v2339, %v1950
  %v2346 = vmul.f32 %v2340, %v1954
  %v2347 = vmul.f32 %v2341, %v1958
  %v2348 = vmul.f32 %v2342, %v1962
  %s2349 = scalar_lea.vmem %s4, 32
  %v2350 = vld [vmem:[%s2349] sm:$0xff]
  %v2352 = vsel %vm41, %v2350, 0
  %2354 = vmatprep.subr.mxu0 %v2344
  %2355 = vmatpush1.msra.mxu0 %v2343
  %2356 = vmatprep.subr.mxu0 0.0
  %2357 = vmatpush1.msra.mxu0 0.0
  %2358 = vmatprep.subr.mxu0 0.0
  %2359 = vmatpush1.msra.mxu0 0.0
  %2360 = vmatprep.subr.mxu0 0.0
  %2361 = vmatpush1.msra.mxu0 0.0
  %2362 = vmatprep.subr.mxu0 0.0
  %2363 = vmatpush1.msra.mxu0 0.0
  %2364 = vmatprep.subr.mxu0 0.0
  %2365 = vmatpush1.msra.mxu0 0.0
  %2366 = vmatprep.subr.mxu0 0.0
  %2367 = vmatpush1.msra.mxu0 0.0
  %2368 = vmatprep.subr.mxu0 0.0
  %2369 = vmatpush1.msra.mxu0 0.0
  %2370 = vmatprep.subr.mxu0 0.0
  %2371 = vmatpush1.msra.mxu0 0.0
  %2372 = vmatprep.subr.mxu0 0.0
  %2373 = vmatpush1.msra.mxu0 0.0
  %2374 = vmatprep.subr.mxu0 0.0
  %2375 = vmatpush1.msra.mxu0 0.0
  %2376 = vmatprep.subr.mxu0 0.0
  %2377 = vmatpush1.msra.mxu0 0.0
  %2378 = vmatprep.subr.mxu0 0.0
  %2379 = vmatpush1.msra.mxu0 0.0
  %2380 = vmatprep.subr.mxu0 0.0
  %2381 = vmatpush1.msra.mxu0 0.0
  %2382 = vmatprep.subr.mxu0 0.0
  %2383 = vmatpush1.msra.mxu0 0.0
  %2384 = vmatprep.subr.mxu0 0.0
  %2385 = vmatpush1.msra.mxu0 0.0
  %2386 = vmatprep.subr.mxu0 0.0
  %2387 = vmatpush1.msra.mxu0 0.0
  %2388 = vmatprep.subr.mxu0 0.0
  %2389 = vmatpush1.msra.mxu0 0.0
  %2390 = vmatprep.subr.mxu0 0.0
  %2391 = vmatpush1.msra.mxu0 0.0
  %2392 = vmatprep.subr.mxu0 0.0
  %2393 = vmatpush1.msra.mxu0 0.0
  %2394 = vmatprep.subr.mxu0 0.0
  %2395 = vmatpush1.msra.mxu0 0.0
  %2396 = vmatprep.subr.mxu0 0.0
  %2397 = vmatpush1.msra.mxu0 0.0
  %2398 = vmatprep.subr.mxu0 0.0
  %2399 = vmatpush1.msra.mxu0 0.0
  %2400 = vmatprep.subr.mxu0 0.0
  %2401 = vmatpush1.msra.mxu0 0.0
  %2402 = vmatprep.subr.mxu0 0.0
  %2403 = vmatpush1.msra.mxu0 0.0
  %2404 = vmatprep.subr.mxu0 0.0
  %2405 = vmatpush1.msra.mxu0 0.0
  %2406 = vmatprep.subr.mxu0 0.0
  %2407 = vmatpush1.msra.mxu0 0.0
  %2408 = vmatprep.subr.mxu0 0.0
  %2409 = vmatpush1.msra.mxu0 0.0
  %2410 = vmatprep.subr.mxu0 0.0
  %2411 = vmatpush1.msra.mxu0 0.0
  %2412 = vmatprep.subr.mxu0 0.0
  %2413 = vmatpush1.msra.mxu0 0.0
  %2414 = vmatprep.subr.mxu0 0.0
  %2415 = vmatpush1.msra.mxu0 0.0
  %2416 = vmatprep.subr.mxu0 0.0
  %2417 = vmatpush1.msra.mxu0 0.0
  %2418 = vmatprep.mubr.f32.mxu0 0.0
  %2419 = vmatmul.mubr.f32.gmra.mrb[0].mxu0 %v2352
  %v2420 = vpop.f32.mrb[0].mxu0
  %v2421 = vadd.f32 0.0, %v2420
  %v2422 = vpop.f32.mrb[0].mxu0
  %v2423 = vadd.f32 0.0, %v2422
  %2424 = vdwg.mxu0
  %2425 = vmatprep.subr.mxu0 %v2346
  %2426 = vmatpush1.msra.mxu0 %v2345
  %2427 = vmatprep.subr.mxu0 0.0
  %2428 = vmatpush1.msra.mxu0 0.0
  %2429 = vmatprep.subr.mxu0 0.0
  %2430 = vmatpush1.msra.mxu0 0.0
  %2431 = vmatprep.subr.mxu0 0.0
  %2432 = vmatpush1.msra.mxu0 0.0
  %2433 = vmatprep.subr.mxu0 0.0
  %2434 = vmatpush1.msra.mxu0 0.0
  %2435 = vmatprep.subr.mxu0 0.0
  %2436 = vmatpush1.msra.mxu0 0.0
  %2437 = vmatprep.subr.mxu0 0.0
  %2438 = vmatpush1.msra.mxu0 0.0
  %2439 = vmatprep.subr.mxu0 0.0
  %2440 = vmatpush1.msra.mxu0 0.0
  %2441 = vmatprep.subr.mxu0 0.0
  %2442 = vmatpush1.msra.mxu0 0.0
  %2443 = vmatprep.subr.mxu0 0.0
  %2444 = vmatpush1.msra.mxu0 0.0
  %2445 = vmatprep.subr.mxu0 0.0
  %2446 = vmatpush1.msra.mxu0 0.0
  %2447 = vmatprep.subr.mxu0 0.0
  %2448 = vmatpush1.msra.mxu0 0.0
  %2449 = vmatprep.subr.mxu0 0.0
  %2450 = vmatpush1.msra.mxu0 0.0
  %2451 = vmatprep.subr.mxu0 0.0
  %2452 = vmatpush1.msra.mxu0 0.0
  %2453 = vmatprep.subr.mxu0 0.0
  %2454 = vmatpush1.msra.mxu0 0.0
  %2455 = vmatprep.subr.mxu0 0.0
  %2456 = vmatpush1.msra.mxu0 0.0
  %2457 = vmatprep.subr.mxu0 0.0
  %2458 = vmatpush1.msra.mxu0 0.0
  %2459 = vmatprep.subr.mxu0 0.0
  %2460 = vmatpush1.msra.mxu0 0.0
  %2461 = vmatprep.subr.mxu0 0.0
  %2462 = vmatpush1.msra.mxu0 0.0
  %2463 = vmatprep.subr.mxu0 0.0
  %2464 = vmatpush1.msra.mxu0 0.0
  %2465 = vmatprep.subr.mxu0 0.0
  %2466 = vmatpush1.msra.mxu0 0.0
  %2467 = vmatprep.subr.mxu0 0.0
  %2468 = vmatpush1.msra.mxu0 0.0
  %2469 = vmatprep.subr.mxu0 0.0
  %2470 = vmatpush1.msra.mxu0 0.0
  %2471 = vmatprep.subr.mxu0 0.0
  %2472 = vmatpush1.msra.mxu0 0.0
  %2473 = vmatprep.subr.mxu0 0.0
  %2474 = vmatpush1.msra.mxu0 0.0
  %2475 = vmatprep.subr.mxu0 0.0
  %2476 = vmatpush1.msra.mxu0 0.0
  %2477 = vmatprep.subr.mxu0 0.0
  %2478 = vmatpush1.msra.mxu0 0.0
  %2479 = vmatprep.subr.mxu0 0.0
  %2480 = vmatpush1.msra.mxu0 0.0
  %2481 = vmatprep.subr.mxu0 0.0
  %2482 = vmatpush1.msra.mxu0 0.0
  %2483 = vmatprep.subr.mxu0 0.0
  %2484 = vmatpush1.msra.mxu0 0.0
  %2485 = vmatprep.subr.mxu0 0.0
  %2486 = vmatpush1.msra.mxu0 0.0
  %2487 = vmatprep.subr.mxu0 0.0
  %2488 = vmatpush1.msra.mxu0 0.0
  %2489 = vmatprep.mubr.f32.mxu0 0.0
  %2490 = vmatmul.mubr.f32.gmra.mrb[0].mxu0 %v2352
  %v2491 = vpop.f32.mrb[0].mxu0
  %v2492 = vadd.f32 0.0, %v2491
  %v2493 = vpop.f32.mrb[0].mxu0
  %v2494 = vadd.f32 0.0, %v2493
  %2495 = vdwg.mxu0
  %2496 = vmatprep.subr.mxu0 %v2348
  %2497 = vmatpush1.msra.mxu0 %v2347
  %2498 = vmatprep.subr.mxu0 0.0
  %2499 = vmatpush1.msra.mxu0 0.0
  %2500 = vmatprep.subr.mxu0 0.0
  %2501 = vmatpush1.msra.mxu0 0.0
  %2502 = vmatprep.subr.mxu0 0.0
  %2503 = vmatpush1.msra.mxu0 0.0
  %2504 = vmatprep.subr.mxu0 0.0
  %2505 = vmatpush1.msra.mxu0 0.0
  %2506 = vmatprep.subr.mxu0 0.0
  %2507 = vmatpush1.msra.mxu0 0.0
  %2508 = vmatprep.subr.mxu0 0.0
  %2509 = vmatpush1.msra.mxu0 0.0
  %2510 = vmatprep.subr.mxu0 0.0
  %2511 = vmatpush1.msra.mxu0 0.0
  %2512 = vmatprep.subr.mxu0 0.0
  %2513 = vmatpush1.msra.mxu0 0.0
  %2514 = vmatprep.subr.mxu0 0.0
  %2515 = vmatpush1.msra.mxu0 0.0
  %2516 = vmatprep.subr.mxu0 0.0
  %2517 = vmatpush1.msra.mxu0 0.0
  %2518 = vmatprep.subr.mxu0 0.0
  %2519 = vmatpush1.msra.mxu0 0.0
  %2520 = vmatprep.subr.mxu0 0.0
  %2521 = vmatpush1.msra.mxu0 0.0
  %2522 = vmatprep.subr.mxu0 0.0
  %2523 = vmatpush1.msra.mxu0 0.0
  %2524 = vmatprep.subr.mxu0 0.0
  %2525 = vmatpush1.msra.mxu0 0.0
  %2526 = vmatprep.subr.mxu0 0.0
  %2527 = vmatpush1.msra.mxu0 0.0
  %2528 = vmatprep.subr.mxu0 0.0
  %2529 = vmatpush1.msra.mxu0 0.0
  %2530 = vmatprep.subr.mxu0 0.0
  %2531 = vmatpush1.msra.mxu0 0.0
  %2532 = vmatprep.subr.mxu0 0.0
  %2533 = vmatpush1.msra.mxu0 0.0
  %2534 = vmatprep.subr.mxu0 0.0
  %2535 = vmatpush1.msra.mxu0 0.0
  %2536 = vmatprep.subr.mxu0 0.0
  %2537 = vmatpush1.msra.mxu0 0.0
  %2538 = vmatprep.subr.mxu0 0.0
  %2539 = vmatpush1.msra.mxu0 0.0
  %2540 = vmatprep.subr.mxu0 0.0
  %2541 = vmatpush1.msra.mxu0 0.0
  %2542 = vmatprep.subr.mxu0 0.0
  %2543 = vmatpush1.msra.mxu0 0.0
  %2544 = vmatprep.subr.mxu0 0.0
  %2545 = vmatpush1.msra.mxu0 0.0
  %2546 = vmatprep.subr.mxu0 0.0
  %2547 = vmatpush1.msra.mxu0 0.0
  %2548 = vmatprep.subr.mxu0 0.0
  %2549 = vmatpush1.msra.mxu0 0.0
  %2550 = vmatprep.subr.mxu0 0.0
  %2551 = vmatpush1.msra.mxu0 0.0
  %2552 = vmatprep.subr.mxu0 0.0
  %2553 = vmatpush1.msra.mxu0 0.0
  %2554 = vmatprep.subr.mxu0 0.0
  %2555 = vmatpush1.msra.mxu0 0.0
  %2556 = vmatprep.subr.mxu0 0.0
  %2557 = vmatpush1.msra.mxu0 0.0
  %2558 = vmatprep.subr.mxu0 0.0
  %2559 = vmatpush1.msra.mxu0 0.0
  %2560 = vmatprep.mubr.f32.mxu0 0.0
  %2561 = vmatmul.mubr.f32.gmra.mrb[0].mxu0 %v2352
  %v2562 = vpop.f32.mrb[0].mxu0
  %v2563 = vadd.f32 0.0, %v2562
  %v2564 = vpop.f32.mrb[0].mxu0
  %v2565 = vadd.f32 0.0, %v2564
  %2566 = vdwg.mxu0
  %v2567 = vmul.f32 %v2421, %v1942
  %v2568 = vmul.f32 %v2423, %v1946
  %v2569 = vmul.f32 %v2492, %v1950
  %v2570 = vmul.f32 %v2494, %v1954
  %v2571 = vmul.f32 %v2563, %v1958
  %v2572 = vmul.f32 %v2565, %v1962
  %v2573 = vadd.f32 %v2567, %v2568
  %v2574 = vadd.f32 %v2573, %v2569
  %v2575 = vadd.f32 %v2574, %v2570
  %v2576 = vadd.f32 %v2575, %v2571
  %v2577 = vadd.f32 %v2576, %v2572
  %2578 = vadd.xlane.f32.xlu0 %v2577
  %v2579 = vpop.xlane.xlu0 %2578
  %v2580 = vmul.f32 %v2579, 0.001953125
  %v2581 = vsub.f32 %v2421, %v2580
  %v2582 = vsub.f32 %v2423, %v2580
  %v2583 = vsub.f32 %v2492, %v2580
  %v2584 = vsub.f32 %v2494, %v2580
  %v2585 = vsub.f32 %v2563, %v2580
  %v2586 = vsub.f32 %v2565, %v2580
  %v2587 = vmul.f32 %v2581, %v1942
  %v2588 = vmul.f32 %v2582, %v1946
  %v2589 = vmul.f32 %v2583, %v1950
  %v2590 = vmul.f32 %v2584, %v1954
  %v2591 = vmul.f32 %v2585, %v1958
  %v2592 = vmul.f32 %v2586, %v1962
  %v2593 = vmul.f32 %v2587, %v2587
  %v2594 = vmul.f32 %v2588, %v2588
  %v2595 = vmul.f32 %v2589, %v2589
  %v2596 = vmul.f32 %v2590, %v2590
  %v2597 = vmul.f32 %v2591, %v2591
  %v2598 = vmul.f32 %v2592, %v2592
  %v2599 = vadd.f32 %v2593, %v2594
  %v2600 = vadd.f32 %v2599, %v2595
  %v2601 = vadd.f32 %v2600, %v2596
  %v2602 = vadd.f32 %v2601, %v2597
  %v2603 = vadd.f32 %v2602, %v2598
  %2604 = vadd.xlane.f32.xlu0 %v2603
  %v2605 = vpop.xlane.xlu0 %2604
  %v2606 = vmul.f32 %v2605, 0.001953125
  %v2607 = vadd.f32 %v2606, 1e-05
  %v2608 = vrsqrt.pop %v2607
  %v2609 = vmul.f32 %v2581, %v2608
  %v2610 = vmul.f32 %v2582, %v2608
  %v2611 = vmul.f32 %v2583, %v2608
  %v2612 = vmul.f32 %v2584, %v2608
  %v2613 = vmul.f32 %v2585, %v2608
  %v2614 = vmul.f32 %v2586, %v2608
  %2615 = vset.pattern.permute.xlu0 2
  %2616 = vperm.xlu0 %2615, %v1936
  %v2617 = vpop.permute.xlu0 %2616
  %v2619 = vmul.f32 %v2609, %v2617
  %v2620 = vmul.f32 %v2610, %v2617
  %v2621 = vmul.f32 %v2611, %v2617
  %v2622 = vmul.f32 %v2612, %v2617
  %v2623 = vmul.f32 %v2613, %v2617
  %v2624 = vmul.f32 %v2614, %v2617
  %2625 = vset.pattern.permute.xlu0 2
  %2626 = vperm.xlu0 %2625, %v1937
  %v2627 = vpop.permute.xlu0 %2626
  %v2629 = vadd.f32 %v2619, %v2627
  %v2630 = vadd.f32 %v2620, %v2627
  %v2631 = vadd.f32 %v2621, %v2627
  %v2632 = vadd.f32 %v2622, %v2627
  %v2633 = vadd.f32 %v2623, %v2627
  %v2634 = vadd.f32 %v2624, %v2627
  %v2635 = vmax.f32 %v2629, 0.0
  %v2636 = vmax.f32 %v2630, 0.0
  %v2637 = vmax.f32 %v2631, 0.0
  %v2638 = vmax.f32 %v2632, 0.0
  %v2639 = vmax.f32 %v2633, 0.0
  %v2640 = vmax.f32 %v2634, 0.0
  %v2641 = vmul.f32 %v2635, %v1942
  %v2642 = vmul.f32 %v2636, %v1946
  %v2643 = vmul.f32 %v2637, %v1950
  %v2644 = vmul.f32 %v2638, %v1954
  %v2645 = vmul.f32 %v2639, %v1958
  %v2646 = vmul.f32 %v2640, %v1962
  %v2647 = vld [vmem:[%s0] sm:$0xff]
  %v2648 = vld [vmem:[%s0 + $0x8] sm:$0xff]
  %v2649 = vld [vmem:[%s0 + $0x10] sm:$0xff]
  %v2650 = vld [vmem:[%s0 + $0x18] sm:$0xff]
  %v2651 = vld [vmem:[%s0 + $0x20] sm:$0xff]
  %v2652 = vld [vmem:[%s0 + $0x28] sm:$0xff]
  %v2653 = vld [vmem:[%s3] sm:$0xff]
  %v2654 = vld [vmem:[%s3 + $0x8] sm:$0xff]
  %2655 = vrot.lane.b32.xlu0 %v2647, 19
  %v2656 = vpop.permute.xlu0 %2655
  %2657 = vrot.lane.b32.xlu0 %v2648, 19
  %v2658 = vpop.permute.xlu0 %2657
  %2659 = vrot.lane.b32.xlu0 %v2649, 19
  %v2660 = vpop.permute.xlu0 %2659
  %2661 = vrot.lane.b32.xlu0 %v2650, 19
  %v2662 = vpop.permute.xlu0 %2661
  %2663 = vrot.lane.b32.xlu0 %v2651, 19
  %v2664 = vpop.permute.xlu0 %2663
  %2665 = vrot.lane.b32.xlu0 %v2652, 19
  %v2666 = vpop.permute.xlu0 %2665
  %v2667 = vlaneseq
  %v2668 = vand.u32 %v2667, 127
  %vm2669 = vcmp.lt.s32.totalorder %v2668, 19
  %v2670 = vsel %vm2669, %v2664, %v2666
  %v2671 = vsel %vm2669, %v2662, %v2664
  %v2672 = vsel %vm2669, %v2660, %v2662
  %v2673 = vsel %vm2669, %v2658, %v2660
  %v2674 = vsel %vm2669, %v2656, %v2658
  %v2675 = vsel %vm2669, %v2666, %v2656
  %2676 = vrot.lane.b32.xlu0 %v2647, 18
  %v2677 = vpop.permute.xlu0 %2676
  %2678 = vrot.lane.b32.xlu0 %v2648, 18
  %v2679 = vpop.permute.xlu0 %2678
  %2680 = vrot.lane.b32.xlu0 %v2649, 18
  %v2681 = vpop.permute.xlu0 %2680
  %2682 = vrot.lane.b32.xlu0 %v2650, 18
  %v2683 = vpop.permute.xlu0 %2682
  %2684 = vrot.lane.b32.xlu0 %v2651, 18
  %v2685 = vpop.permute.xlu0 %2684
  %2686 = vrot.lane.b32.xlu0 %v2652, 18
  %v2687 = vpop.permute.xlu0 %2686
  %vm2688 = vcmp.lt.s32.totalorder %v2668, 18
  %v2689 = vsel %vm2688, %v2685, %v2687
  %v2690 = vsel %vm2688, %v2683, %v2685
  %v2691 = vsel %vm2688, %v2681, %v2683
  %v2692 = vsel %vm2688, %v2679, %v2681
  %v2693 = vsel %vm2688, %v2677, %v2679
  %v2694 = vsel %vm2688, %v2687, %v2677
  %2695 = vrot.lane.b32.xlu0 %v2647, 17
  %v2696 = vpop.permute.xlu0 %2695
  %2697 = vrot.lane.b32.xlu0 %v2648, 17
  %v2698 = vpop.permute.xlu0 %2697
  %2699 = vrot.lane.b32.xlu0 %v2649, 17
  %v2700 = vpop.permute.xlu0 %2699
  %2701 = vrot.lane.b32.xlu0 %v2650, 17
  %v2702 = vpop.permute.xlu0 %2701
  %2703 = vrot.lane.b32.xlu0 %v2651, 17
  %v2704 = vpop.permute.xlu0 %2703
  %2705 = vrot.lane.b32.xlu0 %v2652, 17
  %v2706 = vpop.permute.xlu0 %2705
  %vm2707 = vcmp.lt.s32.totalorder %v2668, 17
  %v2708 = vsel %vm2707, %v2704, %v2706
  %v2709 = vsel %vm2707, %v2702, %v2704
  %v2710 = vsel %vm2707, %v2700, %v2702
  %v2711 = vsel %vm2707, %v2698, %v2700
  %v2712 = vsel %vm2707, %v2696, %v2698
  %v2713 = vsel %vm2707, %v2706, %v2696
  %2714 = vrot.lane.b32.xlu0 %v2647, 1
  %v2715 = vpop.permute.xlu0 %2714
  %2716 = vrot.lane.b32.xlu0 %v2648, 1
  %v2717 = vpop.permute.xlu0 %2716
  %2718 = vrot.lane.b32.xlu0 %v2649, 1
  %v2719 = vpop.permute.xlu0 %2718
  %2720 = vrot.lane.b32.xlu0 %v2650, 1
  %v2721 = vpop.permute.xlu0 %2720
  %2722 = vrot.lane.b32.xlu0 %v2651, 1
  %v2723 = vpop.permute.xlu0 %2722
  %2724 = vrot.lane.b32.xlu0 %v2652, 1
  %v2725 = vpop.permute.xlu0 %2724
  %vm2726 = vcmp.lt.s32.totalorder %v2668, 1
  %v2727 = vsel %vm2726, %v2723, %v2725
  %v2728 = vsel %vm2726, %v2721, %v2723
  %v2729 = vsel %vm2726, %v2719, %v2721
  %v2730 = vsel %vm2726, %v2717, %v2719
  %v2731 = vsel %vm2726, %v2715, %v2717
  %v2732 = vsel %vm2726, %v2725, %v2715
  %2733 = vrot.lane.b32.xlu0 %v2647, 127
  %v2734 = vpop.permute.xlu0 %2733
  %2735 = vrot.lane.b32.xlu0 %v2648, 127
  %v2736 = vpop.permute.xlu0 %2735
  %2737 = vrot.lane.b32.xlu0 %v2649, 127
  %v2738 = vpop.permute.xlu0 %2737
  %2739 = vrot.lane.b32.xlu0 %v2650, 127
  %v2740 = vpop.permute.xlu0 %2739
  %2741 = vrot.lane.b32.xlu0 %v2651, 127
  %v2742 = vpop.permute.xlu0 %2741
  %2743 = vrot.lane.b32.xlu0 %v2652, 127
  %v2744 = vpop.permute.xlu0 %2743
  %vm2745 = vcmp.lt.s32.totalorder %v2668, 127
  %v2746 = vsel %vm2745, %v2742, %v2744
  %v2747 = vsel %vm2745, %v2740, %v2742
  %v2748 = vsel %vm2745, %v2738, %v2740
  %v2749 = vsel %vm2745, %v2736, %v2738
  %v2750 = vsel %vm2745, %v2734, %v2736
  %v2751 = vsel %vm2745, %v2744, %v2734
  %2752 = vrot.lane.b32.xlu0 %v2647, 111
  %v2753 = vpop.permute.xlu0 %2752
  %2754 = vrot.lane.b32.xlu0 %v2648, 111
  %v2755 = vpop.permute.xlu0 %2754
  %2756 = vrot.lane.b32.xlu0 %v2649, 111
  %v2757 = vpop.permute.xlu0 %2756
  %2758 = vrot.lane.b32.xlu0 %v2650, 111
  %v2759 = vpop.permute.xlu0 %2758
  %2760 = vrot.lane.b32.xlu0 %v2651, 111
  %v2761 = vpop.permute.xlu0 %2760
  %2762 = vrot.lane.b32.xlu0 %v2652, 111
  %v2763 = vpop.permute.xlu0 %2762
  %vm2764 = vcmp.lt.s32.totalorder %v2668, 111
  %v2765 = vsel %vm2764, %v2761, %v2763
  %v2766 = vsel %vm2764, %v2759, %v2761
  %v2767 = vsel %vm2764, %v2757, %v2759
  %v2768 = vsel %vm2764, %v2755, %v2757
  %v2769 = vsel %vm2764, %v2753, %v2755
  %v2770 = vsel %vm2764, %v2763, %v2753
  %2771 = vrot.lane.b32.xlu0 %v2647, 110
  %v2772 = vpop.permute.xlu0 %2771
  %2773 = vrot.lane.b32.xlu0 %v2648, 110
  %v2774 = vpop.permute.xlu0 %2773
  %2775 = vrot.lane.b32.xlu0 %v2649, 110
  %v2776 = vpop.permute.xlu0 %2775
  %2777 = vrot.lane.b32.xlu0 %v2650, 110
  %v2778 = vpop.permute.xlu0 %2777
  %2779 = vrot.lane.b32.xlu0 %v2651, 110
  %v2780 = vpop.permute.xlu0 %2779
  %2781 = vrot.lane.b32.xlu0 %v2652, 110
  %v2782 = vpop.permute.xlu0 %2781
  %vm2783 = vcmp.lt.s32.totalorder %v2668, 110
  %v2784 = vsel %vm2783, %v2780, %v2782
  %v2785 = vsel %vm2783, %v2778, %v2780
  %v2786 = vsel %vm2783, %v2776, %v2778
  %v2787 = vsel %vm2783, %v2774, %v2776
  %v2788 = vsel %vm2783, %v2772, %v2774
  %v2789 = vsel %vm2783, %v2782, %v2772
  %2790 = vrot.lane.b32.xlu0 %v2647, 109
  %v2791 = vpop.permute.xlu0 %2790
  %2792 = vrot.lane.b32.xlu0 %v2648, 109
  %v2793 = vpop.permute.xlu0 %2792
  %2794 = vrot.lane.b32.xlu0 %v2649, 109
  %v2795 = vpop.permute.xlu0 %2794
  %2796 = vrot.lane.b32.xlu0 %v2650, 109
  %v2797 = vpop.permute.xlu0 %2796
  %2798 = vrot.lane.b32.xlu0 %v2651, 109
  %v2799 = vpop.permute.xlu0 %2798
  %2800 = vrot.lane.b32.xlu0 %v2652, 109
  %v2801 = vpop.permute.xlu0 %2800
  %vm2802 = vcmp.lt.s32.totalorder %v2668, 109
  %v2803 = vsel %vm2802, %v2799, %v2801
  %v2804 = vsel %vm2802, %v2797, %v2799
  %v2805 = vsel %vm2802, %v2795, %v2797
  %v2806 = vsel %vm2802, %v2793, %v2795
  %v2807 = vsel %vm2802, %v2791, %v2793
  %v2808 = vsel %vm2802, %v2801, %v2791
  %v2809 = vpack.c.bf16 %v2694, %v2675
  %v2810 = vpack.c.bf16 %v2693, %v2674
  %v2811 = vpack.c.bf16 %v2692, %v2673
  %v2812 = vpack.c.bf16 %v2691, %v2672
  %v2813 = vpack.c.bf16 %v2690, %v2671
  %v2814 = vpack.c.bf16 %v2689, %v2670
  %v2815 = vpack.c.bf16 %v2732, %v2713
  %v2816 = vpack.c.bf16 %v2731, %v2712
  %v2817 = vpack.c.bf16 %v2730, %v2711
  %v2818 = vpack.c.bf16 %v2729, %v2710
  %v2819 = vpack.c.bf16 %v2728, %v2709
  %v2820 = vpack.c.bf16 %v2727, %v2708
  %v2821 = vpack.c.bf16 %v2750, %v2647
  %v2822 = vpack.c.bf16 %v2749, %v2648
  %v2823 = vpack.c.bf16 %v2748, %v2649
  %v2824 = vpack.c.bf16 %v2747, %v2650
  %v2825 = vpack.c.bf16 %v2746, %v2651
  %v2826 = vpack.c.bf16 %v2751, %v2652
  %v2827 = vpack.c.bf16 %v2788, %v2769
  %v2828 = vpack.c.bf16 %v2787, %v2768
  %v2829 = vpack.c.bf16 %v2786, %v2767
  %v2830 = vpack.c.bf16 %v2785, %v2766
  %v2831 = vpack.c.bf16 %v2784, %v2765
  %v2832 = vpack.c.bf16 %v2789, %v2770
  %v2833 = vpack.c.bf16 %v2807, %v2807
  %v2834 = vpack.c.bf16 %v2806, %v2806
  %v2835 = vpack.c.bf16 %v2805, %v2805
  %v2836 = vpack.c.bf16 %v2804, %v2804
  %v2837 = vpack.c.bf16 %v2803, %v2803
  %v2838 = vpack.c.bf16 %v2808, %v2808
  %v2841 = vunpack.c.l.b16 %v2653
  %v2842 = vunpack.c.l.b16 %v2654
  %v2843 = vpack.c.b16 %v2842, %v2841
  %vm2844 = vcmask 588800
  %v2846 = vsel %vm2844, %v2843, 0
  %vm2848 = vcmask 1043456
  %v2850 = vsel %vm2848, %v2833, 0
  %v2853 = vsel %vm2848, %v2834, 0
  %v2856 = vsel %vm2848, %v2835, 0
  %v2859 = vsel %vm2848, %v2836, 0
  %v2862 = vsel %vm2848, %v2837, 0
  %v2865 = vsel %vm2848, %v2838, 0
  %2867 = vmatprep.subr.bf16.mxu0 %v2810
  %2868 = vmatpush1.bf16.msra.mxu0 %v2809
  %2869 = vmatprep.subr.bf16.mxu0 %v2816
  %2870 = vmatpush1.bf16.msra.mxu0 %v2815
  %2871 = vmatprep.subr.bf16.mxu0 %v2822
  %2872 = vmatpush1.bf16.msra.mxu0 %v2821
  %2873 = vmatprep.subr.bf16.mxu0 %v2828
  %2874 = vmatpush1.bf16.msra.mxu0 %v2827
  %2875 = vmatprep.subr.bf16.mxu0 %v2853
  %2876 = vmatpush1.bf16.msra.mxu0 %v2850
  %2877 = vmatprep.subr.bf16.mxu0 0
  %2878 = vmatpush1.bf16.msra.mxu0 0
  %2879 = vmatprep.subr.bf16.mxu0 0
  %2880 = vmatpush1.bf16.msra.mxu0 0
  %2881 = vmatprep.subr.bf16.mxu0 0
  %2882 = vmatpush1.bf16.msra.mxu0 0
  %2883 = vmatprep.subr.bf16.mxu0 0
  %2884 = vmatpush1.bf16.msra.mxu0 0
  %2885 = vmatprep.subr.bf16.mxu0 0
  %2886 = vmatpush1.bf16.msra.mxu0 0
  %2887 = vmatprep.subr.bf16.mxu0 0
  %2888 = vmatpush1.bf16.msra.mxu0 0
  %2889 = vmatprep.subr.bf16.mxu0 0
  %2890 = vmatpush1.bf16.msra.mxu0 0
  %2891 = vmatprep.subr.bf16.mxu0 0
  %2892 = vmatpush1.bf16.msra.mxu0 0
  %2893 = vmatprep.subr.bf16.mxu0 0
  %2894 = vmatpush1.bf16.msra.mxu0 0
  %2895 = vmatprep.subr.bf16.mxu0 0
  %2896 = vmatpush1.bf16.msra.mxu0 0
  %2897 = vmatprep.subr.bf16.mxu0 0
  %2898 = vmatpush1.bf16.msra.mxu0 0
  %2899 = vmatprep.mubr.bf16.mxu0 0
  %2900 = vmatmul.mubr.bf16.gmra.mrb[0].mxu0 %v2846
  %v2901 = vpop.f32.mrb[0].mxu0
  %v2902 = vadd.f32 0.0, %v2901
  %v2903 = vpop.f32.mrb[0].mxu0
  %v2904 = vadd.f32 0.0, %v2903
  %v2905 = vpop.f32.mrb[0].mxu0
  %v2906 = vadd.f32 0.0, %v2905
  %v2907 = vpop.f32.mrb[0].mxu0
  %v2908 = vadd.f32 0.0, %v2907
  %2909 = vdwg.mxu0
  %2910 = vmatprep.subr.bf16.mxu0 %v2812
  %2911 = vmatpush1.bf16.msra.mxu0 %v2811
  %2912 = vmatprep.subr.bf16.mxu0 %v2818
  %2913 = vmatpush1.bf16.msra.mxu0 %v2817
  %2914 = vmatprep.subr.bf16.mxu0 %v2824
  %2915 = vmatpush1.bf16.msra.mxu0 %v2823
  %2916 = vmatprep.subr.bf16.mxu0 %v2830
  %2917 = vmatpush1.bf16.msra.mxu0 %v2829
  %2918 = vmatprep.subr.bf16.mxu0 %v2859
  %2919 = vmatpush1.bf16.msra.mxu0 %v2856
  %2920 = vmatprep.subr.bf16.mxu0 0
  %2921 = vmatpush1.bf16.msra.mxu0 0
  %2922 = vmatprep.subr.bf16.mxu0 0
  %2923 = vmatpush1.bf16.msra.mxu0 0
  %2924 = vmatprep.subr.bf16.mxu0 0
  %2925 = vmatpush1.bf16.msra.mxu0 0
  %2926 = vmatprep.subr.bf16.mxu0 0
  %2927 = vmatpush1.bf16.msra.mxu0 0
  %2928 = vmatprep.subr.bf16.mxu0 0
  %2929 = vmatpush1.bf16.msra.mxu0 0
  %2930 = vmatprep.subr.bf16.mxu0 0
  %2931 = vmatpush1.bf16.msra.mxu0 0
  %2932 = vmatprep.subr.bf16.mxu0 0
  %2933 = vmatpush1.bf16.msra.mxu0 0
  %2934 = vmatprep.subr.bf16.mxu0 0
  %2935 = vmatpush1.bf16.msra.mxu0 0
  %2936 = vmatprep.subr.bf16.mxu0 0
  %2937 = vmatpush1.bf16.msra.mxu0 0
  %2938 = vmatprep.subr.bf16.mxu0 0
  %2939 = vmatpush1.bf16.msra.mxu0 0
  %2940 = vmatprep.subr.bf16.mxu0 0
  %2941 = vmatpush1.bf16.msra.mxu0 0
  %2942 = vmatprep.mubr.bf16.mxu0 0
  %2943 = vmatmul.mubr.bf16.gmra.mrb[0].mxu0 %v2846
  %v2944 = vpop.f32.mrb[0].mxu0
  %v2945 = vadd.f32 0.0, %v2944
  %v2946 = vpop.f32.mrb[0].mxu0
  %v2947 = vadd.f32 0.0, %v2946
  %v2948 = vpop.f32.mrb[0].mxu0
  %v2949 = vadd.f32 0.0, %v2948
  %v2950 = vpop.f32.mrb[0].mxu0
  %v2951 = vadd.f32 0.0, %v2950
  %2952 = vdwg.mxu0
  %2953 = vmatprep.subr.bf16.mxu0 %v2814
  %2954 = vmatpush1.bf16.msra.mxu0 %v2813
  %2955 = vmatprep.subr.bf16.mxu0 %v2820
  %2956 = vmatpush1.bf16.msra.mxu0 %v2819
  %2957 = vmatprep.subr.bf16.mxu0 %v2826
  %2958 = vmatpush1.bf16.msra.mxu0 %v2825
  %2959 = vmatprep.subr.bf16.mxu0 %v2832
  %2960 = vmatpush1.bf16.msra.mxu0 %v2831
  %2961 = vmatprep.subr.bf16.mxu0 %v2865
  %2962 = vmatpush1.bf16.msra.mxu0 %v2862
  %2963 = vmatprep.subr.bf16.mxu0 0
  %2964 = vmatpush1.bf16.msra.mxu0 0
  %2965 = vmatprep.subr.bf16.mxu0 0
  %2966 = vmatpush1.bf16.msra.mxu0 0
  %2967 = vmatprep.subr.bf16.mxu0 0
  %2968 = vmatpush1.bf16.msra.mxu0 0
  %2969 = vmatprep.subr.bf16.mxu0 0
  %2970 = vmatpush1.bf16.msra.mxu0 0
  %2971 = vmatprep.subr.bf16.mxu0 0
  %2972 = vmatpush1.bf16.msra.mxu0 0
  %2973 = vmatprep.subr.bf16.mxu0 0
  %2974 = vmatpush1.bf16.msra.mxu0 0
  %2975 = vmatprep.subr.bf16.mxu0 0
  %2976 = vmatpush1.bf16.msra.mxu0 0
  %2977 = vmatprep.subr.bf16.mxu0 0
  %2978 = vmatpush1.bf16.msra.mxu0 0
  %2979 = vmatprep.subr.bf16.mxu0 0
  %2980 = vmatpush1.bf16.msra.mxu0 0
  %2981 = vmatprep.subr.bf16.mxu0 0
  %2982 = vmatpush1.bf16.msra.mxu0 0
  %2983 = vmatprep.subr.bf16.mxu0 0
  %2984 = vmatpush1.bf16.msra.mxu0 0
  %2985 = vmatprep.mubr.bf16.mxu0 0
  %2986 = vmatmul.mubr.bf16.gmra.mrb[0].mxu0 %v2846
  %v2987 = vpop.f32.mrb[0].mxu0
  %v2988 = vadd.f32 0.0, %v2987
  %v2989 = vpop.f32.mrb[0].mxu0
  %v2990 = vadd.f32 0.0, %v2989
  %v2991 = vpop.f32.mrb[0].mxu0
  %v2992 = vadd.f32 0.0, %v2991
  %v2993 = vpop.f32.mrb[0].mxu0
  %v2994 = vadd.f32 0.0, %v2993
  %2995 = vdwg.mxu0
  %v2996 = vld [vmem:[%s6] sm:$0xff]
  %v2997 = vld [vmem:[%s6 + $0x8] sm:$0xff]
  %v2998 = vld [vmem:[%s7] sm:$0xff]
  %v2999 = vld [vmem:[%s7 + $0x8] sm:$0xff]
  %v3000 = vmul.f32 %v2902, %v1942
  %v3001 = vmul.f32 %v2904, %v1946
  %v3002 = vmul.f32 %v2945, %v1950
  %v3003 = vmul.f32 %v2947, %v1954
  %v3004 = vmul.f32 %v2988, %v1958
  %v3005 = vmul.f32 %v2990, %v1962
  %v3006 = vmul.f32 %v2906, %v1942
  %v3007 = vmul.f32 %v2908, %v1946
  %v3008 = vmul.f32 %v2949, %v1950
  %v3009 = vmul.f32 %v2951, %v1954
  %v3010 = vmul.f32 %v2992, %v1958
  %v3011 = vmul.f32 %v2994, %v1962
  %v3012 = vadd.f32 %v3000, %v3001
  %v3013 = vadd.f32 %v3012, %v3002
  %v3014 = vadd.f32 %v3013, %v3003
  %v3015 = vadd.f32 %v3014, %v3004
  %v3016 = vadd.f32 %v3015, %v3005
  %3017 = vadd.xlane.f32.xlu0 %v3016
  %v3018 = vpop.xlane.xlu0 %3017
  %v3019 = vadd.f32 %v3006, %v3007
  %v3020 = vadd.f32 %v3019, %v3008
  %v3021 = vadd.f32 %v3020, %v3009
  %v3022 = vadd.f32 %v3021, %v3010
  %v3023 = vadd.f32 %v3022, %v3011
  %3024 = vadd.xlane.f32.xlu0 %v3023
  %v3025 = vpop.xlane.xlu0 %3024
  %v3026 = vmul.f32 %v3018, 0.001953125
  %v3027 = vmul.f32 %v3025, 0.001953125
  %v3028 = vsub.f32 %v2902, %v3026
  %v3029 = vsub.f32 %v2904, %v3026
  %v3030 = vsub.f32 %v2945, %v3026
  %v3031 = vsub.f32 %v2947, %v3026
  %v3032 = vsub.f32 %v2988, %v3026
  %v3033 = vsub.f32 %v2990, %v3026
  %v3034 = vsub.f32 %v2906, %v3027
  %v3035 = vsub.f32 %v2908, %v3027
  %v3036 = vsub.f32 %v2949, %v3027
  %v3037 = vsub.f32 %v2951, %v3027
  %v3038 = vsub.f32 %v2992, %v3027
  %v3039 = vsub.f32 %v2994, %v3027
  %v3040 = vmul.f32 %v3028, %v1942
  %v3041 = vmul.f32 %v3029, %v1946
  %v3042 = vmul.f32 %v3030, %v1950
  %v3043 = vmul.f32 %v3031, %v1954
  %v3044 = vmul.f32 %v3032, %v1958
  %v3045 = vmul.f32 %v3033, %v1962
  %v3046 = vmul.f32 %v3034, %v1942
  %v3047 = vmul.f32 %v3035, %v1946
  %v3048 = vmul.f32 %v3036, %v1950
  %v3049 = vmul.f32 %v3037, %v1954
  %v3050 = vmul.f32 %v3038, %v1958
  %v3051 = vmul.f32 %v3039, %v1962
  %v3052 = vmul.f32 %v3040, %v3040
  %v3053 = vmul.f32 %v3041, %v3041
  %v3054 = vmul.f32 %v3042, %v3042
  %v3055 = vmul.f32 %v3043, %v3043
  %v3056 = vmul.f32 %v3044, %v3044
  %v3057 = vmul.f32 %v3045, %v3045
  %v3058 = vmul.f32 %v3046, %v3046
  %v3059 = vmul.f32 %v3047, %v3047
  %v3060 = vmul.f32 %v3048, %v3048
  %v3061 = vmul.f32 %v3049, %v3049
  %v3062 = vmul.f32 %v3050, %v3050
  %v3063 = vmul.f32 %v3051, %v3051
  %v3064 = vadd.f32 %v3052, %v3053
  %v3065 = vadd.f32 %v3064, %v3054
  %v3066 = vadd.f32 %v3065, %v3055
  %v3067 = vadd.f32 %v3066, %v3056
  %v3068 = vadd.f32 %v3067, %v3057
  %3069 = vadd.xlane.f32.xlu0 %v3068
  %v3070 = vpop.xlane.xlu0 %3069
  %v3071 = vadd.f32 %v3058, %v3059
  %v3072 = vadd.f32 %v3071, %v3060
  %v3073 = vadd.f32 %v3072, %v3061
  %v3074 = vadd.f32 %v3073, %v3062
  %v3075 = vadd.f32 %v3074, %v3063
  %3076 = vadd.xlane.f32.xlu0 %v3075
  %v3077 = vpop.xlane.xlu0 %3076
  %v3078 = vmul.f32 %v3070, 0.001953125
  %v3079 = vmul.f32 %v3077, 0.001953125
  %v3080 = vadd.f32 %v3078, 1e-05
  %v3081 = vadd.f32 %v3079, 1e-05
  %v3082 = vrsqrt.pop %v3080
  %v3083 = vrsqrt.pop %v3081
  %v3084 = vmul.f32 %v3028, %v3082
  %v3085 = vmul.f32 %v3029, %v3082
  %v3086 = vmul.f32 %v3030, %v3082
  %v3087 = vmul.f32 %v3031, %v3082
  %v3088 = vmul.f32 %v3032, %v3082
  %v3089 = vmul.f32 %v3033, %v3082
  %v3090 = vmul.f32 %v3034, %v3083
  %v3091 = vmul.f32 %v3035, %v3083
  %v3092 = vmul.f32 %v3036, %v3083
  %v3093 = vmul.f32 %v3037, %v3083
  %v3094 = vmul.f32 %v3038, %v3083
  %v3095 = vmul.f32 %v3039, %v3083
  %3097 = vset.pattern.permute.xlu0 3
  %3098 = vperm.xlu0 %3097, %v2996
  %v3099 = vpop.permute.xlu0 %3098
  %3102 = vset.pattern.permute.xlu0 3
  %3103 = vperm.xlu0 %3102, %v2997
  %v3104 = vpop.permute.xlu0 %3103
  %v3106 = vmul.f32 %v3084, %v3099
  %v3107 = vmul.f32 %v3085, %v3099
  %v3108 = vmul.f32 %v3086, %v3099
  %v3109 = vmul.f32 %v3087, %v3099
  %v3110 = vmul.f32 %v3088, %v3099
  %v3111 = vmul.f32 %v3089, %v3099
  %v3112 = vmul.f32 %v3090, %v3104
  %v3113 = vmul.f32 %v3091, %v3104
  %v3114 = vmul.f32 %v3092, %v3104
  %v3115 = vmul.f32 %v3093, %v3104
  %v3116 = vmul.f32 %v3094, %v3104
  %v3117 = vmul.f32 %v3095, %v3104
  %3119 = vset.pattern.permute.xlu0 3
  %3120 = vperm.xlu0 %3119, %v2998
  %v3121 = vpop.permute.xlu0 %3120
  %3124 = vset.pattern.permute.xlu0 3
  %3125 = vperm.xlu0 %3124, %v2999
  %v3126 = vpop.permute.xlu0 %3125
  %v3128 = vadd.f32 %v3106, %v3121
  %v3129 = vadd.f32 %v3107, %v3121
  %v3130 = vadd.f32 %v3108, %v3121
  %v3131 = vadd.f32 %v3109, %v3121
  %v3132 = vadd.f32 %v3110, %v3121
  %v3133 = vadd.f32 %v3111, %v3121
  %v3134 = vadd.f32 %v3112, %v3126
  %v3135 = vadd.f32 %v3113, %v3126
  %v3136 = vadd.f32 %v3114, %v3126
  %v3137 = vadd.f32 %v3115, %v3126
  %v3138 = vadd.f32 %v3116, %v3126
  %v3139 = vadd.f32 %v3117, %v3126
  %v3140 = vmax.f32 %v3128, 0.0
  %v3141 = vmax.f32 %v3129, 0.0
  %v3142 = vmax.f32 %v3130, 0.0
  %v3143 = vmax.f32 %v3131, 0.0
  %v3144 = vmax.f32 %v3132, 0.0
  %v3145 = vmax.f32 %v3133, 0.0
  %v3146 = vmax.f32 %v3134, 0.0
  %v3147 = vmax.f32 %v3135, 0.0
  %v3148 = vmax.f32 %v3136, 0.0
  %v3149 = vmax.f32 %v3137, 0.0
  %v3150 = vmax.f32 %v3138, 0.0
  %v3151 = vmax.f32 %v3139, 0.0
  %v3152 = vmul.f32 %v3140, %v1942
  %v3153 = vmul.f32 %v3141, %v1946
  %v3154 = vmul.f32 %v3142, %v1950
  %v3155 = vmul.f32 %v3143, %v1954
  %v3156 = vmul.f32 %v3144, %v1958
  %v3157 = vmul.f32 %v3145, %v1962
  %v3158 = vmul.f32 %v3146, %v1942
  %v3159 = vmul.f32 %v3147, %v1946
  %v3160 = vmul.f32 %v3148, %v1950
  %v3161 = vmul.f32 %v3149, %v1954
  %v3162 = vmul.f32 %v3150, %v1958
  %v3163 = vmul.f32 %v3151, %v1962
  %s3164 = scalar_lea.vmem %s3, 16
  %v3165 = vld [vmem:[%s3164] sm:$0xff]
  %v3166 = vld [vmem:[%s3164 + $0x8] sm:$0xff]
  %3167 = vrot.lane.b32.xlu0 %v3152, 19
  %v3168 = vpop.permute.xlu0 %3167
  %3169 = vrot.lane.b32.xlu0 %v3158, 19
  %v3170 = vpop.permute.xlu0 %3169
  %3171 = vrot.lane.b32.xlu0 %v3153, 19
  %v3172 = vpop.permute.xlu0 %3171
  %3173 = vrot.lane.b32.xlu0 %v3159, 19
  %v3174 = vpop.permute.xlu0 %3173
  %3175 = vrot.lane.b32.xlu0 %v3154, 19
  %v3176 = vpop.permute.xlu0 %3175
  %3177 = vrot.lane.b32.xlu0 %v3160, 19
  %v3178 = vpop.permute.xlu0 %3177
  %3179 = vrot.lane.b32.xlu0 %v3155, 19
  %v3180 = vpop.permute.xlu0 %3179
  %3181 = vrot.lane.b32.xlu0 %v3161, 19
  %v3182 = vpop.permute.xlu0 %3181
  %3183 = vrot.lane.b32.xlu0 %v3156, 19
  %v3184 = vpop.permute.xlu0 %3183
  %3185 = vrot.lane.b32.xlu0 %v3162, 19
  %v3186 = vpop.permute.xlu0 %3185
  %3187 = vrot.lane.b32.xlu0 %v3157, 19
  %v3188 = vpop.permute.xlu0 %3187
  %3189 = vrot.lane.b32.xlu0 %v3163, 19
  %v3190 = vpop.permute.xlu0 %3189
  %v3191 = vsel %vm2669, %v3184, %v3188
  %v3192 = vsel %vm2669, %v3186, %v3190
  %v3193 = vsel %vm2669, %v3180, %v3184
  %v3194 = vsel %vm2669, %v3182, %v3186
  %v3195 = vsel %vm2669, %v3176, %v3180
  %v3196 = vsel %vm2669, %v3178, %v3182
  %v3197 = vsel %vm2669, %v3172, %v3176
  %v3198 = vsel %vm2669, %v3174, %v3178
  %v3199 = vsel %vm2669, %v3168, %v3172
  %v3200 = vsel %vm2669, %v3170, %v3174
  %v3201 = vsel %vm2669, %v3188, %v3168
  %v3202 = vsel %vm2669, %v3190, %v3170
  %3203 = vrot.lane.b32.xlu0 %v3152, 18
  %v3204 = vpop.permute.xlu0 %3203
  %3205 = vrot.lane.b32.xlu0 %v3158, 18
  %v3206 = vpop.permute.xlu0 %3205
  %3207 = vrot.lane.b32.xlu0 %v3153, 18
  %v3208 = vpop.permute.xlu0 %3207
  %3209 = vrot.lane.b32.xlu0 %v3159, 18
  %v3210 = vpop.permute.xlu0 %3209
  %3211 = vrot.lane.b32.xlu0 %v3154, 18
  %v3212 = vpop.permute.xlu0 %3211
  %3213 = vrot.lane.b32.xlu0 %v3160, 18
  %v3214 = vpop.permute.xlu0 %3213
  %3215 = vrot.lane.b32.xlu0 %v3155, 18
  %v3216 = vpop.permute.xlu0 %3215
  %3217 = vrot.lane.b32.xlu0 %v3161, 18
  %v3218 = vpop.permute.xlu0 %3217
  %3219 = vrot.lane.b32.xlu0 %v3156, 18
  %v3220 = vpop.permute.xlu0 %3219
  %3221 = vrot.lane.b32.xlu0 %v3162, 18
  %v3222 = vpop.permute.xlu0 %3221
  %3223 = vrot.lane.b32.xlu0 %v3157, 18
  %v3224 = vpop.permute.xlu0 %3223
  %3225 = vrot.lane.b32.xlu0 %v3163, 18
  %v3226 = vpop.permute.xlu0 %3225
  %v3227 = vsel %vm2688, %v3220, %v3224
  %v3228 = vsel %vm2688, %v3222, %v3226
  %v3229 = vsel %vm2688, %v3216, %v3220
  %v3230 = vsel %vm2688, %v3218, %v3222
  %v3231 = vsel %vm2688, %v3212, %v3216
  %v3232 = vsel %vm2688, %v3214, %v3218
  %v3233 = vsel %vm2688, %v3208, %v3212
  %v3234 = vsel %vm2688, %v3210, %v3214
  %v3235 = vsel %vm2688, %v3204, %v3208
  %v3236 = vsel %vm2688, %v3206, %v3210
  %v3237 = vsel %vm2688, %v3224, %v3204
  %v3238 = vsel %vm2688, %v3226, %v3206
  %3239 = vrot.lane.b32.xlu0 %v3152, 17
  %v3240 = vpop.permute.xlu0 %3239
  %3241 = vrot.lane.b32.xlu0 %v3158, 17
  %v3242 = vpop.permute.xlu0 %3241
  %3243 = vrot.lane.b32.xlu0 %v3153, 17
  %v3244 = vpop.permute.xlu0 %3243
  %3245 = vrot.lane.b32.xlu0 %v3159, 17
  %v3246 = vpop.permute.xlu0 %3245
  %3247 = vrot.lane.b32.xlu0 %v3154, 17
  %v3248 = vpop.permute.xlu0 %3247
  %3249 = vrot.lane.b32.xlu0 %v3160, 17
  %v3250 = vpop.permute.xlu0 %3249
  %3251 = vrot.lane.b32.xlu0 %v3155, 17
  %v3252 = vpop.permute.xlu0 %3251
  %3253 = vrot.lane.b32.xlu0 %v3161, 17
  %v3254 = vpop.permute.xlu0 %3253
  %3255 = vrot.lane.b32.xlu0 %v3156, 17
  %v3256 = vpop.permute.xlu0 %3255
  %3257 = vrot.lane.b32.xlu0 %v3162, 17
  %v3258 = vpop.permute.xlu0 %3257
  %3259 = vrot.lane.b32.xlu0 %v3157, 17
  %v3260 = vpop.permute.xlu0 %3259
  %3261 = vrot.lane.b32.xlu0 %v3163, 17
  %v3262 = vpop.permute.xlu0 %3261
  %v3263 = vsel %vm2707, %v3256, %v3260
  %v3264 = vsel %vm2707, %v3258, %v3262
  %v3265 = vsel %vm2707, %v3252, %v3256
  %v3266 = vsel %vm2707, %v3254, %v3258
  %v3267 = vsel %vm2707, %v3248, %v3252
  %v3268 = vsel %vm2707, %v3250, %v3254
  %v3269 = vsel %vm2707, %v3244, %v3248
  %v3270 = vsel %vm2707, %v3246, %v3250
  %v3271 = vsel %vm2707, %v3240, %v3244
  %v3272 = vsel %vm2707, %v3242, %v3246
  %v3273 = vsel %vm2707, %v3260, %v3240
  %v3274 = vsel %vm2707, %v3262, %v3242
  %3275 = vrot.lane.b32.xlu0 %v3152, 1
  %v3276 = vpop.permute.xlu0 %3275
  %3277 = vrot.lane.b32.xlu0 %v3158, 1
  %v3278 = vpop.permute.xlu0 %3277
  %3279 = vrot.lane.b32.xlu0 %v3153, 1
  %v3280 = vpop.permute.xlu0 %3279
  %3281 = vrot.lane.b32.xlu0 %v3159, 1
  %v3282 = vpop.permute.xlu0 %3281
  %3283 = vrot.lane.b32.xlu0 %v3154, 1
  %v3284 = vpop.permute.xlu0 %3283
  %3285 = vrot.lane.b32.xlu0 %v3160, 1
  %v3286 = vpop.permute.xlu0 %3285
  %3287 = vrot.lane.b32.xlu0 %v3155, 1
  %v3288 = vpop.permute.xlu0 %3287
  %3289 = vrot.lane.b32.xlu0 %v3161, 1
  %v3290 = vpop.permute.xlu0 %3289
  %3291 = vrot.lane.b32.xlu0 %v3156, 1
  %v3292 = vpop.permute.xlu0 %3291
  %3293 = vrot.lane.b32.xlu0 %v3162, 1
  %v3294 = vpop.permute.xlu0 %3293
  %3295 = vrot.lane.b32.xlu0 %v3157, 1
  %v3296 = vpop.permute.xlu0 %3295
  %3297 = vrot.lane.b32.xlu0 %v3163, 1
  %v3298 = vpop.permute.xlu0 %3297
  %v3299 = vsel %vm2726, %v3292, %v3296
  %v3300 = vsel %vm2726, %v3294, %v3298
  %v3301 = vsel %vm2726, %v3288, %v3292
  %v3302 = vsel %vm2726, %v3290, %v3294
  %v3303 = vsel %vm2726, %v3284, %v3288
  %v3304 = vsel %vm2726, %v3286, %v3290
  %v3305 = vsel %vm2726, %v3280, %v3284
  %v3306 = vsel %vm2726, %v3282, %v3286
  %v3307 = vsel %vm2726, %v3276, %v3280
  %v3308 = vsel %vm2726, %v3278, %v3282
  %v3309 = vsel %vm2726, %v3296, %v3276
  %v3310 = vsel %vm2726, %v3298, %v3278
  %3311 = vrot.lane.b32.xlu0 %v3152, 127
  %v3312 = vpop.permute.xlu0 %3311
  %3313 = vrot.lane.b32.xlu0 %v3158, 127
  %v3314 = vpop.permute.xlu0 %3313
  %3315 = vrot.lane.b32.xlu0 %v3153, 127
  %v3316 = vpop.permute.xlu0 %3315
  %3317 = vrot.lane.b32.xlu0 %v3159, 127
  %v3318 = vpop.permute.xlu0 %3317
  %3319 = vrot.lane.b32.xlu0 %v3154, 127
  %v3320 = vpop.permute.xlu0 %3319
  %3321 = vrot.lane.b32.xlu0 %v3160, 127
  %v3322 = vpop.permute.xlu0 %3321
  %3323 = vrot.lane.b32.xlu0 %v3155, 127
  %v3324 = vpop.permute.xlu0 %3323
  %3325 = vrot.lane.b32.xlu0 %v3161, 127
  %v3326 = vpop.permute.xlu0 %3325
  %3327 = vrot.lane.b32.xlu0 %v3156, 127
  %v3328 = vpop.permute.xlu0 %3327
  %3329 = vrot.lane.b32.xlu0 %v3162, 127
  %v3330 = vpop.permute.xlu0 %3329
  %3331 = vrot.lane.b32.xlu0 %v3157, 127
  %v3332 = vpop.permute.xlu0 %3331
  %3333 = vrot.lane.b32.xlu0 %v3163, 127
  %v3334 = vpop.permute.xlu0 %3333
  %v3335 = vsel %vm2745, %v3328, %v3332
  %v3336 = vsel %vm2745, %v3330, %v3334
  %v3337 = vsel %vm2745, %v3324, %v3328
  %v3338 = vsel %vm2745, %v3326, %v3330
  %v3339 = vsel %vm2745, %v3320, %v3324
  %v3340 = vsel %vm2745, %v3322, %v3326
  %v3341 = vsel %vm2745, %v3316, %v3320
  %v3342 = vsel %vm2745, %v3318, %v3322
  %v3343 = vsel %vm2745, %v3312, %v3316
  %v3344 = vsel %vm2745, %v3314, %v3318
  %v3345 = vsel %vm2745, %v3332, %v3312
  %v3346 = vsel %vm2745, %v3334, %v3314
  %3347 = vrot.lane.b32.xlu0 %v3152, 111
  %v3348 = vpop.permute.xlu0 %3347
  %3349 = vrot.lane.b32.xlu0 %v3158, 111
  %v3350 = vpop.permute.xlu0 %3349
  %3351 = vrot.lane.b32.xlu0 %v3153, 111
  %v3352 = vpop.permute.xlu0 %3351
  %3353 = vrot.lane.b32.xlu0 %v3159, 111
  %v3354 = vpop.permute.xlu0 %3353
  %3355 = vrot.lane.b32.xlu0 %v3154, 111
  %v3356 = vpop.permute.xlu0 %3355
  %3357 = vrot.lane.b32.xlu0 %v3160, 111
  %v3358 = vpop.permute.xlu0 %3357
  %3359 = vrot.lane.b32.xlu0 %v3155, 111
  %v3360 = vpop.permute.xlu0 %3359
  %3361 = vrot.lane.b32.xlu0 %v3161, 111
  %v3362 = vpop.permute.xlu0 %3361
  %3363 = vrot.lane.b32.xlu0 %v3156, 111
  %v3364 = vpop.permute.xlu0 %3363
  %3365 = vrot.lane.b32.xlu0 %v3162, 111
  %v3366 = vpop.permute.xlu0 %3365
  %3367 = vrot.lane.b32.xlu0 %v3157, 111
  %v3368 = vpop.permute.xlu0 %3367
  %3369 = vrot.lane.b32.xlu0 %v3163, 111
  %v3370 = vpop.permute.xlu0 %3369
  %v3371 = vsel %vm2764, %v3364, %v3368
  %v3372 = vsel %vm2764, %v3366, %v3370
  %v3373 = vsel %vm2764, %v3360, %v3364
  %v3374 = vsel %vm2764, %v3362, %v3366
  %v3375 = vsel %vm2764, %v3356, %v3360
  %v3376 = vsel %vm2764, %v3358, %v3362
  %v3377 = vsel %vm2764, %v3352, %v3356
  %v3378 = vsel %vm2764, %v3354, %v3358
  %v3379 = vsel %vm2764, %v3348, %v3352
  %v3380 = vsel %vm2764, %v3350, %v3354
  %v3381 = vsel %vm2764, %v3368, %v3348
  %v3382 = vsel %vm2764, %v3370, %v3350
  %3383 = vrot.lane.b32.xlu0 %v3152, 110
  %v3384 = vpop.permute.xlu0 %3383
  %3385 = vrot.lane.b32.xlu0 %v3158, 110
  %v3386 = vpop.permute.xlu0 %3385
  %3387 = vrot.lane.b32.xlu0 %v3153, 110
  %v3388 = vpop.permute.xlu0 %3387
  %3389 = vrot.lane.b32.xlu0 %v3159, 110
  %v3390 = vpop.permute.xlu0 %3389
  %3391 = vrot.lane.b32.xlu0 %v3154, 110
  %v3392 = vpop.permute.xlu0 %3391
  %3393 = vrot.lane.b32.xlu0 %v3160, 110
  %v3394 = vpop.permute.xlu0 %3393
  %3395 = vrot.lane.b32.xlu0 %v3155, 110
  %v3396 = vpop.permute.xlu0 %3395
  %3397 = vrot.lane.b32.xlu0 %v3161, 110
  %v3398 = vpop.permute.xlu0 %3397
  %3399 = vrot.lane.b32.xlu0 %v3156, 110
  %v3400 = vpop.permute.xlu0 %3399
  %3401 = vrot.lane.b32.xlu0 %v3162, 110
  %v3402 = vpop.permute.xlu0 %3401
  %3403 = vrot.lane.b32.xlu0 %v3157, 110
  %v3404 = vpop.permute.xlu0 %3403
  %3405 = vrot.lane.b32.xlu0 %v3163, 110
  %v3406 = vpop.permute.xlu0 %3405
  %v3407 = vsel %vm2783, %v3400, %v3404
  %v3408 = vsel %vm2783, %v3402, %v3406
  %v3409 = vsel %vm2783, %v3396, %v3400
  %v3410 = vsel %vm2783, %v3398, %v3402
  %v3411 = vsel %vm2783, %v3392, %v3396
  %v3412 = vsel %vm2783, %v3394, %v3398
  %v3413 = vsel %vm2783, %v3388, %v3392
  %v3414 = vsel %vm2783, %v3390, %v3394
  %v3415 = vsel %vm2783, %v3384, %v3388
  %v3416 = vsel %vm2783, %v3386, %v3390
  %v3417 = vsel %vm2783, %v3404, %v3384
  %v3418 = vsel %vm2783, %v3406, %v3386
  %3419 = vrot.lane.b32.xlu0 %v3152, 109
  %v3420 = vpop.permute.xlu0 %3419
  %3421 = vrot.lane.b32.xlu0 %v3158, 109
  %v3422 = vpop.permute.xlu0 %3421
  %3423 = vrot.lane.b32.xlu0 %v3153, 109
  %v3424 = vpop.permute.xlu0 %3423
  %3425 = vrot.lane.b32.xlu0 %v3159, 109
  %v3426 = vpop.permute.xlu0 %3425
  %3427 = vrot.lane.b32.xlu0 %v3154, 109
  %v3428 = vpop.permute.xlu0 %3427
  %3429 = vrot.lane.b32.xlu0 %v3160, 109
  %v3430 = vpop.permute.xlu0 %3429
  %3431 = vrot.lane.b32.xlu0 %v3155, 109
  %v3432 = vpop.permute.xlu0 %3431
  %3433 = vrot.lane.b32.xlu0 %v3161, 109
  %v3434 = vpop.permute.xlu0 %3433
  %3435 = vrot.lane.b32.xlu0 %v3156, 109
  %v3436 = vpop.permute.xlu0 %3435
  %3437 = vrot.lane.b32.xlu0 %v3162, 109
  %v3438 = vpop.permute.xlu0 %3437
  %3439 = vrot.lane.b32.xlu0 %v3157, 109
  %v3440 = vpop.permute.xlu0 %3439
  %3441 = vrot.lane.b32.xlu0 %v3163, 109
  %v3442 = vpop.permute.xlu0 %3441
  %v3443 = vsel %vm2802, %v3436, %v3440
  %v3444 = vsel %vm2802, %v3438, %v3442
  %v3445 = vsel %vm2802, %v3432, %v3436
  %v3446 = vsel %vm2802, %v3434, %v3438
  %v3447 = vsel %vm2802, %v3428, %v3432
  %v3448 = vsel %vm2802, %v3430, %v3434
  %v3449 = vsel %vm2802, %v3424, %v3428
  %v3450 = vsel %vm2802, %v3426, %v3430
  %v3451 = vsel %vm2802, %v3420, %v3424
  %v3452 = vsel %vm2802, %v3422, %v3426
  %v3453 = vsel %vm2802, %v3440, %v3420
  %v3454 = vsel %vm2802, %v3442, %v3422
  %v3455 = vpack.c.bf16 %v3202, %v3201
  %v3456 = vpack.c.bf16 %v3200, %v3199
  %v3457 = vpack.c.bf16 %v3198, %v3197
  %v3458 = vpack.c.bf16 %v3196, %v3195
  %v3459 = vpack.c.bf16 %v3194, %v3193
  %v3460 = vpack.c.bf16 %v3192, %v3191
  %v3461 = vpack.c.bf16 %v3238, %v3237
  %v3462 = vpack.c.bf16 %v3236, %v3235
  %v3463 = vpack.c.bf16 %v3234, %v3233
  %v3464 = vpack.c.bf16 %v3232, %v3231
  %v3465 = vpack.c.bf16 %v3230, %v3229
  %v3466 = vpack.c.bf16 %v3228, %v3227
  %v3467 = vpack.c.bf16 %v3274, %v3273
  %v3468 = vpack.c.bf16 %v3272, %v3271
  %v3469 = vpack.c.bf16 %v3270, %v3269
  %v3470 = vpack.c.bf16 %v3268, %v3267
  %v3471 = vpack.c.bf16 %v3266, %v3265
  %v3472 = vpack.c.bf16 %v3264, %v3263
  %v3473 = vpack.c.bf16 %v3310, %v3309
  %v3474 = vpack.c.bf16 %v3308, %v3307
  %v3475 = vpack.c.bf16 %v3306, %v3305
  %v3476 = vpack.c.bf16 %v3304, %v3303
  %v3477 = vpack.c.bf16 %v3302, %v3301
  %v3478 = vpack.c.bf16 %v3300, %v3299
  %v3479 = vpack.c.bf16 %v3158, %v3152
  %v3480 = vpack.c.bf16 %v3159, %v3153
  %v3481 = vpack.c.bf16 %v3160, %v3154
  %v3482 = vpack.c.bf16 %v3161, %v3155
  %v3483 = vpack.c.bf16 %v3162, %v3156
  %v3484 = vpack.c.bf16 %v3163, %v3157
  %v3485 = vpack.c.bf16 %v3344, %v3343
  %v3486 = vpack.c.bf16 %v3342, %v3341
  %v3487 = vpack.c.bf16 %v3340, %v3339
  %v3488 = vpack.c.bf16 %v3338, %v3337
  %v3489 = vpack.c.bf16 %v3336, %v3335
  %v3490 = vpack.c.bf16 %v3346, %v3345
  %v3491 = vpack.c.bf16 %v3380, %v3379
  %v3492 = vpack.c.bf16 %v3378, %v3377
  %v3493 = vpack.c.bf16 %v3376, %v3375
  %v3494 = vpack.c.bf16 %v3374, %v3373
  %v3495 = vpack.c.bf16 %v3372, %v3371
  %v3496 = vpack.c.bf16 %v3382, %v3381
  %v3497 = vpack.c.bf16 %v3416, %v3415
  %v3498 = vpack.c.bf16 %v3414, %v3413
  %v3499 = vpack.c.bf16 %v3412, %v3411
  %v3500 = vpack.c.bf16 %v3410, %v3409
  %v3501 = vpack.c.bf16 %v3408, %v3407
  %v3502 = vpack.c.bf16 %v3418, %v3417
  %v3503 = vpack.c.bf16 %v3452, %v3451
  %v3504 = vpack.c.bf16 %v3450, %v3449
  %v3505 = vpack.c.bf16 %v3448, %v3447
  %v3506 = vpack.c.bf16 %v3446, %v3445
  %v3507 = vpack.c.bf16 %v3444, %v3443
  %v3508 = vpack.c.bf16 %v3454, %v3453
  %v3511 = vunpack.c.l.b16 %v3165
  %v3512 = vunpack.c.h.b16 %v3165
  %v3513 = vunpack.c.l.b16 %v3166
  %v3514 = vunpack.c.h.b16 %v3166
  %v3515 = vpack.c.b16 %v3513, %v3511
  %v3516 = vpack.c.b16 %v3514, %v3512
  %vm3518 = vcmask 130048
  %v3520 = vsel %vm3518, %v3516, 0
  %3522 = vmatprep.subr.bf16.mxu0 %v3456
  %3523 = vmatpush1.bf16.msra.mxu0 %v3455
  %3524 = vmatprep.subr.bf16.mxu0 %v3462
  %3525 = vmatpush1.bf16.msra.mxu0 %v3461
  %3526 = vmatprep.subr.bf16.mxu0 %v3468
  %3527 = vmatpush1.bf16.msra.mxu0 %v3467
  %3528 = vmatprep.subr.bf16.mxu0 %v3474
  %3529 = vmatpush1.bf16.msra.mxu0 %v3473
  %3530 = vmatprep.subr.bf16.mxu0 %v3480
  %3531 = vmatpush1.bf16.msra.mxu0 %v3479
  %3532 = vmatprep.subr.bf16.mxu0 %v3486
  %3533 = vmatpush1.bf16.msra.mxu0 %v3485
  %3534 = vmatprep.subr.bf16.mxu0 %v3492
  %3535 = vmatpush1.bf16.msra.mxu0 %v3491
  %3536 = vmatprep.subr.bf16.mxu0 %v3498
  %3537 = vmatpush1.bf16.msra.mxu0 %v3497
  %3538 = vmatprep.subr.bf16.mxu0 %v3504
  %3539 = vmatpush1.bf16.msra.mxu0 %v3503
  %3540 = vmatprep.subr.bf16.mxu0 0
  %3541 = vmatpush1.bf16.msra.mxu0 0
  %3542 = vmatprep.subr.bf16.mxu0 0
  %3543 = vmatpush1.bf16.msra.mxu0 0
  %3544 = vmatprep.subr.bf16.mxu0 0
  %3545 = vmatpush1.bf16.msra.mxu0 0
  %3546 = vmatprep.subr.bf16.mxu0 0
  %3547 = vmatpush1.bf16.msra.mxu0 0
  %3548 = vmatprep.subr.bf16.mxu0 0
  %3549 = vmatpush1.bf16.msra.mxu0 0
  %3550 = vmatprep.subr.bf16.mxu0 0
  %3551 = vmatpush1.bf16.msra.mxu0 0
  %3552 = vmatprep.subr.bf16.mxu0 0
  %3553 = vmatpush1.bf16.msra.mxu0 0
  %3554 = vmatprep.mubr.bf16.mxu0 %v3520
  %3555 = vmatmul.mubr.bf16.gmra.mrb[0].mxu0 %v3515
  %v3556 = vpop.f32.mrb[0].mxu0
  %v3557 = vadd.f32 0.0, %v3556
  %v3558 = vpop.f32.mrb[0].mxu0
  %v3559 = vadd.f32 0.0, %v3558
  %v3560 = vpop.f32.mrb[0].mxu0
  %v3561 = vadd.f32 0.0, %v3560
  %v3562 = vpop.f32.mrb[0].mxu0
  %v3563 = vadd.f32 0.0, %v3562
  %3564 = vdwg.mxu0
  %3565 = vmatprep.subr.bf16.mxu0 %v3458
  %3566 = vmatpush1.bf16.msra.mxu0 %v3457
  %3567 = vmatprep.subr.bf16.mxu0 %v3464
  %3568 = vmatpush1.bf16.msra.mxu0 %v3463
  %3569 = vmatprep.subr.bf16.mxu0 %v3470
  %3570 = vmatpush1.bf16.msra.mxu0 %v3469
  %3571 = vmatprep.subr.bf16.mxu0 %v3476
  %3572 = vmatpush1.bf16.msra.mxu0 %v3475
  %3573 = vmatprep.subr.bf16.mxu0 %v3482
  %3574 = vmatpush1.bf16.msra.mxu0 %v3481
  %3575 = vmatprep.subr.bf16.mxu0 %v3488
  %3576 = vmatpush1.bf16.msra.mxu0 %v3487
  %3577 = vmatprep.subr.bf16.mxu0 %v3494
  %3578 = vmatpush1.bf16.msra.mxu0 %v3493
  %3579 = vmatprep.subr.bf16.mxu0 %v3500
  %3580 = vmatpush1.bf16.msra.mxu0 %v3499
  %3581 = vmatprep.subr.bf16.mxu0 %v3506
  %3582 = vmatpush1.bf16.msra.mxu0 %v3505
  %3583 = vmatprep.subr.bf16.mxu0 0
  %3584 = vmatpush1.bf16.msra.mxu0 0
  %3585 = vmatprep.subr.bf16.mxu0 0
  %3586 = vmatpush1.bf16.msra.mxu0 0
  %3587 = vmatprep.subr.bf16.mxu0 0
  %3588 = vmatpush1.bf16.msra.mxu0 0
  %3589 = vmatprep.subr.bf16.mxu0 0
  %3590 = vmatpush1.bf16.msra.mxu0 0
  %3591 = vmatprep.subr.bf16.mxu0 0
  %3592 = vmatpush1.bf16.msra.mxu0 0
  %3593 = vmatprep.subr.bf16.mxu0 0
  %3594 = vmatpush1.bf16.msra.mxu0 0
  %3595 = vmatprep.subr.bf16.mxu0 0
  %3596 = vmatpush1.bf16.msra.mxu0 0
  %3597 = vmatprep.mubr.bf16.mxu0 %v3520
  %3598 = vmatmul.mubr.bf16.gmra.mrb[0].mxu0 %v3515
  %v3599 = vpop.f32.mrb[0].mxu0
  %v3600 = vadd.f32 0.0, %v3599
  %v3601 = vpop.f32.mrb[0].mxu0
  %v3602 = vadd.f32 0.0, %v3601
  %v3603 = vpop.f32.mrb[0].mxu0
  %v3604 = vadd.f32 0.0, %v3603
  %v3605 = vpop.f32.mrb[0].mxu0
  %v3606 = vadd.f32 0.0, %v3605
  %3607 = vdwg.mxu0
  %3608 = vmatprep.subr.bf16.mxu0 %v3460
  %3609 = vmatpush1.bf16.msra.mxu0 %v3459
  %3610 = vmatprep.subr.bf16.mxu0 %v3466
  %3611 = vmatpush1.bf16.msra.mxu0 %v3465
  %3612 = vmatprep.subr.bf16.mxu0 %v3472
  %3613 = vmatpush1.bf16.msra.mxu0 %v3471
  %3614 = vmatprep.subr.bf16.mxu0 %v3478
  %3615 = vmatpush1.bf16.msra.mxu0 %v3477
  %3616 = vmatprep.subr.bf16.mxu0 %v3484
  %3617 = vmatpush1.bf16.msra.mxu0 %v3483
  %3618 = vmatprep.subr.bf16.mxu0 %v3490
  %3619 = vmatpush1.bf16.msra.mxu0 %v3489
  %3620 = vmatprep.subr.bf16.mxu0 %v3496
  %3621 = vmatpush1.bf16.msra.mxu0 %v3495
  %3622 = vmatprep.subr.bf16.mxu0 %v3502
  %3623 = vmatpush1.bf16.msra.mxu0 %v3501
  %3624 = vmatprep.subr.bf16.mxu0 %v3508
  %3625 = vmatpush1.bf16.msra.mxu0 %v3507
  %3626 = vmatprep.subr.bf16.mxu0 0
  %3627 = vmatpush1.bf16.msra.mxu0 0
  %3628 = vmatprep.subr.bf16.mxu0 0
  %3629 = vmatpush1.bf16.msra.mxu0 0
  %3630 = vmatprep.subr.bf16.mxu0 0
  %3631 = vmatpush1.bf16.msra.mxu0 0
  %3632 = vmatprep.subr.bf16.mxu0 0
  %3633 = vmatpush1.bf16.msra.mxu0 0
  %3634 = vmatprep.subr.bf16.mxu0 0
  %3635 = vmatpush1.bf16.msra.mxu0 0
  %3636 = vmatprep.subr.bf16.mxu0 0
  %3637 = vmatpush1.bf16.msra.mxu0 0
  %3638 = vmatprep.subr.bf16.mxu0 0
  %3639 = vmatpush1.bf16.msra.mxu0 0
  %3640 = vmatprep.mubr.bf16.mxu0 %v3520
  %3641 = vmatmul.mubr.bf16.gmra.mrb[0].mxu0 %v3515
  %v3642 = vpop.f32.mrb[0].mxu0
  %v3643 = vadd.f32 0.0, %v3642
  %v3644 = vpop.f32.mrb[0].mxu0
  %v3645 = vadd.f32 0.0, %v3644
  %v3646 = vpop.f32.mrb[0].mxu0
  %v3647 = vadd.f32 0.0, %v3646
  %v3648 = vpop.f32.mrb[0].mxu0
  %v3649 = vadd.f32 0.0, %v3648
  %3650 = vdwg.mxu0
  %v3651 = vmul.f32 %v3557, %v1942
  %v3652 = vmul.f32 %v3559, %v1946
  %v3653 = vmul.f32 %v3600, %v1950
  %v3654 = vmul.f32 %v3602, %v1954
  %v3655 = vmul.f32 %v3643, %v1958
  %v3656 = vmul.f32 %v3645, %v1962
  %v3657 = vmul.f32 %v3561, %v1942
  %v3658 = vmul.f32 %v3563, %v1946
  %v3659 = vmul.f32 %v3604, %v1950
  %v3660 = vmul.f32 %v3606, %v1954
  %v3661 = vmul.f32 %v3647, %v1958
  %v3662 = vmul.f32 %v3649, %v1962
  %v3663 = vadd.f32 %v3651, %v3652
  %v3664 = vadd.f32 %v3663, %v3653
  %v3665 = vadd.f32 %v3664, %v3654
  %v3666 = vadd.f32 %v3665, %v3655
  %v3667 = vadd.f32 %v3666, %v3656
  %3668 = vadd.xlane.f32.xlu0 %v3667
  %v3669 = vpop.xlane.xlu0 %3668
  %v3670 = vadd.f32 %v3657, %v3658
  %v3671 = vadd.f32 %v3670, %v3659
  %v3672 = vadd.f32 %v3671, %v3660
  %v3673 = vadd.f32 %v3672, %v3661
  %v3674 = vadd.f32 %v3673, %v3662
  %3675 = vadd.xlane.f32.xlu0 %v3674
  %v3676 = vpop.xlane.xlu0 %3675
  %v3677 = vmul.f32 %v3669, 0.001953125
  %v3678 = vmul.f32 %v3676, 0.001953125
  %v3679 = vsub.f32 %v3557, %v3677
  %v3680 = vsub.f32 %v3559, %v3677
  %v3681 = vsub.f32 %v3600, %v3677
  %v3682 = vsub.f32 %v3602, %v3677
  %v3683 = vsub.f32 %v3643, %v3677
  %v3684 = vsub.f32 %v3645, %v3677
  %v3685 = vsub.f32 %v3561, %v3678
  %v3686 = vsub.f32 %v3563, %v3678
  %v3687 = vsub.f32 %v3604, %v3678
  %v3688 = vsub.f32 %v3606, %v3678
  %v3689 = vsub.f32 %v3647, %v3678
  %v3690 = vsub.f32 %v3649, %v3678
  %v3691 = vmul.f32 %v3679, %v1942
  %v3692 = vmul.f32 %v3680, %v1946
  %v3693 = vmul.f32 %v3681, %v1950
  %v3694 = vmul.f32 %v3682, %v1954
  %v3695 = vmul.f32 %v3683, %v1958
  %v3696 = vmul.f32 %v3684, %v1962
  %v3697 = vmul.f32 %v3685, %v1942
  %v3698 = vmul.f32 %v3686, %v1946
  %v3699 = vmul.f32 %v3687, %v1950
  %v3700 = vmul.f32 %v3688, %v1954
  %v3701 = vmul.f32 %v3689, %v1958
  %v3702 = vmul.f32 %v3690, %v1962
  %v3703 = vmul.f32 %v3691, %v3691
  %v3704 = vmul.f32 %v3692, %v3692
  %v3705 = vmul.f32 %v3693, %v3693
  %v3706 = vmul.f32 %v3694, %v3694
  %v3707 = vmul.f32 %v3695, %v3695
  %v3708 = vmul.f32 %v3696, %v3696
  %v3709 = vmul.f32 %v3697, %v3697
  %v3710 = vmul.f32 %v3698, %v3698
  %v3711 = vmul.f32 %v3699, %v3699
  %v3712 = vmul.f32 %v3700, %v3700
  %v3713 = vmul.f32 %v3701, %v3701
  %v3714 = vmul.f32 %v3702, %v3702
  %v3715 = vadd.f32 %v3703, %v3704
  %v3716 = vadd.f32 %v3715, %v3705
  %v3717 = vadd.f32 %v3716, %v3706
  %v3718 = vadd.f32 %v3717, %v3707
  %v3719 = vadd.f32 %v3718, %v3708
  %3720 = vadd.xlane.f32.xlu0 %v3719
  %v3721 = vpop.xlane.xlu0 %3720
  %v3722 = vadd.f32 %v3709, %v3710
  %v3723 = vadd.f32 %v3722, %v3711
  %v3724 = vadd.f32 %v3723, %v3712
  %v3725 = vadd.f32 %v3724, %v3713
  %v3726 = vadd.f32 %v3725, %v3714
  %3727 = vadd.xlane.f32.xlu0 %v3726
  %v3728 = vpop.xlane.xlu0 %3727
  %v3729 = vmul.f32 %v3721, 0.001953125
  %v3730 = vmul.f32 %v3728, 0.001953125
  %v3731 = vadd.f32 %v3729, 1e-05
  %v3732 = vadd.f32 %v3730, 1e-05
  %v3733 = vrsqrt.pop %v3731
  %v3734 = vrsqrt.pop %v3732
  %v3735 = vmul.f32 %v3679, %v3733
  %v3736 = vmul.f32 %v3680, %v3733
  %v3737 = vmul.f32 %v3681, %v3733
  %v3738 = vmul.f32 %v3682, %v3733
  %v3739 = vmul.f32 %v3683, %v3733
  %v3740 = vmul.f32 %v3684, %v3733
  %v3741 = vmul.f32 %v3685, %v3734
  %v3742 = vmul.f32 %v3686, %v3734
  %v3743 = vmul.f32 %v3687, %v3734
  %v3744 = vmul.f32 %v3688, %v3734
  %v3745 = vmul.f32 %v3689, %v3734
  %v3746 = vmul.f32 %v3690, %v3734
  %3747 = vset.pattern.permute.xlu0 4
  %3748 = vperm.xlu0 %3747, %v2996
  %v3749 = vpop.permute.xlu0 %3748
  %3751 = vset.pattern.permute.xlu0 4
  %3752 = vperm.xlu0 %3751, %v2997
  %v3753 = vpop.permute.xlu0 %3752
  %v3755 = vmul.f32 %v3735, %v3749
  %v3756 = vmul.f32 %v3736, %v3749
  %v3757 = vmul.f32 %v3737, %v3749
  %v3758 = vmul.f32 %v3738, %v3749
  %v3759 = vmul.f32 %v3739, %v3749
  %v3760 = vmul.f32 %v3740, %v3749
  %v3761 = vmul.f32 %v3741, %v3753
  %v3762 = vmul.f32 %v3742, %v3753
  %v3763 = vmul.f32 %v3743, %v3753
  %v3764 = vmul.f32 %v3744, %v3753
  %v3765 = vmul.f32 %v3745, %v3753
  %v3766 = vmul.f32 %v3746, %v3753
  %3767 = vset.pattern.permute.xlu0 4
  %3768 = vperm.xlu0 %3767, %v2998
  %v3769 = vpop.permute.xlu0 %3768
  %3771 = vset.pattern.permute.xlu0 4
  %3772 = vperm.xlu0 %3771, %v2999
  %v3773 = vpop.permute.xlu0 %3772
  %v3775 = vadd.f32 %v3755, %v3769
  %v3776 = vadd.f32 %v3756, %v3769
  %v3777 = vadd.f32 %v3757, %v3769
  %v3778 = vadd.f32 %v3758, %v3769
  %v3779 = vadd.f32 %v3759, %v3769
  %v3780 = vadd.f32 %v3760, %v3769
  %v3781 = vadd.f32 %v3761, %v3773
  %v3782 = vadd.f32 %v3762, %v3773
  %v3783 = vadd.f32 %v3763, %v3773
  %v3784 = vadd.f32 %v3764, %v3773
  %v3785 = vadd.f32 %v3765, %v3773
  %v3786 = vadd.f32 %v3766, %v3773
  %v3787 = vmax.f32 %v3775, 0.0
  %v3788 = vmax.f32 %v3776, 0.0
  %v3789 = vmax.f32 %v3777, 0.0
  %v3790 = vmax.f32 %v3778, 0.0
  %v3791 = vmax.f32 %v3779, 0.0
  %v3792 = vmax.f32 %v3780, 0.0
  %v3793 = vmax.f32 %v3781, 0.0
  %v3794 = vmax.f32 %v3782, 0.0
  %v3795 = vmax.f32 %v3783, 0.0
  %v3796 = vmax.f32 %v3784, 0.0
  %v3797 = vmax.f32 %v3785, 0.0
  %v3798 = vmax.f32 %v3786, 0.0
  %v3799 = vmul.f32 %v3787, %v1942
  %v3800 = vmul.f32 %v3788, %v1946
  %v3801 = vmul.f32 %v3789, %v1950
  %v3802 = vmul.f32 %v3790, %v1954
  %v3803 = vmul.f32 %v3791, %v1958
  %v3804 = vmul.f32 %v3792, %v1962
  %v3805 = vmul.f32 %v3793, %v1942
  %v3806 = vmul.f32 %v3794, %v1946
  %v3807 = vmul.f32 %v3795, %v1950
  %v3808 = vmul.f32 %v3796, %v1954
  %v3809 = vmul.f32 %v3797, %v1958
  %v3810 = vmul.f32 %v3798, %v1962
  %s3811 = scalar_lea.vmem %s3, 32
  %v3812 = vld [vmem:[%s3811] sm:$0xff]
  %v3813 = vld [vmem:[%s3811 + $0x8] sm:$0xff]
  %3814 = vrot.lane.b32.xlu0 %v3799, 19
  %v3815 = vpop.permute.xlu0 %3814
  %3816 = vrot.lane.b32.xlu0 %v3805, 19
  %v3817 = vpop.permute.xlu0 %3816
  %3818 = vrot.lane.b32.xlu0 %v3800, 19
  %v3819 = vpop.permute.xlu0 %3818
  %3820 = vrot.lane.b32.xlu0 %v3806, 19
  %v3821 = vpop.permute.xlu0 %3820
  %3822 = vrot.lane.b32.xlu0 %v3801, 19
  %v3823 = vpop.permute.xlu0 %3822
  %3824 = vrot.lane.b32.xlu0 %v3807, 19
  %v3825 = vpop.permute.xlu0 %3824
  %3826 = vrot.lane.b32.xlu0 %v3802, 19
  %v3827 = vpop.permute.xlu0 %3826
  %3828 = vrot.lane.b32.xlu0 %v3808, 19
  %v3829 = vpop.permute.xlu0 %3828
  %3830 = vrot.lane.b32.xlu0 %v3803, 19
  %v3831 = vpop.permute.xlu0 %3830
  %3832 = vrot.lane.b32.xlu0 %v3809, 19
  %v3833 = vpop.permute.xlu0 %3832
  %3834 = vrot.lane.b32.xlu0 %v3804, 19
  %v3835 = vpop.permute.xlu0 %3834
  %3836 = vrot.lane.b32.xlu0 %v3810, 19
  %v3837 = vpop.permute.xlu0 %3836
  %v3838 = vsel %vm2669, %v3831, %v3835
  %v3839 = vsel %vm2669, %v3833, %v3837
  %v3840 = vsel %vm2669, %v3827, %v3831
  %v3841 = vsel %vm2669, %v3829, %v3833
  %v3842 = vsel %vm2669, %v3823, %v3827
  %v3843 = vsel %vm2669, %v3825, %v3829
  %v3844 = vsel %vm2669, %v3819, %v3823
  %v3845 = vsel %vm2669, %v3821, %v3825
  %v3846 = vsel %vm2669, %v3815, %v3819
  %v3847 = vsel %vm2669, %v3817, %v3821
  %v3848 = vsel %vm2669, %v3835, %v3815
  %v3849 = vsel %vm2669, %v3837, %v3817
  %3850 = vrot.lane.b32.xlu0 %v3799, 18
  %v3851 = vpop.permute.xlu0 %3850
  %3852 = vrot.lane.b32.xlu0 %v3805, 18
  %v3853 = vpop.permute.xlu0 %3852
  %3854 = vrot.lane.b32.xlu0 %v3800, 18
  %v3855 = vpop.permute.xlu0 %3854
  %3856 = vrot.lane.b32.xlu0 %v3806, 18
  %v3857 = vpop.permute.xlu0 %3856
  %3858 = vrot.lane.b32.xlu0 %v3801, 18
  %v3859 = vpop.permute.xlu0 %3858
  %3860 = vrot.lane.b32.xlu0 %v3807, 18
  %v3861 = vpop.permute.xlu0 %3860
  %3862 = vrot.lane.b32.xlu0 %v3802, 18
  %v3863 = vpop.permute.xlu0 %3862
  %3864 = vrot.lane.b32.xlu0 %v3808, 18
  %v3865 = vpop.permute.xlu0 %3864
  %3866 = vrot.lane.b32.xlu0 %v3803, 18
  %v3867 = vpop.permute.xlu0 %3866
  %3868 = vrot.lane.b32.xlu0 %v3809, 18
  %v3869 = vpop.permute.xlu0 %3868
  %3870 = vrot.lane.b32.xlu0 %v3804, 18
  %v3871 = vpop.permute.xlu0 %3870
  %3872 = vrot.lane.b32.xlu0 %v3810, 18
  %v3873 = vpop.permute.xlu0 %3872
  %v3874 = vsel %vm2688, %v3867, %v3871
  %v3875 = vsel %vm2688, %v3869, %v3873
  %v3876 = vsel %vm2688, %v3863, %v3867
  %v3877 = vsel %vm2688, %v3865, %v3869
  %v3878 = vsel %vm2688, %v3859, %v3863
  %v3879 = vsel %vm2688, %v3861, %v3865
  %v3880 = vsel %vm2688, %v3855, %v3859
  %v3881 = vsel %vm2688, %v3857, %v3861
  %v3882 = vsel %vm2688, %v3851, %v3855
  %v3883 = vsel %vm2688, %v3853, %v3857
  %v3884 = vsel %vm2688, %v3871, %v3851
  %v3885 = vsel %vm2688, %v3873, %v3853
  %3886 = vrot.lane.b32.xlu0 %v3799, 17
  %v3887 = vpop.permute.xlu0 %3886
  %3888 = vrot.lane.b32.xlu0 %v3805, 17
  %v3889 = vpop.permute.xlu0 %3888
  %3890 = vrot.lane.b32.xlu0 %v3800, 17
  %v3891 = vpop.permute.xlu0 %3890
  %3892 = vrot.lane.b32.xlu0 %v3806, 17
  %v3893 = vpop.permute.xlu0 %3892
  %3894 = vrot.lane.b32.xlu0 %v3801, 17
  %v3895 = vpop.permute.xlu0 %3894
  %3896 = vrot.lane.b32.xlu0 %v3807, 17
  %v3897 = vpop.permute.xlu0 %3896
  %3898 = vrot.lane.b32.xlu0 %v3802, 17
  %v3899 = vpop.permute.xlu0 %3898
  %3900 = vrot.lane.b32.xlu0 %v3808, 17
  %v3901 = vpop.permute.xlu0 %3900
  %3902 = vrot.lane.b32.xlu0 %v3803, 17
  %v3903 = vpop.permute.xlu0 %3902
  %3904 = vrot.lane.b32.xlu0 %v3809, 17
  %v3905 = vpop.permute.xlu0 %3904
  %3906 = vrot.lane.b32.xlu0 %v3804, 17
  %v3907 = vpop.permute.xlu0 %3906
  %3908 = vrot.lane.b32.xlu0 %v3810, 17
  %v3909 = vpop.permute.xlu0 %3908
  %v3910 = vsel %vm2707, %v3903, %v3907
  %v3911 = vsel %vm2707, %v3905, %v3909
  %v3912 = vsel %vm2707, %v3899, %v3903
  %v3913 = vsel %vm2707, %v3901, %v3905
  %v3914 = vsel %vm2707, %v3895, %v3899
  %v3915 = vsel %vm2707, %v3897, %v3901
  %v3916 = vsel %vm2707, %v3891, %v3895
  %v3917 = vsel %vm2707, %v3893, %v3897
  %v3918 = vsel %vm2707, %v3887, %v3891
  %v3919 = vsel %vm2707, %v3889, %v3893
  %v3920 = vsel %vm2707, %v3907, %v3887
  %v3921 = vsel %vm2707, %v3909, %v3889
  %3922 = vrot.lane.b32.xlu0 %v3799, 1
  %v3923 = vpop.permute.xlu0 %3922
  %3924 = vrot.lane.b32.xlu0 %v3805, 1
  %v3925 = vpop.permute.xlu0 %3924
  %3926 = vrot.lane.b32.xlu0 %v3800, 1
  %v3927 = vpop.permute.xlu0 %3926
  %3928 = vrot.lane.b32.xlu0 %v3806, 1
  %v3929 = vpop.permute.xlu0 %3928
  %3930 = vrot.lane.b32.xlu0 %v3801, 1
  %v3931 = vpop.permute.xlu0 %3930
  %3932 = vrot.lane.b32.xlu0 %v3807, 1
  %v3933 = vpop.permute.xlu0 %3932
  %3934 = vrot.lane.b32.xlu0 %v3802, 1
  %v3935 = vpop.permute.xlu0 %3934
  %3936 = vrot.lane.b32.xlu0 %v3808, 1
  %v3937 = vpop.permute.xlu0 %3936
  %3938 = vrot.lane.b32.xlu0 %v3803, 1
  %v3939 = vpop.permute.xlu0 %3938
  %3940 = vrot.lane.b32.xlu0 %v3809, 1
  %v3941 = vpop.permute.xlu0 %3940
  %3942 = vrot.lane.b32.xlu0 %v3804, 1
  %v3943 = vpop.permute.xlu0 %3942
  %3944 = vrot.lane.b32.xlu0 %v3810, 1
  %v3945 = vpop.permute.xlu0 %3944
  %v3946 = vsel %vm2726, %v3939, %v3943
  %v3947 = vsel %vm2726, %v3941, %v3945
  %v3948 = vsel %vm2726, %v3935, %v3939
  %v3949 = vsel %vm2726, %v3937, %v3941
  %v3950 = vsel %vm2726, %v3931, %v3935
  %v3951 = vsel %vm2726, %v3933, %v3937
  %v3952 = vsel %vm2726, %v3927, %v3931
  %v3953 = vsel %vm2726, %v3929, %v3933
  %v3954 = vsel %vm2726, %v3923, %v3927
  %v3955 = vsel %vm2726, %v3925, %v3929
  %v3956 = vsel %vm2726, %v3943, %v3923
  %v3957 = vsel %vm2726, %v3945, %v3925
  %3958 = vrot.lane.b32.xlu0 %v3799, 127
  %v3959 = vpop.permute.xlu0 %3958
  %3960 = vrot.lane.b32.xlu0 %v3805, 127
  %v3961 = vpop.permute.xlu0 %3960
  %3962 = vrot.lane.b32.xlu0 %v3800, 127
  %v3963 = vpop.permute.xlu0 %3962
  %3964 = vrot.lane.b32.xlu0 %v3806, 127
  %v3965 = vpop.permute.xlu0 %3964
  %3966 = vrot.lane.b32.xlu0 %v3801, 127
  %v3967 = vpop.permute.xlu0 %3966
  %3968 = vrot.lane.b32.xlu0 %v3807, 127
  %v3969 = vpop.permute.xlu0 %3968
  %3970 = vrot.lane.b32.xlu0 %v3802, 127
  %v3971 = vpop.permute.xlu0 %3970
  %3972 = vrot.lane.b32.xlu0 %v3808, 127
  %v3973 = vpop.permute.xlu0 %3972
  %3974 = vrot.lane.b32.xlu0 %v3803, 127
  %v3975 = vpop.permute.xlu0 %3974
  %3976 = vrot.lane.b32.xlu0 %v3809, 127
  %v3977 = vpop.permute.xlu0 %3976
  %3978 = vrot.lane.b32.xlu0 %v3804, 127
  %v3979 = vpop.permute.xlu0 %3978
  %3980 = vrot.lane.b32.xlu0 %v3810, 127
  %v3981 = vpop.permute.xlu0 %3980
  %v3982 = vsel %vm2745, %v3975, %v3979
  %v3983 = vsel %vm2745, %v3977, %v3981
  %v3984 = vsel %vm2745, %v3971, %v3975
  %v3985 = vsel %vm2745, %v3973, %v3977
  %v3986 = vsel %vm2745, %v3967, %v3971
  %v3987 = vsel %vm2745, %v3969, %v3973
  %v3988 = vsel %vm2745, %v3963, %v3967
  %v3989 = vsel %vm2745, %v3965, %v3969
  %v3990 = vsel %vm2745, %v3959, %v3963
  %v3991 = vsel %vm2745, %v3961, %v3965
  %v3992 = vsel %vm2745, %v3979, %v3959
  %v3993 = vsel %vm2745, %v3981, %v3961
  %3994 = vrot.lane.b32.xlu0 %v3799, 111
  %v3995 = vpop.permute.xlu0 %3994
  %3996 = vrot.lane.b32.xlu0 %v3805, 111
  %v3997 = vpop.permute.xlu0 %3996
  %3998 = vrot.lane.b32.xlu0 %v3800, 111
  %v3999 = vpop.permute.xlu0 %3998
  %4000 = vrot.lane.b32.xlu0 %v3806, 111
  %v4001 = vpop.permute.xlu0 %4000
  %4002 = vrot.lane.b32.xlu0 %v3801, 111
  %v4003 = vpop.permute.xlu0 %4002
  %4004 = vrot.lane.b32.xlu0 %v3807, 111
  %v4005 = vpop.permute.xlu0 %4004
  %4006 = vrot.lane.b32.xlu0 %v3802, 111
  %v4007 = vpop.permute.xlu0 %4006
  %4008 = vrot.lane.b32.xlu0 %v3808, 111
  %v4009 = vpop.permute.xlu0 %4008
  %4010 = vrot.lane.b32.xlu0 %v3803, 111
  %v4011 = vpop.permute.xlu0 %4010
  %4012 = vrot.lane.b32.xlu0 %v3809, 111
  %v4013 = vpop.permute.xlu0 %4012
  %4014 = vrot.lane.b32.xlu0 %v3804, 111
  %v4015 = vpop.permute.xlu0 %4014
  %4016 = vrot.lane.b32.xlu0 %v3810, 111
  %v4017 = vpop.permute.xlu0 %4016
  %v4018 = vsel %vm2764, %v4011, %v4015
  %v4019 = vsel %vm2764, %v4013, %v4017
  %v4020 = vsel %vm2764, %v4007, %v4011
  %v4021 = vsel %vm2764, %v4009, %v4013
  %v4022 = vsel %vm2764, %v4003, %v4007
  %v4023 = vsel %vm2764, %v4005, %v4009
  %v4024 = vsel %vm2764, %v3999, %v4003
  %v4025 = vsel %vm2764, %v4001, %v4005
  %v4026 = vsel %vm2764, %v3995, %v3999
  %v4027 = vsel %vm2764, %v3997, %v4001
  %v4028 = vsel %vm2764, %v4015, %v3995
  %v4029 = vsel %vm2764, %v4017, %v3997
  %4030 = vrot.lane.b32.xlu0 %v3799, 110
  %v4031 = vpop.permute.xlu0 %4030
  %4032 = vrot.lane.b32.xlu0 %v3805, 110
  %v4033 = vpop.permute.xlu0 %4032
  %4034 = vrot.lane.b32.xlu0 %v3800, 110
  %v4035 = vpop.permute.xlu0 %4034
  %4036 = vrot.lane.b32.xlu0 %v3806, 110
  %v4037 = vpop.permute.xlu0 %4036
  %4038 = vrot.lane.b32.xlu0 %v3801, 110
  %v4039 = vpop.permute.xlu0 %4038
  %4040 = vrot.lane.b32.xlu0 %v3807, 110
  %v4041 = vpop.permute.xlu0 %4040
  %4042 = vrot.lane.b32.xlu0 %v3802, 110
  %v4043 = vpop.permute.xlu0 %4042
  %4044 = vrot.lane.b32.xlu0 %v3808, 110
  %v4045 = vpop.permute.xlu0 %4044
  %4046 = vrot.lane.b32.xlu0 %v3803, 110
  %v4047 = vpop.permute.xlu0 %4046
  %4048 = vrot.lane.b32.xlu0 %v3809, 110
  %v4049 = vpop.permute.xlu0 %4048
  %4050 = vrot.lane.b32.xlu0 %v3804, 110
  %v4051 = vpop.permute.xlu0 %4050
  %4052 = vrot.lane.b32.xlu0 %v3810, 110
  %v4053 = vpop.permute.xlu0 %4052
  %v4054 = vsel %vm2783, %v4047, %v4051
  %v4055 = vsel %vm2783, %v4049, %v4053
  %v4056 = vsel %vm2783, %v4043, %v4047
  %v4057 = vsel %vm2783, %v4045, %v4049
  %v4058 = vsel %vm2783, %v4039, %v4043
  %v4059 = vsel %vm2783, %v4041, %v4045
  %v4060 = vsel %vm2783, %v4035, %v4039
  %v4061 = vsel %vm2783, %v4037, %v4041
  %v4062 = vsel %vm2783, %v4031, %v4035
  %v4063 = vsel %vm2783, %v4033, %v4037
  %v4064 = vsel %vm2783, %v4051, %v4031
  %v4065 = vsel %vm2783, %v4053, %v4033
  %4066 = vrot.lane.b32.xlu0 %v3799, 109
  %v4067 = vpop.permute.xlu0 %4066
  %4068 = vrot.lane.b32.xlu0 %v3805, 109
  %v4069 = vpop.permute.xlu0 %4068
  %4070 = vrot.lane.b32.xlu0 %v3800, 109
  %v4071 = vpop.permute.xlu0 %4070
  %4072 = vrot.lane.b32.xlu0 %v3806, 109
  %v4073 = vpop.permute.xlu0 %4072
  %4074 = vrot.lane.b32.xlu0 %v3801, 109
  %v4075 = vpop.permute.xlu0 %4074
  %4076 = vrot.lane.b32.xlu0 %v3807, 109
  %v4077 = vpop.permute.xlu0 %4076
  %4078 = vrot.lane.b32.xlu0 %v3802, 109
  %v4079 = vpop.permute.xlu0 %4078
  %4080 = vrot.lane.b32.xlu0 %v3808, 109
  %v4081 = vpop.permute.xlu0 %4080
  %4082 = vrot.lane.b32.xlu0 %v3803, 109
  %v4083 = vpop.permute.xlu0 %4082
  %4084 = vrot.lane.b32.xlu0 %v3809, 109
  %v4085 = vpop.permute.xlu0 %4084
  %4086 = vrot.lane.b32.xlu0 %v3804, 109
  %v4087 = vpop.permute.xlu0 %4086
  %4088 = vrot.lane.b32.xlu0 %v3810, 109
  %v4089 = vpop.permute.xlu0 %4088
  %v4090 = vsel %vm2802, %v4083, %v4087
  %v4091 = vsel %vm2802, %v4085, %v4089
  %v4092 = vsel %vm2802, %v4079, %v4083
  %v4093 = vsel %vm2802, %v4081, %v4085
  %v4094 = vsel %vm2802, %v4075, %v4079
  %v4095 = vsel %vm2802, %v4077, %v4081
  %v4096 = vsel %vm2802, %v4071, %v4075
  %v4097 = vsel %vm2802, %v4073, %v4077
  %v4098 = vsel %vm2802, %v4067, %v4071
  %v4099 = vsel %vm2802, %v4069, %v4073
  %v4100 = vsel %vm2802, %v4087, %v4067
  %v4101 = vsel %vm2802, %v4089, %v4069
  %v4102 = vpack.c.bf16 %v3849, %v3848
  %v4103 = vpack.c.bf16 %v3847, %v3846
  %v4104 = vpack.c.bf16 %v3845, %v3844
  %v4105 = vpack.c.bf16 %v3843, %v3842
  %v4106 = vpack.c.bf16 %v3841, %v3840
  %v4107 = vpack.c.bf16 %v3839, %v3838
  %v4108 = vpack.c.bf16 %v3885, %v3884
  %v4109 = vpack.c.bf16 %v3883, %v3882
  %v4110 = vpack.c.bf16 %v3881, %v3880
  %v4111 = vpack.c.bf16 %v3879, %v3878
  %v4112 = vpack.c.bf16 %v3877, %v3876
  %v4113 = vpack.c.bf16 %v3875, %v3874
  %v4114 = vpack.c.bf16 %v3921, %v3920
  %v4115 = vpack.c.bf16 %v3919, %v3918
  %v4116 = vpack.c.bf16 %v3917, %v3916
  %v4117 = vpack.c.bf16 %v3915, %v3914
  %v4118 = vpack.c.bf16 %v3913, %v3912
  %v4119 = vpack.c.bf16 %v3911, %v3910
  %v4120 = vpack.c.bf16 %v3957, %v3956
  %v4121 = vpack.c.bf16 %v3955, %v3954
  %v4122 = vpack.c.bf16 %v3953, %v3952
  %v4123 = vpack.c.bf16 %v3951, %v3950
  %v4124 = vpack.c.bf16 %v3949, %v3948
  %v4125 = vpack.c.bf16 %v3947, %v3946
  %v4126 = vpack.c.bf16 %v3805, %v3799
  %v4127 = vpack.c.bf16 %v3806, %v3800
  %v4128 = vpack.c.bf16 %v3807, %v3801
  %v4129 = vpack.c.bf16 %v3808, %v3802
  %v4130 = vpack.c.bf16 %v3809, %v3803
  %v4131 = vpack.c.bf16 %v3810, %v3804
  %v4132 = vpack.c.bf16 %v3991, %v3990
  %v4133 = vpack.c.bf16 %v3989, %v3988
  %v4134 = vpack.c.bf16 %v3987, %v3986
  %v4135 = vpack.c.bf16 %v3985, %v3984
  %v4136 = vpack.c.bf16 %v3983, %v3982
  %v4137 = vpack.c.bf16 %v3993, %v3992
  %v4138 = vpack.c.bf16 %v4027, %v4026
  %v4139 = vpack.c.bf16 %v4025, %v4024
  %v4140 = vpack.c.bf16 %v4023, %v4022
  %v4141 = vpack.c.bf16 %v4021, %v4020
  %v4142 = vpack.c.bf16 %v4019, %v4018
  %v4143 = vpack.c.bf16 %v4029, %v4028
  %v4144 = vpack.c.bf16 %v4063, %v4062
  %v4145 = vpack.c.bf16 %v4061, %v4060
  %v4146 = vpack.c.bf16 %v4059, %v4058
  %v4147 = vpack.c.bf16 %v4057, %v4056
  %v4148 = vpack.c.bf16 %v4055, %v4054
  %v4149 = vpack.c.bf16 %v4065, %v4064
  %v4150 = vpack.c.bf16 %v4099, %v4098
  %v4151 = vpack.c.bf16 %v4097, %v4096
  %v4152 = vpack.c.bf16 %v4095, %v4094
  %v4153 = vpack.c.bf16 %v4093, %v4092
  %v4154 = vpack.c.bf16 %v4091, %v4090
  %v4155 = vpack.c.bf16 %v4101, %v4100
  %v4158 = vunpack.c.l.b16 %v3812
  %v4159 = vunpack.c.h.b16 %v3812
  %v4160 = vunpack.c.l.b16 %v3813
  %v4161 = vunpack.c.h.b16 %v3813
  %v4162 = vpack.c.b16 %v4160, %v4158
  %v4163 = vpack.c.b16 %v4161, %v4159
  %v4166 = vsel %vm3518, %v4163, 0
  %4168 = vmatprep.subr.bf16.mxu0 %v4103
  %4169 = vmatpush1.bf16.msra.mxu0 %v4102
  %4170 = vmatprep.subr.bf16.mxu0 %v4109
  %4171 = vmatpush1.bf16.msra.mxu0 %v4108
  %4172 = vmatprep.subr.bf16.mxu0 %v4115
  %4173 = vmatpush1.bf16.msra.mxu0 %v4114
  %4174 = vmatprep.subr.bf16.mxu0 %v4121
  %4175 = vmatpush1.bf16.msra.mxu0 %v4120
  %4176 = vmatprep.subr.bf16.mxu0 %v4127
  %4177 = vmatpush1.bf16.msra.mxu0 %v4126
  %4178 = vmatprep.subr.bf16.mxu0 %v4133
  %4179 = vmatpush1.bf16.msra.mxu0 %v4132
  %4180 = vmatprep.subr.bf16.mxu0 %v4139
  %4181 = vmatpush1.bf16.msra.mxu0 %v4138
  %4182 = vmatprep.subr.bf16.mxu0 %v4145
  %4183 = vmatpush1.bf16.msra.mxu0 %v4144
  %4184 = vmatprep.subr.bf16.mxu0 %v4151
  %4185 = vmatpush1.bf16.msra.mxu0 %v4150
  %4186 = vmatprep.subr.bf16.mxu0 0
  %4187 = vmatpush1.bf16.msra.mxu0 0
  %4188 = vmatprep.subr.bf16.mxu0 0
  %4189 = vmatpush1.bf16.msra.mxu0 0
  %4190 = vmatprep.subr.bf16.mxu0 0
  %4191 = vmatpush1.bf16.msra.mxu0 0
  %4192 = vmatprep.subr.bf16.mxu0 0
  %4193 = vmatpush1.bf16.msra.mxu0 0
  %4194 = vmatprep.subr.bf16.mxu0 0
  %4195 = vmatpush1.bf16.msra.mxu0 0
  %4196 = vmatprep.subr.bf16.mxu0 0
  %4197 = vmatpush1.bf16.msra.mxu0 0
  %4198 = vmatprep.subr.bf16.mxu0 0
  %4199 = vmatpush1.bf16.msra.mxu0 0
  %4200 = vmatprep.mubr.bf16.mxu0 %v4166
  %4201 = vmatmul.mubr.bf16.gmra.mrb[0].mxu0 %v4162
  %v4202 = vpop.f32.mrb[0].mxu0
  %v4203 = vadd.f32 0.0, %v4202
  %v4204 = vpop.f32.mrb[0].mxu0
  %v4205 = vadd.f32 0.0, %v4204
  %v4206 = vpop.f32.mrb[0].mxu0
  %v4207 = vadd.f32 0.0, %v4206
  %v4208 = vpop.f32.mrb[0].mxu0
  %v4209 = vadd.f32 0.0, %v4208
  %4210 = vdwg.mxu0
  %4211 = vmatprep.subr.bf16.mxu0 %v4105
  %4212 = vmatpush1.bf16.msra.mxu0 %v4104
  %4213 = vmatprep.subr.bf16.mxu0 %v4111
  %4214 = vmatpush1.bf16.msra.mxu0 %v4110
  %4215 = vmatprep.subr.bf16.mxu0 %v4117
  %4216 = vmatpush1.bf16.msra.mxu0 %v4116
  %4217 = vmatprep.subr.bf16.mxu0 %v4123
  %4218 = vmatpush1.bf16.msra.mxu0 %v4122
  %4219 = vmatprep.subr.bf16.mxu0 %v4129
  %4220 = vmatpush1.bf16.msra.mxu0 %v4128
  %4221 = vmatprep.subr.bf16.mxu0 %v4135
  %4222 = vmatpush1.bf16.msra.mxu0 %v4134
  %4223 = vmatprep.subr.bf16.mxu0 %v4141
  %4224 = vmatpush1.bf16.msra.mxu0 %v4140
  %4225 = vmatprep.subr.bf16.mxu0 %v4147
  %4226 = vmatpush1.bf16.msra.mxu0 %v4146
  %4227 = vmatprep.subr.bf16.mxu0 %v4153
  %4228 = vmatpush1.bf16.msra.mxu0 %v4152
  %4229 = vmatprep.subr.bf16.mxu0 0
  %4230 = vmatpush1.bf16.msra.mxu0 0
  %4231 = vmatprep.subr.bf16.mxu0 0
  %4232 = vmatpush1.bf16.msra.mxu0 0
  %4233 = vmatprep.subr.bf16.mxu0 0
  %4234 = vmatpush1.bf16.msra.mxu0 0
  %4235 = vmatprep.subr.bf16.mxu0 0
  %4236 = vmatpush1.bf16.msra.mxu0 0
  %4237 = vmatprep.subr.bf16.mxu0 0
  %4238 = vmatpush1.bf16.msra.mxu0 0
  %4239 = vmatprep.subr.bf16.mxu0 0
  %4240 = vmatpush1.bf16.msra.mxu0 0
  %4241 = vmatprep.subr.bf16.mxu0 0
  %4242 = vmatpush1.bf16.msra.mxu0 0
  %4243 = vmatprep.mubr.bf16.mxu0 %v4166
  %4244 = vmatmul.mubr.bf16.gmra.mrb[0].mxu0 %v4162
  %v4245 = vpop.f32.mrb[0].mxu0
  %v4246 = vadd.f32 0.0, %v4245
  %v4247 = vpop.f32.mrb[0].mxu0
  %v4248 = vadd.f32 0.0, %v4247
  %v4249 = vpop.f32.mrb[0].mxu0
  %v4250 = vadd.f32 0.0, %v4249
  %v4251 = vpop.f32.mrb[0].mxu0
  %v4252 = vadd.f32 0.0, %v4251
  %4253 = vdwg.mxu0
  %4254 = vmatprep.subr.bf16.mxu0 %v4107
  %4255 = vmatpush1.bf16.msra.mxu0 %v4106
  %4256 = vmatprep.subr.bf16.mxu0 %v4113
  %4257 = vmatpush1.bf16.msra.mxu0 %v4112
  %4258 = vmatprep.subr.bf16.mxu0 %v4119
  %4259 = vmatpush1.bf16.msra.mxu0 %v4118
  %4260 = vmatprep.subr.bf16.mxu0 %v4125
  %4261 = vmatpush1.bf16.msra.mxu0 %v4124
  %4262 = vmatprep.subr.bf16.mxu0 %v4131
  %4263 = vmatpush1.bf16.msra.mxu0 %v4130
  %4264 = vmatprep.subr.bf16.mxu0 %v4137
  %4265 = vmatpush1.bf16.msra.mxu0 %v4136
  %4266 = vmatprep.subr.bf16.mxu0 %v4143
  %4267 = vmatpush1.bf16.msra.mxu0 %v4142
  %4268 = vmatprep.subr.bf16.mxu0 %v4149
  %4269 = vmatpush1.bf16.msra.mxu0 %v4148
  %4270 = vmatprep.subr.bf16.mxu0 %v4155
  %4271 = vmatpush1.bf16.msra.mxu0 %v4154
  %4272 = vmatprep.subr.bf16.mxu0 0
  %4273 = vmatpush1.bf16.msra.mxu0 0
  %4274 = vmatprep.subr.bf16.mxu0 0
  %4275 = vmatpush1.bf16.msra.mxu0 0
  %4276 = vmatprep.subr.bf16.mxu0 0
  %4277 = vmatpush1.bf16.msra.mxu0 0
  %4278 = vmatprep.subr.bf16.mxu0 0
  %4279 = vmatpush1.bf16.msra.mxu0 0
  %4280 = vmatprep.subr.bf16.mxu0 0
  %4281 = vmatpush1.bf16.msra.mxu0 0
  %4282 = vmatprep.subr.bf16.mxu0 0
  %4283 = vmatpush1.bf16.msra.mxu0 0
  %4284 = vmatprep.subr.bf16.mxu0 0
  %4285 = vmatpush1.bf16.msra.mxu0 0
  %4286 = vmatprep.mubr.bf16.mxu0 %v4166
  %4287 = vmatmul.mubr.bf16.gmra.mrb[0].mxu0 %v4162
  %v4288 = vpop.f32.mrb[0].mxu0
  %v4289 = vadd.f32 0.0, %v4288
  %v4290 = vpop.f32.mrb[0].mxu0
  %v4291 = vadd.f32 0.0, %v4290
  %v4292 = vpop.f32.mrb[0].mxu0
  %v4293 = vadd.f32 0.0, %v4292
  %v4294 = vpop.f32.mrb[0].mxu0
  %v4295 = vadd.f32 0.0, %v4294
  %4296 = vdwg.mxu0
  %v4297 = vmul.f32 %v4203, %v1942
  %v4298 = vmul.f32 %v4205, %v1946
  %v4299 = vmul.f32 %v4246, %v1950
  %v4300 = vmul.f32 %v4248, %v1954
  %v4301 = vmul.f32 %v4289, %v1958
  %v4302 = vmul.f32 %v4291, %v1962
  %v4303 = vmul.f32 %v4207, %v1942
  %v4304 = vmul.f32 %v4209, %v1946
  %v4305 = vmul.f32 %v4250, %v1950
  %v4306 = vmul.f32 %v4252, %v1954
  %v4307 = vmul.f32 %v4293, %v1958
  %v4308 = vmul.f32 %v4295, %v1962
  %v4309 = vadd.f32 %v4297, %v4298
  %v4310 = vadd.f32 %v4309, %v4299
  %v4311 = vadd.f32 %v4310, %v4300
  %v4312 = vadd.f32 %v4311, %v4301
  %v4313 = vadd.f32 %v4312, %v4302
  %4314 = vadd.xlane.f32.xlu0 %v4313
  %v4315 = vpop.xlane.xlu0 %4314
  %v4316 = vadd.f32 %v4303, %v4304
  %v4317 = vadd.f32 %v4316, %v4305
  %v4318 = vadd.f32 %v4317, %v4306
  %v4319 = vadd.f32 %v4318, %v4307
  %v4320 = vadd.f32 %v4319, %v4308
  %4321 = vadd.xlane.f32.xlu0 %v4320
  %v4322 = vpop.xlane.xlu0 %4321
  %v4323 = vmul.f32 %v4315, 0.001953125
  %v4324 = vmul.f32 %v4322, 0.001953125
  %v4325 = vsub.f32 %v4203, %v4323
  %v4326 = vsub.f32 %v4205, %v4323
  %v4327 = vsub.f32 %v4246, %v4323
  %v4328 = vsub.f32 %v4248, %v4323
  %v4329 = vsub.f32 %v4289, %v4323
  %v4330 = vsub.f32 %v4291, %v4323
  %v4331 = vsub.f32 %v4207, %v4324
  %v4332 = vsub.f32 %v4209, %v4324
  %v4333 = vsub.f32 %v4250, %v4324
  %v4334 = vsub.f32 %v4252, %v4324
  %v4335 = vsub.f32 %v4293, %v4324
  %v4336 = vsub.f32 %v4295, %v4324
  %v4337 = vmul.f32 %v4325, %v1942
  %v4338 = vmul.f32 %v4326, %v1946
  %v4339 = vmul.f32 %v4327, %v1950
  %v4340 = vmul.f32 %v4328, %v1954
  %v4341 = vmul.f32 %v4329, %v1958
  %v4342 = vmul.f32 %v4330, %v1962
  %v4343 = vmul.f32 %v4331, %v1942
  %v4344 = vmul.f32 %v4332, %v1946
  %v4345 = vmul.f32 %v4333, %v1950
  %v4346 = vmul.f32 %v4334, %v1954
  %v4347 = vmul.f32 %v4335, %v1958
  %v4348 = vmul.f32 %v4336, %v1962
  %v4349 = vmul.f32 %v4337, %v4337
  %v4350 = vmul.f32 %v4338, %v4338
  %v4351 = vmul.f32 %v4339, %v4339
  %v4352 = vmul.f32 %v4340, %v4340
  %v4353 = vmul.f32 %v4341, %v4341
  %v4354 = vmul.f32 %v4342, %v4342
  %v4355 = vmul.f32 %v4343, %v4343
  %v4356 = vmul.f32 %v4344, %v4344
  %v4357 = vmul.f32 %v4345, %v4345
  %v4358 = vmul.f32 %v4346, %v4346
  %v4359 = vmul.f32 %v4347, %v4347
  %v4360 = vmul.f32 %v4348, %v4348
  %v4361 = vadd.f32 %v4349, %v4350
  %v4362 = vadd.f32 %v4361, %v4351
  %v4363 = vadd.f32 %v4362, %v4352
  %v4364 = vadd.f32 %v4363, %v4353
  %v4365 = vadd.f32 %v4364, %v4354
  %4366 = vadd.xlane.f32.xlu0 %v4365
  %v4367 = vpop.xlane.xlu0 %4366
  %v4368 = vadd.f32 %v4355, %v4356
  %v4369 = vadd.f32 %v4368, %v4357
  %v4370 = vadd.f32 %v4369, %v4358
  %v4371 = vadd.f32 %v4370, %v4359
  %v4372 = vadd.f32 %v4371, %v4360
  %4373 = vadd.xlane.f32.xlu0 %v4372
  %v4374 = vpop.xlane.xlu0 %4373
  %v4375 = vmul.f32 %v4367, 0.001953125
  %v4376 = vmul.f32 %v4374, 0.001953125
  %v4377 = vadd.f32 %v4375, 1e-05
  %v4378 = vadd.f32 %v4376, 1e-05
  %v4379 = vrsqrt.pop %v4377
  %v4380 = vrsqrt.pop %v4378
  %v4381 = vmul.f32 %v4325, %v4379
  %v4382 = vmul.f32 %v4326, %v4379
  %v4383 = vmul.f32 %v4327, %v4379
  %v4384 = vmul.f32 %v4328, %v4379
  %v4385 = vmul.f32 %v4329, %v4379
  %v4386 = vmul.f32 %v4330, %v4379
  %v4387 = vmul.f32 %v4331, %v4380
  %v4388 = vmul.f32 %v4332, %v4380
  %v4389 = vmul.f32 %v4333, %v4380
  %v4390 = vmul.f32 %v4334, %v4380
  %v4391 = vmul.f32 %v4335, %v4380
  %v4392 = vmul.f32 %v4336, %v4380
  %4393 = vset.pattern.permute.xlu0 5
  %4394 = vperm.xlu0 %4393, %v2996
  %v4395 = vpop.permute.xlu0 %4394
  %4397 = vset.pattern.permute.xlu0 5
  %4398 = vperm.xlu0 %4397, %v2997
  %v4399 = vpop.permute.xlu0 %4398
  %v4401 = vmul.f32 %v4381, %v4395
  %v4402 = vmul.f32 %v4382, %v4395
  %v4403 = vmul.f32 %v4383, %v4395
  %v4404 = vmul.f32 %v4384, %v4395
  %v4405 = vmul.f32 %v4385, %v4395
  %v4406 = vmul.f32 %v4386, %v4395
  %v4407 = vmul.f32 %v4387, %v4399
  %v4408 = vmul.f32 %v4388, %v4399
  %v4409 = vmul.f32 %v4389, %v4399
  %v4410 = vmul.f32 %v4390, %v4399
  %v4411 = vmul.f32 %v4391, %v4399
  %v4412 = vmul.f32 %v4392, %v4399
  %4413 = vset.pattern.permute.xlu0 5
  %4414 = vperm.xlu0 %4413, %v2998
  %v4415 = vpop.permute.xlu0 %4414
  %4417 = vset.pattern.permute.xlu0 5
  %4418 = vperm.xlu0 %4417, %v2999
  %v4419 = vpop.permute.xlu0 %4418
  %v4421 = vadd.f32 %v4401, %v4415
  %v4422 = vadd.f32 %v4402, %v4415
  %v4423 = vadd.f32 %v4403, %v4415
  %v4424 = vadd.f32 %v4404, %v4415
  %v4425 = vadd.f32 %v4405, %v4415
  %v4426 = vadd.f32 %v4406, %v4415
  %v4427 = vadd.f32 %v4407, %v4419
  %v4428 = vadd.f32 %v4408, %v4419
  %v4429 = vadd.f32 %v4409, %v4419
  %v4430 = vadd.f32 %v4410, %v4419
  %v4431 = vadd.f32 %v4411, %v4419
  %v4432 = vadd.f32 %v4412, %v4419
  %v4433 = vmax.f32 %v4421, 0.0
  %v4434 = vmax.f32 %v4422, 0.0
  %v4435 = vmax.f32 %v4423, 0.0
  %v4436 = vmax.f32 %v4424, 0.0
  %v4437 = vmax.f32 %v4425, 0.0
  %v4438 = vmax.f32 %v4426, 0.0
  %v4439 = vmax.f32 %v4427, 0.0
  %v4440 = vmax.f32 %v4428, 0.0
  %v4441 = vmax.f32 %v4429, 0.0
  %v4442 = vmax.f32 %v4430, 0.0
  %v4443 = vmax.f32 %v4431, 0.0
  %v4444 = vmax.f32 %v4432, 0.0
  %v4445 = vmul.f32 %v4433, %v1942
  %v4446 = vmul.f32 %v4434, %v1946
  %v4447 = vmul.f32 %v4435, %v1950
  %v4448 = vmul.f32 %v4436, %v1954
  %v4449 = vmul.f32 %v4437, %v1958
  %v4450 = vmul.f32 %v4438, %v1962
  %v4451 = vmul.f32 %v4439, %v1942
  %v4452 = vmul.f32 %v4440, %v1946
  %v4453 = vmul.f32 %v4441, %v1950
  %v4454 = vmul.f32 %v4442, %v1954
  %v4455 = vmul.f32 %v4443, %v1958
  %v4456 = vmul.f32 %v4444, %v1962
  %s4457 = scalar_lea.vmem %s3, 48
  %v4458 = vld [vmem:[%s4457] sm:$0xff]
  %v4459 = vld [vmem:[%s4457 + $0x8] sm:$0xff]
  %4460 = vrot.lane.b32.xlu0 %v4445, 19
  %v4461 = vpop.permute.xlu0 %4460
  %4462 = vrot.lane.b32.xlu0 %v4451, 19
  %v4463 = vpop.permute.xlu0 %4462
  %4464 = vrot.lane.b32.xlu0 %v4446, 19
  %v4465 = vpop.permute.xlu0 %4464
  %4466 = vrot.lane.b32.xlu0 %v4452, 19
  %v4467 = vpop.permute.xlu0 %4466
  %4468 = vrot.lane.b32.xlu0 %v4447, 19
  %v4469 = vpop.permute.xlu0 %4468
  %4470 = vrot.lane.b32.xlu0 %v4453, 19
  %v4471 = vpop.permute.xlu0 %4470
  %4472 = vrot.lane.b32.xlu0 %v4448, 19
  %v4473 = vpop.permute.xlu0 %4472
  %4474 = vrot.lane.b32.xlu0 %v4454, 19
  %v4475 = vpop.permute.xlu0 %4474
  %4476 = vrot.lane.b32.xlu0 %v4449, 19
  %v4477 = vpop.permute.xlu0 %4476
  %4478 = vrot.lane.b32.xlu0 %v4455, 19
  %v4479 = vpop.permute.xlu0 %4478
  %4480 = vrot.lane.b32.xlu0 %v4450, 19
  %v4481 = vpop.permute.xlu0 %4480
  %4482 = vrot.lane.b32.xlu0 %v4456, 19
  %v4483 = vpop.permute.xlu0 %4482
  %v4484 = vsel %vm2669, %v4477, %v4481
  %v4485 = vsel %vm2669, %v4479, %v4483
  %v4486 = vsel %vm2669, %v4473, %v4477
  %v4487 = vsel %vm2669, %v4475, %v4479
  %v4488 = vsel %vm2669, %v4469, %v4473
  %v4489 = vsel %vm2669, %v4471, %v4475
  %v4490 = vsel %vm2669, %v4465, %v4469
  %v4491 = vsel %vm2669, %v4467, %v4471
  %v4492 = vsel %vm2669, %v4461, %v4465
  %v4493 = vsel %vm2669, %v4463, %v4467
  %v4494 = vsel %vm2669, %v4481, %v4461
  %v4495 = vsel %vm2669, %v4483, %v4463
  %4496 = vrot.lane.b32.xlu0 %v4445, 18
  %v4497 = vpop.permute.xlu0 %4496
  %4498 = vrot.lane.b32.xlu0 %v4451, 18
  %v4499 = vpop.permute.xlu0 %4498
  %4500 = vrot.lane.b32.xlu0 %v4446, 18
  %v4501 = vpop.permute.xlu0 %4500
  %4502 = vrot.lane.b32.xlu0 %v4452, 18
  %v4503 = vpop.permute.xlu0 %4502
  %4504 = vrot.lane.b32.xlu0 %v4447, 18
  %v4505 = vpop.permute.xlu0 %4504
  %4506 = vrot.lane.b32.xlu0 %v4453, 18
  %v4507 = vpop.permute.xlu0 %4506
  %4508 = vrot.lane.b32.xlu0 %v4448, 18
  %v4509 = vpop.permute.xlu0 %4508
  %4510 = vrot.lane.b32.xlu0 %v4454, 18
  %v4511 = vpop.permute.xlu0 %4510
  %4512 = vrot.lane.b32.xlu0 %v4449, 18
  %v4513 = vpop.permute.xlu0 %4512
  %4514 = vrot.lane.b32.xlu0 %v4455, 18
  %v4515 = vpop.permute.xlu0 %4514
  %4516 = vrot.lane.b32.xlu0 %v4450, 18
  %v4517 = vpop.permute.xlu0 %4516
  %4518 = vrot.lane.b32.xlu0 %v4456, 18
  %v4519 = vpop.permute.xlu0 %4518
  %v4520 = vsel %vm2688, %v4513, %v4517
  %v4521 = vsel %vm2688, %v4515, %v4519
  %v4522 = vsel %vm2688, %v4509, %v4513
  %v4523 = vsel %vm2688, %v4511, %v4515
  %v4524 = vsel %vm2688, %v4505, %v4509
  %v4525 = vsel %vm2688, %v4507, %v4511
  %v4526 = vsel %vm2688, %v4501, %v4505
  %v4527 = vsel %vm2688, %v4503, %v4507
  %v4528 = vsel %vm2688, %v4497, %v4501
  %v4529 = vsel %vm2688, %v4499, %v4503
  %v4530 = vsel %vm2688, %v4517, %v4497
  %v4531 = vsel %vm2688, %v4519, %v4499
  %4532 = vrot.lane.b32.xlu0 %v4445, 17
  %v4533 = vpop.permute.xlu0 %4532
  %4534 = vrot.lane.b32.xlu0 %v4451, 17
  %v4535 = vpop.permute.xlu0 %4534
  %4536 = vrot.lane.b32.xlu0 %v4446, 17
  %v4537 = vpop.permute.xlu0 %4536
  %4538 = vrot.lane.b32.xlu0 %v4452, 17
  %v4539 = vpop.permute.xlu0 %4538
  %4540 = vrot.lane.b32.xlu0 %v4447, 17
  %v4541 = vpop.permute.xlu0 %4540
  %4542 = vrot.lane.b32.xlu0 %v4453, 17
  %v4543 = vpop.permute.xlu0 %4542
  %4544 = vrot.lane.b32.xlu0 %v4448, 17
  %v4545 = vpop.permute.xlu0 %4544
  %4546 = vrot.lane.b32.xlu0 %v4454, 17
  %v4547 = vpop.permute.xlu0 %4546
  %4548 = vrot.lane.b32.xlu0 %v4449, 17
  %v4549 = vpop.permute.xlu0 %4548
  %4550 = vrot.lane.b32.xlu0 %v4455, 17
  %v4551 = vpop.permute.xlu0 %4550
  %4552 = vrot.lane.b32.xlu0 %v4450, 17
  %v4553 = vpop.permute.xlu0 %4552
  %4554 = vrot.lane.b32.xlu0 %v4456, 17
  %v4555 = vpop.permute.xlu0 %4554
  %v4556 = vsel %vm2707, %v4549, %v4553
  %v4557 = vsel %vm2707, %v4551, %v4555
  %v4558 = vsel %vm2707, %v4545, %v4549
  %v4559 = vsel %vm2707, %v4547, %v4551
  %v4560 = vsel %vm2707, %v4541, %v4545
  %v4561 = vsel %vm2707, %v4543, %v4547
  %v4562 = vsel %vm2707, %v4537, %v4541
  %v4563 = vsel %vm2707, %v4539, %v4543
  %v4564 = vsel %vm2707, %v4533, %v4537
  %v4565 = vsel %vm2707, %v4535, %v4539
  %v4566 = vsel %vm2707, %v4553, %v4533
  %v4567 = vsel %vm2707, %v4555, %v4535
  %4568 = vrot.lane.b32.xlu0 %v4445, 1
  %v4569 = vpop.permute.xlu0 %4568
  %4570 = vrot.lane.b32.xlu0 %v4451, 1
  %v4571 = vpop.permute.xlu0 %4570
  %4572 = vrot.lane.b32.xlu0 %v4446, 1
  %v4573 = vpop.permute.xlu0 %4572
  %4574 = vrot.lane.b32.xlu0 %v4452, 1
  %v4575 = vpop.permute.xlu0 %4574
  %4576 = vrot.lane.b32.xlu0 %v4447, 1
  %v4577 = vpop.permute.xlu0 %4576
  %4578 = vrot.lane.b32.xlu0 %v4453, 1
  %v4579 = vpop.permute.xlu0 %4578
  %4580 = vrot.lane.b32.xlu0 %v4448, 1
  %v4581 = vpop.permute.xlu0 %4580
  %4582 = vrot.lane.b32.xlu0 %v4454, 1
  %v4583 = vpop.permute.xlu0 %4582
  %4584 = vrot.lane.b32.xlu0 %v4449, 1
  %v4585 = vpop.permute.xlu0 %4584
  %4586 = vrot.lane.b32.xlu0 %v4455, 1
  %v4587 = vpop.permute.xlu0 %4586
  %4588 = vrot.lane.b32.xlu0 %v4450, 1
  %v4589 = vpop.permute.xlu0 %4588
  %4590 = vrot.lane.b32.xlu0 %v4456, 1
  %v4591 = vpop.permute.xlu0 %4590
  %v4592 = vsel %vm2726, %v4585, %v4589
  %v4593 = vsel %vm2726, %v4587, %v4591
  %v4594 = vsel %vm2726, %v4581, %v4585
  %v4595 = vsel %vm2726, %v4583, %v4587
  %v4596 = vsel %vm2726, %v4577, %v4581
  %v4597 = vsel %vm2726, %v4579, %v4583
  %v4598 = vsel %vm2726, %v4573, %v4577
  %v4599 = vsel %vm2726, %v4575, %v4579
  %v4600 = vsel %vm2726, %v4569, %v4573
  %v4601 = vsel %vm2726, %v4571, %v4575
  %v4602 = vsel %vm2726, %v4589, %v4569
  %v4603 = vsel %vm2726, %v4591, %v4571
  %4604 = vrot.lane.b32.xlu0 %v4445, 127
  %v4605 = vpop.permute.xlu0 %4604
  %4606 = vrot.lane.b32.xlu0 %v4451, 127
  %v4607 = vpop.permute.xlu0 %4606
  %4608 = vrot.lane.b32.xlu0 %v4446, 127
  %v4609 = vpop.permute.xlu0 %4608
  %4610 = vrot.lane.b32.xlu0 %v4452, 127
  %v4611 = vpop.permute.xlu0 %4610
  %4612 = vrot.lane.b32.xlu0 %v4447, 127
  %v4613 = vpop.permute.xlu0 %4612
  %4614 = vrot.lane.b32.xlu0 %v4453, 127
  %v4615 = vpop.permute.xlu0 %4614
  %4616 = vrot.lane.b32.xlu0 %v4448, 127
  %v4617 = vpop.permute.xlu0 %4616
  %4618 = vrot.lane.b32.xlu0 %v4454, 127
  %v4619 = vpop.permute.xlu0 %4618
  %4620 = vrot.lane.b32.xlu0 %v4449, 127
  %v4621 = vpop.permute.xlu0 %4620
  %4622 = vrot.lane.b32.xlu0 %v4455, 127
  %v4623 = vpop.permute.xlu0 %4622
  %4624 = vrot.lane.b32.xlu0 %v4450, 127
  %v4625 = vpop.permute.xlu0 %4624
  %4626 = vrot.lane.b32.xlu0 %v4456, 127
  %v4627 = vpop.permute.xlu0 %4626
  %v4628 = vsel %vm2745, %v4621, %v4625
  %v4629 = vsel %vm2745, %v4623, %v4627
  %v4630 = vsel %vm2745, %v4617, %v4621
  %v4631 = vsel %vm2745, %v4619, %v4623
  %v4632 = vsel %vm2745, %v4613, %v4617
  %v4633 = vsel %vm2745, %v4615, %v4619
  %v4634 = vsel %vm2745, %v4609, %v4613
  %v4635 = vsel %vm2745, %v4611, %v4615
  %v4636 = vsel %vm2745, %v4605, %v4609
  %v4637 = vsel %vm2745, %v4607, %v4611
  %v4638 = vsel %vm2745, %v4625, %v4605
  %v4639 = vsel %vm2745, %v4627, %v4607
  %4640 = vrot.lane.b32.xlu0 %v4445, 111
  %v4641 = vpop.permute.xlu0 %4640
  %4642 = vrot.lane.b32.xlu0 %v4451, 111
  %v4643 = vpop.permute.xlu0 %4642
  %4644 = vrot.lane.b32.xlu0 %v4446, 111
  %v4645 = vpop.permute.xlu0 %4644
  %4646 = vrot.lane.b32.xlu0 %v4452, 111
  %v4647 = vpop.permute.xlu0 %4646
  %4648 = vrot.lane.b32.xlu0 %v4447, 111
  %v4649 = vpop.permute.xlu0 %4648
  %4650 = vrot.lane.b32.xlu0 %v4453, 111
  %v4651 = vpop.permute.xlu0 %4650
  %4652 = vrot.lane.b32.xlu0 %v4448, 111
  %v4653 = vpop.permute.xlu0 %4652
  %4654 = vrot.lane.b32.xlu0 %v4454, 111
  %v4655 = vpop.permute.xlu0 %4654
  %4656 = vrot.lane.b32.xlu0 %v4449, 111
  %v4657 = vpop.permute.xlu0 %4656
  %4658 = vrot.lane.b32.xlu0 %v4455, 111
  %v4659 = vpop.permute.xlu0 %4658
  %4660 = vrot.lane.b32.xlu0 %v4450, 111
  %v4661 = vpop.permute.xlu0 %4660
  %4662 = vrot.lane.b32.xlu0 %v4456, 111
  %v4663 = vpop.permute.xlu0 %4662
  %v4664 = vsel %vm2764, %v4657, %v4661
  %v4665 = vsel %vm2764, %v4659, %v4663
  %v4666 = vsel %vm2764, %v4653, %v4657
  %v4667 = vsel %vm2764, %v4655, %v4659
  %v4668 = vsel %vm2764, %v4649, %v4653
  %v4669 = vsel %vm2764, %v4651, %v4655
  %v4670 = vsel %vm2764, %v4645, %v4649
  %v4671 = vsel %vm2764, %v4647, %v4651
  %v4672 = vsel %vm2764, %v4641, %v4645
  %v4673 = vsel %vm2764, %v4643, %v4647
  %v4674 = vsel %vm2764, %v4661, %v4641
  %v4675 = vsel %vm2764, %v4663, %v4643
  %4676 = vrot.lane.b32.xlu0 %v4445, 110
  %v4677 = vpop.permute.xlu0 %4676
  %4678 = vrot.lane.b32.xlu0 %v4451, 110
  %v4679 = vpop.permute.xlu0 %4678
  %4680 = vrot.lane.b32.xlu0 %v4446, 110
  %v4681 = vpop.permute.xlu0 %4680
  %4682 = vrot.lane.b32.xlu0 %v4452, 110
  %v4683 = vpop.permute.xlu0 %4682
  %4684 = vrot.lane.b32.xlu0 %v4447, 110
  %v4685 = vpop.permute.xlu0 %4684
  %4686 = vrot.lane.b32.xlu0 %v4453, 110
  %v4687 = vpop.permute.xlu0 %4686
  %4688 = vrot.lane.b32.xlu0 %v4448, 110
  %v4689 = vpop.permute.xlu0 %4688
  %4690 = vrot.lane.b32.xlu0 %v4454, 110
  %v4691 = vpop.permute.xlu0 %4690
  %4692 = vrot.lane.b32.xlu0 %v4449, 110
  %v4693 = vpop.permute.xlu0 %4692
  %4694 = vrot.lane.b32.xlu0 %v4455, 110
  %v4695 = vpop.permute.xlu0 %4694
  %4696 = vrot.lane.b32.xlu0 %v4450, 110
  %v4697 = vpop.permute.xlu0 %4696
  %4698 = vrot.lane.b32.xlu0 %v4456, 110
  %v4699 = vpop.permute.xlu0 %4698
  %v4700 = vsel %vm2783, %v4693, %v4697
  %v4701 = vsel %vm2783, %v4695, %v4699
  %v4702 = vsel %vm2783, %v4689, %v4693
  %v4703 = vsel %vm2783, %v4691, %v4695
  %v4704 = vsel %vm2783, %v4685, %v4689
  %v4705 = vsel %vm2783, %v4687, %v4691
  %v4706 = vsel %vm2783, %v4681, %v4685
  %v4707 = vsel %vm2783, %v4683, %v4687
  %v4708 = vsel %vm2783, %v4677, %v4681
  %v4709 = vsel %vm2783, %v4679, %v4683
  %v4710 = vsel %vm2783, %v4697, %v4677
  %v4711 = vsel %vm2783, %v4699, %v4679
  %4712 = vrot.lane.b32.xlu0 %v4445, 109
  %v4713 = vpop.permute.xlu0 %4712
  %4714 = vrot.lane.b32.xlu0 %v4451, 109
  %v4715 = vpop.permute.xlu0 %4714
  %4716 = vrot.lane.b32.xlu0 %v4446, 109
  %v4717 = vpop.permute.xlu0 %4716
  %4718 = vrot.lane.b32.xlu0 %v4452, 109
  %v4719 = vpop.permute.xlu0 %4718
  %4720 = vrot.lane.b32.xlu0 %v4447, 109
  %v4721 = vpop.permute.xlu0 %4720
  %4722 = vrot.lane.b32.xlu0 %v4453, 109
  %v4723 = vpop.permute.xlu0 %4722
  %4724 = vrot.lane.b32.xlu0 %v4448, 109
  %v4725 = vpop.permute.xlu0 %4724
  %4726 = vrot.lane.b32.xlu0 %v4454, 109
  %v4727 = vpop.permute.xlu0 %4726
  %4728 = vrot.lane.b32.xlu0 %v4449, 109
  %v4729 = vpop.permute.xlu0 %4728
  %4730 = vrot.lane.b32.xlu0 %v4455, 109
  %v4731 = vpop.permute.xlu0 %4730
  %4732 = vrot.lane.b32.xlu0 %v4450, 109
  %v4733 = vpop.permute.xlu0 %4732
  %4734 = vrot.lane.b32.xlu0 %v4456, 109
  %v4735 = vpop.permute.xlu0 %4734
  %v4736 = vsel %vm2802, %v4729, %v4733
  %v4737 = vsel %vm2802, %v4731, %v4735
  %v4738 = vsel %vm2802, %v4725, %v4729
  %v4739 = vsel %vm2802, %v4727, %v4731
  %v4740 = vsel %vm2802, %v4721, %v4725
  %v4741 = vsel %vm2802, %v4723, %v4727
  %v4742 = vsel %vm2802, %v4717, %v4721
  %v4743 = vsel %vm2802, %v4719, %v4723
  %v4744 = vsel %vm2802, %v4713, %v4717
  %v4745 = vsel %vm2802, %v4715, %v4719
  %v4746 = vsel %vm2802, %v4733, %v4713
  %v4747 = vsel %vm2802, %v4735, %v4715
  %v4748 = vpack.c.bf16 %v4495, %v4494
  %v4749 = vpack.c.bf16 %v4493, %v4492
  %v4750 = vpack.c.bf16 %v4491, %v4490
  %v4751 = vpack.c.bf16 %v4489, %v4488
  %v4752 = vpack.c.bf16 %v4487, %v4486
  %v4753 = vpack.c.bf16 %v4485, %v4484
  %v4754 = vpack.c.bf16 %v4531, %v4530
  %v4755 = vpack.c.bf16 %v4529, %v4528
  %v4756 = vpack.c.bf16 %v4527, %v4526
  %v4757 = vpack.c.bf16 %v4525, %v4524
  %v4758 = vpack.c.bf16 %v4523, %v4522
  %v4759 = vpack.c.bf16 %v4521, %v4520
  %v4760 = vpack.c.bf16 %v4567, %v4566
  %v4761 = vpack.c.bf16 %v4565, %v4564
  %v4762 = vpack.c.bf16 %v4563, %v4562
  %v4763 = vpack.c.bf16 %v4561, %v4560
  %v4764 = vpack.c.bf16 %v4559, %v4558
  %v4765 = vpack.c.bf16 %v4557, %v4556
  %v4766 = vpack.c.bf16 %v4603, %v4602
  %v4767 = vpack.c.bf16 %v4601, %v4600
  %v4768 = vpack.c.bf16 %v4599, %v4598
  %v4769 = vpack.c.bf16 %v4597, %v4596
  %v4770 = vpack.c.bf16 %v4595, %v4594
  %v4771 = vpack.c.bf16 %v4593, %v4592
  %v4772 = vpack.c.bf16 %v4451, %v4445
  %v4773 = vpack.c.bf16 %v4452, %v4446
  %v4774 = vpack.c.bf16 %v4453, %v4447
  %v4775 = vpack.c.bf16 %v4454, %v4448
  %v4776 = vpack.c.bf16 %v4455, %v4449
  %v4777 = vpack.c.bf16 %v4456, %v4450
  %v4778 = vpack.c.bf16 %v4637, %v4636
  %v4779 = vpack.c.bf16 %v4635, %v4634
  %v4780 = vpack.c.bf16 %v4633, %v4632
  %v4781 = vpack.c.bf16 %v4631, %v4630
  %v4782 = vpack.c.bf16 %v4629, %v4628
  %v4783 = vpack.c.bf16 %v4639, %v4638
  %v4784 = vpack.c.bf16 %v4673, %v4672
  %v4785 = vpack.c.bf16 %v4671, %v4670
  %v4786 = vpack.c.bf16 %v4669, %v4668
  %v4787 = vpack.c.bf16 %v4667, %v4666
  %v4788 = vpack.c.bf16 %v4665, %v4664
  %v4789 = vpack.c.bf16 %v4675, %v4674
  %v4790 = vpack.c.bf16 %v4709, %v4708
  %v4791 = vpack.c.bf16 %v4707, %v4706
  %v4792 = vpack.c.bf16 %v4705, %v4704
  %v4793 = vpack.c.bf16 %v4703, %v4702
  %v4794 = vpack.c.bf16 %v4701, %v4700
  %v4795 = vpack.c.bf16 %v4711, %v4710
  %v4796 = vpack.c.bf16 %v4745, %v4744
  %v4797 = vpack.c.bf16 %v4743, %v4742
  %v4798 = vpack.c.bf16 %v4741, %v4740
  %v4799 = vpack.c.bf16 %v4739, %v4738
  %v4800 = vpack.c.bf16 %v4737, %v4736
  %v4801 = vpack.c.bf16 %v4747, %v4746
  %v4804 = vunpack.c.l.b16 %v4458
  %v4805 = vunpack.c.h.b16 %v4458
  %v4806 = vunpack.c.l.b16 %v4459
  %v4807 = vunpack.c.h.b16 %v4459
  %v4808 = vpack.c.b16 %v4806, %v4804
  %v4809 = vpack.c.b16 %v4807, %v4805
  %v4812 = vsel %vm3518, %v4809, 0
  %4814 = vmatprep.subr.bf16.mxu0 %v4749
  %4815 = vmatpush1.bf16.msra.mxu0 %v4748
  %4816 = vmatprep.subr.bf16.mxu0 %v4755
  %4817 = vmatpush1.bf16.msra.mxu0 %v4754
  %4818 = vmatprep.subr.bf16.mxu0 %v4761
  %4819 = vmatpush1.bf16.msra.mxu0 %v4760
  %4820 = vmatprep.subr.bf16.mxu0 %v4767
  %4821 = vmatpush1.bf16.msra.mxu0 %v4766
  %4822 = vmatprep.subr.bf16.mxu0 %v4773
  %4823 = vmatpush1.bf16.msra.mxu0 %v4772
  %4824 = vmatprep.subr.bf16.mxu0 %v4779
  %4825 = vmatpush1.bf16.msra.mxu0 %v4778
  %4826 = vmatprep.subr.bf16.mxu0 %v4785
  %4827 = vmatpush1.bf16.msra.mxu0 %v4784
  %4828 = vmatprep.subr.bf16.mxu0 %v4791
  %4829 = vmatpush1.bf16.msra.mxu0 %v4790
  %4830 = vmatprep.subr.bf16.mxu0 %v4797
  %4831 = vmatpush1.bf16.msra.mxu0 %v4796
  %4832 = vmatprep.subr.bf16.mxu0 0
  %4833 = vmatpush1.bf16.msra.mxu0 0
  %4834 = vmatprep.subr.bf16.mxu0 0
  %4835 = vmatpush1.bf16.msra.mxu0 0
  %4836 = vmatprep.subr.bf16.mxu0 0
  %4837 = vmatpush1.bf16.msra.mxu0 0
  %4838 = vmatprep.subr.bf16.mxu0 0
  %4839 = vmatpush1.bf16.msra.mxu0 0
  %4840 = vmatprep.subr.bf16.mxu0 0
  %4841 = vmatpush1.bf16.msra.mxu0 0
  %4842 = vmatprep.subr.bf16.mxu0 0
  %4843 = vmatpush1.bf16.msra.mxu0 0
  %4844 = vmatprep.subr.bf16.mxu0 0
  %4845 = vmatpush1.bf16.msra.mxu0 0
  %4846 = vmatprep.mubr.bf16.mxu0 %v4812
  %4847 = vmatmul.mubr.bf16.gmra.mrb[0].mxu0 %v4808
  %v4848 = vpop.f32.mrb[0].mxu0
  %v4849 = vadd.f32 0.0, %v4848
  %v4850 = vpop.f32.mrb[0].mxu0
  %v4851 = vadd.f32 0.0, %v4850
  %v4852 = vpop.f32.mrb[0].mxu0
  %v4853 = vadd.f32 0.0, %v4852
  %v4854 = vpop.f32.mrb[0].mxu0
  %v4855 = vadd.f32 0.0, %v4854
  %4856 = vdwg.mxu0
  %4857 = vmatprep.subr.bf16.mxu0 %v4751
  %4858 = vmatpush1.bf16.msra.mxu0 %v4750
  %4859 = vmatprep.subr.bf16.mxu0 %v4757
  %4860 = vmatpush1.bf16.msra.mxu0 %v4756
  %4861 = vmatprep.subr.bf16.mxu0 %v4763
  %4862 = vmatpush1.bf16.msra.mxu0 %v4762
  %4863 = vmatprep.subr.bf16.mxu0 %v4769
  %4864 = vmatpush1.bf16.msra.mxu0 %v4768
  %4865 = vmatprep.subr.bf16.mxu0 %v4775
  %4866 = vmatpush1.bf16.msra.mxu0 %v4774
  %4867 = vmatprep.subr.bf16.mxu0 %v4781
  %4868 = vmatpush1.bf16.msra.mxu0 %v4780
  %4869 = vmatprep.subr.bf16.mxu0 %v4787
  %4870 = vmatpush1.bf16.msra.mxu0 %v4786
  %4871 = vmatprep.subr.bf16.mxu0 %v4793
  %4872 = vmatpush1.bf16.msra.mxu0 %v4792
  %4873 = vmatprep.subr.bf16.mxu0 %v4799
  %4874 = vmatpush1.bf16.msra.mxu0 %v4798
  %4875 = vmatprep.subr.bf16.mxu0 0
  %4876 = vmatpush1.bf16.msra.mxu0 0
  %4877 = vmatprep.subr.bf16.mxu0 0
  %4878 = vmatpush1.bf16.msra.mxu0 0
  %4879 = vmatprep.subr.bf16.mxu0 0
  %4880 = vmatpush1.bf16.msra.mxu0 0
  %4881 = vmatprep.subr.bf16.mxu0 0
  %4882 = vmatpush1.bf16.msra.mxu0 0
  %4883 = vmatprep.subr.bf16.mxu0 0
  %4884 = vmatpush1.bf16.msra.mxu0 0
  %4885 = vmatprep.subr.bf16.mxu0 0
  %4886 = vmatpush1.bf16.msra.mxu0 0
  %4887 = vmatprep.subr.bf16.mxu0 0
  %4888 = vmatpush1.bf16.msra.mxu0 0
  %4889 = vmatprep.mubr.bf16.mxu0 %v4812
  %4890 = vmatmul.mubr.bf16.gmra.mrb[0].mxu0 %v4808
  %v4891 = vpop.f32.mrb[0].mxu0
  %v4892 = vadd.f32 0.0, %v4891
  %v4893 = vpop.f32.mrb[0].mxu0
  %v4894 = vadd.f32 0.0, %v4893
  %v4895 = vpop.f32.mrb[0].mxu0
  %v4896 = vadd.f32 0.0, %v4895
  %v4897 = vpop.f32.mrb[0].mxu0
  %v4898 = vadd.f32 0.0, %v4897
  %4899 = vdwg.mxu0
  %4900 = vmatprep.subr.bf16.mxu0 %v4753
  %4901 = vmatpush1.bf16.msra.mxu0 %v4752
  %4902 = vmatprep.subr.bf16.mxu0 %v4759
  %4903 = vmatpush1.bf16.msra.mxu0 %v4758
  %4904 = vmatprep.subr.bf16.mxu0 %v4765
  %4905 = vmatpush1.bf16.msra.mxu0 %v4764
  %4906 = vmatprep.subr.bf16.mxu0 %v4771
  %4907 = vmatpush1.bf16.msra.mxu0 %v4770
  %4908 = vmatprep.subr.bf16.mxu0 %v4777
  %4909 = vmatpush1.bf16.msra.mxu0 %v4776
  %4910 = vmatprep.subr.bf16.mxu0 %v4783
  %4911 = vmatpush1.bf16.msra.mxu0 %v4782
  %4912 = vmatprep.subr.bf16.mxu0 %v4789
  %4913 = vmatpush1.bf16.msra.mxu0 %v4788
  %4914 = vmatprep.subr.bf16.mxu0 %v4795
  %4915 = vmatpush1.bf16.msra.mxu0 %v4794
  %4916 = vmatprep.subr.bf16.mxu0 %v4801
  %4917 = vmatpush1.bf16.msra.mxu0 %v4800
  %4918 = vmatprep.subr.bf16.mxu0 0
  %4919 = vmatpush1.bf16.msra.mxu0 0
  %4920 = vmatprep.subr.bf16.mxu0 0
  %4921 = vmatpush1.bf16.msra.mxu0 0
  %4922 = vmatprep.subr.bf16.mxu0 0
  %4923 = vmatpush1.bf16.msra.mxu0 0
  %4924 = vmatprep.subr.bf16.mxu0 0
  %4925 = vmatpush1.bf16.msra.mxu0 0
  %4926 = vmatprep.subr.bf16.mxu0 0
  %4927 = vmatpush1.bf16.msra.mxu0 0
  %4928 = vmatprep.subr.bf16.mxu0 0
  %4929 = vmatpush1.bf16.msra.mxu0 0
  %4930 = vmatprep.subr.bf16.mxu0 0
  %4931 = vmatpush1.bf16.msra.mxu0 0
  %4932 = vmatprep.mubr.bf16.mxu0 %v4812
  %4933 = vmatmul.mubr.bf16.gmra.mrb[0].mxu0 %v4808
  %v4934 = vpop.f32.mrb[0].mxu0
  %v4935 = vadd.f32 0.0, %v4934
  %v4936 = vpop.f32.mrb[0].mxu0
  %v4937 = vadd.f32 0.0, %v4936
  %v4938 = vpop.f32.mrb[0].mxu0
  %v4939 = vadd.f32 0.0, %v4938
  %v4940 = vpop.f32.mrb[0].mxu0
  %v4941 = vadd.f32 0.0, %v4940
  %4942 = vdwg.mxu0
  %v4943 = vmul.f32 %v4849, %v1942
  %v4944 = vmul.f32 %v4851, %v1946
  %v4945 = vmul.f32 %v4892, %v1950
  %v4946 = vmul.f32 %v4894, %v1954
  %v4947 = vmul.f32 %v4935, %v1958
  %v4948 = vmul.f32 %v4937, %v1962
  %v4949 = vmul.f32 %v4853, %v1942
  %v4950 = vmul.f32 %v4855, %v1946
  %v4951 = vmul.f32 %v4896, %v1950
  %v4952 = vmul.f32 %v4898, %v1954
  %v4953 = vmul.f32 %v4939, %v1958
  %v4954 = vmul.f32 %v4941, %v1962
  %v4955 = vadd.f32 %v4943, %v4944
  %v4956 = vadd.f32 %v4955, %v4945
  %v4957 = vadd.f32 %v4956, %v4946
  %v4958 = vadd.f32 %v4957, %v4947
  %v4959 = vadd.f32 %v4958, %v4948
  %4960 = vadd.xlane.f32.xlu0 %v4959
  %v4961 = vpop.xlane.xlu0 %4960
  %v4962 = vadd.f32 %v4949, %v4950
  %v4963 = vadd.f32 %v4962, %v4951
  %v4964 = vadd.f32 %v4963, %v4952
  %v4965 = vadd.f32 %v4964, %v4953
  %v4966 = vadd.f32 %v4965, %v4954
  %4967 = vadd.xlane.f32.xlu0 %v4966
  %v4968 = vpop.xlane.xlu0 %4967
  %v4969 = vmul.f32 %v4961, 0.001953125
  %v4970 = vmul.f32 %v4968, 0.001953125
  %v4971 = vsub.f32 %v4849, %v4969
  %v4972 = vsub.f32 %v4851, %v4969
  %v4973 = vsub.f32 %v4892, %v4969
  %v4974 = vsub.f32 %v4894, %v4969
  %v4975 = vsub.f32 %v4935, %v4969
  %v4976 = vsub.f32 %v4937, %v4969
  %v4977 = vsub.f32 %v4853, %v4970
  %v4978 = vsub.f32 %v4855, %v4970
  %v4979 = vsub.f32 %v4896, %v4970
  %v4980 = vsub.f32 %v4898, %v4970
  %v4981 = vsub.f32 %v4939, %v4970
  %v4982 = vsub.f32 %v4941, %v4970
  %v4983 = vmul.f32 %v4971, %v1942
  %v4984 = vmul.f32 %v4972, %v1946
  %v4985 = vmul.f32 %v4973, %v1950
  %v4986 = vmul.f32 %v4974, %v1954
  %v4987 = vmul.f32 %v4975, %v1958
  %v4988 = vmul.f32 %v4976, %v1962
  %v4989 = vmul.f32 %v4977, %v1942
  %v4990 = vmul.f32 %v4978, %v1946
  %v4991 = vmul.f32 %v4979, %v1950
  %v4992 = vmul.f32 %v4980, %v1954
  %v4993 = vmul.f32 %v4981, %v1958
  %v4994 = vmul.f32 %v4982, %v1962
  %v4995 = vmul.f32 %v4983, %v4983
  %v4996 = vmul.f32 %v4984, %v4984
  %v4997 = vmul.f32 %v4985, %v4985
  %v4998 = vmul.f32 %v4986, %v4986
  %v4999 = vmul.f32 %v4987, %v4987
  %v5000 = vmul.f32 %v4988, %v4988
  %v5001 = vmul.f32 %v4989, %v4989
  %v5002 = vmul.f32 %v4990, %v4990
  %v5003 = vmul.f32 %v4991, %v4991
  %v5004 = vmul.f32 %v4992, %v4992
  %v5005 = vmul.f32 %v4993, %v4993
  %v5006 = vmul.f32 %v4994, %v4994
  %v5007 = vadd.f32 %v4995, %v4996
  %v5008 = vadd.f32 %v5007, %v4997
  %v5009 = vadd.f32 %v5008, %v4998
  %v5010 = vadd.f32 %v5009, %v4999
  %v5011 = vadd.f32 %v5010, %v5000
  %5012 = vadd.xlane.f32.xlu0 %v5011
  %v5013 = vpop.xlane.xlu0 %5012
  %v5014 = vadd.f32 %v5001, %v5002
  %v5015 = vadd.f32 %v5014, %v5003
  %v5016 = vadd.f32 %v5015, %v5004
  %v5017 = vadd.f32 %v5016, %v5005
  %v5018 = vadd.f32 %v5017, %v5006
  %5019 = vadd.xlane.f32.xlu0 %v5018
  %v5020 = vpop.xlane.xlu0 %5019
  %v5021 = vmul.f32 %v5013, 0.001953125
  %v5022 = vmul.f32 %v5020, 0.001953125
  %v5023 = vadd.f32 %v5021, 1e-05
  %v5024 = vadd.f32 %v5022, 1e-05
  %v5025 = vrsqrt.pop %v5023
  %v5026 = vrsqrt.pop %v5024
  %v5027 = vmul.f32 %v4971, %v5025
  %v5028 = vmul.f32 %v4972, %v5025
  %v5029 = vmul.f32 %v4973, %v5025
  %v5030 = vmul.f32 %v4974, %v5025
  %v5031 = vmul.f32 %v4975, %v5025
  %v5032 = vmul.f32 %v4976, %v5025
  %v5033 = vmul.f32 %v4977, %v5026
  %v5034 = vmul.f32 %v4978, %v5026
  %v5035 = vmul.f32 %v4979, %v5026
  %v5036 = vmul.f32 %v4980, %v5026
  %v5037 = vmul.f32 %v4981, %v5026
  %v5038 = vmul.f32 %v4982, %v5026
  %5039 = vset.pattern.permute.xlu0 6
  %5040 = vperm.xlu0 %5039, %v2996
  %v5041 = vpop.permute.xlu0 %5040
  %5043 = vset.pattern.permute.xlu0 6
  %5044 = vperm.xlu0 %5043, %v2997
  %v5045 = vpop.permute.xlu0 %5044
  %v5047 = vmul.f32 %v5027, %v5041
  %v5048 = vmul.f32 %v5028, %v5041
  %v5049 = vmul.f32 %v5029, %v5041
  %v5050 = vmul.f32 %v5030, %v5041
  %v5051 = vmul.f32 %v5031, %v5041
  %v5052 = vmul.f32 %v5032, %v5041
  %v5053 = vmul.f32 %v5033, %v5045
  %v5054 = vmul.f32 %v5034, %v5045
  %v5055 = vmul.f32 %v5035, %v5045
  %v5056 = vmul.f32 %v5036, %v5045
  %v5057 = vmul.f32 %v5037, %v5045
  %v5058 = vmul.f32 %v5038, %v5045
  %5059 = vset.pattern.permute.xlu0 6
  %5060 = vperm.xlu0 %5059, %v2998
  %v5061 = vpop.permute.xlu0 %5060
  %5063 = vset.pattern.permute.xlu0 6
  %5064 = vperm.xlu0 %5063, %v2999
  %v5065 = vpop.permute.xlu0 %5064
  %v5067 = vadd.f32 %v5047, %v5061
  %v5068 = vadd.f32 %v5048, %v5061
  %v5069 = vadd.f32 %v5049, %v5061
  %v5070 = vadd.f32 %v5050, %v5061
  %v5071 = vadd.f32 %v5051, %v5061
  %v5072 = vadd.f32 %v5052, %v5061
  %v5073 = vadd.f32 %v5053, %v5065
  %v5074 = vadd.f32 %v5054, %v5065
  %v5075 = vadd.f32 %v5055, %v5065
  %v5076 = vadd.f32 %v5056, %v5065
  %v5077 = vadd.f32 %v5057, %v5065
  %v5078 = vadd.f32 %v5058, %v5065
  %v5079 = vmax.f32 %v5067, 0.0
  %v5080 = vmax.f32 %v5068, 0.0
  %v5081 = vmax.f32 %v5069, 0.0
  %v5082 = vmax.f32 %v5070, 0.0
  %v5083 = vmax.f32 %v5071, 0.0
  %v5084 = vmax.f32 %v5072, 0.0
  %v5085 = vmax.f32 %v5073, 0.0
  %v5086 = vmax.f32 %v5074, 0.0
  %v5087 = vmax.f32 %v5075, 0.0
  %v5088 = vmax.f32 %v5076, 0.0
  %v5089 = vmax.f32 %v5077, 0.0
  %v5090 = vmax.f32 %v5078, 0.0
  %v5091 = vmul.f32 %v5079, %v1942
  %v5092 = vmul.f32 %v5080, %v1946
  %v5093 = vmul.f32 %v5081, %v1950
  %v5094 = vmul.f32 %v5082, %v1954
  %v5095 = vmul.f32 %v5083, %v1958
  %v5096 = vmul.f32 %v5084, %v1962
  %v5097 = vmul.f32 %v5085, %v1942
  %v5098 = vmul.f32 %v5086, %v1946
  %v5099 = vmul.f32 %v5087, %v1950
  %v5100 = vmul.f32 %v5088, %v1954
  %v5101 = vmul.f32 %v5089, %v1958
  %v5102 = vmul.f32 %v5090, %v1962
  %s5103 = scalar_lea.vmem %s3, 64
  %v5104 = vld [vmem:[%s5103] sm:$0xff]
  %v5105 = vld [vmem:[%s5103 + $0x8] sm:$0xff]
  %5106 = vrot.lane.b32.xlu0 %v5091, 19
  %v5107 = vpop.permute.xlu0 %5106
  %5108 = vrot.lane.b32.xlu0 %v5097, 19
  %v5109 = vpop.permute.xlu0 %5108
  %5110 = vrot.lane.b32.xlu0 %v2641, 19
  %v5111 = vpop.permute.xlu0 %5110
  %5112 = vrot.lane.b32.xlu0 %v5092, 19
  %v5113 = vpop.permute.xlu0 %5112
  %5114 = vrot.lane.b32.xlu0 %v5098, 19
  %v5115 = vpop.permute.xlu0 %5114
  %5116 = vrot.lane.b32.xlu0 %v2642, 19
  %v5117 = vpop.permute.xlu0 %5116
  %5118 = vrot.lane.b32.xlu0 %v5093, 19
  %v5119 = vpop.permute.xlu0 %5118
  %5120 = vrot.lane.b32.xlu0 %v5099, 19
  %v5121 = vpop.permute.xlu0 %5120
  %5122 = vrot.lane.b32.xlu0 %v2643, 19
  %v5123 = vpop.permute.xlu0 %5122
  %5124 = vrot.lane.b32.xlu0 %v5094, 19
  %v5125 = vpop.permute.xlu0 %5124
  %5126 = vrot.lane.b32.xlu0 %v5100, 19
  %v5127 = vpop.permute.xlu0 %5126
  %5128 = vrot.lane.b32.xlu0 %v2644, 19
  %v5129 = vpop.permute.xlu0 %5128
  %5130 = vrot.lane.b32.xlu0 %v5095, 19
  %v5131 = vpop.permute.xlu0 %5130
  %5132 = vrot.lane.b32.xlu0 %v5101, 19
  %v5133 = vpop.permute.xlu0 %5132
  %5134 = vrot.lane.b32.xlu0 %v2645, 19
  %v5135 = vpop.permute.xlu0 %5134
  %5136 = vrot.lane.b32.xlu0 %v5096, 19
  %v5137 = vpop.permute.xlu0 %5136
  %5138 = vrot.lane.b32.xlu0 %v5102, 19
  %v5139 = vpop.permute.xlu0 %5138
  %5140 = vrot.lane.b32.xlu0 %v2646, 19
  %v5141 = vpop.permute.xlu0 %5140
  %v5142 = vsel %vm2669, %v5131, %v5137
  %v5143 = vsel %vm2669, %v5133, %v5139
  %v5144 = vsel %vm2669, %v5135, %v5141
  %v5145 = vsel %vm2669, %v5125, %v5131
  %v5146 = vsel %vm2669, %v5127, %v5133
  %v5147 = vsel %vm2669, %v5129, %v5135
  %v5148 = vsel %vm2669, %v5119, %v5125
  %v5149 = vsel %vm2669, %v5121, %v5127
  %v5150 = vsel %vm2669, %v5123, %v5129
  %v5151 = vsel %vm2669, %v5113, %v5119
  %v5152 = vsel %vm2669, %v5115, %v5121
  %v5153 = vsel %vm2669, %v5117, %v5123
  %v5154 = vsel %vm2669, %v5107, %v5113
  %v5155 = vsel %vm2669, %v5109, %v5115
  %v5156 = vsel %vm2669, %v5111, %v5117
  %v5157 = vsel %vm2669, %v5137, %v5107
  %v5158 = vsel %vm2669, %v5139, %v5109
  %v5159 = vsel %vm2669, %v5141, %v5111
  %5160 = vrot.lane.b32.xlu0 %v5091, 18
  %v5161 = vpop.permute.xlu0 %5160
  %5162 = vrot.lane.b32.xlu0 %v5097, 18
  %v5163 = vpop.permute.xlu0 %5162
  %5164 = vrot.lane.b32.xlu0 %v2641, 18
  %v5165 = vpop.permute.xlu0 %5164
  %5166 = vrot.lane.b32.xlu0 %v5092, 18
  %v5167 = vpop.permute.xlu0 %5166
  %5168 = vrot.lane.b32.xlu0 %v5098, 18
  %v5169 = vpop.permute.xlu0 %5168
  %5170 = vrot.lane.b32.xlu0 %v2642, 18
  %v5171 = vpop.permute.xlu0 %5170
  %5172 = vrot.lane.b32.xlu0 %v5093, 18
  %v5173 = vpop.permute.xlu0 %5172
  %5174 = vrot.lane.b32.xlu0 %v5099, 18
  %v5175 = vpop.permute.xlu0 %5174
  %5176 = vrot.lane.b32.xlu0 %v2643, 18
  %v5177 = vpop.permute.xlu0 %5176
  %5178 = vrot.lane.b32.xlu0 %v5094, 18
  %v5179 = vpop.permute.xlu0 %5178
  %5180 = vrot.lane.b32.xlu0 %v5100, 18
  %v5181 = vpop.permute.xlu0 %5180
  %5182 = vrot.lane.b32.xlu0 %v2644, 18
  %v5183 = vpop.permute.xlu0 %5182
  %5184 = vrot.lane.b32.xlu0 %v5095, 18
  %v5185 = vpop.permute.xlu0 %5184
  %5186 = vrot.lane.b32.xlu0 %v5101, 18
  %v5187 = vpop.permute.xlu0 %5186
  %5188 = vrot.lane.b32.xlu0 %v2645, 18
  %v5189 = vpop.permute.xlu0 %5188
  %5190 = vrot.lane.b32.xlu0 %v5096, 18
  %v5191 = vpop.permute.xlu0 %5190
  %5192 = vrot.lane.b32.xlu0 %v5102, 18
  %v5193 = vpop.permute.xlu0 %5192
  %5194 = vrot.lane.b32.xlu0 %v2646, 18
  %v5195 = vpop.permute.xlu0 %5194
  %v5196 = vsel %vm2688, %v5185, %v5191
  %v5197 = vsel %vm2688, %v5187, %v5193
  %v5198 = vsel %vm2688, %v5189, %v5195
  %v5199 = vsel %vm2688, %v5179, %v5185
  %v5200 = vsel %vm2688, %v5181, %v5187
  %v5201 = vsel %vm2688, %v5183, %v5189
  %v5202 = vsel %vm2688, %v5173, %v5179
  %v5203 = vsel %vm2688, %v5175, %v5181
  %v5204 = vsel %vm2688, %v5177, %v5183
  %v5205 = vsel %vm2688, %v5167, %v5173
  %v5206 = vsel %vm2688, %v5169, %v5175
  %v5207 = vsel %vm2688, %v5171, %v5177
  %v5208 = vsel %vm2688, %v5161, %v5167
  %v5209 = vsel %vm2688, %v5163, %v5169
  %v5210 = vsel %vm2688, %v5165, %v5171
  %v5211 = vsel %vm2688, %v5191, %v5161
  %v5212 = vsel %vm2688, %v5193, %v5163
  %v5213 = vsel %vm2688, %v5195, %v5165
  %5214 = vrot.lane.b32.xlu0 %v5091, 17
  %v5215 = vpop.permute.xlu0 %5214
  %5216 = vrot.lane.b32.xlu0 %v5097, 17
  %v5217 = vpop.permute.xlu0 %5216
  %5218 = vrot.lane.b32.xlu0 %v2641, 17
  %v5219 = vpop.permute.xlu0 %5218
  %5220 = vrot.lane.b32.xlu0 %v5092, 17
  %v5221 = vpop.permute.xlu0 %5220
  %5222 = vrot.lane.b32.xlu0 %v5098, 17
  %v5223 = vpop.permute.xlu0 %5222
  %5224 = vrot.lane.b32.xlu0 %v2642, 17
  %v5225 = vpop.permute.xlu0 %5224
  %5226 = vrot.lane.b32.xlu0 %v5093, 17
  %v5227 = vpop.permute.xlu0 %5226
  %5228 = vrot.lane.b32.xlu0 %v5099, 17
  %v5229 = vpop.permute.xlu0 %5228
  %5230 = vrot.lane.b32.xlu0 %v2643, 17
  %v5231 = vpop.permute.xlu0 %5230
  %5232 = vrot.lane.b32.xlu0 %v5094, 17
  %v5233 = vpop.permute.xlu0 %5232
  %5234 = vrot.lane.b32.xlu0 %v5100, 17
  %v5235 = vpop.permute.xlu0 %5234
  %5236 = vrot.lane.b32.xlu0 %v2644, 17
  %v5237 = vpop.permute.xlu0 %5236
  %5238 = vrot.lane.b32.xlu0 %v5095, 17
  %v5239 = vpop.permute.xlu0 %5238
  %5240 = vrot.lane.b32.xlu0 %v5101, 17
  %v5241 = vpop.permute.xlu0 %5240
  %5242 = vrot.lane.b32.xlu0 %v2645, 17
  %v5243 = vpop.permute.xlu0 %5242
  %5244 = vrot.lane.b32.xlu0 %v5096, 17
  %v5245 = vpop.permute.xlu0 %5244
  %5246 = vrot.lane.b32.xlu0 %v5102, 17
  %v5247 = vpop.permute.xlu0 %5246
  %5248 = vrot.lane.b32.xlu0 %v2646, 17
  %v5249 = vpop.permute.xlu0 %5248
  %v5250 = vsel %vm2707, %v5239, %v5245
  %v5251 = vsel %vm2707, %v5241, %v5247
  %v5252 = vsel %vm2707, %v5243, %v5249
  %v5253 = vsel %vm2707, %v5233, %v5239
  %v5254 = vsel %vm2707, %v5235, %v5241
  %v5255 = vsel %vm2707, %v5237, %v5243
  %v5256 = vsel %vm2707, %v5227, %v5233
  %v5257 = vsel %vm2707, %v5229, %v5235
  %v5258 = vsel %vm2707, %v5231, %v5237
  %v5259 = vsel %vm2707, %v5221, %v5227
  %v5260 = vsel %vm2707, %v5223, %v5229
  %v5261 = vsel %vm2707, %v5225, %v5231
  %v5262 = vsel %vm2707, %v5215, %v5221
  %v5263 = vsel %vm2707, %v5217, %v5223
  %v5264 = vsel %vm2707, %v5219, %v5225
  %v5265 = vsel %vm2707, %v5245, %v5215
  %v5266 = vsel %vm2707, %v5247, %v5217
  %v5267 = vsel %vm2707, %v5249, %v5219
  %5268 = vrot.lane.b32.xlu0 %v5091, 1
  %v5269 = vpop.permute.xlu0 %5268
  %5270 = vrot.lane.b32.xlu0 %v5097, 1
  %v5271 = vpop.permute.xlu0 %5270
  %5272 = vrot.lane.b32.xlu0 %v2641, 1
  %v5273 = vpop.permute.xlu0 %5272
  %5274 = vrot.lane.b32.xlu0 %v5092, 1
  %v5275 = vpop.permute.xlu0 %5274
  %5276 = vrot.lane.b32.xlu0 %v5098, 1
  %v5277 = vpop.permute.xlu0 %5276
  %5278 = vrot.lane.b32.xlu0 %v2642, 1
  %v5279 = vpop.permute.xlu0 %5278
  %5280 = vrot.lane.b32.xlu0 %v5093, 1
  %v5281 = vpop.permute.xlu0 %5280
  %5282 = vrot.lane.b32.xlu0 %v5099, 1
  %v5283 = vpop.permute.xlu0 %5282
  %5284 = vrot.lane.b32.xlu0 %v2643, 1
  %v5285 = vpop.permute.xlu0 %5284
  %5286 = vrot.lane.b32.xlu0 %v5094, 1
  %v5287 = vpop.permute.xlu0 %5286
  %5288 = vrot.lane.b32.xlu0 %v5100, 1
  %v5289 = vpop.permute.xlu0 %5288
  %5290 = vrot.lane.b32.xlu0 %v2644, 1
  %v5291 = vpop.permute.xlu0 %5290
  %5292 = vrot.lane.b32.xlu0 %v5095, 1
  %v5293 = vpop.permute.xlu0 %5292
  %5294 = vrot.lane.b32.xlu0 %v5101, 1
  %v5295 = vpop.permute.xlu0 %5294
  %5296 = vrot.lane.b32.xlu0 %v2645, 1
  %v5297 = vpop.permute.xlu0 %5296
  %5298 = vrot.lane.b32.xlu0 %v5096, 1
  %v5299 = vpop.permute.xlu0 %5298
  %5300 = vrot.lane.b32.xlu0 %v5102, 1
  %v5301 = vpop.permute.xlu0 %5300
  %5302 = vrot.lane.b32.xlu0 %v2646, 1
  %v5303 = vpop.permute.xlu0 %5302
  %v5304 = vsel %vm2726, %v5293, %v5299
  %v5305 = vsel %vm2726, %v5295, %v5301
  %v5306 = vsel %vm2726, %v5297, %v5303
  %v5307 = vsel %vm2726, %v5287, %v5293
  %v5308 = vsel %vm2726, %v5289, %v5295
  %v5309 = vsel %vm2726, %v5291, %v5297
  %v5310 = vsel %vm2726, %v5281, %v5287
  %v5311 = vsel %vm2726, %v5283, %v5289
  %v5312 = vsel %vm2726, %v5285, %v5291
  %v5313 = vsel %vm2726, %v5275, %v5281
  %v5314 = vsel %vm2726, %v5277, %v5283
  %v5315 = vsel %vm2726, %v5279, %v5285
  %v5316 = vsel %vm2726, %v5269, %v5275
  %v5317 = vsel %vm2726, %v5271, %v5277
  %v5318 = vsel %vm2726, %v5273, %v5279
  %v5319 = vsel %vm2726, %v5299, %v5269
  %v5320 = vsel %vm2726, %v5301, %v5271
  %v5321 = vsel %vm2726, %v5303, %v5273
  %5322 = vrot.lane.b32.xlu0 %v5091, 127
  %v5323 = vpop.permute.xlu0 %5322
  %5324 = vrot.lane.b32.xlu0 %v5097, 127
  %v5325 = vpop.permute.xlu0 %5324
  %5326 = vrot.lane.b32.xlu0 %v2641, 127
  %v5327 = vpop.permute.xlu0 %5326
  %5328 = vrot.lane.b32.xlu0 %v5092, 127
  %v5329 = vpop.permute.xlu0 %5328
  %5330 = vrot.lane.b32.xlu0 %v5098, 127
  %v5331 = vpop.permute.xlu0 %5330
  %5332 = vrot.lane.b32.xlu0 %v2642, 127
  %v5333 = vpop.permute.xlu0 %5332
  %5334 = vrot.lane.b32.xlu0 %v5093, 127
  %v5335 = vpop.permute.xlu0 %5334
  %5336 = vrot.lane.b32.xlu0 %v5099, 127
  %v5337 = vpop.permute.xlu0 %5336
  %5338 = vrot.lane.b32.xlu0 %v2643, 127
  %v5339 = vpop.permute.xlu0 %5338
  %5340 = vrot.lane.b32.xlu0 %v5094, 127
  %v5341 = vpop.permute.xlu0 %5340
  %5342 = vrot.lane.b32.xlu0 %v5100, 127
  %v5343 = vpop.permute.xlu0 %5342
  %5344 = vrot.lane.b32.xlu0 %v2644, 127
  %v5345 = vpop.permute.xlu0 %5344
  %5346 = vrot.lane.b32.xlu0 %v5095, 127
  %v5347 = vpop.permute.xlu0 %5346
  %5348 = vrot.lane.b32.xlu0 %v5101, 127
  %v5349 = vpop.permute.xlu0 %5348
  %5350 = vrot.lane.b32.xlu0 %v2645, 127
  %v5351 = vpop.permute.xlu0 %5350
  %5352 = vrot.lane.b32.xlu0 %v5096, 127
  %v5353 = vpop.permute.xlu0 %5352
  %5354 = vrot.lane.b32.xlu0 %v5102, 127
  %v5355 = vpop.permute.xlu0 %5354
  %5356 = vrot.lane.b32.xlu0 %v2646, 127
  %v5357 = vpop.permute.xlu0 %5356
  %v5358 = vsel %vm2745, %v5347, %v5353
  %v5359 = vsel %vm2745, %v5349, %v5355
  %v5360 = vsel %vm2745, %v5351, %v5357
  %v5361 = vsel %vm2745, %v5341, %v5347
  %v5362 = vsel %vm2745, %v5343, %v5349
  %v5363 = vsel %vm2745, %v5345, %v5351
  %v5364 = vsel %vm2745, %v5335, %v5341
  %v5365 = vsel %vm2745, %v5337, %v5343
  %v5366 = vsel %vm2745, %v5339, %v5345
  %v5367 = vsel %vm2745, %v5329, %v5335
  %v5368 = vsel %vm2745, %v5331, %v5337
  %v5369 = vsel %vm2745, %v5333, %v5339
  %v5370 = vsel %vm2745, %v5323, %v5329
  %v5371 = vsel %vm2745, %v5325, %v5331
  %v5372 = vsel %vm2745, %v5327, %v5333
  %v5373 = vsel %vm2745, %v5353, %v5323
  %v5374 = vsel %vm2745, %v5355, %v5325
  %v5375 = vsel %vm2745, %v5357, %v5327
  %5376 = vrot.lane.b32.xlu0 %v5091, 111
  %v5377 = vpop.permute.xlu0 %5376
  %5378 = vrot.lane.b32.xlu0 %v5097, 111
  %v5379 = vpop.permute.xlu0 %5378
  %5380 = vrot.lane.b32.xlu0 %v2641, 111
  %v5381 = vpop.permute.xlu0 %5380
  %5382 = vrot.lane.b32.xlu0 %v5092, 111
  %v5383 = vpop.permute.xlu0 %5382
  %5384 = vrot.lane.b32.xlu0 %v5098, 111
  %v5385 = vpop.permute.xlu0 %5384
  %5386 = vrot.lane.b32.xlu0 %v2642, 111
  %v5387 = vpop.permute.xlu0 %5386
  %5388 = vrot.lane.b32.xlu0 %v5093, 111
  %v5389 = vpop.permute.xlu0 %5388
  %5390 = vrot.lane.b32.xlu0 %v5099, 111
  %v5391 = vpop.permute.xlu0 %5390
  %5392 = vrot.lane.b32.xlu0 %v2643, 111
  %v5393 = vpop.permute.xlu0 %5392
  %5394 = vrot.lane.b32.xlu0 %v5094, 111
  %v5395 = vpop.permute.xlu0 %5394
  %5396 = vrot.lane.b32.xlu0 %v5100, 111
  %v5397 = vpop.permute.xlu0 %5396
  %5398 = vrot.lane.b32.xlu0 %v2644, 111
  %v5399 = vpop.permute.xlu0 %5398
  %5400 = vrot.lane.b32.xlu0 %v5095, 111
  %v5401 = vpop.permute.xlu0 %5400
  %5402 = vrot.lane.b32.xlu0 %v5101, 111
  %v5403 = vpop.permute.xlu0 %5402
  %5404 = vrot.lane.b32.xlu0 %v2645, 111
  %v5405 = vpop.permute.xlu0 %5404
  %5406 = vrot.lane.b32.xlu0 %v5096, 111
  %v5407 = vpop.permute.xlu0 %5406
  %5408 = vrot.lane.b32.xlu0 %v5102, 111
  %v5409 = vpop.permute.xlu0 %5408
  %5410 = vrot.lane.b32.xlu0 %v2646, 111
  %v5411 = vpop.permute.xlu0 %5410
  %v5412 = vsel %vm2764, %v5401, %v5407
  %v5413 = vsel %vm2764, %v5403, %v5409
  %v5414 = vsel %vm2764, %v5405, %v5411
  %v5415 = vsel %vm2764, %v5395, %v5401
  %v5416 = vsel %vm2764, %v5397, %v5403
  %v5417 = vsel %vm2764, %v5399, %v5405
  %v5418 = vsel %vm2764, %v5389, %v5395
  %v5419 = vsel %vm2764, %v5391, %v5397
  %v5420 = vsel %vm2764, %v5393, %v5399
  %v5421 = vsel %vm2764, %v5383, %v5389
  %v5422 = vsel %vm2764, %v5385, %v5391
  %v5423 = vsel %vm2764, %v5387, %v5393
  %v5424 = vsel %vm2764, %v5377, %v5383
  %v5425 = vsel %vm2764, %v5379, %v5385
  %v5426 = vsel %vm2764, %v5381, %v5387
  %v5427 = vsel %vm2764, %v5407, %v5377
  %v5428 = vsel %vm2764, %v5409, %v5379
  %v5429 = vsel %vm2764, %v5411, %v5381
  %5430 = vrot.lane.b32.xlu0 %v5091, 110
  %v5431 = vpop.permute.xlu0 %5430
  %5432 = vrot.lane.b32.xlu0 %v5097, 110
  %v5433 = vpop.permute.xlu0 %5432
  %5434 = vrot.lane.b32.xlu0 %v2641, 110
  %v5435 = vpop.permute.xlu0 %5434
  %5436 = vrot.lane.b32.xlu0 %v5092, 110
  %v5437 = vpop.permute.xlu0 %5436
  %5438 = vrot.lane.b32.xlu0 %v5098, 110
  %v5439 = vpop.permute.xlu0 %5438
  %5440 = vrot.lane.b32.xlu0 %v2642, 110
  %v5441 = vpop.permute.xlu0 %5440
  %5442 = vrot.lane.b32.xlu0 %v5093, 110
  %v5443 = vpop.permute.xlu0 %5442
  %5444 = vrot.lane.b32.xlu0 %v5099, 110
  %v5445 = vpop.permute.xlu0 %5444
  %5446 = vrot.lane.b32.xlu0 %v2643, 110
  %v5447 = vpop.permute.xlu0 %5446
  %5448 = vrot.lane.b32.xlu0 %v5094, 110
  %v5449 = vpop.permute.xlu0 %5448
  %5450 = vrot.lane.b32.xlu0 %v5100, 110
  %v5451 = vpop.permute.xlu0 %5450
  %5452 = vrot.lane.b32.xlu0 %v2644, 110
  %v5453 = vpop.permute.xlu0 %5452
  %5454 = vrot.lane.b32.xlu0 %v5095, 110
  %v5455 = vpop.permute.xlu0 %5454
  %5456 = vrot.lane.b32.xlu0 %v5101, 110
  %v5457 = vpop.permute.xlu0 %5456
  %5458 = vrot.lane.b32.xlu0 %v2645, 110
  %v5459 = vpop.permute.xlu0 %5458
  %5460 = vrot.lane.b32.xlu0 %v5096, 110
  %v5461 = vpop.permute.xlu0 %5460
  %5462 = vrot.lane.b32.xlu0 %v5102, 110
  %v5463 = vpop.permute.xlu0 %5462
  %5464 = vrot.lane.b32.xlu0 %v2646, 110
  %v5465 = vpop.permute.xlu0 %5464
  %v5466 = vsel %vm2783, %v5455, %v5461
  %v5467 = vsel %vm2783, %v5457, %v5463
  %v5468 = vsel %vm2783, %v5459, %v5465
  %v5469 = vsel %vm2783, %v5449, %v5455
  %v5470 = vsel %vm2783, %v5451, %v5457
  %v5471 = vsel %vm2783, %v5453, %v5459
  %v5472 = vsel %vm2783, %v5443, %v5449
  %v5473 = vsel %vm2783, %v5445, %v5451
  %v5474 = vsel %vm2783, %v5447, %v5453
  %v5475 = vsel %vm2783, %v5437, %v5443
  %v5476 = vsel %vm2783, %v5439, %v5445
  %v5477 = vsel %vm2783, %v5441, %v5447
  %v5478 = vsel %vm2783, %v5431, %v5437
  %v5479 = vsel %vm2783, %v5433, %v5439
  %v5480 = vsel %vm2783, %v5435, %v5441
  %v5481 = vsel %vm2783, %v5461, %v5431
  %v5482 = vsel %vm2783, %v5463, %v5433
  %v5483 = vsel %vm2783, %v5465, %v5435
  %5484 = vrot.lane.b32.xlu0 %v5091, 109
  %v5485 = vpop.permute.xlu0 %5484
  %5486 = vrot.lane.b32.xlu0 %v5097, 109
  %v5487 = vpop.permute.xlu0 %5486
  %5488 = vrot.lane.b32.xlu0 %v2641, 109
  %v5489 = vpop.permute.xlu0 %5488
  %5490 = vrot.lane.b32.xlu0 %v5092, 109
  %v5491 = vpop.permute.xlu0 %5490
  %5492 = vrot.lane.b32.xlu0 %v5098, 109
  %v5493 = vpop.permute.xlu0 %5492
  %5494 = vrot.lane.b32.xlu0 %v2642, 109
  %v5495 = vpop.permute.xlu0 %5494
  %5496 = vrot.lane.b32.xlu0 %v5093, 109
  %v5497 = vpop.permute.xlu0 %5496
  %5498 = vrot.lane.b32.xlu0 %v5099, 109
  %v5499 = vpop.permute.xlu0 %5498
  %5500 = vrot.lane.b32.xlu0 %v2643, 109
  %v5501 = vpop.permute.xlu0 %5500
  %5502 = vrot.lane.b32.xlu0 %v5094, 109
  %v5503 = vpop.permute.xlu0 %5502
  %5504 = vrot.lane.b32.xlu0 %v5100, 109
  %v5505 = vpop.permute.xlu0 %5504
  %5506 = vrot.lane.b32.xlu0 %v2644, 109
  %v5507 = vpop.permute.xlu0 %5506
  %5508 = vrot.lane.b32.xlu0 %v5095, 109
  %v5509 = vpop.permute.xlu0 %5508
  %5510 = vrot.lane.b32.xlu0 %v5101, 109
  %v5511 = vpop.permute.xlu0 %5510
  %5512 = vrot.lane.b32.xlu0 %v2645, 109
  %v5513 = vpop.permute.xlu0 %5512
  %5514 = vrot.lane.b32.xlu0 %v5096, 109
  %v5515 = vpop.permute.xlu0 %5514
  %5516 = vrot.lane.b32.xlu0 %v5102, 109
  %v5517 = vpop.permute.xlu0 %5516
  %5518 = vrot.lane.b32.xlu0 %v2646, 109
  %v5519 = vpop.permute.xlu0 %5518
  %v5520 = vsel %vm2802, %v5509, %v5515
  %v5521 = vsel %vm2802, %v5511, %v5517
  %v5522 = vsel %vm2802, %v5513, %v5519
  %v5523 = vsel %vm2802, %v5503, %v5509
  %v5524 = vsel %vm2802, %v5505, %v5511
  %v5525 = vsel %vm2802, %v5507, %v5513
  %v5526 = vsel %vm2802, %v5497, %v5503
  %v5527 = vsel %vm2802, %v5499, %v5505
  %v5528 = vsel %vm2802, %v5501, %v5507
  %v5529 = vsel %vm2802, %v5491, %v5497
  %v5530 = vsel %vm2802, %v5493, %v5499
  %v5531 = vsel %vm2802, %v5495, %v5501
  %v5532 = vsel %vm2802, %v5485, %v5491
  %v5533 = vsel %vm2802, %v5487, %v5493
  %v5534 = vsel %vm2802, %v5489, %v5495
  %v5535 = vsel %vm2802, %v5515, %v5485
  %v5536 = vsel %vm2802, %v5517, %v5487
  %v5537 = vsel %vm2802, %v5519, %v5489
  %v5538 = vpack.c.bf16 %v5158, %v5157
  %v5539 = vpack.c.bf16 %v5155, %v5154
  %v5540 = vpack.c.bf16 %v5152, %v5151
  %v5541 = vpack.c.bf16 %v5149, %v5148
  %v5542 = vpack.c.bf16 %v5146, %v5145
  %v5543 = vpack.c.bf16 %v5143, %v5142
  %v5544 = vpack.c.bf16 %v5211, %v5159
  %v5545 = vpack.c.bf16 %v5208, %v5156
  %v5546 = vpack.c.bf16 %v5205, %v5153
  %v5547 = vpack.c.bf16 %v5202, %v5150
  %v5548 = vpack.c.bf16 %v5199, %v5147
  %v5549 = vpack.c.bf16 %v5196, %v5144
  %v5550 = vpack.c.bf16 %v5213, %v5212
  %v5551 = vpack.c.bf16 %v5210, %v5209
  %v5552 = vpack.c.bf16 %v5207, %v5206
  %v5553 = vpack.c.bf16 %v5204, %v5203
  %v5554 = vpack.c.bf16 %v5201, %v5200
  %v5555 = vpack.c.bf16 %v5198, %v5197
  %v5556 = vpack.c.bf16 %v5266, %v5265
  %v5557 = vpack.c.bf16 %v5263, %v5262
  %v5558 = vpack.c.bf16 %v5260, %v5259
  %v5559 = vpack.c.bf16 %v5257, %v5256
  %v5560 = vpack.c.bf16 %v5254, %v5253
  %v5561 = vpack.c.bf16 %v5251, %v5250
  %v5562 = vpack.c.bf16 %v5319, %v5267
  %v5563 = vpack.c.bf16 %v5316, %v5264
  %v5564 = vpack.c.bf16 %v5313, %v5261
  %v5565 = vpack.c.bf16 %v5310, %v5258
  %v5566 = vpack.c.bf16 %v5307, %v5255
  %v5567 = vpack.c.bf16 %v5304, %v5252
  %v5568 = vpack.c.bf16 %v5321, %v5320
  %v5569 = vpack.c.bf16 %v5318, %v5317
  %v5570 = vpack.c.bf16 %v5315, %v5314
  %v5571 = vpack.c.bf16 %v5312, %v5311
  %v5572 = vpack.c.bf16 %v5309, %v5308
  %v5573 = vpack.c.bf16 %v5306, %v5305
  %v5574 = vpack.c.bf16 %v5097, %v5091
  %v5575 = vpack.c.bf16 %v5098, %v5092
  %v5576 = vpack.c.bf16 %v5099, %v5093
  %v5577 = vpack.c.bf16 %v5100, %v5094
  %v5578 = vpack.c.bf16 %v5101, %v5095
  %v5579 = vpack.c.bf16 %v5102, %v5096
  %v5580 = vpack.c.bf16 %v5370, %v2641
  %v5581 = vpack.c.bf16 %v5367, %v2642
  %v5582 = vpack.c.bf16 %v5364, %v2643
  %v5583 = vpack.c.bf16 %v5361, %v2644
  %v5584 = vpack.c.bf16 %v5358, %v2645
  %v5585 = vpack.c.bf16 %v5373, %v2646
  %v5586 = vpack.c.bf16 %v5372, %v5371
  %v5587 = vpack.c.bf16 %v5369, %v5368
  %v5588 = vpack.c.bf16 %v5366, %v5365
  %v5589 = vpack.c.bf16 %v5363, %v5362
  %v5590 = vpack.c.bf16 %v5360, %v5359
  %v5591 = vpack.c.bf16 %v5375, %v5374
  %v5592 = vpack.c.bf16 %v5425, %v5424
  %v5593 = vpack.c.bf16 %v5422, %v5421
  %v5594 = vpack.c.bf16 %v5419, %v5418
  %v5595 = vpack.c.bf16 %v5416, %v5415
  %v5596 = vpack.c.bf16 %v5413, %v5412
  %v5597 = vpack.c.bf16 %v5428, %v5427
  %v5598 = vpack.c.bf16 %v5478, %v5426
  %v5599 = vpack.c.bf16 %v5475, %v5423
  %v5600 = vpack.c.bf16 %v5472, %v5420
  %v5601 = vpack.c.bf16 %v5469, %v5417
  %v5602 = vpack.c.bf16 %v5466, %v5414
  %v5603 = vpack.c.bf16 %v5481, %v5429
  %v5604 = vpack.c.bf16 %v5480, %v5479
  %v5605 = vpack.c.bf16 %v5477, %v5476
  %v5606 = vpack.c.bf16 %v5474, %v5473
  %v5607 = vpack.c.bf16 %v5471, %v5470
  %v5608 = vpack.c.bf16 %v5468, %v5467
  %v5609 = vpack.c.bf16 %v5483, %v5482
  %v5610 = vpack.c.bf16 %v5533, %v5532
  %v5611 = vpack.c.bf16 %v5530, %v5529
  %v5612 = vpack.c.bf16 %v5527, %v5526
  %v5613 = vpack.c.bf16 %v5524, %v5523
  %v5614 = vpack.c.bf16 %v5521, %v5520
  %v5615 = vpack.c.bf16 %v5536, %v5535
  %v5616 = vpack.c.bf16 %v5534, %v5534
  %v5617 = vpack.c.bf16 %v5531, %v5531
  %v5618 = vpack.c.bf16 %v5528, %v5528
  %v5619 = vpack.c.bf16 %v5525, %v5525
  %v5620 = vpack.c.bf16 %v5522, %v5522
  %v5621 = vpack.c.bf16 %v5537, %v5537
  %v5624 = vunpack.c.l.b16 %v5104
  %v5625 = vunpack.c.h.b16 %v5104
  %v5626 = vunpack.c.l.b16 %v5105
  %v5627 = vunpack.c.h.b16 %v5105
  %v5628 = vpack.c.b16 %v5626, %v5624
  %v5629 = vpack.c.b16 %v5627, %v5625
  %vm5631 = vcmask 719872
  %v5633 = vsel %vm5631, %v5629, 0
  %v5636 = vsel %vm2848, %v5616, 0
  %v5639 = vsel %vm2848, %v5617, 0
  %v5642 = vsel %vm2848, %v5618, 0
  %v5645 = vsel %vm2848, %v5619, 0
  %v5648 = vsel %vm2848, %v5620, 0
  %v5651 = vsel %vm2848, %v5621, 0
  %5653 = vmatprep.subr.bf16.mxu0 %v5539
  %5654 = vmatpush1.bf16.msra.mxu0 %v5538
  %5655 = vmatprep.subr.bf16.mxu0 %v5545
  %5656 = vmatpush1.bf16.msra.mxu0 %v5544
  %5657 = vmatprep.subr.bf16.mxu0 %v5551
  %5658 = vmatpush1.bf16.msra.mxu0 %v5550
  %5659 = vmatprep.subr.bf16.mxu0 %v5557
  %5660 = vmatpush1.bf16.msra.mxu0 %v5556
  %5661 = vmatprep.subr.bf16.mxu0 %v5563
  %5662 = vmatpush1.bf16.msra.mxu0 %v5562
  %5663 = vmatprep.subr.bf16.mxu0 %v5569
  %5664 = vmatpush1.bf16.msra.mxu0 %v5568
  %5665 = vmatprep.subr.bf16.mxu0 %v5575
  %5666 = vmatpush1.bf16.msra.mxu0 %v5574
  %5667 = vmatprep.subr.bf16.mxu0 %v5581
  %5668 = vmatpush1.bf16.msra.mxu0 %v5580
  %5669 = vmatprep.subr.bf16.mxu0 %v5587
  %5670 = vmatpush1.bf16.msra.mxu0 %v5586
  %5671 = vmatprep.subr.bf16.mxu0 %v5593
  %5672 = vmatpush1.bf16.msra.mxu0 %v5592
  %5673 = vmatprep.subr.bf16.mxu0 %v5599
  %5674 = vmatpush1.bf16.msra.mxu0 %v5598
  %5675 = vmatprep.subr.bf16.mxu0 %v5605
  %5676 = vmatpush1.bf16.msra.mxu0 %v5604
  %5677 = vmatprep.subr.bf16.mxu0 %v5611
  %5678 = vmatpush1.bf16.msra.mxu0 %v5610
  %5679 = vmatprep.subr.bf16.mxu0 %v5639
  %5680 = vmatpush1.bf16.msra.mxu0 %v5636
  %5681 = vmatprep.subr.bf16.mxu0 0
  %5682 = vmatpush1.bf16.msra.mxu0 0
  %5683 = vmatprep.subr.bf16.mxu0 0
  %5684 = vmatpush1.bf16.msra.mxu0 0
  %5685 = vmatprep.mubr.bf16.mxu0 %v5633
  %5686 = vmatmul.mubr.bf16.gmra.mrb[0].mxu0 %v5628
  %v5687 = vpop.f32.mrb[0].mxu0
  %v5688 = vadd.f32 0.0, %v5687
  %v5689 = vpop.f32.mrb[0].mxu0
  %v5690 = vadd.f32 0.0, %v5689
  %v5691 = vpop.f32.mrb[0].mxu0
  %v5692 = vadd.f32 0.0, %v5691
  %v5693 = vpop.f32.mrb[0].mxu0
  %v5694 = vadd.f32 0.0, %v5693
  %5695 = vdwg.mxu0
  %5696 = vmatprep.subr.bf16.mxu0 %v5541
  %5697 = vmatpush1.bf16.msra.mxu0 %v5540
  %5698 = vmatprep.subr.bf16.mxu0 %v5547
  %5699 = vmatpush1.bf16.msra.mxu0 %v5546
  %5700 = vmatprep.subr.bf16.mxu0 %v5553
  %5701 = vmatpush1.bf16.msra.mxu0 %v5552
  %5702 = vmatprep.subr.bf16.mxu0 %v5559
  %5703 = vmatpush1.bf16.msra.mxu0 %v5558
  %5704 = vmatprep.subr.bf16.mxu0 %v5565
  %5705 = vmatpush1.bf16.msra.mxu0 %v5564
  %5706 = vmatprep.subr.bf16.mxu0 %v5571
  %5707 = vmatpush1.bf16.msra.mxu0 %v5570
  %5708 = vmatprep.subr.bf16.mxu0 %v5577
  %5709 = vmatpush1.bf16.msra.mxu0 %v5576
  %5710 = vmatprep.subr.bf16.mxu0 %v5583
  %5711 = vmatpush1.bf16.msra.mxu0 %v5582
  %5712 = vmatprep.subr.bf16.mxu0 %v5589
  %5713 = vmatpush1.bf16.msra.mxu0 %v5588
  %5714 = vmatprep.subr.bf16.mxu0 %v5595
  %5715 = vmatpush1.bf16.msra.mxu0 %v5594
  %5716 = vmatprep.subr.bf16.mxu0 %v5601
  %5717 = vmatpush1.bf16.msra.mxu0 %v5600
  %5718 = vmatprep.subr.bf16.mxu0 %v5607
  %5719 = vmatpush1.bf16.msra.mxu0 %v5606
  %5720 = vmatprep.subr.bf16.mxu0 %v5613
  %5721 = vmatpush1.bf16.msra.mxu0 %v5612
  %5722 = vmatprep.subr.bf16.mxu0 %v5645
  %5723 = vmatpush1.bf16.msra.mxu0 %v5642
  %5724 = vmatprep.subr.bf16.mxu0 0
  %5725 = vmatpush1.bf16.msra.mxu0 0
  %5726 = vmatprep.subr.bf16.mxu0 0
  %5727 = vmatpush1.bf16.msra.mxu0 0
  %5728 = vmatprep.mubr.bf16.mxu0 %v5633
  %5729 = vmatmul.mubr.bf16.gmra.mrb[0].mxu0 %v5628
  %v5730 = vpop.f32.mrb[0].mxu0
  %v5731 = vadd.f32 0.0, %v5730
  %v5732 = vpop.f32.mrb[0].mxu0
  %v5733 = vadd.f32 0.0, %v5732
  %v5734 = vpop.f32.mrb[0].mxu0
  %v5735 = vadd.f32 0.0, %v5734
  %v5736 = vpop.f32.mrb[0].mxu0
  %v5737 = vadd.f32 0.0, %v5736
  %5738 = vdwg.mxu0
  %5739 = vmatprep.subr.bf16.mxu0 %v5543
  %5740 = vmatpush1.bf16.msra.mxu0 %v5542
  %5741 = vmatprep.subr.bf16.mxu0 %v5549
  %5742 = vmatpush1.bf16.msra.mxu0 %v5548
  %5743 = vmatprep.subr.bf16.mxu0 %v5555
  %5744 = vmatpush1.bf16.msra.mxu0 %v5554
  %5745 = vmatprep.subr.bf16.mxu0 %v5561
  %5746 = vmatpush1.bf16.msra.mxu0 %v5560
  %5747 = vmatprep.subr.bf16.mxu0 %v5567
  %5748 = vmatpush1.bf16.msra.mxu0 %v5566
  %5749 = vmatprep.subr.bf16.mxu0 %v5573
  %5750 = vmatpush1.bf16.msra.mxu0 %v5572
  %5751 = vmatprep.subr.bf16.mxu0 %v5579
  %5752 = vmatpush1.bf16.msra.mxu0 %v5578
  %5753 = vmatprep.subr.bf16.mxu0 %v5585
  %5754 = vmatpush1.bf16.msra.mxu0 %v5584
  %5755 = vmatprep.subr.bf16.mxu0 %v5591
  %5756 = vmatpush1.bf16.msra.mxu0 %v5590
  %5757 = vmatprep.subr.bf16.mxu0 %v5597
  %5758 = vmatpush1.bf16.msra.mxu0 %v5596
  %5759 = vmatprep.subr.bf16.mxu0 %v5603
  %5760 = vmatpush1.bf16.msra.mxu0 %v5602
  %5761 = vmatprep.subr.bf16.mxu0 %v5609
  %5762 = vmatpush1.bf16.msra.mxu0 %v5608
  %5763 = vmatprep.subr.bf16.mxu0 %v5615
  %5764 = vmatpush1.bf16.msra.mxu0 %v5614
  %5765 = vmatprep.subr.bf16.mxu0 %v5651
  %5766 = vmatpush1.bf16.msra.mxu0 %v5648
  %5767 = vmatprep.subr.bf16.mxu0 0
  %5768 = vmatpush1.bf16.msra.mxu0 0
  %5769 = vmatprep.subr.bf16.mxu0 0
  %5770 = vmatpush1.bf16.msra.mxu0 0
  %5771 = vmatprep.mubr.bf16.mxu0 %v5633
  %5772 = vmatmul.mubr.bf16.gmra.mrb[0].mxu0 %v5628
  %v5773 = vpop.f32.mrb[0].mxu0
  %v5774 = vadd.f32 0.0, %v5773
  %v5775 = vpop.f32.mrb[0].mxu0
  %v5776 = vadd.f32 0.0, %v5775
  %v5777 = vpop.f32.mrb[0].mxu0
  %v5778 = vadd.f32 0.0, %v5777
  %v5779 = vpop.f32.mrb[0].mxu0
  %v5780 = vadd.f32 0.0, %v5779
  %5781 = vdwg.mxu0
  %v5782 = vmul.f32 %v5688, %v1942
  %v5783 = vmul.f32 %v5690, %v1946
  %v5784 = vmul.f32 %v5731, %v1950
  %v5785 = vmul.f32 %v5733, %v1954
  %v5786 = vmul.f32 %v5774, %v1958
  %v5787 = vmul.f32 %v5776, %v1962
  %v5788 = vmul.f32 %v5692, %v1942
  %v5789 = vmul.f32 %v5694, %v1946
  %v5790 = vmul.f32 %v5735, %v1950
  %v5791 = vmul.f32 %v5737, %v1954
  %v5792 = vmul.f32 %v5778, %v1958
  %v5793 = vmul.f32 %v5780, %v1962
  %v5794 = vadd.f32 %v5782, %v5783
  %v5795 = vadd.f32 %v5794, %v5784
  %v5796 = vadd.f32 %v5795, %v5785
  %v5797 = vadd.f32 %v5796, %v5786
  %v5798 = vadd.f32 %v5797, %v5787
  %5799 = vadd.xlane.f32.xlu0 %v5798
  %v5800 = vpop.xlane.xlu0 %5799
  %v5801 = vadd.f32 %v5788, %v5789
  %v5802 = vadd.f32 %v5801, %v5790
  %v5803 = vadd.f32 %v5802, %v5791
  %v5804 = vadd.f32 %v5803, %v5792
  %v5805 = vadd.f32 %v5804, %v5793
  %5806 = vadd.xlane.f32.xlu0 %v5805
  %v5807 = vpop.xlane.xlu0 %5806
  %v5808 = vmul.f32 %v5800, 0.001953125
  %v5809 = vmul.f32 %v5807, 0.001953125
  %v5810 = vsub.f32 %v5688, %v5808
  %v5811 = vsub.f32 %v5690, %v5808
  %v5812 = vsub.f32 %v5731, %v5808
  %v5813 = vsub.f32 %v5733, %v5808
  %v5814 = vsub.f32 %v5774, %v5808
  %v5815 = vsub.f32 %v5776, %v5808
  %v5816 = vsub.f32 %v5692, %v5809
  %v5817 = vsub.f32 %v5694, %v5809
  %v5818 = vsub.f32 %v5735, %v5809
  %v5819 = vsub.f32 %v5737, %v5809
  %v5820 = vsub.f32 %v5778, %v5809
  %v5821 = vsub.f32 %v5780, %v5809
  %v5822 = vmul.f32 %v5810, %v1942
  %v5823 = vmul.f32 %v5811, %v1946
  %v5824 = vmul.f32 %v5812, %v1950
  %v5825 = vmul.f32 %v5813, %v1954
  %v5826 = vmul.f32 %v5814, %v1958
  %v5827 = vmul.f32 %v5815, %v1962
  %v5828 = vmul.f32 %v5816, %v1942
  %v5829 = vmul.f32 %v5817, %v1946
  %v5830 = vmul.f32 %v5818, %v1950
  %v5831 = vmul.f32 %v5819, %v1954
  %v5832 = vmul.f32 %v5820, %v1958
  %v5833 = vmul.f32 %v5821, %v1962
  %v5834 = vmul.f32 %v5822, %v5822
  %v5835 = vmul.f32 %v5823, %v5823
  %v5836 = vmul.f32 %v5824, %v5824
  %v5837 = vmul.f32 %v5825, %v5825
  %v5838 = vmul.f32 %v5826, %v5826
  %v5839 = vmul.f32 %v5827, %v5827
  %v5840 = vmul.f32 %v5828, %v5828
  %v5841 = vmul.f32 %v5829, %v5829
  %v5842 = vmul.f32 %v5830, %v5830
  %v5843 = vmul.f32 %v5831, %v5831
  %v5844 = vmul.f32 %v5832, %v5832
  %v5845 = vmul.f32 %v5833, %v5833
  %v5846 = vadd.f32 %v5834, %v5835
  %v5847 = vadd.f32 %v5846, %v5836
  %v5848 = vadd.f32 %v5847, %v5837
  %v5849 = vadd.f32 %v5848, %v5838
  %v5850 = vadd.f32 %v5849, %v5839
  %5851 = vadd.xlane.f32.xlu0 %v5850
  %v5852 = vpop.xlane.xlu0 %5851
  %v5853 = vadd.f32 %v5840, %v5841
  %v5854 = vadd.f32 %v5853, %v5842
  %v5855 = vadd.f32 %v5854, %v5843
  %v5856 = vadd.f32 %v5855, %v5844
  %v5857 = vadd.f32 %v5856, %v5845
  %5858 = vadd.xlane.f32.xlu0 %v5857
  %v5859 = vpop.xlane.xlu0 %5858
  %v5860 = vmul.f32 %v5852, 0.001953125
  %v5861 = vmul.f32 %v5859, 0.001953125
  %v5862 = vadd.f32 %v5860, 1e-05
  %v5863 = vadd.f32 %v5861, 1e-05
  %v5864 = vrsqrt.pop %v5862
  %v5865 = vrsqrt.pop %v5863
  %v5866 = vmul.f32 %v5810, %v5864
  %v5867 = vmul.f32 %v5811, %v5864
  %v5868 = vmul.f32 %v5812, %v5864
  %v5869 = vmul.f32 %v5813, %v5864
  %v5870 = vmul.f32 %v5814, %v5864
  %v5871 = vmul.f32 %v5815, %v5864
  %v5872 = vmul.f32 %v5816, %v5865
  %v5873 = vmul.f32 %v5817, %v5865
  %v5874 = vmul.f32 %v5818, %v5865
  %v5875 = vmul.f32 %v5819, %v5865
  %v5876 = vmul.f32 %v5820, %v5865
  %v5877 = vmul.f32 %v5821, %v5865
  %5878 = vset.pattern.permute.xlu0 7
  %5879 = vperm.xlu0 %5878, %v2996
  %v5880 = vpop.permute.xlu0 %5879
  %5882 = vset.pattern.permute.xlu0 7
  %5883 = vperm.xlu0 %5882, %v2997
  %v5884 = vpop.permute.xlu0 %5883
  %v5886 = vmul.f32 %v5866, %v5880
  %v5887 = vmul.f32 %v5867, %v5880
  %v5888 = vmul.f32 %v5868, %v5880
  %v5889 = vmul.f32 %v5869, %v5880
  %v5890 = vmul.f32 %v5870, %v5880
  %v5891 = vmul.f32 %v5871, %v5880
  %v5892 = vmul.f32 %v5872, %v5884
  %v5893 = vmul.f32 %v5873, %v5884
  %v5894 = vmul.f32 %v5874, %v5884
  %v5895 = vmul.f32 %v5875, %v5884
  %v5896 = vmul.f32 %v5876, %v5884
  %v5897 = vmul.f32 %v5877, %v5884
  %5898 = vset.pattern.permute.xlu0 7
  %5899 = vperm.xlu0 %5898, %v2998
  %v5900 = vpop.permute.xlu0 %5899
  %5902 = vset.pattern.permute.xlu0 7
  %5903 = vperm.xlu0 %5902, %v2999
  %v5904 = vpop.permute.xlu0 %5903
  %v5906 = vadd.f32 %v5886, %v5900
  %v5907 = vadd.f32 %v5887, %v5900
  %v5908 = vadd.f32 %v5888, %v5900
  %v5909 = vadd.f32 %v5889, %v5900
  %v5910 = vadd.f32 %v5890, %v5900
  %v5911 = vadd.f32 %v5891, %v5900
  %v5912 = vadd.f32 %v5892, %v5904
  %v5913 = vadd.f32 %v5893, %v5904
  %v5914 = vadd.f32 %v5894, %v5904
  %v5915 = vadd.f32 %v5895, %v5904
  %v5916 = vadd.f32 %v5896, %v5904
  %v5917 = vadd.f32 %v5897, %v5904
  %v5918 = vmax.f32 %v5906, 0.0
  %v5919 = vmax.f32 %v5907, 0.0
  %v5920 = vmax.f32 %v5908, 0.0
  %v5921 = vmax.f32 %v5909, 0.0
  %v5922 = vmax.f32 %v5910, 0.0
  %v5923 = vmax.f32 %v5911, 0.0
  %v5924 = vmax.f32 %v5912, 0.0
  %v5925 = vmax.f32 %v5913, 0.0
  %v5926 = vmax.f32 %v5914, 0.0
  %v5927 = vmax.f32 %v5915, 0.0
  %v5928 = vmax.f32 %v5916, 0.0
  %v5929 = vmax.f32 %v5917, 0.0
  %v5930 = vmul.f32 %v5918, %v1942
  %v5931 = vmul.f32 %v5919, %v1946
  %v5932 = vmul.f32 %v5920, %v1950
  %v5933 = vmul.f32 %v5921, %v1954
  %v5934 = vmul.f32 %v5922, %v1958
  %v5935 = vmul.f32 %v5923, %v1962
  %v5936 = vmul.f32 %v5924, %v1942
  %v5937 = vmul.f32 %v5925, %v1946
  %v5938 = vmul.f32 %v5926, %v1950
  %v5939 = vmul.f32 %v5927, %v1954
  %v5940 = vmul.f32 %v5928, %v1958
  %v5941 = vmul.f32 %v5929, %v1962
  %v5942 = vld [vmem:[%s5] sm:$0x7]
  %v5943 = vld [vmem:[%s8] sm:$0x7]
  %5945 = vset.pattern.permute.xlu0 0
  %5946 = vperm.xlu0 %5945, %v5943
  %v5947 = vpop.permute.xlu0 %5946
  %v5950 = vsel %vm3518, %v5942, 0
  %5952 = vmatprep.subr.mxu0 %v5931
  %5953 = vmatpush1.msra.mxu0 %v5930
  %5954 = vmatprep.subr.mxu0 %v5937
  %5955 = vmatpush1.msra.mxu0 %v5936
  %5956 = vmatprep.subr.mxu0 0.0
  %5957 = vmatpush1.msra.mxu0 0.0
  %5958 = vmatprep.subr.mxu0 0.0
  %5959 = vmatpush1.msra.mxu0 0.0
  %5960 = vmatprep.subr.mxu0 0.0
  %5961 = vmatpush1.msra.mxu0 0.0
  %5962 = vmatprep.subr.mxu0 0.0
  %5963 = vmatpush1.msra.mxu0 0.0
  %5964 = vmatprep.subr.mxu0 0.0
  %5965 = vmatpush1.msra.mxu0 0.0
  %5966 = vmatprep.subr.mxu0 0.0
  %5967 = vmatpush1.msra.mxu0 0.0
  %5968 = vmatprep.subr.mxu0 0.0
  %5969 = vmatpush1.msra.mxu0 0.0
  %5970 = vmatprep.subr.mxu0 0.0
  %5971 = vmatpush1.msra.mxu0 0.0
  %5972 = vmatprep.subr.mxu0 0.0
  %5973 = vmatpush1.msra.mxu0 0.0
  %5974 = vmatprep.subr.mxu0 0.0
  %5975 = vmatpush1.msra.mxu0 0.0
  %5976 = vmatprep.subr.mxu0 0.0
  %5977 = vmatpush1.msra.mxu0 0.0
  %5978 = vmatprep.subr.mxu0 0.0
  %5979 = vmatpush1.msra.mxu0 0.0
  %5980 = vmatprep.subr.mxu0 0.0
  %5981 = vmatpush1.msra.mxu0 0.0
  %5982 = vmatprep.subr.mxu0 0.0
  %5983 = vmatpush1.msra.mxu0 0.0
  %5984 = vmatprep.subr.mxu0 0.0
  %5985 = vmatpush1.msra.mxu0 0.0
  %5986 = vmatprep.subr.mxu0 0.0
  %5987 = vmatpush1.msra.mxu0 0.0
  %5988 = vmatprep.subr.mxu0 0.0
  %5989 = vmatpush1.msra.mxu0 0.0
  %5990 = vmatprep.subr.mxu0 0.0
  %5991 = vmatpush1.msra.mxu0 0.0
  %5992 = vmatprep.subr.mxu0 0.0
  %5993 = vmatpush1.msra.mxu0 0.0
  %5994 = vmatprep.subr.mxu0 0.0
  %5995 = vmatpush1.msra.mxu0 0.0
  %5996 = vmatprep.subr.mxu0 0.0
  %5997 = vmatpush1.msra.mxu0 0.0
  %5998 = vmatprep.subr.mxu0 0.0
  %5999 = vmatpush1.msra.mxu0 0.0
  %6000 = vmatprep.subr.mxu0 0.0
  %6001 = vmatpush1.msra.mxu0 0.0
  %6002 = vmatprep.subr.mxu0 0.0
  %6003 = vmatpush1.msra.mxu0 0.0
  %6004 = vmatprep.subr.mxu0 0.0
  %6005 = vmatpush1.msra.mxu0 0.0
  %6006 = vmatprep.subr.mxu0 0.0
  %6007 = vmatpush1.msra.mxu0 0.0
  %6008 = vmatprep.subr.mxu0 0.0
  %6009 = vmatpush1.msra.mxu0 0.0
  %6010 = vmatprep.subr.mxu0 0.0
  %6011 = vmatpush1.msra.mxu0 0.0
  %6012 = vmatprep.subr.mxu0 0.0
  %6013 = vmatpush1.msra.mxu0 0.0
  %6014 = vmatprep.subr.mxu0 0.0
  %6015 = vmatpush1.msra.mxu0 0.0
  %6016 = vmatprep.mubr.f32.mxu0 0.0
  %6017 = vmatmul.mubr.f32.gmra.mrb[0].mxu0 %v5950
  %v6018 = vpop.f32.mrb[0].mxu0
  %v6019 = vadd.f32 %v5947, %v6018
  %v6020 = vpop.f32.mrb[0].mxu0
  %v6021 = vadd.f32 %v5947, %v6020
  %6022 = vdwg.mxu0
  %6023 = vmatprep.subr.mxu0 %v5933
  %6024 = vmatpush1.msra.mxu0 %v5932
  %6025 = vmatprep.subr.mxu0 %v5939
  %6026 = vmatpush1.msra.mxu0 %v5938
  %6027 = vmatprep.subr.mxu0 0.0
  %6028 = vmatpush1.msra.mxu0 0.0
  %6029 = vmatprep.subr.mxu0 0.0
  %6030 = vmatpush1.msra.mxu0 0.0
  %6031 = vmatprep.subr.mxu0 0.0
  %6032 = vmatpush1.msra.mxu0 0.0
  %6033 = vmatprep.subr.mxu0 0.0
  %6034 = vmatpush1.msra.mxu0 0.0
  %6035 = vmatprep.subr.mxu0 0.0
  %6036 = vmatpush1.msra.mxu0 0.0
  %6037 = vmatprep.subr.mxu0 0.0
  %6038 = vmatpush1.msra.mxu0 0.0
  %6039 = vmatprep.subr.mxu0 0.0
  %6040 = vmatpush1.msra.mxu0 0.0
  %6041 = vmatprep.subr.mxu0 0.0
  %6042 = vmatpush1.msra.mxu0 0.0
  %6043 = vmatprep.subr.mxu0 0.0
  %6044 = vmatpush1.msra.mxu0 0.0
  %6045 = vmatprep.subr.mxu0 0.0
  %6046 = vmatpush1.msra.mxu0 0.0
  %6047 = vmatprep.subr.mxu0 0.0
  %6048 = vmatpush1.msra.mxu0 0.0
  %6049 = vmatprep.subr.mxu0 0.0
  %6050 = vmatpush1.msra.mxu0 0.0
  %6051 = vmatprep.subr.mxu0 0.0
  %6052 = vmatpush1.msra.mxu0 0.0
  %6053 = vmatprep.subr.mxu0 0.0
  %6054 = vmatpush1.msra.mxu0 0.0
  %6055 = vmatprep.subr.mxu0 0.0
  %6056 = vmatpush1.msra.mxu0 0.0
  %6057 = vmatprep.subr.mxu0 0.0
  %6058 = vmatpush1.msra.mxu0 0.0
  %6059 = vmatprep.subr.mxu0 0.0
  %6060 = vmatpush1.msra.mxu0 0.0
  %6061 = vmatprep.subr.mxu0 0.0
  %6062 = vmatpush1.msra.mxu0 0.0
  %6063 = vmatprep.subr.mxu0 0.0
  %6064 = vmatpush1.msra.mxu0 0.0
  %6065 = vmatprep.subr.mxu0 0.0
  %6066 = vmatpush1.msra.mxu0 0.0
  %6067 = vmatprep.subr.mxu0 0.0
  %6068 = vmatpush1.msra.mxu0 0.0
  %6069 = vmatprep.subr.mxu0 0.0
  %6070 = vmatpush1.msra.mxu0 0.0
  %6071 = vmatprep.subr.mxu0 0.0
  %6072 = vmatpush1.msra.mxu0 0.0
  %6073 = vmatprep.subr.mxu0 0.0
  %6074 = vmatpush1.msra.mxu0 0.0
  %6075 = vmatprep.subr.mxu0 0.0
  %6076 = vmatpush1.msra.mxu0 0.0
  %6077 = vmatprep.subr.mxu0 0.0
  %6078 = vmatpush1.msra.mxu0 0.0
  %6079 = vmatprep.subr.mxu0 0.0
  %6080 = vmatpush1.msra.mxu0 0.0
  %6081 = vmatprep.subr.mxu0 0.0
  %6082 = vmatpush1.msra.mxu0 0.0
  %6083 = vmatprep.subr.mxu0 0.0
  %6084 = vmatpush1.msra.mxu0 0.0
  %6085 = vmatprep.subr.mxu0 0.0
  %6086 = vmatpush1.msra.mxu0 0.0
  %6087 = vmatprep.mubr.f32.mxu0 0.0
  %6088 = vmatmul.mubr.f32.gmra.mrb[0].mxu0 %v5950
  %v6089 = vpop.f32.mrb[0].mxu0
  %v6090 = vadd.f32 %v5947, %v6089
  %v6091 = vpop.f32.mrb[0].mxu0
  %v6092 = vadd.f32 %v5947, %v6091
  %6093 = vdwg.mxu0
  %6094 = vmatprep.subr.mxu0 %v5935
  %6095 = vmatpush1.msra.mxu0 %v5934
  %6096 = vmatprep.subr.mxu0 %v5941
  %6097 = vmatpush1.msra.mxu0 %v5940
  %6098 = vmatprep.subr.mxu0 0.0
  %6099 = vmatpush1.msra.mxu0 0.0
  %6100 = vmatprep.subr.mxu0 0.0
  %6101 = vmatpush1.msra.mxu0 0.0
  %6102 = vmatprep.subr.mxu0 0.0
  %6103 = vmatpush1.msra.mxu0 0.0
  %6104 = vmatprep.subr.mxu0 0.0
  %6105 = vmatpush1.msra.mxu0 0.0
  %6106 = vmatprep.subr.mxu0 0.0
  %6107 = vmatpush1.msra.mxu0 0.0
  %6108 = vmatprep.subr.mxu0 0.0
  %6109 = vmatpush1.msra.mxu0 0.0
  %6110 = vmatprep.subr.mxu0 0.0
  %6111 = vmatpush1.msra.mxu0 0.0
  %6112 = vmatprep.subr.mxu0 0.0
  %6113 = vmatpush1.msra.mxu0 0.0
  %6114 = vmatprep.subr.mxu0 0.0
  %6115 = vmatpush1.msra.mxu0 0.0
  %6116 = vmatprep.subr.mxu0 0.0
  %6117 = vmatpush1.msra.mxu0 0.0
  %6118 = vmatprep.subr.mxu0 0.0
  %6119 = vmatpush1.msra.mxu0 0.0
  %6120 = vmatprep.subr.mxu0 0.0
  %6121 = vmatpush1.msra.mxu0 0.0
  %6122 = vmatprep.subr.mxu0 0.0
  %6123 = vmatpush1.msra.mxu0 0.0
  %6124 = vmatprep.subr.mxu0 0.0
  %6125 = vmatpush1.msra.mxu0 0.0
  %6126 = vmatprep.subr.mxu0 0.0
  %6127 = vmatpush1.msra.mxu0 0.0
  %6128 = vmatprep.subr.mxu0 0.0
  %6129 = vmatpush1.msra.mxu0 0.0
  %6130 = vmatprep.subr.mxu0 0.0
  %6131 = vmatpush1.msra.mxu0 0.0
  %6132 = vmatprep.subr.mxu0 0.0
  %6133 = vmatpush1.msra.mxu0 0.0
  %6134 = vmatprep.subr.mxu0 0.0
  %6135 = vmatpush1.msra.mxu0 0.0
  %6136 = vmatprep.subr.mxu0 0.0
  %6137 = vmatpush1.msra.mxu0 0.0
  %6138 = vmatprep.subr.mxu0 0.0
  %6139 = vmatpush1.msra.mxu0 0.0
  %6140 = vmatprep.subr.mxu0 0.0
  %6141 = vmatpush1.msra.mxu0 0.0
  %6142 = vmatprep.subr.mxu0 0.0
  %6143 = vmatpush1.msra.mxu0 0.0
  %6144 = vmatprep.subr.mxu0 0.0
  %6145 = vmatpush1.msra.mxu0 0.0
  %6146 = vmatprep.subr.mxu0 0.0
  %6147 = vmatpush1.msra.mxu0 0.0
  %6148 = vmatprep.subr.mxu0 0.0
  %6149 = vmatpush1.msra.mxu0 0.0
  %6150 = vmatprep.subr.mxu0 0.0
  %6151 = vmatpush1.msra.mxu0 0.0
  %6152 = vmatprep.subr.mxu0 0.0
  %6153 = vmatpush1.msra.mxu0 0.0
  %6154 = vmatprep.subr.mxu0 0.0
  %6155 = vmatpush1.msra.mxu0 0.0
  %6156 = vmatprep.subr.mxu0 0.0
  %6157 = vmatpush1.msra.mxu0 0.0
  %6158 = vmatprep.mubr.f32.mxu0 0.0
  %6159 = vmatmul.mubr.f32.gmra.mrb[0].mxu0 %v5950
  %v6160 = vpop.f32.mrb[0].mxu0
  %v6161 = vadd.f32 %v5947, %v6160
  %v6162 = vpop.f32.mrb[0].mxu0
  %v6163 = vadd.f32 %v5947, %v6162
  %6164 = vdwg.mxu0
  %vm6165 = vcmask 1042432
  %v6166 = vsel %vm6165, %v6019, -inf
  %v6167 = vrot.slane %v6166, 4
  %v6168 = vmax.f32 %v6166, %v6167
  %v6169 = vrot.slane %v6168, 2
  %v6170 = vmax.f32 %v6168, %v6169
  %v6171 = vrot.slane %v6170, 1
  %v6172 = vmax.f32 %v6170, %v6171
  %v6173 = vsel %vm6165, %v6021, -inf
  %v6174 = vrot.slane %v6173, 4
  %v6175 = vmax.f32 %v6173, %v6174
  %v6176 = vrot.slane %v6175, 2
  %v6177 = vmax.f32 %v6175, %v6176
  %v6178 = vrot.slane %v6177, 1
  %v6179 = vmax.f32 %v6177, %v6178
  %v6180 = vsel %vm6165, %v6090, -inf
  %v6181 = vrot.slane %v6180, 4
  %v6182 = vmax.f32 %v6180, %v6181
  %v6183 = vrot.slane %v6182, 2
  %v6184 = vmax.f32 %v6182, %v6183
  %v6185 = vrot.slane %v6184, 1
  %v6186 = vmax.f32 %v6184, %v6185
  %v6187 = vsel %vm6165, %v6092, -inf
  %v6188 = vrot.slane %v6187, 4
  %v6189 = vmax.f32 %v6187, %v6188
  %v6190 = vrot.slane %v6189, 2
  %v6191 = vmax.f32 %v6189, %v6190
  %v6192 = vrot.slane %v6191, 1
  %v6193 = vmax.f32 %v6191, %v6192
  %v6194 = vsel %vm6165, %v6161, -inf
  %v6195 = vrot.slane %v6194, 4
  %v6196 = vmax.f32 %v6194, %v6195
  %v6197 = vrot.slane %v6196, 2
  %v6198 = vmax.f32 %v6196, %v6197
  %v6199 = vrot.slane %v6198, 1
  %v6200 = vmax.f32 %v6198, %v6199
  %v6201 = vsel %vm6165, %v6163, -inf
  %v6202 = vrot.slane %v6201, 4
  %v6203 = vmax.f32 %v6201, %v6202
  %v6204 = vrot.slane %v6203, 2
  %v6205 = vmax.f32 %v6203, %v6204
  %v6206 = vrot.slane %v6205, 1
  %v6207 = vmax.f32 %v6205, %v6206
  %v6208 = vsub.f32 %v6019, %v6172
  %v6209 = vsub.f32 %v6021, %v6179
  %v6210 = vsub.f32 %v6090, %v6186
  %v6211 = vsub.f32 %v6092, %v6193
  %v6212 = vsub.f32 %v6161, %v6200
  %v6213 = vsub.f32 %v6163, %v6207
  %v6214 = vmul.f32 %v6208, 1.442695
  %v6215 = vpow.pop %v6214
  %v6216 = vmul.f32 %v6209, 1.442695
  %v6217 = vpow.pop %v6216
  %v6218 = vmul.f32 %v6210, 1.442695
  %v6219 = vpow.pop %v6218
  %v6220 = vmul.f32 %v6211, 1.442695
  %v6221 = vpow.pop %v6220
  %v6222 = vmul.f32 %v6212, 1.442695
  %v6223 = vpow.pop %v6222
  %v6224 = vmul.f32 %v6213, 1.442695
  %v6225 = vpow.pop %v6224
  %v6226 = vsel %vm6165, %v6215, 0.0
  %v6227 = vrot.slane %v6226, 4
  %v6228 = vadd.f32 %v6226, %v6227
  %v6229 = vrot.slane %v6228, 2
  %v6230 = vadd.f32 %v6228, %v6229
  %v6231 = vrot.slane %v6230, 1
  %v6232 = vadd.f32 %v6230, %v6231
  %v6233 = vsel %vm6165, %v6217, 0.0
  %v6234 = vrot.slane %v6233, 4
  %v6235 = vadd.f32 %v6233, %v6234
  %v6236 = vrot.slane %v6235, 2
  %v6237 = vadd.f32 %v6235, %v6236
  %v6238 = vrot.slane %v6237, 1
  %v6239 = vadd.f32 %v6237, %v6238
  %v6240 = vsel %vm6165, %v6219, 0.0
  %v6241 = vrot.slane %v6240, 4
  %v6242 = vadd.f32 %v6240, %v6241
  %v6243 = vrot.slane %v6242, 2
  %v6244 = vadd.f32 %v6242, %v6243
  %v6245 = vrot.slane %v6244, 1
  %v6246 = vadd.f32 %v6244, %v6245
  %v6247 = vsel %vm6165, %v6221, 0.0
  %v6248 = vrot.slane %v6247, 4
  %v6249 = vadd.f32 %v6247, %v6248
  %v6250 = vrot.slane %v6249, 2
  %v6251 = vadd.f32 %v6249, %v6250
  %v6252 = vrot.slane %v6251, 1
  %v6253 = vadd.f32 %v6251, %v6252
  %v6254 = vsel %vm6165, %v6223, 0.0
  %v6255 = vrot.slane %v6254, 4
  %v6256 = vadd.f32 %v6254, %v6255
  %v6257 = vrot.slane %v6256, 2
  %v6258 = vadd.f32 %v6256, %v6257
  %v6259 = vrot.slane %v6258, 1
  %v6260 = vadd.f32 %v6258, %v6259
  %v6261 = vsel %vm6165, %v6225, 0.0
  %v6262 = vrot.slane %v6261, 4
  %v6263 = vadd.f32 %v6261, %v6262
  %v6264 = vrot.slane %v6263, 2
  %v6265 = vadd.f32 %v6263, %v6264
  %v6266 = vrot.slane %v6265, 1
  %v6267 = vadd.f32 %v6265, %v6266
  %v6268 = vrcp.pop %v6232
  %v6269 = vrcp.pop %v6239
  %v6270 = vrcp.pop %v6246
  %v6271 = vrcp.pop %v6253
  %v6272 = vrcp.pop %v6260
  %v6273 = vrcp.pop %v6267
  %v6274 = vmul.f32 %v6215, %v6268
  %v6275 = vmul.f32 %v6217, %v6269
  %v6276 = vmul.f32 %v6219, %v6270
  %v6277 = vmul.f32 %v6221, %v6271
  %v6278 = vmul.f32 %v6223, %v6272
  %v6279 = vmul.f32 %v6225, %v6273
  %v6286 = vcombine.low %v6274, %v6275
  %v6287 = vcombine.low %v6276, %v6277
  %v6288 = vcombine.low %v6278, %v6279
  %6292 = vst [vmem:[%s9] sm:$0x77] %v6286
  %6293 = vst [vmem:[%s9 + $0x8] sm:$0x77] %v6287
  %6294 = vst [vmem:[%s9 + $0x10] sm:$0x77] %v6288
  // Predicated region
  $region38: #{fcn_pallas.1} parent=0 // pred_check
    _
  $region39: #{fcn_pallas.1} parent=0 // pred_check_branch
    %6296 = sbr.rel (0) target = $region41
  $region40: #{fcn_pallas.1} parent=0 // pred_region
    _
  $region41: #{fcn_pallas.1} parent=0 // pred_fallthru
    _
  // Predicated region
  $region42: #{fcn_pallas.1} parent=0 // pred_check
    _
  $region43: #{fcn_pallas.1} parent=0 // pred_check_branch
    %6298 = sbr.rel (0) target = $region45
  $region44: #{fcn_pallas.1} parent=0 // pred_region
    _
  $region45: #{fcn_pallas.1} parent=0 // pred_fallthru
    _

</llo_original>
